<compile_context>
chip_gen: v6e
topology: v6e:2x2x1
jax: 0.10.0
libtpu: 0.0.40
codegen_flags: <defaults>
</compile_context>

<pallas_src>
import jax
import jax.numpy as jnp
from jax.experimental import pallas as pl
from jax.experimental.pallas import tpu as pltpu


# ---------------------------------------------------------------------------
# Kernel 1: conv1 + relu + maxpool1 + conv2 + relu + maxpool2   (one image / grid step)
#
#   p_ref  : (1, 4, 196, 32)  bf16  conv1 corner patches (25 taps zero-padded to 32)
#   w1_ref : (32, 128)        bf16  conv1 weight, (k*k*Cin=25 -> 32, Cout=6 -> 128)
#   b1_ref : (1, 128)         f32
#   w2_ref : (25, 128, 128)   bf16  conv2 per-tap weights W2[i*5+j, cin(6->128), cout(16->128)]
#   b2_ref : (1, 128)         f32
#   out_ref: (1, 32, 128)     bf16  pooled2 5x5x16 map, row = p*5+q, lanes = channel (16->128)
#   a1_s   : (256, 128) f32 scratch  pooled1 14x14 map (row = h*14+w), rows 196..255 zero
#   c2_s   : (196, 128) f32 scratch  conv2 output on the 14-wide row indexing
# ---------------------------------------------------------------------------
def _features_kernel(p_ref, w1_ref, b1_ref, w2_ref, b2_ref, out_ref, a1_s, c2_s):
    # ---- conv1 + relu + 2x2 maxpool (pool = max over the 4 pre-gathered corners) ----
    w1 = w1_ref[...]
    m = None
    for d in range(4):                      # 4 pooling corners
        z = jnp.dot(p_ref[0, d], w1, preferred_element_type=jnp.float32)  # (196, 128)
        m = z if m is None else jnp.maximum(m, z)
    a1 = jnp.maximum(m + b1_ref[...], 0.0)  # (196, 128) f32, row = h2*14 + w2

    a1_s[...] = jnp.zeros((256, 128), jnp.float32)
    a1_s[0:196, :] = a1

    # ---- conv2 as 25 shifted matmuls (in-VMEM im2col) + bias + relu ----
    # output row r = ho*14 + wo (valid for ho,wo < 10); input row = r + i*14 + j.
    acc = jnp.zeros((196, 128), jnp.float32)
    for i in range(5):
        for j in range(5):
            lhs = a1_s[pl.ds(i * 14 + j, 196), :].astype(jnp.bfloat16)     # (196, 128)
            acc = acc + jnp.dot(lhs, w2_ref[i * 5 + j],
                                preferred_element_type=jnp.float32)
    c2_s[...] = jnp.maximum(acc + b2_ref[...], 0.0)

    # ---- 2x2 maxpool over the valid 10x10 region -> 5x5x16, lane-dense store ----
    out_ref[...] = jnp.zeros((1, 32, 128), jnp.bfloat16)
    for p in range(5):
        for q in range(5):
            base = 28 * p + 2 * q                       # row (2p, 2q)
            top = c2_s[pl.ds(base, 2), :]               # rows (2p, 2q), (2p, 2q+1)
            bot = c2_s[pl.ds(base + 14, 2), :]          # rows (2p+1, 2q), (2p+1, 2q+1)
            v = jnp.max(jnp.maximum(top, bot), axis=0)  # (128,)
            out_ref[0, p * 5 + q, :] = v.astype(jnp.bfloat16)


# ---------------------------------------------------------------------------
# Kernel 2: conv3(as FC over the flattened 5x5x(16->128) map) + relu + fc1 + relu
#           + fc2 + log_softmax          (TILE_B rows / grid step)
# ---------------------------------------------------------------------------
def _tail_kernel(x_ref, w3_ref, b3_ref, w4_ref, b4_ref, w5_ref, b5_ref, o_ref):
    h = jnp.dot(x_ref[...], w3_ref[...], preferred_element_type=jnp.float32) + b3_ref[...]
    h = jnp.maximum(h, 0.0).astype(jnp.bfloat16)
    h = jnp.dot(h, w4_ref[...], preferred_element_type=jnp.float32) + b4_ref[...]
    h = jnp.maximum(h, 0.0).astype(jnp.bfloat16)
    z = jnp.dot(h, w5_ref[...], preferred_element_type=jnp.float32) + b5_ref[...]

    # mask the 118 padded logit lanes before the softmax reduction
    col = jax.lax.broadcasted_iota(jnp.int32, z.shape, 1)
    z = jnp.where(col < 10, z, -1e30)
    m = jnp.max(z, axis=-1, keepdims=True)
    e = jnp.exp(z - m)
    s = jnp.sum(e, axis=-1, keepdims=True)
    o_ref[...] = (z - m) - jnp.log(s)


# ---------------------------------------------------------------------------
# Wrapper glue
# ---------------------------------------------------------------------------
def _round_up(a, b):
    return (a + b - 1) // b * b


def _conv1_corner_patches(x_nchw):
    """(N,1,28,28) -> (N, 4, 196, 32) bf16 corner patch matrices.

    corner d = dh*2+dw, row = h2*14+w2, tap k = i*5+j holds
    x_pad[2*h2+dh+i, 2*w2+dw+j]  (pad=2, so x_pad is 32x32).
    """
    n = x_nchw.shape[0]
    x = x_nchw[:, 0, :, :].astype(jnp.float32)                     # (N, 28, 28)
    xp = jnp.pad(x, ((0, 0), (2, 2), (2, 2)))                      # (N, 32, 32)
    cols = [xp[:, i:i + 28, j:j + 28] for i in range(5) for j in range(5)]
    pat = jnp.stack(cols, axis=-1)                                 # (N, 28, 28, 25)
    pat = pat.reshape(n, 14, 2, 14, 2, 25)                         # (N, h2, dh, w2, dw, k)
    pat = pat.transpose(0, 2, 4, 1, 3, 5).reshape(n, 4, 196, 25)   # (N, d, h2*14+w2, k)
    pat = jnp.pad(pat, ((0, 0), (0, 0), (0, 0), (0, 7)))           # k: 25 -> 32
    return pat.astype(jnp.bfloat16)


def net_forward_pallas(x_nchw, kp):
    n = x_nchw.shape[0]
    patches = _conv1_corner_patches(x_nchw)

    # ---- fused conv stack: one grid step per image, sharded across TensorCores ----
    feat = pl.pallas_call(
        _features_kernel,
        out_shape=jax.ShapeDtypeStruct((n, 32, 128), jnp.bfloat16),
        grid=(n,),
        in_specs=[
            pl.BlockSpec((1, 4, 196, 32), lambda i: (i, 0, 0, 0)),
            pl.BlockSpec((32, 128), lambda i: (0, 0)),
            pl.BlockSpec((1, 128), lambda i: (0, 0)),
            pl.BlockSpec((25, 128, 128), lambda i: (0, 0, 0)),
            pl.BlockSpec((1, 128), lambda i: (0, 0)),
        ],
        out_specs=pl.BlockSpec((1, 32, 128), lambda i: (i, 0, 0)),
        scratch_shapes=[pltpu.VMEM((256, 128), jnp.float32),
                        pltpu.VMEM((196, 128), jnp.float32)],
        compiler_params=pltpu.CompilerParams(
            dimension_semantics=("parallel",),
            vmem_limit_bytes=32 * 1024 * 1024),
    )(patches, kp["w1"], kp["b1"], kp["w2"], kp["b2"])

    # ---- fused tail: conv3 + fc1 + fc2 + log_softmax, gridded over batch rows ----
    x2 = feat.reshape(n, 32 * 128)                     # free reshape (trailing dims)
    tile_b = 128 if n >= 128 else _round_up(n, 8)
    n_pad = _round_up(n, tile_b)
    if n_pad != n:
        x2 = jnp.pad(x2, ((0, n_pad - n), (0, 0)))

    logits = pl.pallas_call(
        _tail_kernel,
        out_shape=jax.ShapeDtypeStruct((n_pad, 128), jnp.float32),
        grid=(n_pad // tile_b,),
        in_specs=[
            pl.BlockSpec((tile_b, 4096), lambda i: (i, 0)),
            pl.BlockSpec((4096, 128), lambda i: (0, 0)),
            pl.BlockSpec((1, 128), lambda i: (0, 0)),
            pl.BlockSpec((128, 128), lambda i: (0, 0)),
            pl.BlockSpec((1, 128), lambda i: (0, 0)),
            pl.BlockSpec((128, 128), lambda i: (0, 0)),
            pl.BlockSpec((1, 128), lambda i: (0, 0)),
        ],
        out_specs=pl.BlockSpec((tile_b, 128), lambda i: (i, 0)),
        compiler_params=pltpu.CompilerParams(
            dimension_semantics=("parallel",),
            vmem_limit_bytes=32 * 1024 * 1024),
    )(x2, kp["w3"], kp["b3"], kp["w4"], kp["b4"], kp["w5"], kp["b5"])

    return logits[:n, :10]


# ---------------------------------------------------------------------------
# Parameters: logical (torch-equivalent) layouts + packing into padded bf16 layouts
# ---------------------------------------------------------------------------
def init_logical_params(key):
    ks = jax.random.split(key, 10)

    def u(k, shape, fan_in):
        bound = 1.0 / (fan_in ** 0.5)
        return jax.random.uniform(k, shape, jnp.float32, -bound, bound)

    def rnd(a):  # round weights through bf16 so kernel & reference use identical values
        return a.astype(jnp.bfloat16).astype(jnp.float32)

    return {
        "w1": rnd(u(ks[0], (5, 5, 1, 6), 25)),    "b1": u(ks[1], (6,), 25),
        "w2": rnd(u(ks[2], (5, 5, 6, 16), 150)),  "b2": u(ks[3], (16,), 150),
        "w3": rnd(u(ks[4], (5, 5, 16, 120), 400)), "b3": u(ks[5], (120,), 400),
        "w4": rnd(u(ks[6], (120, 84), 120)),      "b4": u(ks[7], (84,), 120),
        "w5": rnd(u(ks[8], (84, 10), 84)),        "b5": u(ks[9], (10,), 84),
    }


def pack_params(p):
    f32, bf16 = jnp.float32, jnp.bfloat16
    w1p = jnp.zeros((32, 128), f32).at[:25, :6].set(p["w1"].reshape(25, 6)).astype(bf16)
    b1p = jnp.zeros((1, 128), f32).at[0, :6].set(p["b1"])
    w2p = (jnp.zeros((25, 128, 128), f32)
           .at[:, :6, :16].set(p["w2"].reshape(25, 6, 16)).astype(bf16))
    b2p = jnp.zeros((1, 128), f32).at[0, :16].set(p["b2"])
    w3t = jnp.zeros((32, 128, 128), f32).at[:25, :16, :120].set(p["w3"].reshape(25, 16, 120))
    w3p = w3t.reshape(4096, 128).astype(bf16)
    b3p = jnp.zeros((1, 128), f32).at[0, :120].set(p["b3"])
    w4p = jnp.zeros((128, 128), f32).at[:120, :84].set(p["w4"]).astype(bf16)
    b4p = jnp.zeros((1, 128), f32).at[0, :84].set(p["b4"])
    w5p = jnp.zeros((128, 128), f32).at[:84, :10].set(p["w5"]).astype(bf16)
    b5p = jnp.zeros((1, 128), f32).at[0, :10].set(p["b5"])
    return {"w1": w1p, "b1": b1p, "w2": w2p, "b2": b2p, "w3": w3p, "b3": b3p,
            "w4": w4p, "b4": b4p, "w5": w5p, "b5": b5p}


# ---------------------------------------------------------------------------
# Pure-JAX reference (f32) for a correctness check
# ---------------------------------------------------------------------------
def reference_forward(x_nchw, p):
    dn = ("NHWC", "HWIO", "NHWC")
    x = jnp.transpose(x_nchw, (0, 2, 3, 1)).astype(jnp.float32)
    y = jax.lax.conv_general_dilated(x, p["w1"], (1, 1), ((2, 2), (2, 2)),
                                     dimension_numbers=dn) + p["b1"]
    y = jnp.maximum(y, 0.0)
    y = jax.lax.reduce_window(y, -jnp.inf, jax.lax.max, (1, 2, 2, 1), (1, 2, 2, 1), "VALID")
    y = jax.lax.conv_general_dilated(y, p["w2"], (1, 1), "VALID",
                                     dimension_numbers=dn) + p["b2"]
    y = jnp.maximum(y, 0.0)
    y = jax.lax.reduce_window(y, -jnp.inf, jax.lax.max, (1, 2, 2, 1), (1, 2, 2, 1), "VALID")
    y = jax.lax.conv_general_dilated(y, p["w3"], (1, 1), "VALID",
                                     dimension_numbers=dn) + p["b3"]
    y = jnp.maximum(y, 0.0)
    y = y.reshape(y.shape[0], 120)
    y = jnp.maximum(y @ p["w4"] + p["b4"], 0.0)
    y = y @ p["w5"] + p["b5"]
    return jax.nn.log_softmax(y, axis=-1)


if __name__ == "__main__":
    key = jax.random.PRNGKey(0)
    k_x, k_p = jax.random.split(key)

    # LeNet architecture requires 28x28 single-channel input; batch = 2.
    x = jax.random.normal(k_x, (2, 1, 28, 28), jnp.float32)
    x = x.astype(jnp.bfloat16).astype(jnp.float32)   # pre-round: in-kernel bf16 cast is exact

    logical = init_logical_params(k_p)
    kp = pack_params(logical)

    fwd = jax.jit(net_forward_pallas)
    out = jax.block_until_ready(fwd(x, kp))

    assert out.shape == (2, 10)
    ref = jax.block_until_ready(reference_forward(x, logical))
    err = float(jnp.max(jnp.abs(out - ref)))
    assert err < 1e-1, f"mismatch vs reference: {err}"
    assert bool(jnp.allclose(jnp.exp(out).sum(axis=1), 1.0, atol=1e-3))
    print("KERNEL_OK")
</pallas_src>

<mosaic_0001>
module attributes {stable_mosaic.version = 11 : i64} {
  func.func @_features_kernel(%arg0: i32, %arg1: memref<1x4x196x32xbf16, #tpu.memory_space<vmem>>, %arg2: memref<32x128xbf16, #tpu.memory_space<vmem>>, %arg3: memref<1x128xf32, #tpu.memory_space<vmem>>, %arg4: memref<25x128x128xbf16, #tpu.memory_space<vmem>>, %arg5: memref<1x128xf32, #tpu.memory_space<vmem>>, %arg6: memref<1x32x128xbf16, #tpu.memory_space<vmem>>, %arg7: memref<256x128xf32, #tpu.memory_space<vmem>>, %arg8: memref<196x128xf32, #tpu.memory_space<vmem>>) attributes {dimension_semantics = [#tpu.dimension_semantics<parallel>], iteration_bounds = array<i64: 2>, scalar_prefetch = 0 : i64, scratch_operands = 2 : i64, tpu.core_type = #tpu.core_type<tc>, window_params = [{transform_indices = @transform_0, window_bounds = array<i64: 1, 4, 196, 32>}, {pipeline_mode = #tpu.pipeline_mode<synchronous>, transform_indices = @transform_1, window_bounds = array<i64: 32, 128>}, {pipeline_mode = #tpu.pipeline_mode<synchronous>, transform_indices = @transform_2, window_bounds = array<i64: 1, 128>}, {pipeline_mode = #tpu.pipeline_mode<synchronous>, transform_indices = @transform_3, window_bounds = array<i64: 25, 128, 128>}, {pipeline_mode = #tpu.pipeline_mode<synchronous>, transform_indices = @transform_4, window_bounds = array<i64: 1, 128>}, {transform_indices = @transform_5, window_bounds = array<i64: 1, 32, 128>}]} {
    %c0 = arith.constant 0 : index
    %c0_0 = arith.constant 0 : index
    %0 = vector.load %arg2[%c0, %c0_0] : memref<32x128xbf16, #tpu.memory_space<vmem>>, vector<32x128xbf16>
    %c0_1 = arith.constant 0 : index
    %c0_2 = arith.constant 0 : index
    %c0_3 = arith.constant 0 : index
    %c0_4 = arith.constant 0 : index
    %1 = vector.load %arg1[%c0_1, %c0_2, %c0_3, %c0_4] : memref<1x4x196x32xbf16, #tpu.memory_space<vmem>>, vector<1x1x196x32xbf16>
    %2 = vector.shape_cast %1 : vector<1x1x196x32xbf16> to vector<196x32xbf16>
    %cst = arith.constant dense<0.000000e+00> : vector<196x128xf32>
    %3 = tpu.matmul %2, %0, %cst {dimension_numbers = #tpu.dot_dimension_numbers<[1], [0], [0], [1], [0, 0, 1, 1], [], []>} : vector<196x32xbf16>, vector<32x128xbf16>, vector<196x128xf32> -> vector<196x128xf32>
    %c0_5 = arith.constant 0 : index
    %c1 = arith.constant 1 : index
    %c0_6 = arith.constant 0 : index
    %c0_7 = arith.constant 0 : index
    %4 = vector.load %arg1[%c0_5, %c1, %c0_6, %c0_7] : memref<1x4x196x32xbf16, #tpu.memory_space<vmem>>, vector<1x1x196x32xbf16>
    %5 = vector.shape_cast %4 : vector<1x1x196x32xbf16> to vector<196x32xbf16>
    %cst_8 = arith.constant dense<0.000000e+00> : vector<196x128xf32>
    %6 = tpu.matmul %5, %0, %cst_8 {dimension_numbers = #tpu.dot_dimension_numbers<[1], [0], [0], [1], [0, 0, 1, 1], [], []>} : vector<196x32xbf16>, vector<32x128xbf16>, vector<196x128xf32> -> vector<196x128xf32>
    %7 = arith.maximumf %3, %6 : vector<196x128xf32>
    %c0_9 = arith.constant 0 : index
    %c2 = arith.constant 2 : index
    %c0_10 = arith.constant 0 : index
    %c0_11 = arith.constant 0 : index
    %8 = vector.load %arg1[%c0_9, %c2, %c0_10, %c0_11] : memref<1x4x196x32xbf16, #tpu.memory_space<vmem>>, vector<1x1x196x32xbf16>
    %9 = vector.shape_cast %8 : vector<1x1x196x32xbf16> to vector<196x32xbf16>
    %cst_12 = arith.constant dense<0.000000e+00> : vector<196x128xf32>
    %10 = tpu.matmul %9, %0, %cst_12 {dimension_numbers = #tpu.dot_dimension_numbers<[1], [0], [0], [1], [0, 0, 1, 1], [], []>} : vector<196x32xbf16>, vector<32x128xbf16>, vector<196x128xf32> -> vector<196x128xf32>
    %11 = arith.maximumf %7, %10 : vector<196x128xf32>
    %c0_13 = arith.constant 0 : index
    %c3 = arith.constant 3 : index
    %c0_14 = arith.constant 0 : index
    %c0_15 = arith.constant 0 : index
    %12 = vector.load %arg1[%c0_13, %c3, %c0_14, %c0_15] : memref<1x4x196x32xbf16, #tpu.memory_space<vmem>>, vector<1x1x196x32xbf16>
    %13 = vector.shape_cast %12 : vector<1x1x196x32xbf16> to vector<196x32xbf16>
    %cst_16 = arith.constant dense<0.000000e+00> : vector<196x128xf32>
    %14 = tpu.matmul %13, %0, %cst_16 {dimension_numbers = #tpu.dot_dimension_numbers<[1], [0], [0], [1], [0, 0, 1, 1], [], []>} : vector<196x32xbf16>, vector<32x128xbf16>, vector<196x128xf32> -> vector<196x128xf32>
    %15 = arith.maximumf %11, %14 : vector<196x128xf32>
    %c0_17 = arith.constant 0 : index
    %c0_18 = arith.constant 0 : index
    %16 = vector.load %arg3[%c0_17, %c0_18] : memref<1x128xf32, #tpu.memory_space<vmem>>, vector<1x128xf32>
    %17 = vector.broadcast %16 : vector<1x128xf32> to vector<196x128xf32>
    %18 = arith.addf %15, %17 : vector<196x128xf32>
    %cst_19 = arith.constant 0.000000e+00 : f32
    %19 = vector.broadcast %cst_19 : f32 to vector<196x128xf32>
    %20 = arith.maximumf %18, %19 : vector<196x128xf32>
    %cst_20 = arith.constant 0.000000e+00 : f32
    %21 = vector.broadcast %cst_20 : f32 to vector<256x128xf32>
    %c0_21 = arith.constant 0 : index
    %c0_22 = arith.constant 0 : index
    %22 = vector.load %arg7[%c0_21, %c0_22] : memref<256x128xf32, #tpu.memory_space<vmem>>, vector<256x128xf32>
    tpu.vector_store %arg7[%c0_21, %c0_22], %21 {strides = array<i32>} : memref<256x128xf32, #tpu.memory_space<vmem>>, vector<256x128xf32>,
    %c0_23 = arith.constant 0 : index
    %c0_24 = arith.constant 0 : index
    %23 = vector.load %arg7[%c0_23, %c0_24] : memref<256x128xf32, #tpu.memory_space<vmem>>, vector<196x128xf32>
    tpu.vector_store %arg7[%c0_23, %c0_24], %20 {strides = array<i32>} : memref<256x128xf32, #tpu.memory_space<vmem>>, vector<196x128xf32>,
    %cst_25 = arith.constant 0.000000e+00 : f32
    %24 = vector.broadcast %cst_25 : f32 to vector<196x128xf32>
    %c0_26 = arith.constant 0 : index
    %c0_27 = arith.constant 0 : index
    %25 = vector.load %arg7[%c0_26, %c0_27] : memref<256x128xf32, #tpu.memory_space<vmem>>, vector<196x128xf32>
    %26 = arith.truncf %25 : vector<196x128xf32> to vector<196x128xbf16>
    %c0_28 = arith.constant 0 : index
    %c0_29 = arith.constant 0 : index
    %c0_30 = arith.constant 0 : index
    %27 = vector.load %arg4[%c0_28, %c0_29, %c0_30] : memref<25x128x128xbf16, #tpu.memory_space<vmem>>, vector<1x128x128xbf16>
    %28 = vector.shape_cast %27 : vector<1x128x128xbf16> to vector<128x128xbf16>
    %cst_31 = arith.constant dense<0.000000e+00> : vector<196x128xf32>
    %29 = tpu.matmul %26, %28, %cst_31 {dimension_numbers = #tpu.dot_dimension_numbers<[1], [0], [0], [1], [0, 0, 1, 1], [], []>} : vector<196x128xbf16>, vector<128x128xbf16>, vector<196x128xf32> -> vector<196x128xf32>
    %30 = arith.addf %24, %29 : vector<196x128xf32>
    %c1_32 = arith.constant 1 : index
    %c0_33 = arith.constant 0 : index
    %31 = vector.load %arg7[%c1_32, %c0_33] : memref<256x128xf32, #tpu.memory_space<vmem>>, vector<196x128xf32>
    %32 = arith.truncf %31 : vector<196x128xf32> to vector<196x128xbf16>
    %c1_34 = arith.constant 1 : index
    %c0_35 = arith.constant 0 : index
    %c0_36 = arith.constant 0 : index
    %33 = vector.load %arg4[%c1_34, %c0_35, %c0_36] : memref<25x128x128xbf16, #tpu.memory_space<vmem>>, vector<1x128x128xbf16>
    %34 = vector.shape_cast %33 : vector<1x128x128xbf16> to vector<128x128xbf16>
    %cst_37 = arith.constant dense<0.000000e+00> : vector<196x128xf32>
    %35 = tpu.matmul %32, %34, %cst_37 {dimension_numbers = #tpu.dot_dimension_numbers<[1], [0], [0], [1], [0, 0, 1, 1], [], []>} : vector<196x128xbf16>, vector<128x128xbf16>, vector<196x128xf32> -> vector<196x128xf32>
    %36 = arith.addf %30, %35 : vector<196x128xf32>
    %c2_38 = arith.constant 2 : index
    %c0_39 = arith.constant 0 : index
    %37 = vector.load %arg7[%c2_38, %c0_39] : memref<256x128xf32, #tpu.memory_space<vmem>>, vector<196x128xf32>
    %38 = arith.truncf %37 : vector<196x128xf32> to vector<196x128xbf16>
    %c2_40 = arith.constant 2 : index
    %c0_41 = arith.constant 0 : index
    %c0_42 = arith.constant 0 : index
    %39 = vector.load %arg4[%c2_40, %c0_41, %c0_42] : memref<25x128x128xbf16, #tpu.memory_space<vmem>>, vector<1x128x128xbf16>
    %40 = vector.shape_cast %39 : vector<1x128x128xbf16> to vector<128x128xbf16>
    %cst_43 = arith.constant dense<0.000000e+00> : vector<196x128xf32>
    %41 = tpu.matmul %38, %40, %cst_43 {dimension_numbers = #tpu.dot_dimension_numbers<[1], [0], [0], [1], [0, 0, 1, 1], [], []>} : vector<196x128xbf16>, vector<128x128xbf16>, vector<196x128xf32> -> vector<196x128xf32>
    %42 = arith.addf %36, %41 : vector<196x128xf32>
    %c3_44 = arith.constant 3 : index
    %c0_45 = arith.constant 0 : index
    %43 = vector.load %arg7[%c3_44, %c0_45] : memref<256x128xf32, #tpu.memory_space<vmem>>, vector<196x128xf32>
    %44 = arith.truncf %43 : vector<196x128xf32> to vector<196x128xbf16>
    %c3_46 = arith.constant 3 : index
    %c0_47 = arith.constant 0 : index
    %c0_48 = arith.constant 0 : index
    %45 = vector.load %arg4[%c3_46, %c0_47, %c0_48] : memref<25x128x128xbf16, #tpu.memory_space<vmem>>, vector<1x128x128xbf16>
    %46 = vector.shape_cast %45 : vector<1x128x128xbf16> to vector<128x128xbf16>
    %cst_49 = arith.constant dense<0.000000e+00> : vector<196x128xf32>
    %47 = tpu.matmul %44, %46, %cst_49 {dimension_numbers = #tpu.dot_dimension_numbers<[1], [0], [0], [1], [0, 0, 1, 1], [], []>} : vector<196x128xbf16>, vector<128x128xbf16>, vector<196x128xf32> -> vector<196x128xf32>
    %48 = arith.addf %42, %47 : vector<196x128xf32>
    %c4 = arith.constant 4 : index
    %c0_50 = arith.constant 0 : index
    %49 = vector.load %arg7[%c4, %c0_50] : memref<256x128xf32, #tpu.memory_space<vmem>>, vector<196x128xf32>
    %50 = arith.truncf %49 : vector<196x128xf32> to vector<196x128xbf16>
    %c4_51 = arith.constant 4 : index
    %c0_52 = arith.constant 0 : index
    %c0_53 = arith.constant 0 : index
    %51 = vector.load %arg4[%c4_51, %c0_52, %c0_53] : memref<25x128x128xbf16, #tpu.memory_space<vmem>>, vector<1x128x128xbf16>
    %52 = vector.shape_cast %51 : vector<1x128x128xbf16> to vector<128x128xbf16>
    %cst_54 = arith.constant dense<0.000000e+00> : vector<196x128xf32>
    %53 = tpu.matmul %50, %52, %cst_54 {dimension_numbers = #tpu.dot_dimension_numbers<[1], [0], [0], [1], [0, 0, 1, 1], [], []>} : vector<196x128xbf16>, vector<128x128xbf16>, vector<196x128xf32> -> vector<196x128xf32>
    %54 = arith.addf %48, %53 : vector<196x128xf32>
    %c14 = arith.constant 14 : index
    %c0_55 = arith.constant 0 : index
    %55 = vector.load %arg7[%c14, %c0_55] : memref<256x128xf32, #tpu.memory_space<vmem>>, vector<196x128xf32>
    %56 = arith.truncf %55 : vector<196x128xf32> to vector<196x128xbf16>
    %c5 = arith.constant 5 : index
    %c0_56 = arith.constant 0 : index
    %c0_57 = arith.constant 0 : index
    %57 = vector.load %arg4[%c5, %c0_56, %c0_57] : memref<25x128x128xbf16, #tpu.memory_space<vmem>>, vector<1x128x128xbf16>
    %58 = vector.shape_cast %57 : vector<1x128x128xbf16> to vector<128x128xbf16>
    %cst_58 = arith.constant dense<0.000000e+00> : vector<196x128xf32>
    %59 = tpu.matmul %56, %58, %cst_58 {dimension_numbers = #tpu.dot_dimension_numbers<[1], [0], [0], [1], [0, 0, 1, 1], [], []>} : vector<196x128xbf16>, vector<128x128xbf16>, vector<196x128xf32> -> vector<196x128xf32>
    %60 = arith.addf %54, %59 : vector<196x128xf32>
    %c15 = arith.constant 15 : index
    %c0_59 = arith.constant 0 : index
    %61 = vector.load %arg7[%c15, %c0_59] : memref<256x128xf32, #tpu.memory_space<vmem>>, vector<196x128xf32>
    %62 = arith.truncf %61 : vector<196x128xf32> to vector<196x128xbf16>
    %c6 = arith.constant 6 : index
    %c0_60 = arith.constant 0 : index
    %c0_61 = arith.constant 0 : index
    %63 = vector.load %arg4[%c6, %c0_60, %c0_61] : memref<25x128x128xbf16, #tpu.memory_space<vmem>>, vector<1x128x128xbf16>
    %64 = vector.shape_cast %63 : vector<1x128x128xbf16> to vector<128x128xbf16>
    %cst_62 = arith.constant dense<0.000000e+00> : vector<196x128xf32>
    %65 = tpu.matmul %62, %64, %cst_62 {dimension_numbers = #tpu.dot_dimension_numbers<[1], [0], [0], [1], [0, 0, 1, 1], [], []>} : vector<196x128xbf16>, vector<128x128xbf16>, vector<196x128xf32> -> vector<196x128xf32>
    %66 = arith.addf %60, %65 : vector<196x128xf32>
    %c16 = arith.constant 16 : index
    %c0_63 = arith.constant 0 : index
    %67 = vector.load %arg7[%c16, %c0_63] : memref<256x128xf32, #tpu.memory_space<vmem>>, vector<196x128xf32>
    %68 = arith.truncf %67 : vector<196x128xf32> to vector<196x128xbf16>
    %c7 = arith.constant 7 : index
    %c0_64 = arith.constant 0 : index
    %c0_65 = arith.constant 0 : index
    %69 = vector.load %arg4[%c7, %c0_64, %c0_65] : memref<25x128x128xbf16, #tpu.memory_space<vmem>>, vector<1x128x128xbf16>
    %70 = vector.shape_cast %69 : vector<1x128x128xbf16> to vector<128x128xbf16>
    %cst_66 = arith.constant dense<0.000000e+00> : vector<196x128xf32>
    %71 = tpu.matmul %68, %70, %cst_66 {dimension_numbers = #tpu.dot_dimension_numbers<[1], [0], [0], [1], [0, 0, 1, 1], [], []>} : vector<196x128xbf16>, vector<128x128xbf16>, vector<196x128xf32> -> vector<196x128xf32>
    %72 = arith.addf %66, %71 : vector<196x128xf32>
    %c17 = arith.constant 17 : index
    %c0_67 = arith.constant 0 : index
    %73 = vector.load %arg7[%c17, %c0_67] : memref<256x128xf32, #tpu.memory_space<vmem>>, vector<196x128xf32>
    %74 = arith.truncf %73 : vector<196x128xf32> to vector<196x128xbf16>
    %c8 = arith.constant 8 : index
    %c0_68 = arith.constant 0 : index
    %c0_69 = arith.constant 0 : index
    %75 = vector.load %arg4[%c8, %c0_68, %c0_69] : memref<25x128x128xbf16, #tpu.memory_space<vmem>>, vector<1x128x128xbf16>
    %76 = vector.shape_cast %75 : vector<1x128x128xbf16> to vector<128x128xbf16>
    %cst_70 = arith.constant dense<0.000000e+00> : vector<196x128xf32>
    %77 = tpu.matmul %74, %76, %cst_70 {dimension_numbers = #tpu.dot_dimension_numbers<[1], [0], [0], [1], [0, 0, 1, 1], [], []>} : vector<196x128xbf16>, vector<128x128xbf16>, vector<196x128xf32> -> vector<196x128xf32>
    %78 = arith.addf %72, %77 : vector<196x128xf32>
    %c18 = arith.constant 18 : index
    %c0_71 = arith.constant 0 : index
    %79 = vector.load %arg7[%c18, %c0_71] : memref<256x128xf32, #tpu.memory_space<vmem>>, vector<196x128xf32>
    %80 = arith.truncf %79 : vector<196x128xf32> to vector<196x128xbf16>
    %c9 = arith.constant 9 : index
    %c0_72 = arith.constant 0 : index
    %c0_73 = arith.constant 0 : index
    %81 = vector.load %arg4[%c9, %c0_72, %c0_73] : memref<25x128x128xbf16, #tpu.memory_space<vmem>>, vector<1x128x128xbf16>
    %82 = vector.shape_cast %81 : vector<1x128x128xbf16> to vector<128x128xbf16>
    %cst_74 = arith.constant dense<0.000000e+00> : vector<196x128xf32>
    %83 = tpu.matmul %80, %82, %cst_74 {dimension_numbers = #tpu.dot_dimension_numbers<[1], [0], [0], [1], [0, 0, 1, 1], [], []>} : vector<196x128xbf16>, vector<128x128xbf16>, vector<196x128xf32> -> vector<196x128xf32>
    %84 = arith.addf %78, %83 : vector<196x128xf32>
    %c28 = arith.constant 28 : index
    %c0_75 = arith.constant 0 : index
    %85 = vector.load %arg7[%c28, %c0_75] : memref<256x128xf32, #tpu.memory_space<vmem>>, vector<196x128xf32>
    %86 = arith.truncf %85 : vector<196x128xf32> to vector<196x128xbf16>
    %c10 = arith.constant 10 : index
    %c0_76 = arith.constant 0 : index
    %c0_77 = arith.constant 0 : index
    %87 = vector.load %arg4[%c10, %c0_76, %c0_77] : memref<25x128x128xbf16, #tpu.memory_space<vmem>>, vector<1x128x128xbf16>
    %88 = vector.shape_cast %87 : vector<1x128x128xbf16> to vector<128x128xbf16>
    %cst_78 = arith.constant dense<0.000000e+00> : vector<196x128xf32>
    %89 = tpu.matmul %86, %88, %cst_78 {dimension_numbers = #tpu.dot_dimension_numbers<[1], [0], [0], [1], [0, 0, 1, 1], [], []>} : vector<196x128xbf16>, vector<128x128xbf16>, vector<196x128xf32> -> vector<196x128xf32>
    %90 = arith.addf %84, %89 : vector<196x128xf32>
    %c29 = arith.constant 29 : index
    %c0_79 = arith.constant 0 : index
    %91 = vector.load %arg7[%c29, %c0_79] : memref<256x128xf32, #tpu.memory_space<vmem>>, vector<196x128xf32>
    %92 = arith.truncf %91 : vector<196x128xf32> to vector<196x128xbf16>
    %c11 = arith.constant 11 : index
    %c0_80 = arith.constant 0 : index
    %c0_81 = arith.constant 0 : index
    %93 = vector.load %arg4[%c11, %c0_80, %c0_81] : memref<25x128x128xbf16, #tpu.memory_space<vmem>>, vector<1x128x128xbf16>
    %94 = vector.shape_cast %93 : vector<1x128x128xbf16> to vector<128x128xbf16>
    %cst_82 = arith.constant dense<0.000000e+00> : vector<196x128xf32>
    %95 = tpu.matmul %92, %94, %cst_82 {dimension_numbers = #tpu.dot_dimension_numbers<[1], [0], [0], [1], [0, 0, 1, 1], [], []>} : vector<196x128xbf16>, vector<128x128xbf16>, vector<196x128xf32> -> vector<196x128xf32>
    %96 = arith.addf %90, %95 : vector<196x128xf32>
    %c30 = arith.constant 30 : index
    %c0_83 = arith.constant 0 : index
    %97 = vector.load %arg7[%c30, %c0_83] : memref<256x128xf32, #tpu.memory_space<vmem>>, vector<196x128xf32>
    %98 = arith.truncf %97 : vector<196x128xf32> to vector<196x128xbf16>
    %c12 = arith.constant 12 : index
    %c0_84 = arith.constant 0 : index
    %c0_85 = arith.constant 0 : index
    %99 = vector.load %arg4[%c12, %c0_84, %c0_85] : memref<25x128x128xbf16, #tpu.memory_space<vmem>>, vector<1x128x128xbf16>
    %100 = vector.shape_cast %99 : vector<1x128x128xbf16> to vector<128x128xbf16>
    %cst_86 = arith.constant dense<0.000000e+00> : vector<196x128xf32>
    %101 = tpu.matmul %98, %100, %cst_86 {dimension_numbers = #tpu.dot_dimension_numbers<[1], [0], [0], [1], [0, 0, 1, 1], [], []>} : vector<196x128xbf16>, vector<128x128xbf16>, vector<196x128xf32> -> vector<196x128xf32>
    %102 = arith.addf %96, %101 : vector<196x128xf32>
    %c31 = arith.constant 31 : index
    %c0_87 = arith.constant 0 : index
    %103 = vector.load %arg7[%c31, %c0_87] : memref<256x128xf32, #tpu.memory_space<vmem>>, vector<196x128xf32>
    %104 = arith.truncf %103 : vector<196x128xf32> to vector<196x128xbf16>
    %c13 = arith.constant 13 : index
    %c0_88 = arith.constant 0 : index
    %c0_89 = arith.constant 0 : index
    %105 = vector.load %arg4[%c13, %c0_88, %c0_89] : memref<25x128x128xbf16, #tpu.memory_space<vmem>>, vector<1x128x128xbf16>
    %106 = vector.shape_cast %105 : vector<1x128x128xbf16> to vector<128x128xbf16>
    %cst_90 = arith.constant dense<0.000000e+00> : vector<196x128xf32>
    %107 = tpu.matmul %104, %106, %cst_90 {dimension_numbers = #tpu.dot_dimension_numbers<[1], [0], [0], [1], [0, 0, 1, 1], [], []>} : vector<196x128xbf16>, vector<128x128xbf16>, vector<196x128xf32> -> vector<196x128xf32>
    %108 = arith.addf %102, %107 : vector<196x128xf32>
    %c32 = arith.constant 32 : index
    %c0_91 = arith.constant 0 : index
    %109 = vector.load %arg7[%c32, %c0_91] : memref<256x128xf32, #tpu.memory_space<vmem>>, vector<196x128xf32>
    %110 = arith.truncf %109 : vector<196x128xf32> to vector<196x128xbf16>
    %c14_92 = arith.constant 14 : index
    %c0_93 = arith.constant 0 : index
    %c0_94 = arith.constant 0 : index
    %111 = vector.load %arg4[%c14_92, %c0_93, %c0_94] : memref<25x128x128xbf16, #tpu.memory_space<vmem>>, vector<1x128x128xbf16>
    %112 = vector.shape_cast %111 : vector<1x128x128xbf16> to vector<128x128xbf16>
    %cst_95 = arith.constant dense<0.000000e+00> : vector<196x128xf32>
    %113 = tpu.matmul %110, %112, %cst_95 {dimension_numbers = #tpu.dot_dimension_numbers<[1], [0], [0], [1], [0, 0, 1, 1], [], []>} : vector<196x128xbf16>, vector<128x128xbf16>, vector<196x128xf32> -> vector<196x128xf32>
    %114 = arith.addf %108, %113 : vector<196x128xf32>
    %c42 = arith.constant 42 : index
    %c0_96 = arith.constant 0 : index
    %115 = vector.load %arg7[%c42, %c0_96] : memref<256x128xf32, #tpu.memory_space<vmem>>, vector<196x128xf32>
    %116 = arith.truncf %115 : vector<196x128xf32> to vector<196x128xbf16>
    %c15_97 = arith.constant 15 : index
    %c0_98 = arith.constant 0 : index
    %c0_99 = arith.constant 0 : index
    %117 = vector.load %arg4[%c15_97, %c0_98, %c0_99] : memref<25x128x128xbf16, #tpu.memory_space<vmem>>, vector<1x128x128xbf16>
    %118 = vector.shape_cast %117 : vector<1x128x128xbf16> to vector<128x128xbf16>
    %cst_100 = arith.constant dense<0.000000e+00> : vector<196x128xf32>
    %119 = tpu.matmul %116, %118, %cst_100 {dimension_numbers = #tpu.dot_dimension_numbers<[1], [0], [0], [1], [0, 0, 1, 1], [], []>} : vector<196x128xbf16>, vector<128x128xbf16>, vector<196x128xf32> -> vector<196x128xf32>
    %120 = arith.addf %114, %119 : vector<196x128xf32>
    %c43 = arith.constant 43 : index
    %c0_101 = arith.constant 0 : index
    %121 = vector.load %arg7[%c43, %c0_101] : memref<256x128xf32, #tpu.memory_space<vmem>>, vector<196x128xf32>
    %122 = arith.truncf %121 : vector<196x128xf32> to vector<196x128xbf16>
    %c16_102 = arith.constant 16 : index
    %c0_103 = arith.constant 0 : index
    %c0_104 = arith.constant 0 : index
    %123 = vector.load %arg4[%c16_102, %c0_103, %c0_104] : memref<25x128x128xbf16, #tpu.memory_space<vmem>>, vector<1x128x128xbf16>
    %124 = vector.shape_cast %123 : vector<1x128x128xbf16> to vector<128x128xbf16>
    %cst_105 = arith.constant dense<0.000000e+00> : vector<196x128xf32>
    %125 = tpu.matmul %122, %124, %cst_105 {dimension_numbers = #tpu.dot_dimension_numbers<[1], [0], [0], [1], [0, 0, 1, 1], [], []>} : vector<196x128xbf16>, vector<128x128xbf16>, vector<196x128xf32> -> vector<196x128xf32>
    %126 = arith.addf %120, %125 : vector<196x128xf32>
    %c44 = arith.constant 44 : index
    %c0_106 = arith.constant 0 : index
    %127 = vector.load %arg7[%c44, %c0_106] : memref<256x128xf32, #tpu.memory_space<vmem>>, vector<196x128xf32>
    %128 = arith.truncf %127 : vector<196x128xf32> to vector<196x128xbf16>
    %c17_107 = arith.constant 17 : index
    %c0_108 = arith.constant 0 : index
    %c0_109 = arith.constant 0 : index
    %129 = vector.load %arg4[%c17_107, %c0_108, %c0_109] : memref<25x128x128xbf16, #tpu.memory_space<vmem>>, vector<1x128x128xbf16>
    %130 = vector.shape_cast %129 : vector<1x128x128xbf16> to vector<128x128xbf16>
    %cst_110 = arith.constant dense<0.000000e+00> : vector<196x128xf32>
    %131 = tpu.matmul %128, %130, %cst_110 {dimension_numbers = #tpu.dot_dimension_numbers<[1], [0], [0], [1], [0, 0, 1, 1], [], []>} : vector<196x128xbf16>, vector<128x128xbf16>, vector<196x128xf32> -> vector<196x128xf32>
    %132 = arith.addf %126, %131 : vector<196x128xf32>
    %c45 = arith.constant 45 : index
    %c0_111 = arith.constant 0 : index
    %133 = vector.load %arg7[%c45, %c0_111] : memref<256x128xf32, #tpu.memory_space<vmem>>, vector<196x128xf32>
    %134 = arith.truncf %133 : vector<196x128xf32> to vector<196x128xbf16>
    %c18_112 = arith.constant 18 : index
    %c0_113 = arith.constant 0 : index
    %c0_114 = arith.constant 0 : index
    %135 = vector.load %arg4[%c18_112, %c0_113, %c0_114] : memref<25x128x128xbf16, #tpu.memory_space<vmem>>, vector<1x128x128xbf16>
    %136 = vector.shape_cast %135 : vector<1x128x128xbf16> to vector<128x128xbf16>
    %cst_115 = arith.constant dense<0.000000e+00> : vector<196x128xf32>
    %137 = tpu.matmul %134, %136, %cst_115 {dimension_numbers = #tpu.dot_dimension_numbers<[1], [0], [0], [1], [0, 0, 1, 1], [], []>} : vector<196x128xbf16>, vector<128x128xbf16>, vector<196x128xf32> -> vector<196x128xf32>
    %138 = arith.addf %132, %137 : vector<196x128xf32>
    %c46 = arith.constant 46 : index
    %c0_116 = arith.constant 0 : index
    %139 = vector.load %arg7[%c46, %c0_116] : memref<256x128xf32, #tpu.memory_space<vmem>>, vector<196x128xf32>
    %140 = arith.truncf %139 : vector<196x128xf32> to vector<196x128xbf16>
    %c19 = arith.constant 19 : index
    %c0_117 = arith.constant 0 : index
    %c0_118 = arith.constant 0 : index
    %141 = vector.load %arg4[%c19, %c0_117, %c0_118] : memref<25x128x128xbf16, #tpu.memory_space<vmem>>, vector<1x128x128xbf16>
    %142 = vector.shape_cast %141 : vector<1x128x128xbf16> to vector<128x128xbf16>
    %cst_119 = arith.constant dense<0.000000e+00> : vector<196x128xf32>
    %143 = tpu.matmul %140, %142, %cst_119 {dimension_numbers = #tpu.dot_dimension_numbers<[1], [0], [0], [1], [0, 0, 1, 1], [], []>} : vector<196x128xbf16>, vector<128x128xbf16>, vector<196x128xf32> -> vector<196x128xf32>
    %144 = arith.addf %138, %143 : vector<196x128xf32>
    %c56 = arith.constant 56 : index
    %c0_120 = arith.constant 0 : index
    %145 = vector.load %arg7[%c56, %c0_120] : memref<256x128xf32, #tpu.memory_space<vmem>>, vector<196x128xf32>
    %146 = arith.truncf %145 : vector<196x128xf32> to vector<196x128xbf16>
    %c20 = arith.constant 20 : index
    %c0_121 = arith.constant 0 : index
    %c0_122 = arith.constant 0 : index
    %147 = vector.load %arg4[%c20, %c0_121, %c0_122] : memref<25x128x128xbf16, #tpu.memory_space<vmem>>, vector<1x128x128xbf16>
    %148 = vector.shape_cast %147 : vector<1x128x128xbf16> to vector<128x128xbf16>
    %cst_123 = arith.constant dense<0.000000e+00> : vector<196x128xf32>
    %149 = tpu.matmul %146, %148, %cst_123 {dimension_numbers = #tpu.dot_dimension_numbers<[1], [0], [0], [1], [0, 0, 1, 1], [], []>} : vector<196x128xbf16>, vector<128x128xbf16>, vector<196x128xf32> -> vector<196x128xf32>
    %150 = arith.addf %144, %149 : vector<196x128xf32>
    %c57 = arith.constant 57 : index
    %c0_124 = arith.constant 0 : index
    %151 = vector.load %arg7[%c57, %c0_124] : memref<256x128xf32, #tpu.memory_space<vmem>>, vector<196x128xf32>
    %152 = arith.truncf %151 : vector<196x128xf32> to vector<196x128xbf16>
    %c21 = arith.constant 21 : index
    %c0_125 = arith.constant 0 : index
    %c0_126 = arith.constant 0 : index
    %153 = vector.load %arg4[%c21, %c0_125, %c0_126] : memref<25x128x128xbf16, #tpu.memory_space<vmem>>, vector<1x128x128xbf16>
    %154 = vector.shape_cast %153 : vector<1x128x128xbf16> to vector<128x128xbf16>
    %cst_127 = arith.constant dense<0.000000e+00> : vector<196x128xf32>
    %155 = tpu.matmul %152, %154, %cst_127 {dimension_numbers = #tpu.dot_dimension_numbers<[1], [0], [0], [1], [0, 0, 1, 1], [], []>} : vector<196x128xbf16>, vector<128x128xbf16>, vector<196x128xf32> -> vector<196x128xf32>
    %156 = arith.addf %150, %155 : vector<196x128xf32>
    %c58 = arith.constant 58 : index
    %c0_128 = arith.constant 0 : index
    %157 = vector.load %arg7[%c58, %c0_128] : memref<256x128xf32, #tpu.memory_space<vmem>>, vector<196x128xf32>
    %158 = arith.truncf %157 : vector<196x128xf32> to vector<196x128xbf16>
    %c22 = arith.constant 22 : index
    %c0_129 = arith.constant 0 : index
    %c0_130 = arith.constant 0 : index
    %159 = vector.load %arg4[%c22, %c0_129, %c0_130] : memref<25x128x128xbf16, #tpu.memory_space<vmem>>, vector<1x128x128xbf16>
    %160 = vector.shape_cast %159 : vector<1x128x128xbf16> to vector<128x128xbf16>
    %cst_131 = arith.constant dense<0.000000e+00> : vector<196x128xf32>
    %161 = tpu.matmul %158, %160, %cst_131 {dimension_numbers = #tpu.dot_dimension_numbers<[1], [0], [0], [1], [0, 0, 1, 1], [], []>} : vector<196x128xbf16>, vector<128x128xbf16>, vector<196x128xf32> -> vector<196x128xf32>
    %162 = arith.addf %156, %161 : vector<196x128xf32>
    %c59 = arith.constant 59 : index
    %c0_132 = arith.constant 0 : index
    %163 = vector.load %arg7[%c59, %c0_132] : memref<256x128xf32, #tpu.memory_space<vmem>>, vector<196x128xf32>
    %164 = arith.truncf %163 : vector<196x128xf32> to vector<196x128xbf16>
    %c23 = arith.constant 23 : index
    %c0_133 = arith.constant 0 : index
    %c0_134 = arith.constant 0 : index
    %165 = vector.load %arg4[%c23, %c0_133, %c0_134] : memref<25x128x128xbf16, #tpu.memory_space<vmem>>, vector<1x128x128xbf16>
    %166 = vector.shape_cast %165 : vector<1x128x128xbf16> to vector<128x128xbf16>
    %cst_135 = arith.constant dense<0.000000e+00> : vector<196x128xf32>
    %167 = tpu.matmul %164, %166, %cst_135 {dimension_numbers = #tpu.dot_dimension_numbers<[1], [0], [0], [1], [0, 0, 1, 1], [], []>} : vector<196x128xbf16>, vector<128x128xbf16>, vector<196x128xf32> -> vector<196x128xf32>
    %168 = arith.addf %162, %167 : vector<196x128xf32>
    %c60 = arith.constant 60 : index
    %c0_136 = arith.constant 0 : index
    %169 = vector.load %arg7[%c60, %c0_136] : memref<256x128xf32, #tpu.memory_space<vmem>>, vector<196x128xf32>
    %170 = arith.truncf %169 : vector<196x128xf32> to vector<196x128xbf16>
    %c24 = arith.constant 24 : index
    %c0_137 = arith.constant 0 : index
    %c0_138 = arith.constant 0 : index
    %171 = vector.load %arg4[%c24, %c0_137, %c0_138] : memref<25x128x128xbf16, #tpu.memory_space<vmem>>, vector<1x128x128xbf16>
    %172 = vector.shape_cast %171 : vector<1x128x128xbf16> to vector<128x128xbf16>
    %cst_139 = arith.constant dense<0.000000e+00> : vector<196x128xf32>
    %173 = tpu.matmul %170, %172, %cst_139 {dimension_numbers = #tpu.dot_dimension_numbers<[1], [0], [0], [1], [0, 0, 1, 1], [], []>} : vector<196x128xbf16>, vector<128x128xbf16>, vector<196x128xf32> -> vector<196x128xf32>
    %174 = arith.addf %168, %173 : vector<196x128xf32>
    %c0_140 = arith.constant 0 : index
    %c0_141 = arith.constant 0 : index
    %175 = vector.load %arg5[%c0_140, %c0_141] : memref<1x128xf32, #tpu.memory_space<vmem>>, vector<1x128xf32>
    %176 = vector.broadcast %175 : vector<1x128xf32> to vector<196x128xf32>
    %177 = arith.addf %174, %176 : vector<196x128xf32>
    %cst_142 = arith.constant 0.000000e+00 : f32
    %178 = vector.broadcast %cst_142 : f32 to vector<196x128xf32>
    %179 = arith.maximumf %177, %178 : vector<196x128xf32>
    %c0_143 = arith.constant 0 : index
    %c0_144 = arith.constant 0 : index
    %180 = vector.load %arg8[%c0_143, %c0_144] : memref<196x128xf32, #tpu.memory_space<vmem>>, vector<196x128xf32>
    tpu.vector_store %arg8[%c0_143, %c0_144], %179 {strides = array<i32>} : memref<196x128xf32, #tpu.memory_space<vmem>>, vector<196x128xf32>,
    %cst_145 = arith.constant 0.000000e+00 : bf16
    %181 = vector.broadcast %cst_145 : bf16 to vector<1x32x128xbf16>
    %c0_146 = arith.constant 0 : index
    %c0_147 = arith.constant 0 : index
    %c0_148 = arith.constant 0 : index
    %182 = vector.load %arg6[%c0_146, %c0_147, %c0_148] : memref<1x32x128xbf16, #tpu.memory_space<vmem>>, vector<1x32x128xbf16>
    tpu.vector_store %arg6[%c0_146, %c0_147, %c0_148], %181 {strides = array<i32>} : memref<1x32x128xbf16, #tpu.memory_space<vmem>>, vector<1x32x128xbf16>,
    %c0_149 = arith.constant 0 : index
    %c0_150 = arith.constant 0 : index
    %183 = vector.load %arg8[%c0_149, %c0_150] : memref<196x128xf32, #tpu.memory_space<vmem>>, vector<2x128xf32>
    %c14_151 = arith.constant 14 : index
    %c0_152 = arith.constant 0 : index
    %184 = vector.load %arg8[%c14_151, %c0_152] : memref<196x128xf32, #tpu.memory_space<vmem>>, vector<2x128xf32>
    %185 = arith.maximumf %183, %184 : vector<2x128xf32>
    %cst_153 = arith.constant dense<0xFF800000> : vector<128xf32>
    %186 = vector.multi_reduction <maximumf>, %185, %cst_153 [0] : vector<2x128xf32> to vector<128xf32>
    %187 = arith.truncf %186 : vector<128xf32> to vector<128xbf16>
    %c0_154 = arith.constant 0 : index
    %c0_155 = arith.constant 0 : index
    %c0_156 = arith.constant 0 : index
    %188 = vector.load %arg6[%c0_154, %c0_155, %c0_156] : memref<1x32x128xbf16, #tpu.memory_space<vmem>>, vector<1x1x128xbf16>
    %189 = vector.shape_cast %188 : vector<1x1x128xbf16> to vector<128xbf16>
    %190 = vector.shape_cast %187 : vector<128xbf16> to vector<1x1x128xbf16>
    tpu.vector_store %arg6[%c0_154, %c0_155, %c0_156], %190 {strides = array<i32>} : memref<1x32x128xbf16, #tpu.memory_space<vmem>>, vector<1x1x128xbf16>,
    %c2_157 = arith.constant 2 : index
    %c0_158 = arith.constant 0 : index
    %191 = vector.load %arg8[%c2_157, %c0_158] : memref<196x128xf32, #tpu.memory_space<vmem>>, vector<2x128xf32>
    %c16_159 = arith.constant 16 : index
    %c0_160 = arith.constant 0 : index
    %192 = vector.load %arg8[%c16_159, %c0_160] : memref<196x128xf32, #tpu.memory_space<vmem>>, vector<2x128xf32>
    %193 = arith.maximumf %191, %192 : vector<2x128xf32>
    %cst_161 = arith.constant dense<0xFF800000> : vector<128xf32>
    %194 = vector.multi_reduction <maximumf>, %193, %cst_161 [0] : vector<2x128xf32> to vector<128xf32>
    %195 = arith.truncf %194 : vector<128xf32> to vector<128xbf16>
    %c0_162 = arith.constant 0 : index
    %c1_163 = arith.constant 1 : index
    %c0_164 = arith.constant 0 : index
    %196 = vector.load %arg6[%c0_162, %c1_163, %c0_164] : memref<1x32x128xbf16, #tpu.memory_space<vmem>>, vector<1x1x128xbf16>
    %197 = vector.shape_cast %196 : vector<1x1x128xbf16> to vector<128xbf16>
    %198 = vector.shape_cast %195 : vector<128xbf16> to vector<1x1x128xbf16>
    tpu.vector_store %arg6[%c0_162, %c1_163, %c0_164], %198 {strides = array<i32>} : memref<1x32x128xbf16, #tpu.memory_space<vmem>>, vector<1x1x128xbf16>,
    %c4_165 = arith.constant 4 : index
    %c0_166 = arith.constant 0 : index
    %199 = vector.load %arg8[%c4_165, %c0_166] : memref<196x128xf32, #tpu.memory_space<vmem>>, vector<2x128xf32>
    %c18_167 = arith.constant 18 : index
    %c0_168 = arith.constant 0 : index
    %200 = vector.load %arg8[%c18_167, %c0_168] : memref<196x128xf32, #tpu.memory_space<vmem>>, vector<2x128xf32>
    %201 = arith.maximumf %199, %200 : vector<2x128xf32>
    %cst_169 = arith.constant dense<0xFF800000> : vector<128xf32>
    %202 = vector.multi_reduction <maximumf>, %201, %cst_169 [0] : vector<2x128xf32> to vector<128xf32>
    %203 = arith.truncf %202 : vector<128xf32> to vector<128xbf16>
    %c0_170 = arith.constant 0 : index
    %c2_171 = arith.constant 2 : index
    %c0_172 = arith.constant 0 : index
    %204 = vector.load %arg6[%c0_170, %c2_171, %c0_172] : memref<1x32x128xbf16, #tpu.memory_space<vmem>>, vector<1x1x128xbf16>
    %205 = vector.shape_cast %204 : vector<1x1x128xbf16> to vector<128xbf16>
    %206 = vector.shape_cast %203 : vector<128xbf16> to vector<1x1x128xbf16>
    tpu.vector_store %arg6[%c0_170, %c2_171, %c0_172], %206 {strides = array<i32>} : memref<1x32x128xbf16, #tpu.memory_space<vmem>>, vector<1x1x128xbf16>,
    %c6_173 = arith.constant 6 : index
    %c0_174 = arith.constant 0 : index
    %207 = vector.load %arg8[%c6_173, %c0_174] : memref<196x128xf32, #tpu.memory_space<vmem>>, vector<2x128xf32>
    %c20_175 = arith.constant 20 : index
    %c0_176 = arith.constant 0 : index
    %208 = vector.load %arg8[%c20_175, %c0_176] : memref<196x128xf32, #tpu.memory_space<vmem>>, vector<2x128xf32>
    %209 = arith.maximumf %207, %208 : vector<2x128xf32>
    %cst_177 = arith.constant dense<0xFF800000> : vector<128xf32>
    %210 = vector.multi_reduction <maximumf>, %209, %cst_177 [0] : vector<2x128xf32> to vector<128xf32>
    %211 = arith.truncf %210 : vector<128xf32> to vector<128xbf16>
    %c0_178 = arith.constant 0 : index
    %c3_179 = arith.constant 3 : index
    %c0_180 = arith.constant 0 : index
    %212 = vector.load %arg6[%c0_178, %c3_179, %c0_180] : memref<1x32x128xbf16, #tpu.memory_space<vmem>>, vector<1x1x128xbf16>
    %213 = vector.shape_cast %212 : vector<1x1x128xbf16> to vector<128xbf16>
    %214 = vector.shape_cast %211 : vector<128xbf16> to vector<1x1x128xbf16>
    tpu.vector_store %arg6[%c0_178, %c3_179, %c0_180], %214 {strides = array<i32>} : memref<1x32x128xbf16, #tpu.memory_space<vmem>>, vector<1x1x128xbf16>,
    %c8_181 = arith.constant 8 : index
    %c0_182 = arith.constant 0 : index
    %215 = vector.load %arg8[%c8_181, %c0_182] : memref<196x128xf32, #tpu.memory_space<vmem>>, vector<2x128xf32>
    %c22_183 = arith.constant 22 : index
    %c0_184 = arith.constant 0 : index
    %216 = vector.load %arg8[%c22_183, %c0_184] : memref<196x128xf32, #tpu.memory_space<vmem>>, vector<2x128xf32>
    %217 = arith.maximumf %215, %216 : vector<2x128xf32>
    %cst_185 = arith.constant dense<0xFF800000> : vector<128xf32>
    %218 = vector.multi_reduction <maximumf>, %217, %cst_185 [0] : vector<2x128xf32> to vector<128xf32>
    %219 = arith.truncf %218 : vector<128xf32> to vector<128xbf16>
    %c0_186 = arith.constant 0 : index
    %c4_187 = arith.constant 4 : index
    %c0_188 = arith.constant 0 : index
    %220 = vector.load %arg6[%c0_186, %c4_187, %c0_188] : memref<1x32x128xbf16, #tpu.memory_space<vmem>>, vector<1x1x128xbf16>
    %221 = vector.shape_cast %220 : vector<1x1x128xbf16> to vector<128xbf16>
    %222 = vector.shape_cast %219 : vector<128xbf16> to vector<1x1x128xbf16>
    tpu.vector_store %arg6[%c0_186, %c4_187, %c0_188], %222 {strides = array<i32>} : memref<1x32x128xbf16, #tpu.memory_space<vmem>>, vector<1x1x128xbf16>,
    %c28_189 = arith.constant 28 : index
    %c0_190 = arith.constant 0 : index
    %223 = vector.load %arg8[%c28_189, %c0_190] : memref<196x128xf32, #tpu.memory_space<vmem>>, vector<2x128xf32>
    %c42_191 = arith.constant 42 : index
    %c0_192 = arith.constant 0 : index
    %224 = vector.load %arg8[%c42_191, %c0_192] : memref<196x128xf32, #tpu.memory_space<vmem>>, vector<2x128xf32>
    %225 = arith.maximumf %223, %224 : vector<2x128xf32>
    %cst_193 = arith.constant dense<0xFF800000> : vector<128xf32>
    %226 = vector.multi_reduction <maximumf>, %225, %cst_193 [0] : vector<2x128xf32> to vector<128xf32>
    %227 = arith.truncf %226 : vector<128xf32> to vector<128xbf16>
    %c0_194 = arith.constant 0 : index
    %c5_195 = arith.constant 5 : index
    %c0_196 = arith.constant 0 : index
    %228 = vector.load %arg6[%c0_194, %c5_195, %c0_196] : memref<1x32x128xbf16, #tpu.memory_space<vmem>>, vector<1x1x128xbf16>
    %229 = vector.shape_cast %228 : vector<1x1x128xbf16> to vector<128xbf16>
    %230 = vector.shape_cast %227 : vector<128xbf16> to vector<1x1x128xbf16>
    tpu.vector_store %arg6[%c0_194, %c5_195, %c0_196], %230 {strides = array<i32>} : memref<1x32x128xbf16, #tpu.memory_space<vmem>>, vector<1x1x128xbf16>,
    %c30_197 = arith.constant 30 : index
    %c0_198 = arith.constant 0 : index
    %231 = vector.load %arg8[%c30_197, %c0_198] : memref<196x128xf32, #tpu.memory_space<vmem>>, vector<2x128xf32>
    %c44_199 = arith.constant 44 : index
    %c0_200 = arith.constant 0 : index
    %232 = vector.load %arg8[%c44_199, %c0_200] : memref<196x128xf32, #tpu.memory_space<vmem>>, vector<2x128xf32>
    %233 = arith.maximumf %231, %232 : vector<2x128xf32>
    %cst_201 = arith.constant dense<0xFF800000> : vector<128xf32>
    %234 = vector.multi_reduction <maximumf>, %233, %cst_201 [0] : vector<2x128xf32> to vector<128xf32>
    %235 = arith.truncf %234 : vector<128xf32> to vector<128xbf16>
    %c0_202 = arith.constant 0 : index
    %c6_203 = arith.constant 6 : index
    %c0_204 = arith.constant 0 : index
    %236 = vector.load %arg6[%c0_202, %c6_203, %c0_204] : memref<1x32x128xbf16, #tpu.memory_space<vmem>>, vector<1x1x128xbf16>
    %237 = vector.shape_cast %236 : vector<1x1x128xbf16> to vector<128xbf16>
    %238 = vector.shape_cast %235 : vector<128xbf16> to vector<1x1x128xbf16>
    tpu.vector_store %arg6[%c0_202, %c6_203, %c0_204], %238 {strides = array<i32>} : memref<1x32x128xbf16, #tpu.memory_space<vmem>>, vector<1x1x128xbf16>,
    %c32_205 = arith.constant 32 : index
    %c0_206 = arith.constant 0 : index
    %239 = vector.load %arg8[%c32_205, %c0_206] : memref<196x128xf32, #tpu.memory_space<vmem>>, vector<2x128xf32>
    %c46_207 = arith.constant 46 : index
    %c0_208 = arith.constant 0 : index
    %240 = vector.load %arg8[%c46_207, %c0_208] : memref<196x128xf32, #tpu.memory_space<vmem>>, vector<2x128xf32>
    %241 = arith.maximumf %239, %240 : vector<2x128xf32>
    %cst_209 = arith.constant dense<0xFF800000> : vector<128xf32>
    %242 = vector.multi_reduction <maximumf>, %241, %cst_209 [0] : vector<2x128xf32> to vector<128xf32>
    %243 = arith.truncf %242 : vector<128xf32> to vector<128xbf16>
    %c0_210 = arith.constant 0 : index
    %c7_211 = arith.constant 7 : index
    %c0_212 = arith.constant 0 : index
    %244 = vector.load %arg6[%c0_210, %c7_211, %c0_212] : memref<1x32x128xbf16, #tpu.memory_space<vmem>>, vector<1x1x128xbf16>
    %245 = vector.shape_cast %244 : vector<1x1x128xbf16> to vector<128xbf16>
    %246 = vector.shape_cast %243 : vector<128xbf16> to vector<1x1x128xbf16>
    tpu.vector_store %arg6[%c0_210, %c7_211, %c0_212], %246 {strides = array<i32>} : memref<1x32x128xbf16, #tpu.memory_space<vmem>>, vector<1x1x128xbf16>,
    %c34 = arith.constant 34 : index
    %c0_213 = arith.constant 0 : index
    %247 = vector.load %arg8[%c34, %c0_213] : memref<196x128xf32, #tpu.memory_space<vmem>>, vector<2x128xf32>
    %c48 = arith.constant 48 : index
    %c0_214 = arith.constant 0 : index
    %248 = vector.load %arg8[%c48, %c0_214] : memref<196x128xf32, #tpu.memory_space<vmem>>, vector<2x128xf32>
    %249 = arith.maximumf %247, %248 : vector<2x128xf32>
    %cst_215 = arith.constant dense<0xFF800000> : vector<128xf32>
    %250 = vector.multi_reduction <maximumf>, %249, %cst_215 [0] : vector<2x128xf32> to vector<128xf32>
    %251 = arith.truncf %250 : vector<128xf32> to vector<128xbf16>
    %c0_216 = arith.constant 0 : index
    %c8_217 = arith.constant 8 : index
    %c0_218 = arith.constant 0 : index
    %252 = vector.load %arg6[%c0_216, %c8_217, %c0_218] : memref<1x32x128xbf16, #tpu.memory_space<vmem>>, vector<1x1x128xbf16>
    %253 = vector.shape_cast %252 : vector<1x1x128xbf16> to vector<128xbf16>
    %254 = vector.shape_cast %251 : vector<128xbf16> to vector<1x1x128xbf16>
    tpu.vector_store %arg6[%c0_216, %c8_217, %c0_218], %254 {strides = array<i32>} : memref<1x32x128xbf16, #tpu.memory_space<vmem>>, vector<1x1x128xbf16>,
    %c36 = arith.constant 36 : index
    %c0_219 = arith.constant 0 : index
    %255 = vector.load %arg8[%c36, %c0_219] : memref<196x128xf32, #tpu.memory_space<vmem>>, vector<2x128xf32>
    %c50 = arith.constant 50 : index
    %c0_220 = arith.constant 0 : index
    %256 = vector.load %arg8[%c50, %c0_220] : memref<196x128xf32, #tpu.memory_space<vmem>>, vector<2x128xf32>
    %257 = arith.maximumf %255, %256 : vector<2x128xf32>
    %cst_221 = arith.constant dense<0xFF800000> : vector<128xf32>
    %258 = vector.multi_reduction <maximumf>, %257, %cst_221 [0] : vector<2x128xf32> to vector<128xf32>
    %259 = arith.truncf %258 : vector<128xf32> to vector<128xbf16>
    %c0_222 = arith.constant 0 : index
    %c9_223 = arith.constant 9 : index
    %c0_224 = arith.constant 0 : index
    %260 = vector.load %arg6[%c0_222, %c9_223, %c0_224] : memref<1x32x128xbf16, #tpu.memory_space<vmem>>, vector<1x1x128xbf16>
    %261 = vector.shape_cast %260 : vector<1x1x128xbf16> to vector<128xbf16>
    %262 = vector.shape_cast %259 : vector<128xbf16> to vector<1x1x128xbf16>
    tpu.vector_store %arg6[%c0_222, %c9_223, %c0_224], %262 {strides = array<i32>} : memref<1x32x128xbf16, #tpu.memory_space<vmem>>, vector<1x1x128xbf16>,
    %c56_225 = arith.constant 56 : index
    %c0_226 = arith.constant 0 : index
    %263 = vector.load %arg8[%c56_225, %c0_226] : memref<196x128xf32, #tpu.memory_space<vmem>>, vector<2x128xf32>
    %c70 = arith.constant 70 : index
    %c0_227 = arith.constant 0 : index
    %264 = vector.load %arg8[%c70, %c0_227] : memref<196x128xf32, #tpu.memory_space<vmem>>, vector<2x128xf32>
    %265 = arith.maximumf %263, %264 : vector<2x128xf32>
    %cst_228 = arith.constant dense<0xFF800000> : vector<128xf32>
    %266 = vector.multi_reduction <maximumf>, %265, %cst_228 [0] : vector<2x128xf32> to vector<128xf32>
    %267 = arith.truncf %266 : vector<128xf32> to vector<128xbf16>
    %c0_229 = arith.constant 0 : index
    %c10_230 = arith.constant 10 : index
    %c0_231 = arith.constant 0 : index
    %268 = vector.load %arg6[%c0_229, %c10_230, %c0_231] : memref<1x32x128xbf16, #tpu.memory_space<vmem>>, vector<1x1x128xbf16>
    %269 = vector.shape_cast %268 : vector<1x1x128xbf16> to vector<128xbf16>
    %270 = vector.shape_cast %267 : vector<128xbf16> to vector<1x1x128xbf16>
    tpu.vector_store %arg6[%c0_229, %c10_230, %c0_231], %270 {strides = array<i32>} : memref<1x32x128xbf16, #tpu.memory_space<vmem>>, vector<1x1x128xbf16>,
    %c58_232 = arith.constant 58 : index
    %c0_233 = arith.constant 0 : index
    %271 = vector.load %arg8[%c58_232, %c0_233] : memref<196x128xf32, #tpu.memory_space<vmem>>, vector<2x128xf32>
    %c72 = arith.constant 72 : index
    %c0_234 = arith.constant 0 : index
    %272 = vector.load %arg8[%c72, %c0_234] : memref<196x128xf32, #tpu.memory_space<vmem>>, vector<2x128xf32>
    %273 = arith.maximumf %271, %272 : vector<2x128xf32>
    %cst_235 = arith.constant dense<0xFF800000> : vector<128xf32>
    %274 = vector.multi_reduction <maximumf>, %273, %cst_235 [0] : vector<2x128xf32> to vector<128xf32>
    %275 = arith.truncf %274 : vector<128xf32> to vector<128xbf16>
    %c0_236 = arith.constant 0 : index
    %c11_237 = arith.constant 11 : index
    %c0_238 = arith.constant 0 : index
    %276 = vector.load %arg6[%c0_236, %c11_237, %c0_238] : memref<1x32x128xbf16, #tpu.memory_space<vmem>>, vector<1x1x128xbf16>
    %277 = vector.shape_cast %276 : vector<1x1x128xbf16> to vector<128xbf16>
    %278 = vector.shape_cast %275 : vector<128xbf16> to vector<1x1x128xbf16>
    tpu.vector_store %arg6[%c0_236, %c11_237, %c0_238], %278 {strides = array<i32>} : memref<1x32x128xbf16, #tpu.memory_space<vmem>>, vector<1x1x128xbf16>,
    %c60_239 = arith.constant 60 : index
    %c0_240 = arith.constant 0 : index
    %279 = vector.load %arg8[%c60_239, %c0_240] : memref<196x128xf32, #tpu.memory_space<vmem>>, vector<2x128xf32>
    %c74 = arith.constant 74 : index
    %c0_241 = arith.constant 0 : index
    %280 = vector.load %arg8[%c74, %c0_241] : memref<196x128xf32, #tpu.memory_space<vmem>>, vector<2x128xf32>
    %281 = arith.maximumf %279, %280 : vector<2x128xf32>
    %cst_242 = arith.constant dense<0xFF800000> : vector<128xf32>
    %282 = vector.multi_reduction <maximumf>, %281, %cst_242 [0] : vector<2x128xf32> to vector<128xf32>
    %283 = arith.truncf %282 : vector<128xf32> to vector<128xbf16>
    %c0_243 = arith.constant 0 : index
    %c12_244 = arith.constant 12 : index
    %c0_245 = arith.constant 0 : index
    %284 = vector.load %arg6[%c0_243, %c12_244, %c0_245] : memref<1x32x128xbf16, #tpu.memory_space<vmem>>, vector<1x1x128xbf16>
    %285 = vector.shape_cast %284 : vector<1x1x128xbf16> to vector<128xbf16>
    %286 = vector.shape_cast %283 : vector<128xbf16> to vector<1x1x128xbf16>
    tpu.vector_store %arg6[%c0_243, %c12_244, %c0_245], %286 {strides = array<i32>} : memref<1x32x128xbf16, #tpu.memory_space<vmem>>, vector<1x1x128xbf16>,
    %c62 = arith.constant 62 : index
    %c0_246 = arith.constant 0 : index
    %287 = vector.load %arg8[%c62, %c0_246] : memref<196x128xf32, #tpu.memory_space<vmem>>, vector<2x128xf32>
    %c76 = arith.constant 76 : index
    %c0_247 = arith.constant 0 : index
    %288 = vector.load %arg8[%c76, %c0_247] : memref<196x128xf32, #tpu.memory_space<vmem>>, vector<2x128xf32>
    %289 = arith.maximumf %287, %288 : vector<2x128xf32>
    %cst_248 = arith.constant dense<0xFF800000> : vector<128xf32>
    %290 = vector.multi_reduction <maximumf>, %289, %cst_248 [0] : vector<2x128xf32> to vector<128xf32>
    %291 = arith.truncf %290 : vector<128xf32> to vector<128xbf16>
    %c0_249 = arith.constant 0 : index
    %c13_250 = arith.constant 13 : index
    %c0_251 = arith.constant 0 : index
    %292 = vector.load %arg6[%c0_249, %c13_250, %c0_251] : memref<1x32x128xbf16, #tpu.memory_space<vmem>>, vector<1x1x128xbf16>
    %293 = vector.shape_cast %292 : vector<1x1x128xbf16> to vector<128xbf16>
    %294 = vector.shape_cast %291 : vector<128xbf16> to vector<1x1x128xbf16>
    tpu.vector_store %arg6[%c0_249, %c13_250, %c0_251], %294 {strides = array<i32>} : memref<1x32x128xbf16, #tpu.memory_space<vmem>>, vector<1x1x128xbf16>,
    %c64 = arith.constant 64 : index
    %c0_252 = arith.constant 0 : index
    %295 = vector.load %arg8[%c64, %c0_252] : memref<196x128xf32, #tpu.memory_space<vmem>>, vector<2x128xf32>
    %c78 = arith.constant 78 : index
    %c0_253 = arith.constant 0 : index
    %296 = vector.load %arg8[%c78, %c0_253] : memref<196x128xf32, #tpu.memory_space<vmem>>, vector<2x128xf32>
    %297 = arith.maximumf %295, %296 : vector<2x128xf32>
    %cst_254 = arith.constant dense<0xFF800000> : vector<128xf32>
    %298 = vector.multi_reduction <maximumf>, %297, %cst_254 [0] : vector<2x128xf32> to vector<128xf32>
    %299 = arith.truncf %298 : vector<128xf32> to vector<128xbf16>
    %c0_255 = arith.constant 0 : index
    %c14_256 = arith.constant 14 : index
    %c0_257 = arith.constant 0 : index
    %300 = vector.load %arg6[%c0_255, %c14_256, %c0_257] : memref<1x32x128xbf16, #tpu.memory_space<vmem>>, vector<1x1x128xbf16>
    %301 = vector.shape_cast %300 : vector<1x1x128xbf16> to vector<128xbf16>
    %302 = vector.shape_cast %299 : vector<128xbf16> to vector<1x1x128xbf16>
    tpu.vector_store %arg6[%c0_255, %c14_256, %c0_257], %302 {strides = array<i32>} : memref<1x32x128xbf16, #tpu.memory_space<vmem>>, vector<1x1x128xbf16>,
    %c84 = arith.constant 84 : index
    %c0_258 = arith.constant 0 : index
    %303 = vector.load %arg8[%c84, %c0_258] : memref<196x128xf32, #tpu.memory_space<vmem>>, vector<2x128xf32>
    %c98 = arith.constant 98 : index
    %c0_259 = arith.constant 0 : index
    %304 = vector.load %arg8[%c98, %c0_259] : memref<196x128xf32, #tpu.memory_space<vmem>>, vector<2x128xf32>
    %305 = arith.maximumf %303, %304 : vector<2x128xf32>
    %cst_260 = arith.constant dense<0xFF800000> : vector<128xf32>
    %306 = vector.multi_reduction <maximumf>, %305, %cst_260 [0] : vector<2x128xf32> to vector<128xf32>
    %307 = arith.truncf %306 : vector<128xf32> to vector<128xbf16>
    %c0_261 = arith.constant 0 : index
    %c15_262 = arith.constant 15 : index
    %c0_263 = arith.constant 0 : index
    %308 = vector.load %arg6[%c0_261, %c15_262, %c0_263] : memref<1x32x128xbf16, #tpu.memory_space<vmem>>, vector<1x1x128xbf16>
    %309 = vector.shape_cast %308 : vector<1x1x128xbf16> to vector<128xbf16>
    %310 = vector.shape_cast %307 : vector<128xbf16> to vector<1x1x128xbf16>
    tpu.vector_store %arg6[%c0_261, %c15_262, %c0_263], %310 {strides = array<i32>} : memref<1x32x128xbf16, #tpu.memory_space<vmem>>, vector<1x1x128xbf16>,
    %c86 = arith.constant 86 : index
    %c0_264 = arith.constant 0 : index
    %311 = vector.load %arg8[%c86, %c0_264] : memref<196x128xf32, #tpu.memory_space<vmem>>, vector<2x128xf32>
    %c100 = arith.constant 100 : index
    %c0_265 = arith.constant 0 : index
    %312 = vector.load %arg8[%c100, %c0_265] : memref<196x128xf32, #tpu.memory_space<vmem>>, vector<2x128xf32>
    %313 = arith.maximumf %311, %312 : vector<2x128xf32>
    %cst_266 = arith.constant dense<0xFF800000> : vector<128xf32>
    %314 = vector.multi_reduction <maximumf>, %313, %cst_266 [0] : vector<2x128xf32> to vector<128xf32>
    %315 = arith.truncf %314 : vector<128xf32> to vector<128xbf16>
    %c0_267 = arith.constant 0 : index
    %c16_268 = arith.constant 16 : index
    %c0_269 = arith.constant 0 : index
    %316 = vector.load %arg6[%c0_267, %c16_268, %c0_269] : memref<1x32x128xbf16, #tpu.memory_space<vmem>>, vector<1x1x128xbf16>
    %317 = vector.shape_cast %316 : vector<1x1x128xbf16> to vector<128xbf16>
    %318 = vector.shape_cast %315 : vector<128xbf16> to vector<1x1x128xbf16>
    tpu.vector_store %arg6[%c0_267, %c16_268, %c0_269], %318 {strides = array<i32>} : memref<1x32x128xbf16, #tpu.memory_space<vmem>>, vector<1x1x128xbf16>,
    %c88 = arith.constant 88 : index
    %c0_270 = arith.constant 0 : index
    %319 = vector.load %arg8[%c88, %c0_270] : memref<196x128xf32, #tpu.memory_space<vmem>>, vector<2x128xf32>
    %c102 = arith.constant 102 : index
    %c0_271 = arith.constant 0 : index
    %320 = vector.load %arg8[%c102, %c0_271] : memref<196x128xf32, #tpu.memory_space<vmem>>, vector<2x128xf32>
    %321 = arith.maximumf %319, %320 : vector<2x128xf32>
    %cst_272 = arith.constant dense<0xFF800000> : vector<128xf32>
    %322 = vector.multi_reduction <maximumf>, %321, %cst_272 [0] : vector<2x128xf32> to vector<128xf32>
    %323 = arith.truncf %322 : vector<128xf32> to vector<128xbf16>
    %c0_273 = arith.constant 0 : index
    %c17_274 = arith.constant 17 : index
    %c0_275 = arith.constant 0 : index
    %324 = vector.load %arg6[%c0_273, %c17_274, %c0_275] : memref<1x32x128xbf16, #tpu.memory_space<vmem>>, vector<1x1x128xbf16>
    %325 = vector.shape_cast %324 : vector<1x1x128xbf16> to vector<128xbf16>
    %326 = vector.shape_cast %323 : vector<128xbf16> to vector<1x1x128xbf16>
    tpu.vector_store %arg6[%c0_273, %c17_274, %c0_275], %326 {strides = array<i32>} : memref<1x32x128xbf16, #tpu.memory_space<vmem>>, vector<1x1x128xbf16>,
    %c90 = arith.constant 90 : index
    %c0_276 = arith.constant 0 : index
    %327 = vector.load %arg8[%c90, %c0_276] : memref<196x128xf32, #tpu.memory_space<vmem>>, vector<2x128xf32>
    %c104 = arith.constant 104 : index
    %c0_277 = arith.constant 0 : index
    %328 = vector.load %arg8[%c104, %c0_277] : memref<196x128xf32, #tpu.memory_space<vmem>>, vector<2x128xf32>
    %329 = arith.maximumf %327, %328 : vector<2x128xf32>
    %cst_278 = arith.constant dense<0xFF800000> : vector<128xf32>
    %330 = vector.multi_reduction <maximumf>, %329, %cst_278 [0] : vector<2x128xf32> to vector<128xf32>
    %331 = arith.truncf %330 : vector<128xf32> to vector<128xbf16>
    %c0_279 = arith.constant 0 : index
    %c18_280 = arith.constant 18 : index
    %c0_281 = arith.constant 0 : index
    %332 = vector.load %arg6[%c0_279, %c18_280, %c0_281] : memref<1x32x128xbf16, #tpu.memory_space<vmem>>, vector<1x1x128xbf16>
    %333 = vector.shape_cast %332 : vector<1x1x128xbf16> to vector<128xbf16>
    %334 = vector.shape_cast %331 : vector<128xbf16> to vector<1x1x128xbf16>
    tpu.vector_store %arg6[%c0_279, %c18_280, %c0_281], %334 {strides = array<i32>} : memref<1x32x128xbf16, #tpu.memory_space<vmem>>, vector<1x1x128xbf16>,
    %c92 = arith.constant 92 : index
    %c0_282 = arith.constant 0 : index
    %335 = vector.load %arg8[%c92, %c0_282] : memref<196x128xf32, #tpu.memory_space<vmem>>, vector<2x128xf32>
    %c106 = arith.constant 106 : index
    %c0_283 = arith.constant 0 : index
    %336 = vector.load %arg8[%c106, %c0_283] : memref<196x128xf32, #tpu.memory_space<vmem>>, vector<2x128xf32>
    %337 = arith.maximumf %335, %336 : vector<2x128xf32>
    %cst_284 = arith.constant dense<0xFF800000> : vector<128xf32>
    %338 = vector.multi_reduction <maximumf>, %337, %cst_284 [0] : vector<2x128xf32> to vector<128xf32>
    %339 = arith.truncf %338 : vector<128xf32> to vector<128xbf16>
    %c0_285 = arith.constant 0 : index
    %c19_286 = arith.constant 19 : index
    %c0_287 = arith.constant 0 : index
    %340 = vector.load %arg6[%c0_285, %c19_286, %c0_287] : memref<1x32x128xbf16, #tpu.memory_space<vmem>>, vector<1x1x128xbf16>
    %341 = vector.shape_cast %340 : vector<1x1x128xbf16> to vector<128xbf16>
    %342 = vector.shape_cast %339 : vector<128xbf16> to vector<1x1x128xbf16>
    tpu.vector_store %arg6[%c0_285, %c19_286, %c0_287], %342 {strides = array<i32>} : memref<1x32x128xbf16, #tpu.memory_space<vmem>>, vector<1x1x128xbf16>,
    %c112 = arith.constant 112 : index
    %c0_288 = arith.constant 0 : index
    %343 = vector.load %arg8[%c112, %c0_288] : memref<196x128xf32, #tpu.memory_space<vmem>>, vector<2x128xf32>
    %c126 = arith.constant 126 : index
    %c0_289 = arith.constant 0 : index
    %344 = vector.load %arg8[%c126, %c0_289] : memref<196x128xf32, #tpu.memory_space<vmem>>, vector<2x128xf32>
    %345 = arith.maximumf %343, %344 : vector<2x128xf32>
    %cst_290 = arith.constant dense<0xFF800000> : vector<128xf32>
    %346 = vector.multi_reduction <maximumf>, %345, %cst_290 [0] : vector<2x128xf32> to vector<128xf32>
    %347 = arith.truncf %346 : vector<128xf32> to vector<128xbf16>
    %c0_291 = arith.constant 0 : index
    %c20_292 = arith.constant 20 : index
    %c0_293 = arith.constant 0 : index
    %348 = vector.load %arg6[%c0_291, %c20_292, %c0_293] : memref<1x32x128xbf16, #tpu.memory_space<vmem>>, vector<1x1x128xbf16>
    %349 = vector.shape_cast %348 : vector<1x1x128xbf16> to vector<128xbf16>
    %350 = vector.shape_cast %347 : vector<128xbf16> to vector<1x1x128xbf16>
    tpu.vector_store %arg6[%c0_291, %c20_292, %c0_293], %350 {strides = array<i32>} : memref<1x32x128xbf16, #tpu.memory_space<vmem>>, vector<1x1x128xbf16>,
    %c114 = arith.constant 114 : index
    %c0_294 = arith.constant 0 : index
    %351 = vector.load %arg8[%c114, %c0_294] : memref<196x128xf32, #tpu.memory_space<vmem>>, vector<2x128xf32>
    %c128 = arith.constant 128 : index
    %c0_295 = arith.constant 0 : index
    %352 = vector.load %arg8[%c128, %c0_295] : memref<196x128xf32, #tpu.memory_space<vmem>>, vector<2x128xf32>
    %353 = arith.maximumf %351, %352 : vector<2x128xf32>
    %cst_296 = arith.constant dense<0xFF800000> : vector<128xf32>
    %354 = vector.multi_reduction <maximumf>, %353, %cst_296 [0] : vector<2x128xf32> to vector<128xf32>
    %355 = arith.truncf %354 : vector<128xf32> to vector<128xbf16>
    %c0_297 = arith.constant 0 : index
    %c21_298 = arith.constant 21 : index
    %c0_299 = arith.constant 0 : index
    %356 = vector.load %arg6[%c0_297, %c21_298, %c0_299] : memref<1x32x128xbf16, #tpu.memory_space<vmem>>, vector<1x1x128xbf16>
    %357 = vector.shape_cast %356 : vector<1x1x128xbf16> to vector<128xbf16>
    %358 = vector.shape_cast %355 : vector<128xbf16> to vector<1x1x128xbf16>
    tpu.vector_store %arg6[%c0_297, %c21_298, %c0_299], %358 {strides = array<i32>} : memref<1x32x128xbf16, #tpu.memory_space<vmem>>, vector<1x1x128xbf16>,
    %c116 = arith.constant 116 : index
    %c0_300 = arith.constant 0 : index
    %359 = vector.load %arg8[%c116, %c0_300] : memref<196x128xf32, #tpu.memory_space<vmem>>, vector<2x128xf32>
    %c130 = arith.constant 130 : index
    %c0_301 = arith.constant 0 : index
    %360 = vector.load %arg8[%c130, %c0_301] : memref<196x128xf32, #tpu.memory_space<vmem>>, vector<2x128xf32>
    %361 = arith.maximumf %359, %360 : vector<2x128xf32>
    %cst_302 = arith.constant dense<0xFF800000> : vector<128xf32>
    %362 = vector.multi_reduction <maximumf>, %361, %cst_302 [0] : vector<2x128xf32> to vector<128xf32>
    %363 = arith.truncf %362 : vector<128xf32> to vector<128xbf16>
    %c0_303 = arith.constant 0 : index
    %c22_304 = arith.constant 22 : index
    %c0_305 = arith.constant 0 : index
    %364 = vector.load %arg6[%c0_303, %c22_304, %c0_305] : memref<1x32x128xbf16, #tpu.memory_space<vmem>>, vector<1x1x128xbf16>
    %365 = vector.shape_cast %364 : vector<1x1x128xbf16> to vector<128xbf16>
    %366 = vector.shape_cast %363 : vector<128xbf16> to vector<1x1x128xbf16>
    tpu.vector_store %arg6[%c0_303, %c22_304, %c0_305], %366 {strides = array<i32>} : memref<1x32x128xbf16, #tpu.memory_space<vmem>>, vector<1x1x128xbf16>,
    %c118 = arith.constant 118 : index
    %c0_306 = arith.constant 0 : index
    %367 = vector.load %arg8[%c118, %c0_306] : memref<196x128xf32, #tpu.memory_space<vmem>>, vector<2x128xf32>
    %c132 = arith.constant 132 : index
    %c0_307 = arith.constant 0 : index
    %368 = vector.load %arg8[%c132, %c0_307] : memref<196x128xf32, #tpu.memory_space<vmem>>, vector<2x128xf32>
    %369 = arith.maximumf %367, %368 : vector<2x128xf32>
    %cst_308 = arith.constant dense<0xFF800000> : vector<128xf32>
    %370 = vector.multi_reduction <maximumf>, %369, %cst_308 [0] : vector<2x128xf32> to vector<128xf32>
    %371 = arith.truncf %370 : vector<128xf32> to vector<128xbf16>
    %c0_309 = arith.constant 0 : index
    %c23_310 = arith.constant 23 : index
    %c0_311 = arith.constant 0 : index
    %372 = vector.load %arg6[%c0_309, %c23_310, %c0_311] : memref<1x32x128xbf16, #tpu.memory_space<vmem>>, vector<1x1x128xbf16>
    %373 = vector.shape_cast %372 : vector<1x1x128xbf16> to vector<128xbf16>
    %374 = vector.shape_cast %371 : vector<128xbf16> to vector<1x1x128xbf16>
    tpu.vector_store %arg6[%c0_309, %c23_310, %c0_311], %374 {strides = array<i32>} : memref<1x32x128xbf16, #tpu.memory_space<vmem>>, vector<1x1x128xbf16>,
    %c120 = arith.constant 120 : index
    %c0_312 = arith.constant 0 : index
    %375 = vector.load %arg8[%c120, %c0_312] : memref<196x128xf32, #tpu.memory_space<vmem>>, vector<2x128xf32>
    %c134 = arith.constant 134 : index
    %c0_313 = arith.constant 0 : index
    %376 = vector.load %arg8[%c134, %c0_313] : memref<196x128xf32, #tpu.memory_space<vmem>>, vector<2x128xf32>
    %377 = arith.maximumf %375, %376 : vector<2x128xf32>
    %cst_314 = arith.constant dense<0xFF800000> : vector<128xf32>
    %378 = vector.multi_reduction <maximumf>, %377, %cst_314 [0] : vector<2x128xf32> to vector<128xf32>
    %379 = arith.truncf %378 : vector<128xf32> to vector<128xbf16>
    %c0_315 = arith.constant 0 : index
    %c24_316 = arith.constant 24 : index
    %c0_317 = arith.constant 0 : index
    %380 = vector.load %arg6[%c0_315, %c24_316, %c0_317] : memref<1x32x128xbf16, #tpu.memory_space<vmem>>, vector<1x1x128xbf16>
    %381 = vector.shape_cast %380 : vector<1x1x128xbf16> to vector<128xbf16>
    %382 = vector.shape_cast %379 : vector<128xbf16> to vector<1x1x128xbf16>
    tpu.vector_store %arg6[%c0_315, %c24_316, %c0_317], %382 {strides = array<i32>} : memref<1x32x128xbf16, #tpu.memory_space<vmem>>, vector<1x1x128xbf16>,
    return
  }
  func.func @transform_0(%arg0: i32) -> (i32, i32, i32, i32) {
    %c0_i32 = arith.constant 0 : i32
    %c0_i32_0 = arith.constant 0 : i32
    %c0_i32_1 = arith.constant 0 : i32
    %c0_i32_2 = arith.constant 0 : i32
    return %arg0, %c0_i32, %c0_i32_0, %c0_i32_1 : i32, i32, i32, i32
  }
  func.func @transform_1(%arg0: i32) -> (i32, i32) {
    %c0_i32 = arith.constant 0 : i32
    %c0_i32_0 = arith.constant 0 : i32
    %c0_i32_1 = arith.constant 0 : i32
    return %c0_i32, %c0_i32_0 : i32, i32
  }
  func.func @transform_2(%arg0: i32) -> (i32, i32) {
    %c0_i32 = arith.constant 0 : i32
    %c0_i32_0 = arith.constant 0 : i32
    %c0_i32_1 = arith.constant 0 : i32
    return %c0_i32, %c0_i32_0 : i32, i32
  }
  func.func @transform_3(%arg0: i32) -> (i32, i32, i32) {
    %c0_i32 = arith.constant 0 : i32
    %c0_i32_0 = arith.constant 0 : i32
    %c0_i32_1 = arith.constant 0 : i32
    %c0_i32_2 = arith.constant 0 : i32
    return %c0_i32, %c0_i32_0, %c0_i32_1 : i32, i32, i32
  }
  func.func @transform_4(%arg0: i32) -> (i32, i32) {
    %c0_i32 = arith.constant 0 : i32
    %c0_i32_0 = arith.constant 0 : i32
    %c0_i32_1 = arith.constant 0 : i32
    return %c0_i32, %c0_i32_0 : i32, i32
  }
  func.func @transform_5(%arg0: i32) -> (i32, i32, i32) {
    %c0_i32 = arith.constant 0 : i32
    %c0_i32_0 = arith.constant 0 : i32
    %c0_i32_1 = arith.constant 0 : i32
    return %arg0, %c0_i32, %c0_i32_0 : i32, i32, i32
  }
}

module attributes {stable_mosaic.version = 11 : i64} {
  func.func @_tail_kernel(%arg0: i32, %arg1: memref<8x4096xbf16, #tpu.memory_space<vmem>>, %arg2: memref<4096x128xbf16, #tpu.memory_space<vmem>>, %arg3: memref<1x128xf32, #tpu.memory_space<vmem>>, %arg4: memref<128x128xbf16, #tpu.memory_space<vmem>>, %arg5: memref<1x128xf32, #tpu.memory_space<vmem>>, %arg6: memref<128x128xbf16, #tpu.memory_space<vmem>>, %arg7: memref<1x128xf32, #tpu.memory_space<vmem>>, %arg8: memref<8x128xf32, #tpu.memory_space<vmem>>) attributes {dimension_semantics = [#tpu.dimension_semantics<parallel>], iteration_bounds = array<i64: 1>, scalar_prefetch = 0 : i64, scratch_operands = 0 : i64, tpu.core_type = #tpu.core_type<tc>, window_params = [{transform_indices = @transform_0, window_bounds = array<i64: 8, 4096>}, {pipeline_mode = #tpu.pipeline_mode<synchronous>, transform_indices = @transform_1, window_bounds = array<i64: 4096, 128>}, {pipeline_mode = #tpu.pipeline_mode<synchronous>, transform_indices = @transform_2, window_bounds = array<i64: 1, 128>}, {pipeline_mode = #tpu.pipeline_mode<synchronous>, transform_indices = @transform_3, window_bounds = array<i64: 128, 128>}, {pipeline_mode = #tpu.pipeline_mode<synchronous>, transform_indices = @transform_4, window_bounds = array<i64: 1, 128>}, {pipeline_mode = #tpu.pipeline_mode<synchronous>, transform_indices = @transform_5, window_bounds = array<i64: 128, 128>}, {pipeline_mode = #tpu.pipeline_mode<synchronous>, transform_indices = @transform_6, window_bounds = array<i64: 1, 128>}, {transform_indices = @transform_7, window_bounds = array<i64: 8, 128>}]} {
    %c0 = arith.constant 0 : index
    %c0_0 = arith.constant 0 : index
    %0 = vector.load %arg1[%c0, %c0_0] : memref<8x4096xbf16, #tpu.memory_space<vmem>>, vector<8x4096xbf16>
    %c0_1 = arith.constant 0 : index
    %c0_2 = arith.constant 0 : index
    %1 = vector.load %arg2[%c0_1, %c0_2] : memref<4096x128xbf16, #tpu.memory_space<vmem>>, vector<4096x128xbf16>
    %cst = arith.constant dense<0.000000e+00> : vector<8x128xf32>
    %2 = tpu.matmul %0, %1, %cst {dimension_numbers = #tpu.dot_dimension_numbers<[1], [0], [0], [1], [0, 0, 1, 1], [], []>} : vector<8x4096xbf16>, vector<4096x128xbf16>, vector<8x128xf32> -> vector<8x128xf32>
    %c0_3 = arith.constant 0 : index
    %c0_4 = arith.constant 0 : index
    %3 = vector.load %arg3[%c0_3, %c0_4] : memref<1x128xf32, #tpu.memory_space<vmem>>, vector<1x128xf32>
    %4 = vector.broadcast %3 : vector<1x128xf32> to vector<8x128xf32>
    %5 = arith.addf %2, %4 : vector<8x128xf32>
    %cst_5 = arith.constant 0.000000e+00 : f32
    %6 = vector.broadcast %cst_5 : f32 to vector<8x128xf32>
    %7 = arith.maximumf %5, %6 : vector<8x128xf32>
    %8 = arith.truncf %7 : vector<8x128xf32> to vector<8x128xbf16>
    %c0_6 = arith.constant 0 : index
    %c0_7 = arith.constant 0 : index
    %9 = vector.load %arg4[%c0_6, %c0_7] : memref<128x128xbf16, #tpu.memory_space<vmem>>, vector<128x128xbf16>
    %cst_8 = arith.constant dense<0.000000e+00> : vector<8x128xf32>
    %10 = tpu.matmul %8, %9, %cst_8 {dimension_numbers = #tpu.dot_dimension_numbers<[1], [0], [0], [1], [0, 0, 1, 1], [], []>} : vector<8x128xbf16>, vector<128x128xbf16>, vector<8x128xf32> -> vector<8x128xf32>
    %c0_9 = arith.constant 0 : index
    %c0_10 = arith.constant 0 : index
    %11 = vector.load %arg5[%c0_9, %c0_10] : memref<1x128xf32, #tpu.memory_space<vmem>>, vector<1x128xf32>
    %12 = vector.broadcast %11 : vector<1x128xf32> to vector<8x128xf32>
    %13 = arith.addf %10, %12 : vector<8x128xf32>
    %cst_11 = arith.constant 0.000000e+00 : f32
    %14 = vector.broadcast %cst_11 : f32 to vector<8x128xf32>
    %15 = arith.maximumf %13, %14 : vector<8x128xf32>
    %16 = arith.truncf %15 : vector<8x128xf32> to vector<8x128xbf16>
    %c0_12 = arith.constant 0 : index
    %c0_13 = arith.constant 0 : index
    %17 = vector.load %arg6[%c0_12, %c0_13] : memref<128x128xbf16, #tpu.memory_space<vmem>>, vector<128x128xbf16>
    %cst_14 = arith.constant dense<0.000000e+00> : vector<8x128xf32>
    %18 = tpu.matmul %16, %17, %cst_14 {dimension_numbers = #tpu.dot_dimension_numbers<[1], [0], [0], [1], [0, 0, 1, 1], [], []>} : vector<8x128xbf16>, vector<128x128xbf16>, vector<8x128xf32> -> vector<8x128xf32>
    %c0_15 = arith.constant 0 : index
    %c0_16 = arith.constant 0 : index
    %19 = vector.load %arg7[%c0_15, %c0_16] : memref<1x128xf32, #tpu.memory_space<vmem>>, vector<1x128xf32>
    %20 = vector.broadcast %19 : vector<1x128xf32> to vector<8x128xf32>
    %21 = arith.addf %18, %20 : vector<8x128xf32>
    %22 = tpu.iota {dimensions = array<i32: 1>} : vector<8x128xi32>
    %c10_i32 = arith.constant 10 : i32
    %23 = vector.broadcast %c10_i32 : i32 to vector<8x128xi32>
    %24 = arith.cmpi slt, %22, %23 : vector<8x128xi32>
    %cst_17 = arith.constant -1.000000e+30 : f32
    %25 = vector.broadcast %cst_17 : f32 to vector<8x128xf32>
    %26 = arith.select %24, %21, %25 : vector<8x128xi1>, vector<8x128xf32>
    %cst_18 = arith.constant dense<0xFF800000> : vector<8xf32>
    %27 = vector.multi_reduction <maximumf>, %26, %cst_18 [1] : vector<8x128xf32> to vector<8xf32>
    %28 = vector.shape_cast %27 : vector<8xf32> to vector<8x1xf32>
    %29 = vector.broadcast %28 : vector<8x1xf32> to vector<8x128xf32>
    %30 = arith.subf %26, %29 : vector<8x128xf32>
    %31 = math.exp %30 : vector<8x128xf32>
    %cst_19 = arith.constant dense<0.000000e+00> : vector<8xf32>
    %32 = vector.multi_reduction <add>, %31, %cst_19 [1] : vector<8x128xf32> to vector<8xf32>
    %33 = vector.shape_cast %32 : vector<8xf32> to vector<8x1xf32>
    %34 = vector.broadcast %28 : vector<8x1xf32> to vector<8x128xf32>
    %35 = arith.subf %26, %34 : vector<8x128xf32>
    %36 = math.log %33 : vector<8x1xf32>
    %37 = vector.broadcast %36 : vector<8x1xf32> to vector<8x128xf32>
    %38 = arith.subf %35, %37 : vector<8x128xf32>
    %c0_20 = arith.constant 0 : index
    %c0_21 = arith.constant 0 : index
    %39 = vector.load %arg8[%c0_20, %c0_21] : memref<8x128xf32, #tpu.memory_space<vmem>>, vector<8x128xf32>
    tpu.vector_store %arg8[%c0_20, %c0_21], %38 {strides = array<i32>} : memref<8x128xf32, #tpu.memory_space<vmem>>, vector<8x128xf32>,
    return
  }
  func.func @transform_0(%arg0: i32) -> (i32, i32) {
    %c0_i32 = arith.constant 0 : i32
    %c0_i32_0 = arith.constant 0 : i32
    return %arg0, %c0_i32 : i32, i32
  }
  func.func @transform_1(%arg0: i32) -> (i32, i32) {
    %c0_i32 = arith.constant 0 : i32
    %c0_i32_0 = arith.constant 0 : i32
    %c0_i32_1 = arith.constant 0 : i32
    return %c0_i32, %c0_i32_0 : i32, i32
  }
  func.func @transform_2(%arg0: i32) -> (i32, i32) {
    %c0_i32 = arith.constant 0 : i32
    %c0_i32_0 = arith.constant 0 : i32
    %c0_i32_1 = arith.constant 0 : i32
    return %c0_i32, %c0_i32_0 : i32, i32
  }
  func.func @transform_3(%arg0: i32) -> (i32, i32) {
    %c0_i32 = arith.constant 0 : i32
    %c0_i32_0 = arith.constant 0 : i32
    %c0_i32_1 = arith.constant 0 : i32
    return %c0_i32, %c0_i32_0 : i32, i32
  }
  func.func @transform_4(%arg0: i32) -> (i32, i32) {
    %c0_i32 = arith.constant 0 : i32
    %c0_i32_0 = arith.constant 0 : i32
    %c0_i32_1 = arith.constant 0 : i32
    return %c0_i32, %c0_i32_0 : i32, i32
  }
  func.func @transform_5(%arg0: i32) -> (i32, i32) {
    %c0_i32 = arith.constant 0 : i32
    %c0_i32_0 = arith.constant 0 : i32
    %c0_i32_1 = arith.constant 0 : i32
    return %c0_i32, %c0_i32_0 : i32, i32
  }
  func.func @transform_6(%arg0: i32) -> (i32, i32) {
    %c0_i32 = arith.constant 0 : i32
    %c0_i32_0 = arith.constant 0 : i32
    %c0_i32_1 = arith.constant 0 : i32
    return %c0_i32, %c0_i32_0 : i32, i32
  }
  func.func @transform_7(%arg0: i32) -> (i32, i32) {
    %c0_i32 = arith.constant 0 : i32
    %c0_i32_0 = arith.constant 0 : i32
    return %arg0, %c0_i32 : i32, i32
  }
}

</mosaic_0001>

<llo_original>
// kernel: net_forward_pallas.3
$region0: #{net_forward_pallas.3}
  #allocation0 [shape = 'u32[]', space=smem, size = 0x4, offset = 0x4, fixed_abs, tag = 'smem constant byte address 0x4 - core index']
  #allocation1 [shape = 'u32[144,128]{1,0:T(1,128)}', space=vmem, size = 0x12000, scoped, tag = 'internal scratch']
  %s0 = inlined_call_operand.vmem [shape: bf16[8,4096], index: 0, kind: input, shape index: {}]
  %s1 = inlined_call_operand.vmem [shape: bf16[4096,128], index: 1, kind: input, shape index: {}]
  %s2 = inlined_call_operand.vmem [shape: f32[1,128], index: 2, kind: input, shape index: {}]
  %s3 = inlined_call_operand.vmem [shape: bf16[128,128], index: 3, kind: input, shape index: {}]
  %s4 = inlined_call_operand.vmem [shape: f32[1,128], index: 4, kind: input, shape index: {}]
  %s5 = inlined_call_operand.vmem [shape: bf16[128,128], index: 5, kind: input, shape index: {}]
  %s6 = inlined_call_operand.vmem [shape: f32[1,128], index: 6, kind: input, shape index: {}]
  %s7 = inlined_call_operand.vmem [shape: f32[8,128], index: 7, kind: output, shape index: {}]
  %s8 = sld [smem:[#allocation0]]
  $region38: #{net_forward_pallas.3} parent=0
    _
  %s10 = ssub.s32 1, %s8
  %s11 = scalar_select 0, %s10, %s8
  // Predicated region
  $region2: #{net_forward_pallas.3} parent=0 // pred_check
    _
  $region3: #{net_forward_pallas.3} parent=0 // pred_check_branch
    %13 = sbr.rel (0) target = $region5
  $region4: #{net_forward_pallas.3} parent=0 // pred_region
    _
  $region5: #{net_forward_pallas.3} parent=0 // pred_fallthru
    _
  // Predicated region
  $region6: #{net_forward_pallas.3} parent=0 // pred_check
    _
  $region7: #{net_forward_pallas.3} parent=0 // pred_check_branch
    %15 = sbr.rel (0) target = $region9
  $region8: #{net_forward_pallas.3} parent=0 // pred_region
    _
  $region9: #{net_forward_pallas.3} parent=0 // pred_fallthru
    _
  // Predicated region
  $region10: #{net_forward_pallas.3} parent=0 // pred_check
    _
  $region11: #{net_forward_pallas.3} parent=0 // pred_check_branch
    %17 = sbr.rel (0) target = $region13
  $region12: #{net_forward_pallas.3} parent=0 // pred_region
    _
  $region13: #{net_forward_pallas.3} parent=0 // pred_fallthru
    _
  // Predicated region
  $region14: #{net_forward_pallas.3} parent=0 // pred_check
    _
  $region15: #{net_forward_pallas.3} parent=0 // pred_check_branch
    %19 = sbr.rel (0) target = $region17
  $region16: #{net_forward_pallas.3} parent=0 // pred_region
    _
  $region17: #{net_forward_pallas.3} parent=0 // pred_fallthru
    _
  // Predicated region
  $region18: #{net_forward_pallas.3} parent=0 // pred_check
    _
  $region19: #{net_forward_pallas.3} parent=0 // pred_check_branch
    %21 = sbr.rel (0) target = $region21
  $region20: #{net_forward_pallas.3} parent=0 // pred_region
    _
  $region21: #{net_forward_pallas.3} parent=0 // pred_fallthru
    _
  // Predicated region
  $region22: #{net_forward_pallas.3} parent=0 // pred_check
    _
  $region23: #{net_forward_pallas.3} parent=0 // pred_check_branch
    %23 = sbr.rel (0) target = $region25
  $region24: #{net_forward_pallas.3} parent=0 // pred_region
    _
  $region25: #{net_forward_pallas.3} parent=0 // pred_fallthru
    _
  // Predicated region
  $region26: #{net_forward_pallas.3} parent=0 // pred_check
    _
  $region27: #{net_forward_pallas.3} parent=0 // pred_check_branch
    %25 = sbr.rel (0) target = $region29
  $region28: #{net_forward_pallas.3} parent=0 // pred_region
    _
  $region29: #{net_forward_pallas.3} parent=0 // pred_fallthru
    _
  %v27 = vld [vmem:[%s0] sm:$0xff]
  %v28 = vld [vmem:[%s0 + $0x8] sm:$0xff]
  %v29 = vld [vmem:[%s0 + $0x10] sm:$0xff]
  %v30 = vld [vmem:[%s0 + $0x18] sm:$0xff]
  %v31 = vld [vmem:[%s0 + $0x20] sm:$0xff]
  %v32 = vld [vmem:[%s0 + $0x28] sm:$0xff]
  %v33 = vld [vmem:[%s0 + $0x30] sm:$0xff]
  %v34 = vld [vmem:[%s0 + $0x38] sm:$0xff]
  %v35 = vld [vmem:[%s0 + $0x40] sm:$0xff]
  %v36 = vld [vmem:[%s0 + $0x48] sm:$0xff]
  %v37 = vld [vmem:[%s0 + $0x50] sm:$0xff]
  %v38 = vld [vmem:[%s0 + $0x58] sm:$0xff]
  %v39 = vld [vmem:[%s0 + $0x60] sm:$0xff]
  %v40 = vld [vmem:[%s0 + $0x68] sm:$0xff]
  %v41 = vld [vmem:[%s0 + $0x70] sm:$0xff]
  %v42 = vld [vmem:[%s0 + $0x78] sm:$0xff]
  %v43 = vld [vmem:[%s1] sm:$0xf]
  %v44 = vld [vmem:[%s1 + $0x4] sm:$0xf]
  %v45 = vld [vmem:[%s1 + $0x8] sm:$0xf]
  %v46 = vld [vmem:[%s1 + $0xc] sm:$0xf]
  %v47 = vld [vmem:[%s1 + $0x10] sm:$0xf]
  %v48 = vld [vmem:[%s1 + $0x14] sm:$0xf]
  %v49 = vld [vmem:[%s1 + $0x18] sm:$0xf]
  %v50 = vld [vmem:[%s1 + $0x1c] sm:$0xf]
  %v51 = vld [vmem:[%s1 + $0x20] sm:$0xf]
  %v52 = vld [vmem:[%s1 + $0x24] sm:$0xf]
  %v53 = vld [vmem:[%s1 + $0x28] sm:$0xf]
  %v54 = vld [vmem:[%s1 + $0x2c] sm:$0xf]
  %v55 = vld [vmem:[%s1 + $0x30] sm:$0xf]
  %v56 = vld [vmem:[%s1 + $0x34] sm:$0xf]
  %v57 = vld [vmem:[%s1 + $0x38] sm:$0xf]
  %v58 = vld [vmem:[%s1 + $0x3c] sm:$0xf]
  %v59 = vld [vmem:[%s1 + $0x40] sm:$0xf]
  %v60 = vld [vmem:[%s1 + $0x44] sm:$0xf]
  %v61 = vld [vmem:[%s1 + $0x48] sm:$0xf]
  %v62 = vld [vmem:[%s1 + $0x4c] sm:$0xf]
  %v63 = vld [vmem:[%s1 + $0x50] sm:$0xf]
  %v64 = vld [vmem:[%s1 + $0x54] sm:$0xf]
  %v65 = vld [vmem:[%s1 + $0x58] sm:$0xf]
  %v66 = vld [vmem:[%s1 + $0x5c] sm:$0xf]
  %v67 = vld [vmem:[%s1 + $0x60] sm:$0xf]
  %v68 = vld [vmem:[%s1 + $0x64] sm:$0xf]
  %v69 = vld [vmem:[%s1 + $0x68] sm:$0xf]
  %v70 = vld [vmem:[%s1 + $0x6c] sm:$0xf]
  %v71 = vld [vmem:[%s1 + $0x70] sm:$0xf]
  %v72 = vld [vmem:[%s1 + $0x74] sm:$0xf]
  %v73 = vld [vmem:[%s1 + $0x78] sm:$0xf]
  %v74 = vld [vmem:[%s1 + $0x7c] sm:$0xf]
  %v75 = vld [vmem:[%s1 + $0x80] sm:$0xf]
  %v76 = vld [vmem:[%s1 + $0x84] sm:$0xf]
  %v77 = vld [vmem:[%s1 + $0x88] sm:$0xf]
  %v78 = vld [vmem:[%s1 + $0x8c] sm:$0xf]
  %v79 = vld [vmem:[%s1 + $0x90] sm:$0xf]
  %v80 = vld [vmem:[%s1 + $0x94] sm:$0xf]
  %v81 = vld [vmem:[%s1 + $0x98] sm:$0xf]
  %v82 = vld [vmem:[%s1 + $0x9c] sm:$0xf]
  %v83 = vld [vmem:[%s1 + $0xa0] sm:$0xf]
  %v84 = vld [vmem:[%s1 + $0xa4] sm:$0xf]
  %v85 = vld [vmem:[%s1 + $0xa8] sm:$0xf]
  %v86 = vld [vmem:[%s1 + $0xac] sm:$0xf]
  %v87 = vld [vmem:[%s1 + $0xb0] sm:$0xf]
  %v88 = vld [vmem:[%s1 + $0xb4] sm:$0xf]
  %v89 = vld [vmem:[%s1 + $0xb8] sm:$0xf]
  %v90 = vld [vmem:[%s1 + $0xbc] sm:$0xf]
  %v91 = vld [vmem:[%s1 + $0xc0] sm:$0xf]
  %v92 = vld [vmem:[%s1 + $0xc4] sm:$0xf]
  %v93 = vld [vmem:[%s1 + $0xc8] sm:$0xf]
  %v94 = vld [vmem:[%s1 + $0xcc] sm:$0xf]
  %v95 = vld [vmem:[%s1 + $0xd0] sm:$0xf]
  %v96 = vld [vmem:[%s1 + $0xd4] sm:$0xf]
  %v97 = vld [vmem:[%s1 + $0xd8] sm:$0xf]
  %v98 = vld [vmem:[%s1 + $0xdc] sm:$0xf]
  %v99 = vld [vmem:[%s1 + $0xe0] sm:$0xf]
  %v100 = vld [vmem:[%s1 + $0xe4] sm:$0xf]
  %v101 = vld [vmem:[%s1 + $0xe8] sm:$0xf]
  %v102 = vld [vmem:[%s1 + $0xec] sm:$0xf]
  %v103 = vld [vmem:[%s1 + $0xf0] sm:$0xf]
  %v104 = vld [vmem:[%s1 + $0xf4] sm:$0xf]
  %v105 = vld [vmem:[%s1 + $0xf8] sm:$0xf]
  %v106 = vld [vmem:[%s1 + $0xfc] sm:$0xf]
  %v107 = vld [vmem:[%s1 + $0x100] sm:$0xf]
  %v108 = vld [vmem:[%s1 + $0x104] sm:$0xf]
  %v109 = vld [vmem:[%s1 + $0x108] sm:$0xf]
  %v110 = vld [vmem:[%s1 + $0x10c] sm:$0xf]
  %v111 = vld [vmem:[%s1 + $0x110] sm:$0xf]
  %v112 = vld [vmem:[%s1 + $0x114] sm:$0xf]
  %v113 = vld [vmem:[%s1 + $0x118] sm:$0xf]
  %v114 = vld [vmem:[%s1 + $0x11c] sm:$0xf]
  %v115 = vld [vmem:[%s1 + $0x120] sm:$0xf]
  %v116 = vld [vmem:[%s1 + $0x124] sm:$0xf]
  %v117 = vld [vmem:[%s1 + $0x128] sm:$0xf]
  %v118 = vld [vmem:[%s1 + $0x12c] sm:$0xf]
  %v119 = vld [vmem:[%s1 + $0x130] sm:$0xf]
  %v120 = vld [vmem:[%s1 + $0x134] sm:$0xf]
  %v121 = vld [vmem:[%s1 + $0x138] sm:$0xf]
  %v122 = vld [vmem:[%s1 + $0x13c] sm:$0xf]
  %v123 = vld [vmem:[%s1 + $0x140] sm:$0xf]
  %v124 = vld [vmem:[%s1 + $0x144] sm:$0xf]
  %v125 = vld [vmem:[%s1 + $0x148] sm:$0xf]
  %v126 = vld [vmem:[%s1 + $0x14c] sm:$0xf]
  %v127 = vld [vmem:[%s1 + $0x150] sm:$0xf]
  %v128 = vld [vmem:[%s1 + $0x154] sm:$0xf]
  %v129 = vld [vmem:[%s1 + $0x158] sm:$0xf]
  %v130 = vld [vmem:[%s1 + $0x15c] sm:$0xf]
  %v131 = vld [vmem:[%s1 + $0x160] sm:$0xf]
  %v132 = vld [vmem:[%s1 + $0x164] sm:$0xf]
  %v133 = vld [vmem:[%s1 + $0x168] sm:$0xf]
  %v134 = vld [vmem:[%s1 + $0x16c] sm:$0xf]
  %v135 = vld [vmem:[%s1 + $0x170] sm:$0xf]
  %v136 = vld [vmem:[%s1 + $0x174] sm:$0xf]
  %v137 = vld [vmem:[%s1 + $0x178] sm:$0xf]
  %v138 = vld [vmem:[%s1 + $0x17c] sm:$0xf]
  %v139 = vld [vmem:[%s1 + $0x180] sm:$0xf]
  %v140 = vld [vmem:[%s1 + $0x184] sm:$0xf]
  %v141 = vld [vmem:[%s1 + $0x188] sm:$0xf]
  %v142 = vld [vmem:[%s1 + $0x18c] sm:$0xf]
  %v143 = vld [vmem:[%s1 + $0x190] sm:$0xf]
  %v144 = vld [vmem:[%s1 + $0x194] sm:$0xf]
  %v145 = vld [vmem:[%s1 + $0x198] sm:$0xf]
  %v146 = vld [vmem:[%s1 + $0x19c] sm:$0xf]
  %v147 = vld [vmem:[%s1 + $0x1a0] sm:$0xf]
  %v148 = vld [vmem:[%s1 + $0x1a4] sm:$0xf]
  %v149 = vld [vmem:[%s1 + $0x1a8] sm:$0xf]
  %v150 = vld [vmem:[%s1 + $0x1ac] sm:$0xf]
  %v151 = vld [vmem:[%s1 + $0x1b0] sm:$0xf]
  %v152 = vld [vmem:[%s1 + $0x1b4] sm:$0xf]
  %v153 = vld [vmem:[%s1 + $0x1b8] sm:$0xf]
  %v154 = vld [vmem:[%s1 + $0x1bc] sm:$0xf]
  %v155 = vld [vmem:[%s1 + $0x1c0] sm:$0xf]
  %v156 = vld [vmem:[%s1 + $0x1c4] sm:$0xf]
  %v157 = vld [vmem:[%s1 + $0x1c8] sm:$0xf]
  %v158 = vld [vmem:[%s1 + $0x1cc] sm:$0xf]
  %v159 = vld [vmem:[%s1 + $0x1d0] sm:$0xf]
  %v160 = vld [vmem:[%s1 + $0x1d4] sm:$0xf]
  %v161 = vld [vmem:[%s1 + $0x1d8] sm:$0xf]
  %v162 = vld [vmem:[%s1 + $0x1dc] sm:$0xf]
  %v163 = vld [vmem:[%s1 + $0x1e0] sm:$0xf]
  %v164 = vld [vmem:[%s1 + $0x1e4] sm:$0xf]
  %v165 = vld [vmem:[%s1 + $0x1e8] sm:$0xf]
  %v166 = vld [vmem:[%s1 + $0x1ec] sm:$0xf]
  %v167 = vld [vmem:[%s1 + $0x1f0] sm:$0xf]
  %v168 = vld [vmem:[%s1 + $0x1f4] sm:$0xf]
  %v169 = vld [vmem:[%s1 + $0x1f8] sm:$0xf]
  %v170 = vld [vmem:[%s1 + $0x1fc] sm:$0xf]
  %v171 = vld [vmem:[%s1 + $0x200] sm:$0xf]
  %v172 = vld [vmem:[%s1 + $0x204] sm:$0xf]
  %v173 = vld [vmem:[%s1 + $0x208] sm:$0xf]
  %v174 = vld [vmem:[%s1 + $0x20c] sm:$0xf]
  %v175 = vld [vmem:[%s1 + $0x210] sm:$0xf]
  %v176 = vld [vmem:[%s1 + $0x214] sm:$0xf]
  %v177 = vld [vmem:[%s1 + $0x218] sm:$0xf]
  %v178 = vld [vmem:[%s1 + $0x21c] sm:$0xf]
  %v179 = vld [vmem:[%s1 + $0x220] sm:$0xf]
  %v180 = vld [vmem:[%s1 + $0x224] sm:$0xf]
  %v181 = vld [vmem:[%s1 + $0x228] sm:$0xf]
  %v182 = vld [vmem:[%s1 + $0x22c] sm:$0xf]
  %v183 = vld [vmem:[%s1 + $0x230] sm:$0xf]
  %v184 = vld [vmem:[%s1 + $0x234] sm:$0xf]
  %v185 = vld [vmem:[%s1 + $0x238] sm:$0xf]
  %v186 = vld [vmem:[%s1 + $0x23c] sm:$0xf]
  %v187 = vld [vmem:[%s1 + $0x240] sm:$0xf]
  %v188 = vld [vmem:[%s1 + $0x244] sm:$0xf]
  %v189 = vld [vmem:[%s1 + $0x248] sm:$0xf]
  %v190 = vld [vmem:[%s1 + $0x24c] sm:$0xf]
  %v191 = vld [vmem:[%s1 + $0x250] sm:$0xf]
  %v192 = vld [vmem:[%s1 + $0x254] sm:$0xf]
  %v193 = vld [vmem:[%s1 + $0x258] sm:$0xf]
  %v194 = vld [vmem:[%s1 + $0x25c] sm:$0xf]
  %v195 = vld [vmem:[%s1 + $0x260] sm:$0xf]
  %v196 = vld [vmem:[%s1 + $0x264] sm:$0xf]
  %v197 = vld [vmem:[%s1 + $0x268] sm:$0xf]
  %v198 = vld [vmem:[%s1 + $0x26c] sm:$0xf]
  %v199 = vld [vmem:[%s1 + $0x270] sm:$0xf]
  %v200 = vld [vmem:[%s1 + $0x274] sm:$0xf]
  %v201 = vld [vmem:[%s1 + $0x278] sm:$0xf]
  %v202 = vld [vmem:[%s1 + $0x27c] sm:$0xf]
  %v203 = vld [vmem:[%s1 + $0x280] sm:$0xf]
  %v204 = vld [vmem:[%s1 + $0x284] sm:$0xf]
  %v205 = vld [vmem:[%s1 + $0x288] sm:$0xf]
  %v206 = vld [vmem:[%s1 + $0x28c] sm:$0xf]
  %v207 = vld [vmem:[%s1 + $0x290] sm:$0xf]
  %v208 = vld [vmem:[%s1 + $0x294] sm:$0xf]
  %v209 = vld [vmem:[%s1 + $0x298] sm:$0xf]
  %v210 = vld [vmem:[%s1 + $0x29c] sm:$0xf]
  %v211 = vld [vmem:[%s1 + $0x2a0] sm:$0xf]
  %v212 = vld [vmem:[%s1 + $0x2a4] sm:$0xf]
  %v213 = vld [vmem:[%s1 + $0x2a8] sm:$0xf]
  %v214 = vld [vmem:[%s1 + $0x2ac] sm:$0xf]
  %v215 = vld [vmem:[%s1 + $0x2b0] sm:$0xf]
  %v216 = vld [vmem:[%s1 + $0x2b4] sm:$0xf]
  %v217 = vld [vmem:[%s1 + $0x2b8] sm:$0xf]
  %v218 = vld [vmem:[%s1 + $0x2bc] sm:$0xf]
  %v219 = vld [vmem:[%s1 + $0x2c0] sm:$0xf]
  %v220 = vld [vmem:[%s1 + $0x2c4] sm:$0xf]
  %v221 = vld [vmem:[%s1 + $0x2c8] sm:$0xf]
  %v222 = vld [vmem:[%s1 + $0x2cc] sm:$0xf]
  %v223 = vld [vmem:[%s1 + $0x2d0] sm:$0xf]
  %v224 = vld [vmem:[%s1 + $0x2d4] sm:$0xf]
  %v225 = vld [vmem:[%s1 + $0x2d8] sm:$0xf]
  %v226 = vld [vmem:[%s1 + $0x2dc] sm:$0xf]
  %v227 = vld [vmem:[%s1 + $0x2e0] sm:$0xf]
  %v228 = vld [vmem:[%s1 + $0x2e4] sm:$0xf]
  %v229 = vld [vmem:[%s1 + $0x2e8] sm:$0xf]
  %v230 = vld [vmem:[%s1 + $0x2ec] sm:$0xf]
  %v231 = vld [vmem:[%s1 + $0x2f0] sm:$0xf]
  %v232 = vld [vmem:[%s1 + $0x2f4] sm:$0xf]
  %v233 = vld [vmem:[%s1 + $0x2f8] sm:$0xf]
  %v234 = vld [vmem:[%s1 + $0x2fc] sm:$0xf]
  %v235 = vld [vmem:[%s1 + $0x300] sm:$0xf]
  %v236 = vld [vmem:[%s1 + $0x304] sm:$0xf]
  %v237 = vld [vmem:[%s1 + $0x308] sm:$0xf]
  %v238 = vld [vmem:[%s1 + $0x30c] sm:$0xf]
  %v239 = vld [vmem:[%s1 + $0x310] sm:$0xf]
  %v240 = vld [vmem:[%s1 + $0x314] sm:$0xf]
  %v241 = vld [vmem:[%s1 + $0x318] sm:$0xf]
  %v242 = vld [vmem:[%s1 + $0x31c] sm:$0xf]
  %v243 = vld [vmem:[%s1 + $0x320] sm:$0xf]
  %v244 = vld [vmem:[%s1 + $0x324] sm:$0xf]
  %v245 = vld [vmem:[%s1 + $0x328] sm:$0xf]
  %v246 = vld [vmem:[%s1 + $0x32c] sm:$0xf]
  %v247 = vld [vmem:[%s1 + $0x330] sm:$0xf]
  %v248 = vld [vmem:[%s1 + $0x334] sm:$0xf]
  %v249 = vld [vmem:[%s1 + $0x338] sm:$0xf]
  %v250 = vld [vmem:[%s1 + $0x33c] sm:$0xf]
  %v251 = vld [vmem:[%s1 + $0x340] sm:$0xf]
  %v252 = vld [vmem:[%s1 + $0x344] sm:$0xf]
  %v253 = vld [vmem:[%s1 + $0x348] sm:$0xf]
  %v254 = vld [vmem:[%s1 + $0x34c] sm:$0xf]
  %v255 = vld [vmem:[%s1 + $0x350] sm:$0xf]
  %v256 = vld [vmem:[%s1 + $0x354] sm:$0xf]
  %v257 = vld [vmem:[%s1 + $0x358] sm:$0xf]
  %v258 = vld [vmem:[%s1 + $0x35c] sm:$0xf]
  %v259 = vld [vmem:[%s1 + $0x360] sm:$0xf]
  %v260 = vld [vmem:[%s1 + $0x364] sm:$0xf]
  %v261 = vld [vmem:[%s1 + $0x368] sm:$0xf]
  %v262 = vld [vmem:[%s1 + $0x36c] sm:$0xf]
  %v263 = vld [vmem:[%s1 + $0x370] sm:$0xf]
  %v264 = vld [vmem:[%s1 + $0x374] sm:$0xf]
  %v265 = vld [vmem:[%s1 + $0x378] sm:$0xf]
  %v266 = vld [vmem:[%s1 + $0x37c] sm:$0xf]
  %v267 = vld [vmem:[%s1 + $0x380] sm:$0xf]
  %v268 = vld [vmem:[%s1 + $0x384] sm:$0xf]
  %v269 = vld [vmem:[%s1 + $0x388] sm:$0xf]
  %v270 = vld [vmem:[%s1 + $0x38c] sm:$0xf]
  %v271 = vld [vmem:[%s1 + $0x390] sm:$0xf]
  %v272 = vld [vmem:[%s1 + $0x394] sm:$0xf]
  %v273 = vld [vmem:[%s1 + $0x398] sm:$0xf]
  %v274 = vld [vmem:[%s1 + $0x39c] sm:$0xf]
  %v275 = vld [vmem:[%s1 + $0x3a0] sm:$0xf]
  %v276 = vld [vmem:[%s1 + $0x3a4] sm:$0xf]
  %v277 = vld [vmem:[%s1 + $0x3a8] sm:$0xf]
  %v278 = vld [vmem:[%s1 + $0x3ac] sm:$0xf]
  %v279 = vld [vmem:[%s1 + $0x3b0] sm:$0xf]
  %v280 = vld [vmem:[%s1 + $0x3b4] sm:$0xf]
  %v281 = vld [vmem:[%s1 + $0x3b8] sm:$0xf]
  %v282 = vld [vmem:[%s1 + $0x3bc] sm:$0xf]
  %v283 = vld [vmem:[%s1 + $0x3c0] sm:$0xf]
  %v284 = vld [vmem:[%s1 + $0x3c4] sm:$0xf]
  %v285 = vld [vmem:[%s1 + $0x3c8] sm:$0xf]
  %v286 = vld [vmem:[%s1 + $0x3cc] sm:$0xf]
  %v287 = vld [vmem:[%s1 + $0x3d0] sm:$0xf]
  %v288 = vld [vmem:[%s1 + $0x3d4] sm:$0xf]
  %v289 = vld [vmem:[%s1 + $0x3d8] sm:$0xf]
  %v290 = vld [vmem:[%s1 + $0x3dc] sm:$0xf]
  %v291 = vld [vmem:[%s1 + $0x3e0] sm:$0xf]
  %v292 = vld [vmem:[%s1 + $0x3e4] sm:$0xf]
  %v293 = vld [vmem:[%s1 + $0x3e8] sm:$0xf]
  %v294 = vld [vmem:[%s1 + $0x3ec] sm:$0xf]
  %v295 = vld [vmem:[%s1 + $0x3f0] sm:$0xf]
  %v296 = vld [vmem:[%s1 + $0x3f4] sm:$0xf]
  %v297 = vld [vmem:[%s1 + $0x3f8] sm:$0xf]
  %v298 = vld [vmem:[%s1 + $0x3fc] sm:$0xf]
  %v299 = vld [vmem:[%s1 + $0x400] sm:$0xf]
  %v300 = vld [vmem:[%s1 + $0x404] sm:$0xf]
  %v301 = vld [vmem:[%s1 + $0x408] sm:$0xf]
  %v302 = vld [vmem:[%s1 + $0x40c] sm:$0xf]
  %v303 = vld [vmem:[%s1 + $0x410] sm:$0xf]
  %v304 = vld [vmem:[%s1 + $0x414] sm:$0xf]
  %v305 = vld [vmem:[%s1 + $0x418] sm:$0xf]
  %v306 = vld [vmem:[%s1 + $0x41c] sm:$0xf]
  %v307 = vld [vmem:[%s1 + $0x420] sm:$0xf]
  %v308 = vld [vmem:[%s1 + $0x424] sm:$0xf]
  %v309 = vld [vmem:[%s1 + $0x428] sm:$0xf]
  %v310 = vld [vmem:[%s1 + $0x42c] sm:$0xf]
  %v311 = vld [vmem:[%s1 + $0x430] sm:$0xf]
  %v312 = vld [vmem:[%s1 + $0x434] sm:$0xf]
  %v313 = vld [vmem:[%s1 + $0x438] sm:$0xf]
  %v314 = vld [vmem:[%s1 + $0x43c] sm:$0xf]
  %v315 = vld [vmem:[%s1 + $0x440] sm:$0xf]
  %v316 = vld [vmem:[%s1 + $0x444] sm:$0xf]
  %v317 = vld [vmem:[%s1 + $0x448] sm:$0xf]
  %v318 = vld [vmem:[%s1 + $0x44c] sm:$0xf]
  %v319 = vld [vmem:[%s1 + $0x450] sm:$0xf]
  %v320 = vld [vmem:[%s1 + $0x454] sm:$0xf]
  %v321 = vld [vmem:[%s1 + $0x458] sm:$0xf]
  %v322 = vld [vmem:[%s1 + $0x45c] sm:$0xf]
  %v323 = vld [vmem:[%s1 + $0x460] sm:$0xf]
  %v324 = vld [vmem:[%s1 + $0x464] sm:$0xf]
  %v325 = vld [vmem:[%s1 + $0x468] sm:$0xf]
  %v326 = vld [vmem:[%s1 + $0x46c] sm:$0xf]
  %v327 = vld [vmem:[%s1 + $0x470] sm:$0xf]
  %v328 = vld [vmem:[%s1 + $0x474] sm:$0xf]
  %v329 = vld [vmem:[%s1 + $0x478] sm:$0xf]
  %v330 = vld [vmem:[%s1 + $0x47c] sm:$0xf]
  %v331 = vld [vmem:[%s1 + $0x480] sm:$0xf]
  %v332 = vld [vmem:[%s1 + $0x484] sm:$0xf]
  %v333 = vld [vmem:[%s1 + $0x488] sm:$0xf]
  %v334 = vld [vmem:[%s1 + $0x48c] sm:$0xf]
  %v335 = vld [vmem:[%s1 + $0x490] sm:$0xf]
  %v336 = vld [vmem:[%s1 + $0x494] sm:$0xf]
  %v337 = vld [vmem:[%s1 + $0x498] sm:$0xf]
  %v338 = vld [vmem:[%s1 + $0x49c] sm:$0xf]
  %v339 = vld [vmem:[%s1 + $0x4a0] sm:$0xf]
  %v340 = vld [vmem:[%s1 + $0x4a4] sm:$0xf]
  %v341 = vld [vmem:[%s1 + $0x4a8] sm:$0xf]
  %v342 = vld [vmem:[%s1 + $0x4ac] sm:$0xf]
  %v343 = vld [vmem:[%s1 + $0x4b0] sm:$0xf]
  %v344 = vld [vmem:[%s1 + $0x4b4] sm:$0xf]
  %v345 = vld [vmem:[%s1 + $0x4b8] sm:$0xf]
  %v346 = vld [vmem:[%s1 + $0x4bc] sm:$0xf]
  %v347 = vld [vmem:[%s1 + $0x4c0] sm:$0xf]
  %v348 = vld [vmem:[%s1 + $0x4c4] sm:$0xf]
  %v349 = vld [vmem:[%s1 + $0x4c8] sm:$0xf]
  %v350 = vld [vmem:[%s1 + $0x4cc] sm:$0xf]
  %v351 = vld [vmem:[%s1 + $0x4d0] sm:$0xf]
  %v352 = vld [vmem:[%s1 + $0x4d4] sm:$0xf]
  %v353 = vld [vmem:[%s1 + $0x4d8] sm:$0xf]
  %v354 = vld [vmem:[%s1 + $0x4dc] sm:$0xf]
  %v355 = vld [vmem:[%s1 + $0x4e0] sm:$0xf]
  %v356 = vld [vmem:[%s1 + $0x4e4] sm:$0xf]
  %v357 = vld [vmem:[%s1 + $0x4e8] sm:$0xf]
  %v358 = vld [vmem:[%s1 + $0x4ec] sm:$0xf]
  %v359 = vld [vmem:[%s1 + $0x4f0] sm:$0xf]
  %v360 = vld [vmem:[%s1 + $0x4f4] sm:$0xf]
  %v361 = vld [vmem:[%s1 + $0x4f8] sm:$0xf]
  %v362 = vld [vmem:[%s1 + $0x4fc] sm:$0xf]
  %v363 = vld [vmem:[%s1 + $0x500] sm:$0xf]
  %v364 = vld [vmem:[%s1 + $0x504] sm:$0xf]
  %v365 = vld [vmem:[%s1 + $0x508] sm:$0xf]
  %v366 = vld [vmem:[%s1 + $0x50c] sm:$0xf]
  %v367 = vld [vmem:[%s1 + $0x510] sm:$0xf]
  %v368 = vld [vmem:[%s1 + $0x514] sm:$0xf]
  %v369 = vld [vmem:[%s1 + $0x518] sm:$0xf]
  %v370 = vld [vmem:[%s1 + $0x51c] sm:$0xf]
  %v371 = vld [vmem:[%s1 + $0x520] sm:$0xf]
  %v372 = vld [vmem:[%s1 + $0x524] sm:$0xf]
  %v373 = vld [vmem:[%s1 + $0x528] sm:$0xf]
  %v374 = vld [vmem:[%s1 + $0x52c] sm:$0xf]
  %v375 = vld [vmem:[%s1 + $0x530] sm:$0xf]
  %v376 = vld [vmem:[%s1 + $0x534] sm:$0xf]
  %v377 = vld [vmem:[%s1 + $0x538] sm:$0xf]
  %v378 = vld [vmem:[%s1 + $0x53c] sm:$0xf]
  %v379 = vld [vmem:[%s1 + $0x540] sm:$0xf]
  %v380 = vld [vmem:[%s1 + $0x544] sm:$0xf]
  %v381 = vld [vmem:[%s1 + $0x548] sm:$0xf]
  %v382 = vld [vmem:[%s1 + $0x54c] sm:$0xf]
  %v383 = vld [vmem:[%s1 + $0x550] sm:$0xf]
  %v384 = vld [vmem:[%s1 + $0x554] sm:$0xf]
  %v385 = vld [vmem:[%s1 + $0x558] sm:$0xf]
  %v386 = vld [vmem:[%s1 + $0x55c] sm:$0xf]
  %v387 = vld [vmem:[%s1 + $0x560] sm:$0xf]
  %v388 = vld [vmem:[%s1 + $0x564] sm:$0xf]
  %v389 = vld [vmem:[%s1 + $0x568] sm:$0xf]
  %v390 = vld [vmem:[%s1 + $0x56c] sm:$0xf]
  %v391 = vld [vmem:[%s1 + $0x570] sm:$0xf]
  %v392 = vld [vmem:[%s1 + $0x574] sm:$0xf]
  %v393 = vld [vmem:[%s1 + $0x578] sm:$0xf]
  %v394 = vld [vmem:[%s1 + $0x57c] sm:$0xf]
  %v395 = vld [vmem:[%s1 + $0x580] sm:$0xf]
  %v396 = vld [vmem:[%s1 + $0x584] sm:$0xf]
  %v397 = vld [vmem:[%s1 + $0x588] sm:$0xf]
  %v398 = vld [vmem:[%s1 + $0x58c] sm:$0xf]
  %v399 = vld [vmem:[%s1 + $0x590] sm:$0xf]
  %v400 = vld [vmem:[%s1 + $0x594] sm:$0xf]
  %v401 = vld [vmem:[%s1 + $0x598] sm:$0xf]
  %v402 = vld [vmem:[%s1 + $0x59c] sm:$0xf]
  %v403 = vld [vmem:[%s1 + $0x5a0] sm:$0xf]
  %v404 = vld [vmem:[%s1 + $0x5a4] sm:$0xf]
  %v405 = vld [vmem:[%s1 + $0x5a8] sm:$0xf]
  %v406 = vld [vmem:[%s1 + $0x5ac] sm:$0xf]
  %v407 = vld [vmem:[%s1 + $0x5b0] sm:$0xf]
  %v408 = vld [vmem:[%s1 + $0x5b4] sm:$0xf]
  %v409 = vld [vmem:[%s1 + $0x5b8] sm:$0xf]
  %v410 = vld [vmem:[%s1 + $0x5bc] sm:$0xf]
  %v411 = vld [vmem:[%s1 + $0x5c0] sm:$0xf]
  %v412 = vld [vmem:[%s1 + $0x5c4] sm:$0xf]
  %v413 = vld [vmem:[%s1 + $0x5c8] sm:$0xf]
  %v414 = vld [vmem:[%s1 + $0x5cc] sm:$0xf]
  %v415 = vld [vmem:[%s1 + $0x5d0] sm:$0xf]
  %v416 = vld [vmem:[%s1 + $0x5d4] sm:$0xf]
  %v417 = vld [vmem:[%s1 + $0x5d8] sm:$0xf]
  %v418 = vld [vmem:[%s1 + $0x5dc] sm:$0xf]
  %v419 = vld [vmem:[%s1 + $0x5e0] sm:$0xf]
  %v420 = vld [vmem:[%s1 + $0x5e4] sm:$0xf]
  %v421 = vld [vmem:[%s1 + $0x5e8] sm:$0xf]
  %v422 = vld [vmem:[%s1 + $0x5ec] sm:$0xf]
  %v423 = vld [vmem:[%s1 + $0x5f0] sm:$0xf]
  %v424 = vld [vmem:[%s1 + $0x5f4] sm:$0xf]
  %v425 = vld [vmem:[%s1 + $0x5f8] sm:$0xf]
  %v426 = vld [vmem:[%s1 + $0x5fc] sm:$0xf]
  %v427 = vld [vmem:[%s1 + $0x600] sm:$0xf]
  %v428 = vld [vmem:[%s1 + $0x604] sm:$0xf]
  %v429 = vld [vmem:[%s1 + $0x608] sm:$0xf]
  %v430 = vld [vmem:[%s1 + $0x60c] sm:$0xf]
  %v431 = vld [vmem:[%s1 + $0x610] sm:$0xf]
  %v432 = vld [vmem:[%s1 + $0x614] sm:$0xf]
  %v433 = vld [vmem:[%s1 + $0x618] sm:$0xf]
  %v434 = vld [vmem:[%s1 + $0x61c] sm:$0xf]
  %v435 = vld [vmem:[%s1 + $0x620] sm:$0xf]
  %v436 = vld [vmem:[%s1 + $0x624] sm:$0xf]
  %v437 = vld [vmem:[%s1 + $0x628] sm:$0xf]
  %v438 = vld [vmem:[%s1 + $0x62c] sm:$0xf]
  %v439 = vld [vmem:[%s1 + $0x630] sm:$0xf]
  %v440 = vld [vmem:[%s1 + $0x634] sm:$0xf]
  %v441 = vld [vmem:[%s1 + $0x638] sm:$0xf]
  %v442 = vld [vmem:[%s1 + $0x63c] sm:$0xf]
  %v443 = vld [vmem:[%s1 + $0x640] sm:$0xf]
  %v444 = vld [vmem:[%s1 + $0x644] sm:$0xf]
  %v445 = vld [vmem:[%s1 + $0x648] sm:$0xf]
  %v446 = vld [vmem:[%s1 + $0x64c] sm:$0xf]
  %v447 = vld [vmem:[%s1 + $0x650] sm:$0xf]
  %v448 = vld [vmem:[%s1 + $0x654] sm:$0xf]
  %v449 = vld [vmem:[%s1 + $0x658] sm:$0xf]
  %v450 = vld [vmem:[%s1 + $0x65c] sm:$0xf]
  %v451 = vld [vmem:[%s1 + $0x660] sm:$0xf]
  %v452 = vld [vmem:[%s1 + $0x664] sm:$0xf]
  %v453 = vld [vmem:[%s1 + $0x668] sm:$0xf]
  %v454 = vld [vmem:[%s1 + $0x66c] sm:$0xf]
  %v455 = vld [vmem:[%s1 + $0x670] sm:$0xf]
  %v456 = vld [vmem:[%s1 + $0x674] sm:$0xf]
  %v457 = vld [vmem:[%s1 + $0x678] sm:$0xf]
  %v458 = vld [vmem:[%s1 + $0x67c] sm:$0xf]
  %v459 = vld [vmem:[%s1 + $0x680] sm:$0xf]
  %v460 = vld [vmem:[%s1 + $0x684] sm:$0xf]
  %v461 = vld [vmem:[%s1 + $0x688] sm:$0xf]
  %v462 = vld [vmem:[%s1 + $0x68c] sm:$0xf]
  %v463 = vld [vmem:[%s1 + $0x690] sm:$0xf]
  %v464 = vld [vmem:[%s1 + $0x694] sm:$0xf]
  %v465 = vld [vmem:[%s1 + $0x698] sm:$0xf]
  %v466 = vld [vmem:[%s1 + $0x69c] sm:$0xf]
  %v467 = vld [vmem:[%s1 + $0x6a0] sm:$0xf]
  %v468 = vld [vmem:[%s1 + $0x6a4] sm:$0xf]
  %v469 = vld [vmem:[%s1 + $0x6a8] sm:$0xf]
  %v470 = vld [vmem:[%s1 + $0x6ac] sm:$0xf]
  %v471 = vld [vmem:[%s1 + $0x6b0] sm:$0xf]
  %v472 = vld [vmem:[%s1 + $0x6b4] sm:$0xf]
  %v473 = vld [vmem:[%s1 + $0x6b8] sm:$0xf]
  %v474 = vld [vmem:[%s1 + $0x6bc] sm:$0xf]
  %v475 = vld [vmem:[%s1 + $0x6c0] sm:$0xf]
  %v476 = vld [vmem:[%s1 + $0x6c4] sm:$0xf]
  %v477 = vld [vmem:[%s1 + $0x6c8] sm:$0xf]
  %v478 = vld [vmem:[%s1 + $0x6cc] sm:$0xf]
  %v479 = vld [vmem:[%s1 + $0x6d0] sm:$0xf]
  %v480 = vld [vmem:[%s1 + $0x6d4] sm:$0xf]
  %v481 = vld [vmem:[%s1 + $0x6d8] sm:$0xf]
  %v482 = vld [vmem:[%s1 + $0x6dc] sm:$0xf]
  %v483 = vld [vmem:[%s1 + $0x6e0] sm:$0xf]
  %v484 = vld [vmem:[%s1 + $0x6e4] sm:$0xf]
  %v485 = vld [vmem:[%s1 + $0x6e8] sm:$0xf]
  %v486 = vld [vmem:[%s1 + $0x6ec] sm:$0xf]
  %v487 = vld [vmem:[%s1 + $0x6f0] sm:$0xf]
  %v488 = vld [vmem:[%s1 + $0x6f4] sm:$0xf]
  %v489 = vld [vmem:[%s1 + $0x6f8] sm:$0xf]
  %v490 = vld [vmem:[%s1 + $0x6fc] sm:$0xf]
  %v491 = vld [vmem:[%s1 + $0x700] sm:$0xf]
  %v492 = vld [vmem:[%s1 + $0x704] sm:$0xf]
  %v493 = vld [vmem:[%s1 + $0x708] sm:$0xf]
  %v494 = vld [vmem:[%s1 + $0x70c] sm:$0xf]
  %v495 = vld [vmem:[%s1 + $0x710] sm:$0xf]
  %v496 = vld [vmem:[%s1 + $0x714] sm:$0xf]
  %v497 = vld [vmem:[%s1 + $0x718] sm:$0xf]
  %v498 = vld [vmem:[%s1 + $0x71c] sm:$0xf]
  %v499 = vld [vmem:[%s1 + $0x720] sm:$0xf]
  %v500 = vld [vmem:[%s1 + $0x724] sm:$0xf]
  %v501 = vld [vmem:[%s1 + $0x728] sm:$0xf]
  %v502 = vld [vmem:[%s1 + $0x72c] sm:$0xf]
  %v503 = vld [vmem:[%s1 + $0x730] sm:$0xf]
  %v504 = vld [vmem:[%s1 + $0x734] sm:$0xf]
  %v505 = vld [vmem:[%s1 + $0x738] sm:$0xf]
  %v506 = vld [vmem:[%s1 + $0x73c] sm:$0xf]
  %v507 = vld [vmem:[%s1 + $0x740] sm:$0xf]
  %v508 = vld [vmem:[%s1 + $0x744] sm:$0xf]
  %v509 = vld [vmem:[%s1 + $0x748] sm:$0xf]
  %v510 = vld [vmem:[%s1 + $0x74c] sm:$0xf]
  %v511 = vld [vmem:[%s1 + $0x750] sm:$0xf]
  %v512 = vld [vmem:[%s1 + $0x754] sm:$0xf]
  %v513 = vld [vmem:[%s1 + $0x758] sm:$0xf]
  %v514 = vld [vmem:[%s1 + $0x75c] sm:$0xf]
  %v515 = vld [vmem:[%s1 + $0x760] sm:$0xf]
  %v516 = vld [vmem:[%s1 + $0x764] sm:$0xf]
  %v517 = vld [vmem:[%s1 + $0x768] sm:$0xf]
  %v518 = vld [vmem:[%s1 + $0x76c] sm:$0xf]
  %v519 = vld [vmem:[%s1 + $0x770] sm:$0xf]
  %v520 = vld [vmem:[%s1 + $0x774] sm:$0xf]
  %v521 = vld [vmem:[%s1 + $0x778] sm:$0xf]
  %v522 = vld [vmem:[%s1 + $0x77c] sm:$0xf]
  %v523 = vld [vmem:[%s1 + $0x780] sm:$0xf]
  %v524 = vld [vmem:[%s1 + $0x784] sm:$0xf]
  %v525 = vld [vmem:[%s1 + $0x788] sm:$0xf]
  %v526 = vld [vmem:[%s1 + $0x78c] sm:$0xf]
  %v527 = vld [vmem:[%s1 + $0x790] sm:$0xf]
  %v528 = vld [vmem:[%s1 + $0x794] sm:$0xf]
  %v529 = vld [vmem:[%s1 + $0x798] sm:$0xf]
  %v530 = vld [vmem:[%s1 + $0x79c] sm:$0xf]
  %v531 = vld [vmem:[%s1 + $0x7a0] sm:$0xf]
  %v532 = vld [vmem:[%s1 + $0x7a4] sm:$0xf]
  %v533 = vld [vmem:[%s1 + $0x7a8] sm:$0xf]
  %v534 = vld [vmem:[%s1 + $0x7ac] sm:$0xf]
  %v535 = vld [vmem:[%s1 + $0x7b0] sm:$0xf]
  %v536 = vld [vmem:[%s1 + $0x7b4] sm:$0xf]
  %v537 = vld [vmem:[%s1 + $0x7b8] sm:$0xf]
  %v538 = vld [vmem:[%s1 + $0x7bc] sm:$0xf]
  %v539 = vld [vmem:[%s1 + $0x7c0] sm:$0xf]
  %v540 = vld [vmem:[%s1 + $0x7c4] sm:$0xf]
  %v541 = vld [vmem:[%s1 + $0x7c8] sm:$0xf]
  %v542 = vld [vmem:[%s1 + $0x7cc] sm:$0xf]
  %v543 = vld [vmem:[%s1 + $0x7d0] sm:$0xf]
  %v544 = vld [vmem:[%s1 + $0x7d4] sm:$0xf]
  %v545 = vld [vmem:[%s1 + $0x7d8] sm:$0xf]
  %v546 = vld [vmem:[%s1 + $0x7dc] sm:$0xf]
  %v547 = vld [vmem:[%s1 + $0x7e0] sm:$0xf]
  %v548 = vld [vmem:[%s1 + $0x7e4] sm:$0xf]
  %v549 = vld [vmem:[%s1 + $0x7e8] sm:$0xf]
  %v550 = vld [vmem:[%s1 + $0x7ec] sm:$0xf]
  %v551 = vld [vmem:[%s1 + $0x7f0] sm:$0xf]
  %v552 = vld [vmem:[%s1 + $0x7f4] sm:$0xf]
  %v553 = vld [vmem:[%s1 + $0x7f8] sm:$0xf]
  %v554 = vld [vmem:[%s1 + $0x7fc] sm:$0xf]
  %v555 = vld [vmem:[%s2] sm:$0x1]
  %v557 = vlaneseq
  %v558 = vshrl.u32 %v557, 7
  %v559 = vsub.s32 0, %v558
  %v560 = vrot.slane %v555, %v559
  %v578 = vunpack.c.l.b16 %v27
  %v579 = vunpack.c.h.b16 %v27
  %v580 = vunpack.c.l.b16 %v28
  %v581 = vunpack.c.h.b16 %v28
  %v582 = vunpack.c.l.b16 %v29
  %v583 = vunpack.c.h.b16 %v29
  %v584 = vunpack.c.l.b16 %v30
  %v585 = vunpack.c.h.b16 %v30
  %v586 = vunpack.c.l.b16 %v31
  %v587 = vunpack.c.h.b16 %v31
  %v588 = vunpack.c.l.b16 %v32
  %v589 = vunpack.c.h.b16 %v32
  %v590 = vunpack.c.l.b16 %v33
  %v591 = vunpack.c.h.b16 %v33
  %v592 = vunpack.c.l.b16 %v34
  %v593 = vunpack.c.h.b16 %v34
  %v594 = vunpack.c.l.b16 %v35
  %v595 = vunpack.c.h.b16 %v35
  %v596 = vunpack.c.l.b16 %v36
  %v597 = vunpack.c.h.b16 %v36
  %v598 = vunpack.c.l.b16 %v37
  %v599 = vunpack.c.h.b16 %v37
  %v600 = vunpack.c.l.b16 %v38
  %v601 = vunpack.c.h.b16 %v38
  %v602 = vunpack.c.l.b16 %v39
  %v603 = vunpack.c.h.b16 %v39
  %v604 = vunpack.c.l.b16 %v40
  %v605 = vunpack.c.h.b16 %v40
  %v606 = vunpack.c.l.b16 %v41
  %v607 = vunpack.c.h.b16 %v41
  %v608 = vunpack.c.l.b16 %v42
  %v609 = vunpack.c.h.b16 %v42
  %v610 = vpack.c.b16 %v578, %v578
  %v611 = vpack.c.b16 %v579, %v579
  %v612 = vpack.c.b16 %v580, %v580
  %v613 = vpack.c.b16 %v581, %v581
  %v614 = vpack.c.b16 %v582, %v582
  %v615 = vpack.c.b16 %v583, %v583
  %v616 = vpack.c.b16 %v584, %v584
  %v617 = vpack.c.b16 %v585, %v585
  %v618 = vpack.c.b16 %v586, %v586
  %v619 = vpack.c.b16 %v587, %v587
  %v620 = vpack.c.b16 %v588, %v588
  %v621 = vpack.c.b16 %v589, %v589
  %v622 = vpack.c.b16 %v590, %v590
  %v623 = vpack.c.b16 %v591, %v591
  %v624 = vpack.c.b16 %v592, %v592
  %v625 = vpack.c.b16 %v593, %v593
  %v626 = vpack.c.b16 %v594, %v594
  %v627 = vpack.c.b16 %v595, %v595
  %v628 = vpack.c.b16 %v596, %v596
  %v629 = vpack.c.b16 %v597, %v597
  %v630 = vpack.c.b16 %v598, %v598
  %v631 = vpack.c.b16 %v599, %v599
  %v632 = vpack.c.b16 %v600, %v600
  %v633 = vpack.c.b16 %v601, %v601
  %v634 = vpack.c.b16 %v602, %v602
  %v635 = vpack.c.b16 %v603, %v603
  %v636 = vpack.c.b16 %v604, %v604
  %v637 = vpack.c.b16 %v605, %v605
  %v638 = vpack.c.b16 %v606, %v606
  %v639 = vpack.c.b16 %v607, %v607
  %v640 = vpack.c.b16 %v608, %v608
  %v641 = vpack.c.b16 %v609, %v609
  %v1186 = vunpack.c.l.b16 %v43
  %v1187 = vunpack.c.l.b16 %v44
  %v1188 = vunpack.c.l.b16 %v45
  %v1189 = vunpack.c.l.b16 %v46
  %v1190 = vunpack.c.l.b16 %v47
  %v1191 = vunpack.c.l.b16 %v48
  %v1192 = vunpack.c.l.b16 %v49
  %v1193 = vunpack.c.l.b16 %v50
  %v1194 = vunpack.c.l.b16 %v51
  %v1195 = vunpack.c.l.b16 %v52
  %v1196 = vunpack.c.l.b16 %v53
  %v1197 = vunpack.c.l.b16 %v54
  %v1198 = vunpack.c.l.b16 %v55
  %v1199 = vunpack.c.l.b16 %v56
  %v1200 = vunpack.c.l.b16 %v57
  %v1201 = vunpack.c.l.b16 %v58
  %v1202 = vunpack.c.l.b16 %v59
  %v1203 = vunpack.c.l.b16 %v60
  %v1204 = vunpack.c.l.b16 %v61
  %v1205 = vunpack.c.l.b16 %v62
  %v1206 = vunpack.c.l.b16 %v63
  %v1207 = vunpack.c.l.b16 %v64
  %v1208 = vunpack.c.l.b16 %v65
  %v1209 = vunpack.c.l.b16 %v66
  %v1210 = vunpack.c.l.b16 %v67
  %v1211 = vunpack.c.l.b16 %v68
  %v1212 = vunpack.c.l.b16 %v69
  %v1213 = vunpack.c.l.b16 %v70
  %v1214 = vunpack.c.l.b16 %v71
  %v1215 = vunpack.c.l.b16 %v72
  %v1216 = vunpack.c.l.b16 %v73
  %v1217 = vunpack.c.l.b16 %v74
  %v1218 = vunpack.c.l.b16 %v75
  %v1219 = vunpack.c.l.b16 %v76
  %v1220 = vunpack.c.l.b16 %v77
  %v1221 = vunpack.c.l.b16 %v78
  %v1222 = vunpack.c.l.b16 %v79
  %v1223 = vunpack.c.l.b16 %v80
  %v1224 = vunpack.c.l.b16 %v81
  %v1225 = vunpack.c.l.b16 %v82
  %v1226 = vunpack.c.l.b16 %v83
  %v1227 = vunpack.c.l.b16 %v84
  %v1228 = vunpack.c.l.b16 %v85
  %v1229 = vunpack.c.l.b16 %v86
  %v1230 = vunpack.c.l.b16 %v87
  %v1231 = vunpack.c.l.b16 %v88
  %v1232 = vunpack.c.l.b16 %v89
  %v1233 = vunpack.c.l.b16 %v90
  %v1234 = vunpack.c.l.b16 %v91
  %v1235 = vunpack.c.l.b16 %v92
  %v1236 = vunpack.c.l.b16 %v93
  %v1237 = vunpack.c.l.b16 %v94
  %v1238 = vunpack.c.l.b16 %v95
  %v1239 = vunpack.c.l.b16 %v96
  %v1240 = vunpack.c.l.b16 %v97
  %v1241 = vunpack.c.l.b16 %v98
  %v1242 = vunpack.c.l.b16 %v99
  %v1243 = vunpack.c.l.b16 %v100
  %v1244 = vunpack.c.l.b16 %v101
  %v1245 = vunpack.c.l.b16 %v102
  %v1246 = vunpack.c.l.b16 %v103
  %v1247 = vunpack.c.l.b16 %v104
  %v1248 = vunpack.c.l.b16 %v105
  %v1249 = vunpack.c.l.b16 %v106
  %v1250 = vunpack.c.l.b16 %v107
  %v1251 = vunpack.c.l.b16 %v108
  %v1252 = vunpack.c.l.b16 %v109
  %v1253 = vunpack.c.l.b16 %v110
  %v1254 = vunpack.c.l.b16 %v111
  %v1255 = vunpack.c.l.b16 %v112
  %v1256 = vunpack.c.l.b16 %v113
  %v1257 = vunpack.c.l.b16 %v114
  %v1258 = vunpack.c.l.b16 %v115
  %v1259 = vunpack.c.l.b16 %v116
  %v1260 = vunpack.c.l.b16 %v117
  %v1261 = vunpack.c.l.b16 %v118
  %v1262 = vunpack.c.l.b16 %v119
  %v1263 = vunpack.c.l.b16 %v120
  %v1264 = vunpack.c.l.b16 %v121
  %v1265 = vunpack.c.l.b16 %v122
  %v1266 = vunpack.c.l.b16 %v123
  %v1267 = vunpack.c.l.b16 %v124
  %v1268 = vunpack.c.l.b16 %v125
  %v1269 = vunpack.c.l.b16 %v126
  %v1270 = vunpack.c.l.b16 %v127
  %v1271 = vunpack.c.l.b16 %v128
  %v1272 = vunpack.c.l.b16 %v129
  %v1273 = vunpack.c.l.b16 %v130
  %v1274 = vunpack.c.l.b16 %v131
  %v1275 = vunpack.c.l.b16 %v132
  %v1276 = vunpack.c.l.b16 %v133
  %v1277 = vunpack.c.l.b16 %v134
  %v1278 = vunpack.c.l.b16 %v135
  %v1279 = vunpack.c.l.b16 %v136
  %v1280 = vunpack.c.l.b16 %v137
  %v1281 = vunpack.c.l.b16 %v138
  %v1282 = vunpack.c.l.b16 %v139
  %v1283 = vunpack.c.l.b16 %v140
  %v1284 = vunpack.c.l.b16 %v141
  %v1285 = vunpack.c.l.b16 %v142
  %v1286 = vunpack.c.l.b16 %v143
  %v1287 = vunpack.c.l.b16 %v144
  %v1288 = vunpack.c.l.b16 %v145
  %v1289 = vunpack.c.l.b16 %v146
  %v1290 = vunpack.c.l.b16 %v147
  %v1291 = vunpack.c.l.b16 %v148
  %v1292 = vunpack.c.l.b16 %v149
  %v1293 = vunpack.c.l.b16 %v150
  %v1294 = vunpack.c.l.b16 %v151
  %v1295 = vunpack.c.l.b16 %v152
  %v1296 = vunpack.c.l.b16 %v153
  %v1297 = vunpack.c.l.b16 %v154
  %v1298 = vunpack.c.l.b16 %v155
  %v1299 = vunpack.c.l.b16 %v156
  %v1300 = vunpack.c.l.b16 %v157
  %v1301 = vunpack.c.l.b16 %v158
  %v1302 = vunpack.c.l.b16 %v159
  %v1303 = vunpack.c.l.b16 %v160
  %v1304 = vunpack.c.l.b16 %v161
  %v1305 = vunpack.c.l.b16 %v162
  %v1306 = vunpack.c.l.b16 %v163
  %v1307 = vunpack.c.l.b16 %v164
  %v1308 = vunpack.c.l.b16 %v165
  %v1309 = vunpack.c.l.b16 %v166
  %v1310 = vunpack.c.l.b16 %v167
  %v1311 = vunpack.c.l.b16 %v168
  %v1312 = vunpack.c.l.b16 %v169
  %v1313 = vunpack.c.l.b16 %v170
  %v1314 = vunpack.c.l.b16 %v171
  %v1315 = vunpack.c.l.b16 %v172
  %v1316 = vunpack.c.l.b16 %v173
  %v1317 = vunpack.c.l.b16 %v174
  %v1318 = vunpack.c.l.b16 %v175
  %v1319 = vunpack.c.l.b16 %v176
  %v1320 = vunpack.c.l.b16 %v177
  %v1321 = vunpack.c.l.b16 %v178
  %v1322 = vunpack.c.l.b16 %v179
  %v1323 = vunpack.c.l.b16 %v180
  %v1324 = vunpack.c.l.b16 %v181
  %v1325 = vunpack.c.l.b16 %v182
  %v1326 = vunpack.c.l.b16 %v183
  %v1327 = vunpack.c.l.b16 %v184
  %v1328 = vunpack.c.l.b16 %v185
  %v1329 = vunpack.c.l.b16 %v186
  %v1330 = vunpack.c.l.b16 %v187
  %v1331 = vunpack.c.l.b16 %v188
  %v1332 = vunpack.c.l.b16 %v189
  %v1333 = vunpack.c.l.b16 %v190
  %v1334 = vunpack.c.l.b16 %v191
  %v1335 = vunpack.c.l.b16 %v192
  %v1336 = vunpack.c.l.b16 %v193
  %v1337 = vunpack.c.l.b16 %v194
  %v1338 = vunpack.c.l.b16 %v195
  %v1339 = vunpack.c.l.b16 %v196
  %v1340 = vunpack.c.l.b16 %v197
  %v1341 = vunpack.c.l.b16 %v198
  %v1342 = vunpack.c.l.b16 %v199
  %v1343 = vunpack.c.l.b16 %v200
  %v1344 = vunpack.c.l.b16 %v201
  %v1345 = vunpack.c.l.b16 %v202
  %v1346 = vunpack.c.l.b16 %v203
  %v1347 = vunpack.c.l.b16 %v204
  %v1348 = vunpack.c.l.b16 %v205
  %v1349 = vunpack.c.l.b16 %v206
  %v1350 = vunpack.c.l.b16 %v207
  %v1351 = vunpack.c.l.b16 %v208
  %v1352 = vunpack.c.l.b16 %v209
  %v1353 = vunpack.c.l.b16 %v210
  %v1354 = vunpack.c.l.b16 %v211
  %v1355 = vunpack.c.l.b16 %v212
  %v1356 = vunpack.c.l.b16 %v213
  %v1357 = vunpack.c.l.b16 %v214
  %v1358 = vunpack.c.l.b16 %v215
  %v1359 = vunpack.c.l.b16 %v216
  %v1360 = vunpack.c.l.b16 %v217
  %v1361 = vunpack.c.l.b16 %v218
  %v1362 = vunpack.c.l.b16 %v219
  %v1363 = vunpack.c.l.b16 %v220
  %v1364 = vunpack.c.l.b16 %v221
  %v1365 = vunpack.c.l.b16 %v222
  %v1366 = vunpack.c.l.b16 %v223
  %v1367 = vunpack.c.l.b16 %v224
  %v1368 = vunpack.c.l.b16 %v225
  %v1369 = vunpack.c.l.b16 %v226
  %v1370 = vunpack.c.l.b16 %v227
  %v1371 = vunpack.c.l.b16 %v228
  %v1372 = vunpack.c.l.b16 %v229
  %v1373 = vunpack.c.l.b16 %v230
  %v1374 = vunpack.c.l.b16 %v231
  %v1375 = vunpack.c.l.b16 %v232
  %v1376 = vunpack.c.l.b16 %v233
  %v1377 = vunpack.c.l.b16 %v234
  %v1378 = vunpack.c.l.b16 %v235
  %v1379 = vunpack.c.l.b16 %v236
  %v1380 = vunpack.c.l.b16 %v237
  %v1381 = vunpack.c.l.b16 %v238
  %v1382 = vunpack.c.l.b16 %v239
  %v1383 = vunpack.c.l.b16 %v240
  %v1384 = vunpack.c.l.b16 %v241
  %v1385 = vunpack.c.l.b16 %v242
  %v1386 = vunpack.c.l.b16 %v243
  %v1387 = vunpack.c.l.b16 %v244
  %v1388 = vunpack.c.l.b16 %v245
  %v1389 = vunpack.c.l.b16 %v246
  %v1390 = vunpack.c.l.b16 %v247
  %v1391 = vunpack.c.l.b16 %v248
  %v1392 = vunpack.c.l.b16 %v249
  %v1393 = vunpack.c.l.b16 %v250
  %v1394 = vunpack.c.l.b16 %v251
  %v1395 = vunpack.c.l.b16 %v252
  %v1396 = vunpack.c.l.b16 %v253
  %v1397 = vunpack.c.l.b16 %v254
  %v1398 = vunpack.c.l.b16 %v255
  %v1399 = vunpack.c.l.b16 %v256
  %v1400 = vunpack.c.l.b16 %v257
  %v1401 = vunpack.c.l.b16 %v258
  %v1402 = vunpack.c.l.b16 %v259
  %v1403 = vunpack.c.l.b16 %v260
  %v1404 = vunpack.c.l.b16 %v261
  %v1405 = vunpack.c.l.b16 %v262
  %v1406 = vunpack.c.l.b16 %v263
  %v1407 = vunpack.c.l.b16 %v264
  %v1408 = vunpack.c.l.b16 %v265
  %v1409 = vunpack.c.l.b16 %v266
  %v1410 = vunpack.c.l.b16 %v267
  %v1411 = vunpack.c.l.b16 %v268
  %v1412 = vunpack.c.l.b16 %v269
  %v1413 = vunpack.c.l.b16 %v270
  %v1414 = vunpack.c.l.b16 %v271
  %v1415 = vunpack.c.l.b16 %v272
  %v1416 = vunpack.c.l.b16 %v273
  %v1417 = vunpack.c.l.b16 %v274
  %v1418 = vunpack.c.l.b16 %v275
  %v1419 = vunpack.c.l.b16 %v276
  %v1420 = vunpack.c.l.b16 %v277
  %v1421 = vunpack.c.l.b16 %v278
  %v1422 = vunpack.c.l.b16 %v279
  %v1423 = vunpack.c.l.b16 %v280
  %v1424 = vunpack.c.l.b16 %v281
  %v1425 = vunpack.c.l.b16 %v282
  %v1426 = vunpack.c.l.b16 %v283
  %v1427 = vunpack.c.l.b16 %v284
  %v1428 = vunpack.c.l.b16 %v285
  %v1429 = vunpack.c.l.b16 %v286
  %v1430 = vunpack.c.l.b16 %v287
  %v1431 = vunpack.c.l.b16 %v288
  %v1432 = vunpack.c.l.b16 %v289
  %v1433 = vunpack.c.l.b16 %v290
  %v1434 = vunpack.c.l.b16 %v291
  %v1435 = vunpack.c.l.b16 %v292
  %v1436 = vunpack.c.l.b16 %v293
  %v1437 = vunpack.c.l.b16 %v294
  %v1438 = vunpack.c.l.b16 %v295
  %v1439 = vunpack.c.l.b16 %v296
  %v1440 = vunpack.c.l.b16 %v297
  %v1441 = vunpack.c.l.b16 %v298
  %v1442 = vunpack.c.l.b16 %v299
  %v1443 = vunpack.c.l.b16 %v300
  %v1444 = vunpack.c.l.b16 %v301
  %v1445 = vunpack.c.l.b16 %v302
  %v1446 = vunpack.c.l.b16 %v303
  %v1447 = vunpack.c.l.b16 %v304
  %v1448 = vunpack.c.l.b16 %v305
  %v1449 = vunpack.c.l.b16 %v306
  %v1450 = vunpack.c.l.b16 %v307
  %v1451 = vunpack.c.l.b16 %v308
  %v1452 = vunpack.c.l.b16 %v309
  %v1453 = vunpack.c.l.b16 %v310
  %v1454 = vunpack.c.l.b16 %v311
  %v1455 = vunpack.c.l.b16 %v312
  %v1456 = vunpack.c.l.b16 %v313
  %v1457 = vunpack.c.l.b16 %v314
  %v1458 = vunpack.c.l.b16 %v315
  %v1459 = vunpack.c.l.b16 %v316
  %v1460 = vunpack.c.l.b16 %v317
  %v1461 = vunpack.c.l.b16 %v318
  %v1462 = vunpack.c.l.b16 %v319
  %v1463 = vunpack.c.l.b16 %v320
  %v1464 = vunpack.c.l.b16 %v321
  %v1465 = vunpack.c.l.b16 %v322
  %v1466 = vunpack.c.l.b16 %v323
  %v1467 = vunpack.c.l.b16 %v324
  %v1468 = vunpack.c.l.b16 %v325
  %v1469 = vunpack.c.l.b16 %v326
  %v1470 = vunpack.c.l.b16 %v327
  %v1471 = vunpack.c.l.b16 %v328
  %v1472 = vunpack.c.l.b16 %v329
  %v1473 = vunpack.c.l.b16 %v330
  %v1474 = vunpack.c.l.b16 %v331
  %v1475 = vunpack.c.l.b16 %v332
  %v1476 = vunpack.c.l.b16 %v333
  %v1477 = vunpack.c.l.b16 %v334
  %v1478 = vunpack.c.l.b16 %v335
  %v1479 = vunpack.c.l.b16 %v336
  %v1480 = vunpack.c.l.b16 %v337
  %v1481 = vunpack.c.l.b16 %v338
  %v1482 = vunpack.c.l.b16 %v339
  %v1483 = vunpack.c.l.b16 %v340
  %v1484 = vunpack.c.l.b16 %v341
  %v1485 = vunpack.c.l.b16 %v342
  %v1486 = vunpack.c.l.b16 %v343
  %v1487 = vunpack.c.l.b16 %v344
  %v1488 = vunpack.c.l.b16 %v345
  %v1489 = vunpack.c.l.b16 %v346
  %v1490 = vunpack.c.l.b16 %v347
  %v1491 = vunpack.c.l.b16 %v348
  %v1492 = vunpack.c.l.b16 %v349
  %v1493 = vunpack.c.l.b16 %v350
  %v1494 = vunpack.c.l.b16 %v351
  %v1495 = vunpack.c.l.b16 %v352
  %v1496 = vunpack.c.l.b16 %v353
  %v1497 = vunpack.c.l.b16 %v354
  %v1498 = vunpack.c.l.b16 %v355
  %v1499 = vunpack.c.l.b16 %v356
  %v1500 = vunpack.c.l.b16 %v357
  %v1501 = vunpack.c.l.b16 %v358
  %v1502 = vunpack.c.l.b16 %v359
  %v1503 = vunpack.c.l.b16 %v360
  %v1504 = vunpack.c.l.b16 %v361
  %v1505 = vunpack.c.l.b16 %v362
  %v1506 = vunpack.c.l.b16 %v363
  %v1507 = vunpack.c.l.b16 %v364
  %v1508 = vunpack.c.l.b16 %v365
  %v1509 = vunpack.c.l.b16 %v366
  %v1510 = vunpack.c.l.b16 %v367
  %v1511 = vunpack.c.l.b16 %v368
  %v1512 = vunpack.c.l.b16 %v369
  %v1513 = vunpack.c.l.b16 %v370
  %v1514 = vunpack.c.l.b16 %v371
  %v1515 = vunpack.c.l.b16 %v372
  %v1516 = vunpack.c.l.b16 %v373
  %v1517 = vunpack.c.l.b16 %v374
  %v1518 = vunpack.c.l.b16 %v375
  %v1519 = vunpack.c.l.b16 %v376
  %v1520 = vunpack.c.l.b16 %v377
  %v1521 = vunpack.c.l.b16 %v378
  %v1522 = vunpack.c.l.b16 %v379
  %v1523 = vunpack.c.l.b16 %v380
  %v1524 = vunpack.c.l.b16 %v381
  %v1525 = vunpack.c.l.b16 %v382
  %v1526 = vunpack.c.l.b16 %v383
  %v1527 = vunpack.c.l.b16 %v384
  %v1528 = vunpack.c.l.b16 %v385
  %v1529 = vunpack.c.l.b16 %v386
  %v1530 = vunpack.c.l.b16 %v387
  %v1531 = vunpack.c.l.b16 %v388
  %v1532 = vunpack.c.l.b16 %v389
  %v1533 = vunpack.c.l.b16 %v390
  %v1534 = vunpack.c.l.b16 %v391
  %v1535 = vunpack.c.l.b16 %v392
  %v1536 = vunpack.c.l.b16 %v393
  %v1537 = vunpack.c.l.b16 %v394
  %v1538 = vunpack.c.l.b16 %v395
  %v1539 = vunpack.c.l.b16 %v396
  %v1540 = vunpack.c.l.b16 %v397
  %v1541 = vunpack.c.l.b16 %v398
  %v1542 = vunpack.c.l.b16 %v399
  %v1543 = vunpack.c.l.b16 %v400
  %v1544 = vunpack.c.l.b16 %v401
  %v1545 = vunpack.c.l.b16 %v402
  %v1546 = vunpack.c.l.b16 %v403
  %v1547 = vunpack.c.l.b16 %v404
  %v1548 = vunpack.c.l.b16 %v405
  %v1549 = vunpack.c.l.b16 %v406
  %v1550 = vunpack.c.l.b16 %v407
  %v1551 = vunpack.c.l.b16 %v408
  %v1552 = vunpack.c.l.b16 %v409
  %v1553 = vunpack.c.l.b16 %v410
  %v1554 = vunpack.c.l.b16 %v411
  %v1555 = vunpack.c.l.b16 %v412
  %v1556 = vunpack.c.l.b16 %v413
  %v1557 = vunpack.c.l.b16 %v414
  %v1558 = vunpack.c.l.b16 %v415
  %v1559 = vunpack.c.l.b16 %v416
  %v1560 = vunpack.c.l.b16 %v417
  %v1561 = vunpack.c.l.b16 %v418
  %v1562 = vunpack.c.l.b16 %v419
  %v1563 = vunpack.c.l.b16 %v420
  %v1564 = vunpack.c.l.b16 %v421
  %v1565 = vunpack.c.l.b16 %v422
  %v1566 = vunpack.c.l.b16 %v423
  %v1567 = vunpack.c.l.b16 %v424
  %v1568 = vunpack.c.l.b16 %v425
  %v1569 = vunpack.c.l.b16 %v426
  %v1570 = vunpack.c.l.b16 %v427
  %v1571 = vunpack.c.l.b16 %v428
  %v1572 = vunpack.c.l.b16 %v429
  %v1573 = vunpack.c.l.b16 %v430
  %v1574 = vunpack.c.l.b16 %v431
  %v1575 = vunpack.c.l.b16 %v432
  %v1576 = vunpack.c.l.b16 %v433
  %v1577 = vunpack.c.l.b16 %v434
  %v1578 = vunpack.c.l.b16 %v435
  %v1579 = vunpack.c.l.b16 %v436
  %v1580 = vunpack.c.l.b16 %v437
  %v1581 = vunpack.c.l.b16 %v438
  %v1582 = vunpack.c.l.b16 %v439
  %v1583 = vunpack.c.l.b16 %v440
  %v1584 = vunpack.c.l.b16 %v441
  %v1585 = vunpack.c.l.b16 %v442
  %v1586 = vunpack.c.l.b16 %v443
  %v1587 = vunpack.c.l.b16 %v444
  %v1588 = vunpack.c.l.b16 %v445
  %v1589 = vunpack.c.l.b16 %v446
  %v1590 = vunpack.c.l.b16 %v447
  %v1591 = vunpack.c.l.b16 %v448
  %v1592 = vunpack.c.l.b16 %v449
  %v1593 = vunpack.c.l.b16 %v450
  %v1594 = vunpack.c.l.b16 %v451
  %v1595 = vunpack.c.l.b16 %v452
  %v1596 = vunpack.c.l.b16 %v453
  %v1597 = vunpack.c.l.b16 %v454
  %v1598 = vunpack.c.l.b16 %v455
  %v1599 = vunpack.c.l.b16 %v456
  %v1600 = vunpack.c.l.b16 %v457
  %v1601 = vunpack.c.l.b16 %v458
  %v1602 = vunpack.c.l.b16 %v459
  %v1603 = vunpack.c.l.b16 %v460
  %v1604 = vunpack.c.l.b16 %v461
  %v1605 = vunpack.c.l.b16 %v462
  %v1606 = vunpack.c.l.b16 %v463
  %v1607 = vunpack.c.l.b16 %v464
  %v1608 = vunpack.c.l.b16 %v465
  %v1609 = vunpack.c.l.b16 %v466
  %v1610 = vunpack.c.l.b16 %v467
  %v1611 = vunpack.c.l.b16 %v468
  %v1612 = vunpack.c.l.b16 %v469
  %v1613 = vunpack.c.l.b16 %v470
  %v1614 = vunpack.c.l.b16 %v471
  %v1615 = vunpack.c.l.b16 %v472
  %v1616 = vunpack.c.l.b16 %v473
  %v1617 = vunpack.c.l.b16 %v474
  %v1618 = vunpack.c.l.b16 %v475
  %v1619 = vunpack.c.l.b16 %v476
  %v1620 = vunpack.c.l.b16 %v477
  %v1621 = vunpack.c.l.b16 %v478
  %v1622 = vunpack.c.l.b16 %v479
  %v1623 = vunpack.c.l.b16 %v480
  %v1624 = vunpack.c.l.b16 %v481
  %v1625 = vunpack.c.l.b16 %v482
  %v1626 = vunpack.c.l.b16 %v483
  %v1627 = vunpack.c.l.b16 %v484
  %v1628 = vunpack.c.l.b16 %v485
  %v1629 = vunpack.c.l.b16 %v486
  %v1630 = vunpack.c.l.b16 %v487
  %v1631 = vunpack.c.l.b16 %v488
  %v1632 = vunpack.c.l.b16 %v489
  %v1633 = vunpack.c.l.b16 %v490
  %v1634 = vunpack.c.l.b16 %v491
  %v1635 = vunpack.c.l.b16 %v492
  %v1636 = vunpack.c.l.b16 %v493
  %v1637 = vunpack.c.l.b16 %v494
  %v1638 = vunpack.c.l.b16 %v495
  %v1639 = vunpack.c.l.b16 %v496
  %v1640 = vunpack.c.l.b16 %v497
  %v1641 = vunpack.c.l.b16 %v498
  %v1642 = vunpack.c.l.b16 %v499
  %v1643 = vunpack.c.l.b16 %v500
  %v1644 = vunpack.c.l.b16 %v501
  %v1645 = vunpack.c.l.b16 %v502
  %v1646 = vunpack.c.l.b16 %v503
  %v1647 = vunpack.c.l.b16 %v504
  %v1648 = vunpack.c.l.b16 %v505
  %v1649 = vunpack.c.l.b16 %v506
  %v1650 = vunpack.c.l.b16 %v507
  %v1651 = vunpack.c.l.b16 %v508
  %v1652 = vunpack.c.l.b16 %v509
  %v1653 = vunpack.c.l.b16 %v510
  %v1654 = vunpack.c.l.b16 %v511
  %v1655 = vunpack.c.l.b16 %v512
  %v1656 = vunpack.c.l.b16 %v513
  %v1657 = vunpack.c.l.b16 %v514
  %v1658 = vunpack.c.l.b16 %v515
  %v1659 = vunpack.c.l.b16 %v516
  %v1660 = vunpack.c.l.b16 %v517
  %v1661 = vunpack.c.l.b16 %v518
  %v1662 = vunpack.c.l.b16 %v519
  %v1663 = vunpack.c.l.b16 %v520
  %v1664 = vunpack.c.l.b16 %v521
  %v1665 = vunpack.c.l.b16 %v522
  %v1666 = vunpack.c.l.b16 %v523
  %v1667 = vunpack.c.l.b16 %v524
  %v1668 = vunpack.c.l.b16 %v525
  %v1669 = vunpack.c.l.b16 %v526
  %v1670 = vunpack.c.l.b16 %v527
  %v1671 = vunpack.c.l.b16 %v528
  %v1672 = vunpack.c.l.b16 %v529
  %v1673 = vunpack.c.l.b16 %v530
  %v1674 = vunpack.c.l.b16 %v531
  %v1675 = vunpack.c.l.b16 %v532
  %v1676 = vunpack.c.l.b16 %v533
  %v1677 = vunpack.c.l.b16 %v534
  %v1678 = vunpack.c.l.b16 %v535
  %v1679 = vunpack.c.l.b16 %v536
  %v1680 = vunpack.c.l.b16 %v537
  %v1681 = vunpack.c.l.b16 %v538
  %v1682 = vunpack.c.l.b16 %v539
  %v1683 = vunpack.c.l.b16 %v540
  %v1684 = vunpack.c.l.b16 %v541
  %v1685 = vunpack.c.l.b16 %v542
  %v1686 = vunpack.c.l.b16 %v543
  %v1687 = vunpack.c.l.b16 %v544
  %v1688 = vunpack.c.l.b16 %v545
  %v1689 = vunpack.c.l.b16 %v546
  %v1690 = vunpack.c.l.b16 %v547
  %v1691 = vunpack.c.l.b16 %v548
  %v1692 = vunpack.c.l.b16 %v549
  %v1693 = vunpack.c.l.b16 %v550
  %v1694 = vunpack.c.l.b16 %v551
  %v1695 = vunpack.c.l.b16 %v552
  %v1696 = vunpack.c.l.b16 %v553
  %v1697 = vunpack.c.l.b16 %v554
  %v1698 = vpack.c.b16 %v1187, %v1186
  %v1699 = vpack.c.b16 %v1189, %v1188
  %v1700 = vpack.c.b16 %v1191, %v1190
  %v1701 = vpack.c.b16 %v1193, %v1192
  %v1702 = vpack.c.b16 %v1195, %v1194
  %v1703 = vpack.c.b16 %v1197, %v1196
  %v1704 = vpack.c.b16 %v1199, %v1198
  %v1705 = vpack.c.b16 %v1201, %v1200
  %v1706 = vpack.c.b16 %v1203, %v1202
  %v1707 = vpack.c.b16 %v1205, %v1204
  %v1708 = vpack.c.b16 %v1207, %v1206
  %v1709 = vpack.c.b16 %v1209, %v1208
  %v1710 = vpack.c.b16 %v1211, %v1210
  %v1711 = vpack.c.b16 %v1213, %v1212
  %v1712 = vpack.c.b16 %v1215, %v1214
  %v1713 = vpack.c.b16 %v1217, %v1216
  %v1714 = vpack.c.b16 %v1219, %v1218
  %v1715 = vpack.c.b16 %v1221, %v1220
  %v1716 = vpack.c.b16 %v1223, %v1222
  %v1717 = vpack.c.b16 %v1225, %v1224
  %v1718 = vpack.c.b16 %v1227, %v1226
  %v1719 = vpack.c.b16 %v1229, %v1228
  %v1720 = vpack.c.b16 %v1231, %v1230
  %v1721 = vpack.c.b16 %v1233, %v1232
  %v1722 = vpack.c.b16 %v1235, %v1234
  %v1723 = vpack.c.b16 %v1237, %v1236
  %v1724 = vpack.c.b16 %v1239, %v1238
  %v1725 = vpack.c.b16 %v1241, %v1240
  %v1726 = vpack.c.b16 %v1243, %v1242
  %v1727 = vpack.c.b16 %v1245, %v1244
  %v1728 = vpack.c.b16 %v1247, %v1246
  %v1729 = vpack.c.b16 %v1249, %v1248
  %v1730 = vpack.c.b16 %v1251, %v1250
  %v1731 = vpack.c.b16 %v1253, %v1252
  %v1732 = vpack.c.b16 %v1255, %v1254
  %v1733 = vpack.c.b16 %v1257, %v1256
  %v1734 = vpack.c.b16 %v1259, %v1258
  %v1735 = vpack.c.b16 %v1261, %v1260
  %v1736 = vpack.c.b16 %v1263, %v1262
  %v1737 = vpack.c.b16 %v1265, %v1264
  %v1738 = vpack.c.b16 %v1267, %v1266
  %v1739 = vpack.c.b16 %v1269, %v1268
  %v1740 = vpack.c.b16 %v1271, %v1270
  %v1741 = vpack.c.b16 %v1273, %v1272
  %v1742 = vpack.c.b16 %v1275, %v1274
  %v1743 = vpack.c.b16 %v1277, %v1276
  %v1744 = vpack.c.b16 %v1279, %v1278
  %v1745 = vpack.c.b16 %v1281, %v1280
  %v1746 = vpack.c.b16 %v1283, %v1282
  %v1747 = vpack.c.b16 %v1285, %v1284
  %v1748 = vpack.c.b16 %v1287, %v1286
  %v1749 = vpack.c.b16 %v1289, %v1288
  %v1750 = vpack.c.b16 %v1291, %v1290
  %v1751 = vpack.c.b16 %v1293, %v1292
  %v1752 = vpack.c.b16 %v1295, %v1294
  %v1753 = vpack.c.b16 %v1297, %v1296
  %v1754 = vpack.c.b16 %v1299, %v1298
  %v1755 = vpack.c.b16 %v1301, %v1300
  %v1756 = vpack.c.b16 %v1303, %v1302
  %v1757 = vpack.c.b16 %v1305, %v1304
  %v1758 = vpack.c.b16 %v1307, %v1306
  %v1759 = vpack.c.b16 %v1309, %v1308
  %v1760 = vpack.c.b16 %v1311, %v1310
  %v1761 = vpack.c.b16 %v1313, %v1312
  %v1762 = vpack.c.b16 %v1315, %v1314
  %v1763 = vpack.c.b16 %v1317, %v1316
  %v1764 = vpack.c.b16 %v1319, %v1318
  %v1765 = vpack.c.b16 %v1321, %v1320
  %v1766 = vpack.c.b16 %v1323, %v1322
  %v1767 = vpack.c.b16 %v1325, %v1324
  %v1768 = vpack.c.b16 %v1327, %v1326
  %v1769 = vpack.c.b16 %v1329, %v1328
  %v1770 = vpack.c.b16 %v1331, %v1330
  %v1771 = vpack.c.b16 %v1333, %v1332
  %v1772 = vpack.c.b16 %v1335, %v1334
  %v1773 = vpack.c.b16 %v1337, %v1336
  %v1774 = vpack.c.b16 %v1339, %v1338
  %v1775 = vpack.c.b16 %v1341, %v1340
  %v1776 = vpack.c.b16 %v1343, %v1342
  %v1777 = vpack.c.b16 %v1345, %v1344
  %v1778 = vpack.c.b16 %v1347, %v1346
  %v1779 = vpack.c.b16 %v1349, %v1348
  %v1780 = vpack.c.b16 %v1351, %v1350
  %v1781 = vpack.c.b16 %v1353, %v1352
  %v1782 = vpack.c.b16 %v1355, %v1354
  %v1783 = vpack.c.b16 %v1357, %v1356
  %v1784 = vpack.c.b16 %v1359, %v1358
  %v1785 = vpack.c.b16 %v1361, %v1360
  %v1786 = vpack.c.b16 %v1363, %v1362
  %v1787 = vpack.c.b16 %v1365, %v1364
  %v1788 = vpack.c.b16 %v1367, %v1366
  %v1789 = vpack.c.b16 %v1369, %v1368
  %v1790 = vpack.c.b16 %v1371, %v1370
  %v1791 = vpack.c.b16 %v1373, %v1372
  %v1792 = vpack.c.b16 %v1375, %v1374
  %v1793 = vpack.c.b16 %v1377, %v1376
  %v1794 = vpack.c.b16 %v1379, %v1378
  %v1795 = vpack.c.b16 %v1381, %v1380
  %v1796 = vpack.c.b16 %v1383, %v1382
  %v1797 = vpack.c.b16 %v1385, %v1384
  %v1798 = vpack.c.b16 %v1387, %v1386
  %v1799 = vpack.c.b16 %v1389, %v1388
  %v1800 = vpack.c.b16 %v1391, %v1390
  %v1801 = vpack.c.b16 %v1393, %v1392
  %v1802 = vpack.c.b16 %v1395, %v1394
  %v1803 = vpack.c.b16 %v1397, %v1396
  %v1804 = vpack.c.b16 %v1399, %v1398
  %v1805 = vpack.c.b16 %v1401, %v1400
  %v1806 = vpack.c.b16 %v1403, %v1402
  %v1807 = vpack.c.b16 %v1405, %v1404
  %v1808 = vpack.c.b16 %v1407, %v1406
  %v1809 = vpack.c.b16 %v1409, %v1408
  %v1810 = vpack.c.b16 %v1411, %v1410
  %v1811 = vpack.c.b16 %v1413, %v1412
  %v1812 = vpack.c.b16 %v1415, %v1414
  %v1813 = vpack.c.b16 %v1417, %v1416
  %v1814 = vpack.c.b16 %v1419, %v1418
  %v1815 = vpack.c.b16 %v1421, %v1420
  %v1816 = vpack.c.b16 %v1423, %v1422
  %v1817 = vpack.c.b16 %v1425, %v1424
  %v1818 = vpack.c.b16 %v1427, %v1426
  %v1819 = vpack.c.b16 %v1429, %v1428
  %v1820 = vpack.c.b16 %v1431, %v1430
  %v1821 = vpack.c.b16 %v1433, %v1432
  %v1822 = vpack.c.b16 %v1435, %v1434
  %v1823 = vpack.c.b16 %v1437, %v1436
  %v1824 = vpack.c.b16 %v1439, %v1438
  %v1825 = vpack.c.b16 %v1441, %v1440
  %v1826 = vpack.c.b16 %v1443, %v1442
  %v1827 = vpack.c.b16 %v1445, %v1444
  %v1828 = vpack.c.b16 %v1447, %v1446
  %v1829 = vpack.c.b16 %v1449, %v1448
  %v1830 = vpack.c.b16 %v1451, %v1450
  %v1831 = vpack.c.b16 %v1453, %v1452
  %v1832 = vpack.c.b16 %v1455, %v1454
  %v1833 = vpack.c.b16 %v1457, %v1456
  %v1834 = vpack.c.b16 %v1459, %v1458
  %v1835 = vpack.c.b16 %v1461, %v1460
  %v1836 = vpack.c.b16 %v1463, %v1462
  %v1837 = vpack.c.b16 %v1465, %v1464
  %v1838 = vpack.c.b16 %v1467, %v1466
  %v1839 = vpack.c.b16 %v1469, %v1468
  %v1840 = vpack.c.b16 %v1471, %v1470
  %v1841 = vpack.c.b16 %v1473, %v1472
  %v1842 = vpack.c.b16 %v1475, %v1474
  %v1843 = vpack.c.b16 %v1477, %v1476
  %v1844 = vpack.c.b16 %v1479, %v1478
  %v1845 = vpack.c.b16 %v1481, %v1480
  %v1846 = vpack.c.b16 %v1483, %v1482
  %v1847 = vpack.c.b16 %v1485, %v1484
  %v1848 = vpack.c.b16 %v1487, %v1486
  %v1849 = vpack.c.b16 %v1489, %v1488
  %v1850 = vpack.c.b16 %v1491, %v1490
  %v1851 = vpack.c.b16 %v1493, %v1492
  %v1852 = vpack.c.b16 %v1495, %v1494
  %v1853 = vpack.c.b16 %v1497, %v1496
  %v1854 = vpack.c.b16 %v1499, %v1498
  %v1855 = vpack.c.b16 %v1501, %v1500
  %v1856 = vpack.c.b16 %v1503, %v1502
  %v1857 = vpack.c.b16 %v1505, %v1504
  %v1858 = vpack.c.b16 %v1507, %v1506
  %v1859 = vpack.c.b16 %v1509, %v1508
  %v1860 = vpack.c.b16 %v1511, %v1510
  %v1861 = vpack.c.b16 %v1513, %v1512
  %v1862 = vpack.c.b16 %v1515, %v1514
  %v1863 = vpack.c.b16 %v1517, %v1516
  %v1864 = vpack.c.b16 %v1519, %v1518
  %v1865 = vpack.c.b16 %v1521, %v1520
  %v1866 = vpack.c.b16 %v1523, %v1522
  %v1867 = vpack.c.b16 %v1525, %v1524
  %v1868 = vpack.c.b16 %v1527, %v1526
  %v1869 = vpack.c.b16 %v1529, %v1528
  %v1870 = vpack.c.b16 %v1531, %v1530
  %v1871 = vpack.c.b16 %v1533, %v1532
  %v1872 = vpack.c.b16 %v1535, %v1534
  %v1873 = vpack.c.b16 %v1537, %v1536
  %v1874 = vpack.c.b16 %v1539, %v1538
  %v1875 = vpack.c.b16 %v1541, %v1540
  %v1876 = vpack.c.b16 %v1543, %v1542
  %v1877 = vpack.c.b16 %v1545, %v1544
  %v1878 = vpack.c.b16 %v1547, %v1546
  %v1879 = vpack.c.b16 %v1549, %v1548
  %v1880 = vpack.c.b16 %v1551, %v1550
  %v1881 = vpack.c.b16 %v1553, %v1552
  %v1882 = vpack.c.b16 %v1555, %v1554
  %v1883 = vpack.c.b16 %v1557, %v1556
  %v1884 = vpack.c.b16 %v1559, %v1558
  %v1885 = vpack.c.b16 %v1561, %v1560
  %v1886 = vpack.c.b16 %v1563, %v1562
  %v1887 = vpack.c.b16 %v1565, %v1564
  %v1888 = vpack.c.b16 %v1567, %v1566
  %v1889 = vpack.c.b16 %v1569, %v1568
  %v1890 = vpack.c.b16 %v1571, %v1570
  %v1891 = vpack.c.b16 %v1573, %v1572
  %v1892 = vpack.c.b16 %v1575, %v1574
  %v1893 = vpack.c.b16 %v1577, %v1576
  %v1894 = vpack.c.b16 %v1579, %v1578
  %v1895 = vpack.c.b16 %v1581, %v1580
  %v1896 = vpack.c.b16 %v1583, %v1582
  %v1897 = vpack.c.b16 %v1585, %v1584
  %v1898 = vpack.c.b16 %v1587, %v1586
  %v1899 = vpack.c.b16 %v1589, %v1588
  %v1900 = vpack.c.b16 %v1591, %v1590
  %v1901 = vpack.c.b16 %v1593, %v1592
  %v1902 = vpack.c.b16 %v1595, %v1594
  %v1903 = vpack.c.b16 %v1597, %v1596
  %v1904 = vpack.c.b16 %v1599, %v1598
  %v1905 = vpack.c.b16 %v1601, %v1600
  %v1906 = vpack.c.b16 %v1603, %v1602
  %v1907 = vpack.c.b16 %v1605, %v1604
  %v1908 = vpack.c.b16 %v1607, %v1606
  %v1909 = vpack.c.b16 %v1609, %v1608
  %v1910 = vpack.c.b16 %v1611, %v1610
  %v1911 = vpack.c.b16 %v1613, %v1612
  %v1912 = vpack.c.b16 %v1615, %v1614
  %v1913 = vpack.c.b16 %v1617, %v1616
  %v1914 = vpack.c.b16 %v1619, %v1618
  %v1915 = vpack.c.b16 %v1621, %v1620
  %v1916 = vpack.c.b16 %v1623, %v1622
  %v1917 = vpack.c.b16 %v1625, %v1624
  %v1918 = vpack.c.b16 %v1627, %v1626
  %v1919 = vpack.c.b16 %v1629, %v1628
  %v1920 = vpack.c.b16 %v1631, %v1630
  %v1921 = vpack.c.b16 %v1633, %v1632
  %v1922 = vpack.c.b16 %v1635, %v1634
  %v1923 = vpack.c.b16 %v1637, %v1636
  %v1924 = vpack.c.b16 %v1639, %v1638
  %v1925 = vpack.c.b16 %v1641, %v1640
  %v1926 = vpack.c.b16 %v1643, %v1642
  %v1927 = vpack.c.b16 %v1645, %v1644
  %v1928 = vpack.c.b16 %v1647, %v1646
  %v1929 = vpack.c.b16 %v1649, %v1648
  %v1930 = vpack.c.b16 %v1651, %v1650
  %v1931 = vpack.c.b16 %v1653, %v1652
  %v1932 = vpack.c.b16 %v1655, %v1654
  %v1933 = vpack.c.b16 %v1657, %v1656
  %v1934 = vpack.c.b16 %v1659, %v1658
  %v1935 = vpack.c.b16 %v1661, %v1660
  %v1936 = vpack.c.b16 %v1663, %v1662
  %v1937 = vpack.c.b16 %v1665, %v1664
  %v1938 = vpack.c.b16 %v1667, %v1666
  %v1939 = vpack.c.b16 %v1669, %v1668
  %v1940 = vpack.c.b16 %v1671, %v1670
  %v1941 = vpack.c.b16 %v1673, %v1672
  %v1942 = vpack.c.b16 %v1675, %v1674
  %v1943 = vpack.c.b16 %v1677, %v1676
  %v1944 = vpack.c.b16 %v1679, %v1678
  %v1945 = vpack.c.b16 %v1681, %v1680
  %v1946 = vpack.c.b16 %v1683, %v1682
  %v1947 = vpack.c.b16 %v1685, %v1684
  %v1948 = vpack.c.b16 %v1687, %v1686
  %v1949 = vpack.c.b16 %v1689, %v1688
  %v1950 = vpack.c.b16 %v1691, %v1690
  %v1951 = vpack.c.b16 %v1693, %v1692
  %v1952 = vpack.c.b16 %v1695, %v1694
  %v1953 = vpack.c.b16 %v1697, %v1696
  %2210 = vmatprep.subr.bf16.mxu0 0
  %2211 = vmatpush1.bf16.msra.mxu0 %v1705
  %2212 = vmatprep.subr.bf16.mxu0 0
  %2213 = vmatpush1.bf16.msra.mxu0 %v1704
  %2214 = vmatprep.subr.bf16.mxu0 0
  %2215 = vmatpush1.bf16.msra.mxu0 %v1703
  %2216 = vmatprep.subr.bf16.mxu0 0
  %2217 = vmatpush1.bf16.msra.mxu0 %v1702
  %2218 = vmatprep.subr.bf16.mxu0 0
  %2219 = vmatpush1.bf16.msra.mxu0 %v1701
  %2220 = vmatprep.subr.bf16.mxu0 0
  %2221 = vmatpush1.bf16.msra.mxu0 %v1700
  %2222 = vmatprep.subr.bf16.mxu0 0
  %2223 = vmatpush1.bf16.msra.mxu0 %v1699
  %2224 = vmatprep.subr.bf16.mxu0 0
  %2225 = vmatpush1.bf16.msra.mxu0 %v1698
  %2226 = vmatprep.subr.bf16.mxu0 0
  %2227 = vmatpush2.bf16.msra.mxu0 %v1713
  %2228 = vmatprep.subr.bf16.mxu0 0
  %2229 = vmatpush2.bf16.msra.mxu0 %v1712
  %2230 = vmatprep.subr.bf16.mxu0 0
  %2231 = vmatpush2.bf16.msra.mxu0 %v1711
  %2232 = vmatprep.subr.bf16.mxu0 0
  %2233 = vmatpush2.bf16.msra.mxu0 %v1710
  %2234 = vmatprep.subr.bf16.mxu0 0
  %2235 = vmatpush2.bf16.msra.mxu0 %v1709
  %2236 = vmatprep.subr.bf16.mxu0 0
  %2237 = vmatpush2.bf16.msra.mxu0 %v1708
  %2238 = vmatprep.subr.bf16.mxu0 0
  %2239 = vmatpush2.bf16.msra.mxu0 %v1707
  %2240 = vmatprep.subr.bf16.mxu0 0
  %2241 = vmatpush2.bf16.msra.mxu0 %v1706
  %2242 = vmatprep.mubr.bf16.mxu0 %v611
  %2243 = vmatmul.mubr.bf16.gmra.mxu0 %v610
  %v2244 = vpop.f32.mrf.mxu0
  %v2245 = vadd.f32 %v560, %v2244
  %v2246 = vpop.f32.mrf.mxu0
  %v2247 = vpop.f32.mrf.mxu0
  %v2248 = vpop.f32.mrf.mxu0
  %2249 = vdwg.mxu0
  %2250 = vmatprep.subr.bf16.mxu0 0
  %2251 = vmatpush1.bf16.msra.mxu0 %v1721
  %2252 = vmatprep.subr.bf16.mxu0 0
  %2253 = vmatpush1.bf16.msra.mxu0 %v1720
  %2254 = vmatprep.subr.bf16.mxu0 0
  %2255 = vmatpush1.bf16.msra.mxu0 %v1719
  %2256 = vmatprep.subr.bf16.mxu0 0
  %2257 = vmatpush1.bf16.msra.mxu0 %v1718
  %2258 = vmatprep.subr.bf16.mxu0 0
  %2259 = vmatpush1.bf16.msra.mxu0 %v1717
  %2260 = vmatprep.subr.bf16.mxu0 0
  %2261 = vmatpush1.bf16.msra.mxu0 %v1716
  %2262 = vmatprep.subr.bf16.mxu0 0
  %2263 = vmatpush1.bf16.msra.mxu0 %v1715
  %2264 = vmatprep.subr.bf16.mxu0 0
  %2265 = vmatpush1.bf16.msra.mxu0 %v1714
  %2266 = vmatprep.subr.bf16.mxu0 0
  %2267 = vmatpush2.bf16.msra.mxu0 %v1729
  %2268 = vmatprep.subr.bf16.mxu0 0
  %2269 = vmatpush2.bf16.msra.mxu0 %v1728
  %2270 = vmatprep.subr.bf16.mxu0 0
  %2271 = vmatpush2.bf16.msra.mxu0 %v1727
  %2272 = vmatprep.subr.bf16.mxu0 0
  %2273 = vmatpush2.bf16.msra.mxu0 %v1726
  %2274 = vmatprep.subr.bf16.mxu0 0
  %2275 = vmatpush2.bf16.msra.mxu0 %v1725
  %2276 = vmatprep.subr.bf16.mxu0 0
  %2277 = vmatpush2.bf16.msra.mxu0 %v1724
  %2278 = vmatprep.subr.bf16.mxu0 0
  %2279 = vmatpush2.bf16.msra.mxu0 %v1723
  %2280 = vmatprep.subr.bf16.mxu0 0
  %2281 = vmatpush2.bf16.msra.mxu0 %v1722
  %2282 = vmatprep.mubr.bf16.mxu0 %v613
  %2283 = vmatmul.mubr.bf16.gmra.mxu0 %v612
  %v2284 = vpop.f32.mrf.mxu0
  %v2285 = vadd.f32 %v2245, %v2284
  %v2286 = vpop.f32.mrf.mxu0
  %v2287 = vpop.f32.mrf.mxu0
  %v2288 = vpop.f32.mrf.mxu0
  %2289 = vdwg.mxu0
  %2290 = vmatprep.subr.bf16.mxu0 0
  %2291 = vmatpush1.bf16.msra.mxu0 %v1737
  %2292 = vmatprep.subr.bf16.mxu0 0
  %2293 = vmatpush1.bf16.msra.mxu0 %v1736
  %2294 = vmatprep.subr.bf16.mxu0 0
  %2295 = vmatpush1.bf16.msra.mxu0 %v1735
  %2296 = vmatprep.subr.bf16.mxu0 0
  %2297 = vmatpush1.bf16.msra.mxu0 %v1734
  %2298 = vmatprep.subr.bf16.mxu0 0
  %2299 = vmatpush1.bf16.msra.mxu0 %v1733
  %2300 = vmatprep.subr.bf16.mxu0 0
  %2301 = vmatpush1.bf16.msra.mxu0 %v1732
  %2302 = vmatprep.subr.bf16.mxu0 0
  %2303 = vmatpush1.bf16.msra.mxu0 %v1731
  %2304 = vmatprep.subr.bf16.mxu0 0
  %2305 = vmatpush1.bf16.msra.mxu0 %v1730
  %2306 = vmatprep.subr.bf16.mxu0 0
  %2307 = vmatpush2.bf16.msra.mxu0 %v1745
  %2308 = vmatprep.subr.bf16.mxu0 0
  %2309 = vmatpush2.bf16.msra.mxu0 %v1744
  %2310 = vmatprep.subr.bf16.mxu0 0
  %2311 = vmatpush2.bf16.msra.mxu0 %v1743
  %2312 = vmatprep.subr.bf16.mxu0 0
  %2313 = vmatpush2.bf16.msra.mxu0 %v1742
  %2314 = vmatprep.subr.bf16.mxu0 0
  %2315 = vmatpush2.bf16.msra.mxu0 %v1741
  %2316 = vmatprep.subr.bf16.mxu0 0
  %2317 = vmatpush2.bf16.msra.mxu0 %v1740
  %2318 = vmatprep.subr.bf16.mxu0 0
  %2319 = vmatpush2.bf16.msra.mxu0 %v1739
  %2320 = vmatprep.subr.bf16.mxu0 0
  %2321 = vmatpush2.bf16.msra.mxu0 %v1738
  %2322 = vmatprep.mubr.bf16.mxu0 %v615
  %2323 = vmatmul.mubr.bf16.gmra.mxu0 %v614
  %v2324 = vpop.f32.mrf.mxu0
  %v2325 = vadd.f32 %v2285, %v2324
  %v2326 = vpop.f32.mrf.mxu0
  %v2327 = vpop.f32.mrf.mxu0
  %v2328 = vpop.f32.mrf.mxu0
  %2329 = vdwg.mxu0
  %2330 = vmatprep.subr.bf16.mxu0 0
  %2331 = vmatpush1.bf16.msra.mxu0 %v1753
  %2332 = vmatprep.subr.bf16.mxu0 0
  %2333 = vmatpush1.bf16.msra.mxu0 %v1752
  %2334 = vmatprep.subr.bf16.mxu0 0
  %2335 = vmatpush1.bf16.msra.mxu0 %v1751
  %2336 = vmatprep.subr.bf16.mxu0 0
  %2337 = vmatpush1.bf16.msra.mxu0 %v1750
  %2338 = vmatprep.subr.bf16.mxu0 0
  %2339 = vmatpush1.bf16.msra.mxu0 %v1749
  %2340 = vmatprep.subr.bf16.mxu0 0
  %2341 = vmatpush1.bf16.msra.mxu0 %v1748
  %2342 = vmatprep.subr.bf16.mxu0 0
  %2343 = vmatpush1.bf16.msra.mxu0 %v1747
  %2344 = vmatprep.subr.bf16.mxu0 0
  %2345 = vmatpush1.bf16.msra.mxu0 %v1746
  %2346 = vmatprep.subr.bf16.mxu0 0
  %2347 = vmatpush2.bf16.msra.mxu0 %v1761
  %2348 = vmatprep.subr.bf16.mxu0 0
  %2349 = vmatpush2.bf16.msra.mxu0 %v1760
  %2350 = vmatprep.subr.bf16.mxu0 0
  %2351 = vmatpush2.bf16.msra.mxu0 %v1759
  %2352 = vmatprep.subr.bf16.mxu0 0
  %2353 = vmatpush2.bf16.msra.mxu0 %v1758
  %2354 = vmatprep.subr.bf16.mxu0 0
  %2355 = vmatpush2.bf16.msra.mxu0 %v1757
  %2356 = vmatprep.subr.bf16.mxu0 0
  %2357 = vmatpush2.bf16.msra.mxu0 %v1756
  %2358 = vmatprep.subr.bf16.mxu0 0
  %2359 = vmatpush2.bf16.msra.mxu0 %v1755
  %2360 = vmatprep.subr.bf16.mxu0 0
  %2361 = vmatpush2.bf16.msra.mxu0 %v1754
  %2362 = vmatprep.mubr.bf16.mxu0 %v617
  %2363 = vmatmul.mubr.bf16.gmra.mxu0 %v616
  %v2364 = vpop.f32.mrf.mxu0
  %v2365 = vadd.f32 %v2325, %v2364
  %v2366 = vpop.f32.mrf.mxu0
  %v2367 = vpop.f32.mrf.mxu0
  %v2368 = vpop.f32.mrf.mxu0
  %2369 = vdwg.mxu0
  %2370 = vmatprep.subr.bf16.mxu0 0
  %2371 = vmatpush1.bf16.msra.mxu0 %v1769
  %2372 = vmatprep.subr.bf16.mxu0 0
  %2373 = vmatpush1.bf16.msra.mxu0 %v1768
  %2374 = vmatprep.subr.bf16.mxu0 0
  %2375 = vmatpush1.bf16.msra.mxu0 %v1767
  %2376 = vmatprep.subr.bf16.mxu0 0
  %2377 = vmatpush1.bf16.msra.mxu0 %v1766
  %2378 = vmatprep.subr.bf16.mxu0 0
  %2379 = vmatpush1.bf16.msra.mxu0 %v1765
  %2380 = vmatprep.subr.bf16.mxu0 0
  %2381 = vmatpush1.bf16.msra.mxu0 %v1764
  %2382 = vmatprep.subr.bf16.mxu0 0
  %2383 = vmatpush1.bf16.msra.mxu0 %v1763
  %2384 = vmatprep.subr.bf16.mxu0 0
  %2385 = vmatpush1.bf16.msra.mxu0 %v1762
  %2386 = vmatprep.subr.bf16.mxu0 0
  %2387 = vmatpush2.bf16.msra.mxu0 %v1777
  %2388 = vmatprep.subr.bf16.mxu0 0
  %2389 = vmatpush2.bf16.msra.mxu0 %v1776
  %2390 = vmatprep.subr.bf16.mxu0 0
  %2391 = vmatpush2.bf16.msra.mxu0 %v1775
  %2392 = vmatprep.subr.bf16.mxu0 0
  %2393 = vmatpush2.bf16.msra.mxu0 %v1774
  %2394 = vmatprep.subr.bf16.mxu0 0
  %2395 = vmatpush2.bf16.msra.mxu0 %v1773
  %2396 = vmatprep.subr.bf16.mxu0 0
  %2397 = vmatpush2.bf16.msra.mxu0 %v1772
  %2398 = vmatprep.subr.bf16.mxu0 0
  %2399 = vmatpush2.bf16.msra.mxu0 %v1771
  %2400 = vmatprep.subr.bf16.mxu0 0
  %2401 = vmatpush2.bf16.msra.mxu0 %v1770
  %2402 = vmatprep.mubr.bf16.mxu0 %v619
  %2403 = vmatmul.mubr.bf16.gmra.mxu0 %v618
  %v2404 = vpop.f32.mrf.mxu0
  %v2405 = vadd.f32 %v2365, %v2404
  %v2406 = vpop.f32.mrf.mxu0
  %v2407 = vpop.f32.mrf.mxu0
  %v2408 = vpop.f32.mrf.mxu0
  %2409 = vdwg.mxu0
  %2410 = vmatprep.subr.bf16.mxu0 0
  %2411 = vmatpush1.bf16.msra.mxu0 %v1785
  %2412 = vmatprep.subr.bf16.mxu0 0
  %2413 = vmatpush1.bf16.msra.mxu0 %v1784
  %2414 = vmatprep.subr.bf16.mxu0 0
  %2415 = vmatpush1.bf16.msra.mxu0 %v1783
  %2416 = vmatprep.subr.bf16.mxu0 0
  %2417 = vmatpush1.bf16.msra.mxu0 %v1782
  %2418 = vmatprep.subr.bf16.mxu0 0
  %2419 = vmatpush1.bf16.msra.mxu0 %v1781
  %2420 = vmatprep.subr.bf16.mxu0 0
  %2421 = vmatpush1.bf16.msra.mxu0 %v1780
  %2422 = vmatprep.subr.bf16.mxu0 0
  %2423 = vmatpush1.bf16.msra.mxu0 %v1779
  %2424 = vmatprep.subr.bf16.mxu0 0
  %2425 = vmatpush1.bf16.msra.mxu0 %v1778
  %2426 = vmatprep.subr.bf16.mxu0 0
  %2427 = vmatpush2.bf16.msra.mxu0 %v1793
  %2428 = vmatprep.subr.bf16.mxu0 0
  %2429 = vmatpush2.bf16.msra.mxu0 %v1792
  %2430 = vmatprep.subr.bf16.mxu0 0
  %2431 = vmatpush2.bf16.msra.mxu0 %v1791
  %2432 = vmatprep.subr.bf16.mxu0 0
  %2433 = vmatpush2.bf16.msra.mxu0 %v1790
  %2434 = vmatprep.subr.bf16.mxu0 0
  %2435 = vmatpush2.bf16.msra.mxu0 %v1789
  %2436 = vmatprep.subr.bf16.mxu0 0
  %2437 = vmatpush2.bf16.msra.mxu0 %v1788
  %2438 = vmatprep.subr.bf16.mxu0 0
  %2439 = vmatpush2.bf16.msra.mxu0 %v1787
  %2440 = vmatprep.subr.bf16.mxu0 0
  %2441 = vmatpush2.bf16.msra.mxu0 %v1786
  %2442 = vmatprep.mubr.bf16.mxu0 %v621
  %2443 = vmatmul.mubr.bf16.gmra.mxu0 %v620
  %v2444 = vpop.f32.mrf.mxu0
  %v2445 = vadd.f32 %v2405, %v2444
  %v2446 = vpop.f32.mrf.mxu0
  %v2447 = vpop.f32.mrf.mxu0
  %v2448 = vpop.f32.mrf.mxu0
  %2449 = vdwg.mxu0
  %2450 = vmatprep.subr.bf16.mxu0 0
  %2451 = vmatpush1.bf16.msra.mxu0 %v1801
  %2452 = vmatprep.subr.bf16.mxu0 0
  %2453 = vmatpush1.bf16.msra.mxu0 %v1800
  %2454 = vmatprep.subr.bf16.mxu0 0
  %2455 = vmatpush1.bf16.msra.mxu0 %v1799
  %2456 = vmatprep.subr.bf16.mxu0 0
  %2457 = vmatpush1.bf16.msra.mxu0 %v1798
  %2458 = vmatprep.subr.bf16.mxu0 0
  %2459 = vmatpush1.bf16.msra.mxu0 %v1797
  %2460 = vmatprep.subr.bf16.mxu0 0
  %2461 = vmatpush1.bf16.msra.mxu0 %v1796
  %2462 = vmatprep.subr.bf16.mxu0 0
  %2463 = vmatpush1.bf16.msra.mxu0 %v1795
  %2464 = vmatprep.subr.bf16.mxu0 0
  %2465 = vmatpush1.bf16.msra.mxu0 %v1794
  %2466 = vmatprep.subr.bf16.mxu0 0
  %2467 = vmatpush2.bf16.msra.mxu0 %v1809
  %2468 = vmatprep.subr.bf16.mxu0 0
  %2469 = vmatpush2.bf16.msra.mxu0 %v1808
  %2470 = vmatprep.subr.bf16.mxu0 0
  %2471 = vmatpush2.bf16.msra.mxu0 %v1807
  %2472 = vmatprep.subr.bf16.mxu0 0
  %2473 = vmatpush2.bf16.msra.mxu0 %v1806
  %2474 = vmatprep.subr.bf16.mxu0 0
  %2475 = vmatpush2.bf16.msra.mxu0 %v1805
  %2476 = vmatprep.subr.bf16.mxu0 0
  %2477 = vmatpush2.bf16.msra.mxu0 %v1804
  %2478 = vmatprep.subr.bf16.mxu0 0
  %2479 = vmatpush2.bf16.msra.mxu0 %v1803
  %2480 = vmatprep.subr.bf16.mxu0 0
  %2481 = vmatpush2.bf16.msra.mxu0 %v1802
  %2482 = vmatprep.mubr.bf16.mxu0 %v623
  %2483 = vmatmul.mubr.bf16.gmra.mxu0 %v622
  %v2484 = vpop.f32.mrf.mxu0
  %v2485 = vadd.f32 %v2445, %v2484
  %v2486 = vpop.f32.mrf.mxu0
  %v2487 = vpop.f32.mrf.mxu0
  %v2488 = vpop.f32.mrf.mxu0
  %2489 = vdwg.mxu0
  %2490 = vmatprep.subr.bf16.mxu0 0
  %2491 = vmatpush1.bf16.msra.mxu0 %v1817
  %2492 = vmatprep.subr.bf16.mxu0 0
  %2493 = vmatpush1.bf16.msra.mxu0 %v1816
  %2494 = vmatprep.subr.bf16.mxu0 0
  %2495 = vmatpush1.bf16.msra.mxu0 %v1815
  %2496 = vmatprep.subr.bf16.mxu0 0
  %2497 = vmatpush1.bf16.msra.mxu0 %v1814
  %2498 = vmatprep.subr.bf16.mxu0 0
  %2499 = vmatpush1.bf16.msra.mxu0 %v1813
  %2500 = vmatprep.subr.bf16.mxu0 0
  %2501 = vmatpush1.bf16.msra.mxu0 %v1812
  %2502 = vmatprep.subr.bf16.mxu0 0
  %2503 = vmatpush1.bf16.msra.mxu0 %v1811
  %2504 = vmatprep.subr.bf16.mxu0 0
  %2505 = vmatpush1.bf16.msra.mxu0 %v1810
  %2506 = vmatprep.subr.bf16.mxu0 0
  %2507 = vmatpush2.bf16.msra.mxu0 %v1825
  %2508 = vmatprep.subr.bf16.mxu0 0
  %2509 = vmatpush2.bf16.msra.mxu0 %v1824
  %2510 = vmatprep.subr.bf16.mxu0 0
  %2511 = vmatpush2.bf16.msra.mxu0 %v1823
  %2512 = vmatprep.subr.bf16.mxu0 0
  %2513 = vmatpush2.bf16.msra.mxu0 %v1822
  %2514 = vmatprep.subr.bf16.mxu0 0
  %2515 = vmatpush2.bf16.msra.mxu0 %v1821
  %2516 = vmatprep.subr.bf16.mxu0 0
  %2517 = vmatpush2.bf16.msra.mxu0 %v1820
  %2518 = vmatprep.subr.bf16.mxu0 0
  %2519 = vmatpush2.bf16.msra.mxu0 %v1819
  %2520 = vmatprep.subr.bf16.mxu0 0
  %2521 = vmatpush2.bf16.msra.mxu0 %v1818
  %2522 = vmatprep.mubr.bf16.mxu0 %v625
  %2523 = vmatmul.mubr.bf16.gmra.mxu0 %v624
  %v2524 = vpop.f32.mrf.mxu0
  %v2525 = vadd.f32 %v2485, %v2524
  %v2526 = vpop.f32.mrf.mxu0
  %v2527 = vpop.f32.mrf.mxu0
  %v2528 = vpop.f32.mrf.mxu0
  %2529 = vdwg.mxu0
  %2530 = vmatprep.subr.bf16.mxu0 0
  %2531 = vmatpush1.bf16.msra.mxu0 %v1833
  %2532 = vmatprep.subr.bf16.mxu0 0
  %2533 = vmatpush1.bf16.msra.mxu0 %v1832
  %2534 = vmatprep.subr.bf16.mxu0 0
  %2535 = vmatpush1.bf16.msra.mxu0 %v1831
  %2536 = vmatprep.subr.bf16.mxu0 0
  %2537 = vmatpush1.bf16.msra.mxu0 %v1830
  %2538 = vmatprep.subr.bf16.mxu0 0
  %2539 = vmatpush1.bf16.msra.mxu0 %v1829
  %2540 = vmatprep.subr.bf16.mxu0 0
  %2541 = vmatpush1.bf16.msra.mxu0 %v1828
  %2542 = vmatprep.subr.bf16.mxu0 0
  %2543 = vmatpush1.bf16.msra.mxu0 %v1827
  %2544 = vmatprep.subr.bf16.mxu0 0
  %2545 = vmatpush1.bf16.msra.mxu0 %v1826
  %2546 = vmatprep.subr.bf16.mxu0 0
  %2547 = vmatpush2.bf16.msra.mxu0 %v1841
  %2548 = vmatprep.subr.bf16.mxu0 0
  %2549 = vmatpush2.bf16.msra.mxu0 %v1840
  %2550 = vmatprep.subr.bf16.mxu0 0
  %2551 = vmatpush2.bf16.msra.mxu0 %v1839
  %2552 = vmatprep.subr.bf16.mxu0 0
  %2553 = vmatpush2.bf16.msra.mxu0 %v1838
  %2554 = vmatprep.subr.bf16.mxu0 0
  %2555 = vmatpush2.bf16.msra.mxu0 %v1837
  %2556 = vmatprep.subr.bf16.mxu0 0
  %2557 = vmatpush2.bf16.msra.mxu0 %v1836
  %2558 = vmatprep.subr.bf16.mxu0 0
  %2559 = vmatpush2.bf16.msra.mxu0 %v1835
  %2560 = vmatprep.subr.bf16.mxu0 0
  %2561 = vmatpush2.bf16.msra.mxu0 %v1834
  %2562 = vmatprep.mubr.bf16.mxu0 %v627
  %2563 = vmatmul.mubr.bf16.gmra.mxu0 %v626
  %v2564 = vpop.f32.mrf.mxu0
  %v2565 = vadd.f32 %v2525, %v2564
  %v2566 = vpop.f32.mrf.mxu0
  %v2567 = vpop.f32.mrf.mxu0
  %v2568 = vpop.f32.mrf.mxu0
  %2569 = vdwg.mxu0
  %2570 = vmatprep.subr.bf16.mxu0 0
  %2571 = vmatpush1.bf16.msra.mxu0 %v1849
  %2572 = vmatprep.subr.bf16.mxu0 0
  %2573 = vmatpush1.bf16.msra.mxu0 %v1848
  %2574 = vmatprep.subr.bf16.mxu0 0
  %2575 = vmatpush1.bf16.msra.mxu0 %v1847
  %2576 = vmatprep.subr.bf16.mxu0 0
  %2577 = vmatpush1.bf16.msra.mxu0 %v1846
  %2578 = vmatprep.subr.bf16.mxu0 0
  %2579 = vmatpush1.bf16.msra.mxu0 %v1845
  %2580 = vmatprep.subr.bf16.mxu0 0
  %2581 = vmatpush1.bf16.msra.mxu0 %v1844
  %2582 = vmatprep.subr.bf16.mxu0 0
  %2583 = vmatpush1.bf16.msra.mxu0 %v1843
  %2584 = vmatprep.subr.bf16.mxu0 0
  %2585 = vmatpush1.bf16.msra.mxu0 %v1842
  %2586 = vmatprep.subr.bf16.mxu0 0
  %2587 = vmatpush2.bf16.msra.mxu0 %v1857
  %2588 = vmatprep.subr.bf16.mxu0 0
  %2589 = vmatpush2.bf16.msra.mxu0 %v1856
  %2590 = vmatprep.subr.bf16.mxu0 0
  %2591 = vmatpush2.bf16.msra.mxu0 %v1855
  %2592 = vmatprep.subr.bf16.mxu0 0
  %2593 = vmatpush2.bf16.msra.mxu0 %v1854
  %2594 = vmatprep.subr.bf16.mxu0 0
  %2595 = vmatpush2.bf16.msra.mxu0 %v1853
  %2596 = vmatprep.subr.bf16.mxu0 0
  %2597 = vmatpush2.bf16.msra.mxu0 %v1852
  %2598 = vmatprep.subr.bf16.mxu0 0
  %2599 = vmatpush2.bf16.msra.mxu0 %v1851
  %2600 = vmatprep.subr.bf16.mxu0 0
  %2601 = vmatpush2.bf16.msra.mxu0 %v1850
  %2602 = vmatprep.mubr.bf16.mxu0 %v629
  %2603 = vmatmul.mubr.bf16.gmra.mxu0 %v628
  %v2604 = vpop.f32.mrf.mxu0
  %v2605 = vadd.f32 %v2565, %v2604
  %v2606 = vpop.f32.mrf.mxu0
  %v2607 = vpop.f32.mrf.mxu0
  %v2608 = vpop.f32.mrf.mxu0
  %2609 = vdwg.mxu0
  %2610 = vmatprep.subr.bf16.mxu0 0
  %2611 = vmatpush1.bf16.msra.mxu0 %v1865
  %2612 = vmatprep.subr.bf16.mxu0 0
  %2613 = vmatpush1.bf16.msra.mxu0 %v1864
  %2614 = vmatprep.subr.bf16.mxu0 0
  %2615 = vmatpush1.bf16.msra.mxu0 %v1863
  %2616 = vmatprep.subr.bf16.mxu0 0
  %2617 = vmatpush1.bf16.msra.mxu0 %v1862
  %2618 = vmatprep.subr.bf16.mxu0 0
  %2619 = vmatpush1.bf16.msra.mxu0 %v1861
  %2620 = vmatprep.subr.bf16.mxu0 0
  %2621 = vmatpush1.bf16.msra.mxu0 %v1860
  %2622 = vmatprep.subr.bf16.mxu0 0
  %2623 = vmatpush1.bf16.msra.mxu0 %v1859
  %2624 = vmatprep.subr.bf16.mxu0 0
  %2625 = vmatpush1.bf16.msra.mxu0 %v1858
  %2626 = vmatprep.subr.bf16.mxu0 0
  %2627 = vmatpush2.bf16.msra.mxu0 %v1873
  %2628 = vmatprep.subr.bf16.mxu0 0
  %2629 = vmatpush2.bf16.msra.mxu0 %v1872
  %2630 = vmatprep.subr.bf16.mxu0 0
  %2631 = vmatpush2.bf16.msra.mxu0 %v1871
  %2632 = vmatprep.subr.bf16.mxu0 0
  %2633 = vmatpush2.bf16.msra.mxu0 %v1870
  %2634 = vmatprep.subr.bf16.mxu0 0
  %2635 = vmatpush2.bf16.msra.mxu0 %v1869
  %2636 = vmatprep.subr.bf16.mxu0 0
  %2637 = vmatpush2.bf16.msra.mxu0 %v1868
  %2638 = vmatprep.subr.bf16.mxu0 0
  %2639 = vmatpush2.bf16.msra.mxu0 %v1867
  %2640 = vmatprep.subr.bf16.mxu0 0
  %2641 = vmatpush2.bf16.msra.mxu0 %v1866
  %2642 = vmatprep.mubr.bf16.mxu0 %v631
  %2643 = vmatmul.mubr.bf16.gmra.mxu0 %v630
  %v2644 = vpop.f32.mrf.mxu0
  %v2645 = vadd.f32 %v2605, %v2644
  %v2646 = vpop.f32.mrf.mxu0
  %v2647 = vpop.f32.mrf.mxu0
  %v2648 = vpop.f32.mrf.mxu0
  %2649 = vdwg.mxu0
  %2650 = vmatprep.subr.bf16.mxu0 0
  %2651 = vmatpush1.bf16.msra.mxu0 %v1881
  %2652 = vmatprep.subr.bf16.mxu0 0
  %2653 = vmatpush1.bf16.msra.mxu0 %v1880
  %2654 = vmatprep.subr.bf16.mxu0 0
  %2655 = vmatpush1.bf16.msra.mxu0 %v1879
  %2656 = vmatprep.subr.bf16.mxu0 0
  %2657 = vmatpush1.bf16.msra.mxu0 %v1878
  %2658 = vmatprep.subr.bf16.mxu0 0
  %2659 = vmatpush1.bf16.msra.mxu0 %v1877
  %2660 = vmatprep.subr.bf16.mxu0 0
  %2661 = vmatpush1.bf16.msra.mxu0 %v1876
  %2662 = vmatprep.subr.bf16.mxu0 0
  %2663 = vmatpush1.bf16.msra.mxu0 %v1875
  %2664 = vmatprep.subr.bf16.mxu0 0
  %2665 = vmatpush1.bf16.msra.mxu0 %v1874
  %2666 = vmatprep.subr.bf16.mxu0 0
  %2667 = vmatpush2.bf16.msra.mxu0 %v1889
  %2668 = vmatprep.subr.bf16.mxu0 0
  %2669 = vmatpush2.bf16.msra.mxu0 %v1888
  %2670 = vmatprep.subr.bf16.mxu0 0
  %2671 = vmatpush2.bf16.msra.mxu0 %v1887
  %2672 = vmatprep.subr.bf16.mxu0 0
  %2673 = vmatpush2.bf16.msra.mxu0 %v1886
  %2674 = vmatprep.subr.bf16.mxu0 0
  %2675 = vmatpush2.bf16.msra.mxu0 %v1885
  %2676 = vmatprep.subr.bf16.mxu0 0
  %2677 = vmatpush2.bf16.msra.mxu0 %v1884
  %2678 = vmatprep.subr.bf16.mxu0 0
  %2679 = vmatpush2.bf16.msra.mxu0 %v1883
  %2680 = vmatprep.subr.bf16.mxu0 0
  %2681 = vmatpush2.bf16.msra.mxu0 %v1882
  %2682 = vmatprep.mubr.bf16.mxu0 %v633
  %2683 = vmatmul.mubr.bf16.gmra.mxu0 %v632
  %v2684 = vpop.f32.mrf.mxu0
  %v2685 = vadd.f32 %v2645, %v2684
  %v2686 = vpop.f32.mrf.mxu0
  %v2687 = vpop.f32.mrf.mxu0
  %v2688 = vpop.f32.mrf.mxu0
  %2689 = vdwg.mxu0
  %2690 = vmatprep.subr.bf16.mxu0 0
  %2691 = vmatpush1.bf16.msra.mxu0 %v1897
  %2692 = vmatprep.subr.bf16.mxu0 0
  %2693 = vmatpush1.bf16.msra.mxu0 %v1896
  %2694 = vmatprep.subr.bf16.mxu0 0
  %2695 = vmatpush1.bf16.msra.mxu0 %v1895
  %2696 = vmatprep.subr.bf16.mxu0 0
  %2697 = vmatpush1.bf16.msra.mxu0 %v1894
  %2698 = vmatprep.subr.bf16.mxu0 0
  %2699 = vmatpush1.bf16.msra.mxu0 %v1893
  %2700 = vmatprep.subr.bf16.mxu0 0
  %2701 = vmatpush1.bf16.msra.mxu0 %v1892
  %2702 = vmatprep.subr.bf16.mxu0 0
  %2703 = vmatpush1.bf16.msra.mxu0 %v1891
  %2704 = vmatprep.subr.bf16.mxu0 0
  %2705 = vmatpush1.bf16.msra.mxu0 %v1890
  %2706 = vmatprep.subr.bf16.mxu0 0
  %2707 = vmatpush2.bf16.msra.mxu0 %v1905
  %2708 = vmatprep.subr.bf16.mxu0 0
  %2709 = vmatpush2.bf16.msra.mxu0 %v1904
  %2710 = vmatprep.subr.bf16.mxu0 0
  %2711 = vmatpush2.bf16.msra.mxu0 %v1903
  %2712 = vmatprep.subr.bf16.mxu0 0
  %2713 = vmatpush2.bf16.msra.mxu0 %v1902
  %2714 = vmatprep.subr.bf16.mxu0 0
  %2715 = vmatpush2.bf16.msra.mxu0 %v1901
  %2716 = vmatprep.subr.bf16.mxu0 0
  %2717 = vmatpush2.bf16.msra.mxu0 %v1900
  %2718 = vmatprep.subr.bf16.mxu0 0
  %2719 = vmatpush2.bf16.msra.mxu0 %v1899
  %2720 = vmatprep.subr.bf16.mxu0 0
  %2721 = vmatpush2.bf16.msra.mxu0 %v1898
  %2722 = vmatprep.mubr.bf16.mxu0 %v635
  %2723 = vmatmul.mubr.bf16.gmra.mxu0 %v634
  %v2724 = vpop.f32.mrf.mxu0
  %v2725 = vadd.f32 %v2685, %v2724
  %v2726 = vpop.f32.mrf.mxu0
  %v2727 = vpop.f32.mrf.mxu0
  %v2728 = vpop.f32.mrf.mxu0
  %2729 = vdwg.mxu0
  %2730 = vmatprep.subr.bf16.mxu0 0
  %2731 = vmatpush1.bf16.msra.mxu0 %v1913
  %2732 = vmatprep.subr.bf16.mxu0 0
  %2733 = vmatpush1.bf16.msra.mxu0 %v1912
  %2734 = vmatprep.subr.bf16.mxu0 0
  %2735 = vmatpush1.bf16.msra.mxu0 %v1911
  %2736 = vmatprep.subr.bf16.mxu0 0
  %2737 = vmatpush1.bf16.msra.mxu0 %v1910
  %2738 = vmatprep.subr.bf16.mxu0 0
  %2739 = vmatpush1.bf16.msra.mxu0 %v1909
  %2740 = vmatprep.subr.bf16.mxu0 0
  %2741 = vmatpush1.bf16.msra.mxu0 %v1908
  %2742 = vmatprep.subr.bf16.mxu0 0
  %2743 = vmatpush1.bf16.msra.mxu0 %v1907
  %2744 = vmatprep.subr.bf16.mxu0 0
  %2745 = vmatpush1.bf16.msra.mxu0 %v1906
  %2746 = vmatprep.subr.bf16.mxu0 0
  %2747 = vmatpush2.bf16.msra.mxu0 %v1921
  %2748 = vmatprep.subr.bf16.mxu0 0
  %2749 = vmatpush2.bf16.msra.mxu0 %v1920
  %2750 = vmatprep.subr.bf16.mxu0 0
  %2751 = vmatpush2.bf16.msra.mxu0 %v1919
  %2752 = vmatprep.subr.bf16.mxu0 0
  %2753 = vmatpush2.bf16.msra.mxu0 %v1918
  %2754 = vmatprep.subr.bf16.mxu0 0
  %2755 = vmatpush2.bf16.msra.mxu0 %v1917
  %2756 = vmatprep.subr.bf16.mxu0 0
  %2757 = vmatpush2.bf16.msra.mxu0 %v1916
  %2758 = vmatprep.subr.bf16.mxu0 0
  %2759 = vmatpush2.bf16.msra.mxu0 %v1915
  %2760 = vmatprep.subr.bf16.mxu0 0
  %2761 = vmatpush2.bf16.msra.mxu0 %v1914
  %2762 = vmatprep.mubr.bf16.mxu0 %v637
  %2763 = vmatmul.mubr.bf16.gmra.mxu0 %v636
  %v2764 = vpop.f32.mrf.mxu0
  %v2765 = vadd.f32 %v2725, %v2764
  %v2766 = vpop.f32.mrf.mxu0
  %v2767 = vpop.f32.mrf.mxu0
  %v2768 = vpop.f32.mrf.mxu0
  %2769 = vdwg.mxu0
  %2770 = vmatprep.subr.bf16.mxu0 0
  %2771 = vmatpush1.bf16.msra.mxu0 %v1929
  %2772 = vmatprep.subr.bf16.mxu0 0
  %2773 = vmatpush1.bf16.msra.mxu0 %v1928
  %2774 = vmatprep.subr.bf16.mxu0 0
  %2775 = vmatpush1.bf16.msra.mxu0 %v1927
  %2776 = vmatprep.subr.bf16.mxu0 0
  %2777 = vmatpush1.bf16.msra.mxu0 %v1926
  %2778 = vmatprep.subr.bf16.mxu0 0
  %2779 = vmatpush1.bf16.msra.mxu0 %v1925
  %2780 = vmatprep.subr.bf16.mxu0 0
  %2781 = vmatpush1.bf16.msra.mxu0 %v1924
  %2782 = vmatprep.subr.bf16.mxu0 0
  %2783 = vmatpush1.bf16.msra.mxu0 %v1923
  %2784 = vmatprep.subr.bf16.mxu0 0
  %2785 = vmatpush1.bf16.msra.mxu0 %v1922
  %2786 = vmatprep.subr.bf16.mxu0 0
  %2787 = vmatpush2.bf16.msra.mxu0 %v1937
  %2788 = vmatprep.subr.bf16.mxu0 0
  %2789 = vmatpush2.bf16.msra.mxu0 %v1936
  %2790 = vmatprep.subr.bf16.mxu0 0
  %2791 = vmatpush2.bf16.msra.mxu0 %v1935
  %2792 = vmatprep.subr.bf16.mxu0 0
  %2793 = vmatpush2.bf16.msra.mxu0 %v1934
  %2794 = vmatprep.subr.bf16.mxu0 0
  %2795 = vmatpush2.bf16.msra.mxu0 %v1933
  %2796 = vmatprep.subr.bf16.mxu0 0
  %2797 = vmatpush2.bf16.msra.mxu0 %v1932
  %2798 = vmatprep.subr.bf16.mxu0 0
  %2799 = vmatpush2.bf16.msra.mxu0 %v1931
  %2800 = vmatprep.subr.bf16.mxu0 0
  %2801 = vmatpush2.bf16.msra.mxu0 %v1930
  %2802 = vmatprep.mubr.bf16.mxu0 %v639
  %2803 = vmatmul.mubr.bf16.gmra.mxu0 %v638
  %v2804 = vpop.f32.mrf.mxu0
  %v2805 = vadd.f32 %v2765, %v2804
  %v2806 = vpop.f32.mrf.mxu0
  %v2807 = vpop.f32.mrf.mxu0
  %v2808 = vpop.f32.mrf.mxu0
  %2809 = vdwg.mxu0
  %2810 = vmatprep.subr.bf16.mxu0 0
  %2811 = vmatpush1.bf16.msra.mxu0 %v1945
  %2812 = vmatprep.subr.bf16.mxu0 0
  %2813 = vmatpush1.bf16.msra.mxu0 %v1944
  %2814 = vmatprep.subr.bf16.mxu0 0
  %2815 = vmatpush1.bf16.msra.mxu0 %v1943
  %2816 = vmatprep.subr.bf16.mxu0 0
  %2817 = vmatpush1.bf16.msra.mxu0 %v1942
  %2818 = vmatprep.subr.bf16.mxu0 0
  %2819 = vmatpush1.bf16.msra.mxu0 %v1941
  %2820 = vmatprep.subr.bf16.mxu0 0
  %2821 = vmatpush1.bf16.msra.mxu0 %v1940
  %2822 = vmatprep.subr.bf16.mxu0 0
  %2823 = vmatpush1.bf16.msra.mxu0 %v1939
  %2824 = vmatprep.subr.bf16.mxu0 0
  %2825 = vmatpush1.bf16.msra.mxu0 %v1938
  %2826 = vmatprep.subr.bf16.mxu0 0
  %2827 = vmatpush2.bf16.msra.mxu0 %v1953
  %2828 = vmatprep.subr.bf16.mxu0 0
  %2829 = vmatpush2.bf16.msra.mxu0 %v1952
  %2830 = vmatprep.subr.bf16.mxu0 0
  %2831 = vmatpush2.bf16.msra.mxu0 %v1951
  %2832 = vmatprep.subr.bf16.mxu0 0
  %2833 = vmatpush2.bf16.msra.mxu0 %v1950
  %2834 = vmatprep.subr.bf16.mxu0 0
  %2835 = vmatpush2.bf16.msra.mxu0 %v1949
  %2836 = vmatprep.subr.bf16.mxu0 0
  %2837 = vmatpush2.bf16.msra.mxu0 %v1948
  %2838 = vmatprep.subr.bf16.mxu0 0
  %2839 = vmatpush2.bf16.msra.mxu0 %v1947
  %2840 = vmatprep.subr.bf16.mxu0 0
  %2841 = vmatpush2.bf16.msra.mxu0 %v1946
  %2842 = vmatprep.mubr.bf16.mxu0 %v641
  %2843 = vmatmul.mubr.bf16.gmra.mxu0 %v640
  %v2844 = vpop.f32.mrf.mxu0
  %v2845 = vadd.f32 %v2805, %v2844
  %v2846 = vpop.f32.mrf.mxu0
  %v2847 = vpop.f32.mrf.mxu0
  %v2848 = vpop.f32.mrf.mxu0
  %2849 = vdwg.mxu0
  %v2850 = vmax.f32 %v2845, 0.0
  %v2851 = vpack.c.bf16 %v2850, %v2850
  %v2852 = vld [vmem:[%s3] sm:$0xf]
  %v2853 = vld [vmem:[%s3 + $0x4] sm:$0xf]
  %v2854 = vld [vmem:[%s3 + $0x8] sm:$0xf]
  %v2855 = vld [vmem:[%s3 + $0xc] sm:$0xf]
  %v2856 = vld [vmem:[%s3 + $0x10] sm:$0xf]
  %v2857 = vld [vmem:[%s3 + $0x14] sm:$0xf]
  %v2858 = vld [vmem:[%s3 + $0x18] sm:$0xf]
  %v2859 = vld [vmem:[%s3 + $0x1c] sm:$0xf]
  %v2860 = vld [vmem:[%s3 + $0x20] sm:$0xf]
  %v2861 = vld [vmem:[%s3 + $0x24] sm:$0xf]
  %v2862 = vld [vmem:[%s3 + $0x28] sm:$0xf]
  %v2863 = vld [vmem:[%s3 + $0x2c] sm:$0xf]
  %v2864 = vld [vmem:[%s3 + $0x30] sm:$0xf]
  %v2865 = vld [vmem:[%s3 + $0x34] sm:$0xf]
  %v2866 = vld [vmem:[%s3 + $0x38] sm:$0xf]
  %v2867 = vld [vmem:[%s3 + $0x3c] sm:$0xf]
  %v2868 = vld [vmem:[%s4] sm:$0x1]
  %v2870 = vlaneseq
  %v2871 = vshrl.u32 %v2870, 7
  %v2872 = vsub.s32 0, %v2871
  %v2873 = vrot.slane %v2868, %v2872
  %v2891 = vunpack.c.l.b16 %v2852
  %v2892 = vunpack.c.l.b16 %v2853
  %v2893 = vunpack.c.l.b16 %v2854
  %v2894 = vunpack.c.l.b16 %v2855
  %v2895 = vunpack.c.l.b16 %v2856
  %v2896 = vunpack.c.l.b16 %v2857
  %v2897 = vunpack.c.l.b16 %v2858
  %v2898 = vunpack.c.l.b16 %v2859
  %v2899 = vunpack.c.l.b16 %v2860
  %v2900 = vunpack.c.l.b16 %v2861
  %v2901 = vunpack.c.l.b16 %v2862
  %v2902 = vunpack.c.l.b16 %v2863
  %v2903 = vunpack.c.l.b16 %v2864
  %v2904 = vunpack.c.l.b16 %v2865
  %v2905 = vunpack.c.l.b16 %v2866
  %v2906 = vunpack.c.l.b16 %v2867
  %v2907 = vpack.c.b16 %v2892, %v2891
  %v2908 = vpack.c.b16 %v2894, %v2893
  %v2909 = vpack.c.b16 %v2896, %v2895
  %v2910 = vpack.c.b16 %v2898, %v2897
  %v2911 = vpack.c.b16 %v2900, %v2899
  %v2912 = vpack.c.b16 %v2902, %v2901
  %v2913 = vpack.c.b16 %v2904, %v2903
  %v2914 = vpack.c.b16 %v2906, %v2905
  %2923 = vmatprep.subr.bf16.mxu0 0
  %2924 = vmatpush1.bf16.msra.mxu0 %v2914
  %2925 = vmatprep.subr.bf16.mxu0 0
  %2926 = vmatpush1.bf16.msra.mxu0 %v2913
  %2927 = vmatprep.subr.bf16.mxu0 0
  %2928 = vmatpush1.bf16.msra.mxu0 %v2912
  %2929 = vmatprep.subr.bf16.mxu0 0
  %2930 = vmatpush1.bf16.msra.mxu0 %v2911
  %2931 = vmatprep.subr.bf16.mxu0 0
  %2932 = vmatpush1.bf16.msra.mxu0 %v2910
  %2933 = vmatprep.subr.bf16.mxu0 0
  %2934 = vmatpush1.bf16.msra.mxu0 %v2909
  %2935 = vmatprep.subr.bf16.mxu0 0
  %2936 = vmatpush1.bf16.msra.mxu0 %v2908
  %2937 = vmatprep.subr.bf16.mxu0 0
  %2938 = vmatpush1.bf16.msra.mxu0 %v2907
  %2939 = vmatprep.subr.bf16.mxu0 0
  %2940 = vmatpush2.bf16.msra.mxu0 0
  %2941 = vmatprep.subr.bf16.mxu0 0
  %2942 = vmatpush2.bf16.msra.mxu0 0
  %2943 = vmatprep.subr.bf16.mxu0 0
  %2944 = vmatpush2.bf16.msra.mxu0 0
  %2945 = vmatprep.subr.bf16.mxu0 0
  %2946 = vmatpush2.bf16.msra.mxu0 0
  %2947 = vmatprep.subr.bf16.mxu0 0
  %2948 = vmatpush2.bf16.msra.mxu0 0
  %2949 = vmatprep.subr.bf16.mxu0 0
  %2950 = vmatpush2.bf16.msra.mxu0 0
  %2951 = vmatprep.subr.bf16.mxu0 0
  %2952 = vmatpush2.bf16.msra.mxu0 0
  %2953 = vmatprep.subr.bf16.mxu0 0
  %2954 = vmatpush2.bf16.msra.mxu0 0
  %2955 = vmatprep.mubr.bf16.mxu0 0
  %2956 = vmatmul.mubr.bf16.gmra.mxu0 %v2851
  %v2957 = vpop.f32.mrf.mxu0
  %v2958 = vadd.f32 %v2873, %v2957
  %v2959 = vpop.f32.mrf.mxu0
  %v2960 = vpop.f32.mrf.mxu0
  %v2961 = vpop.f32.mrf.mxu0
  %2962 = vdwg.mxu0
  %v2963 = vmax.f32 %v2958, 0.0
  %v2964 = vpack.c.bf16 %v2963, %v2963
  %v2965 = vld [vmem:[%s5] sm:$0xf]
  %v2966 = vld [vmem:[%s5 + $0x4] sm:$0xf]
  %v2967 = vld [vmem:[%s5 + $0x8] sm:$0xf]
  %v2968 = vld [vmem:[%s5 + $0xc] sm:$0xf]
  %v2969 = vld [vmem:[%s5 + $0x10] sm:$0xf]
  %v2970 = vld [vmem:[%s5 + $0x14] sm:$0xf]
  %v2971 = vld [vmem:[%s5 + $0x18] sm:$0xf]
  %v2972 = vld [vmem:[%s5 + $0x1c] sm:$0xf]
  %v2973 = vld [vmem:[%s5 + $0x20] sm:$0xf]
  %v2974 = vld [vmem:[%s5 + $0x24] sm:$0xf]
  %v2975 = vld [vmem:[%s5 + $0x28] sm:$0xf]
  %v2976 = vld [vmem:[%s5 + $0x2c] sm:$0xf]
  %v2977 = vld [vmem:[%s5 + $0x30] sm:$0xf]
  %v2978 = vld [vmem:[%s5 + $0x34] sm:$0xf]
  %v2979 = vld [vmem:[%s5 + $0x38] sm:$0xf]
  %v2980 = vld [vmem:[%s5 + $0x3c] sm:$0xf]
  %v2981 = vld [vmem:[%s6] sm:$0x1]
  %v2983 = vlaneseq
  %v2984 = vshrl.u32 %v2983, 7
  %v2985 = vsub.s32 0, %v2984
  %v2986 = vrot.slane %v2981, %v2985
  %v3004 = vunpack.c.l.b16 %v2965
  %v3005 = vunpack.c.l.b16 %v2966
  %v3006 = vunpack.c.l.b16 %v2967
  %v3007 = vunpack.c.l.b16 %v2968
  %v3008 = vunpack.c.l.b16 %v2969
  %v3009 = vunpack.c.l.b16 %v2970
  %v3010 = vunpack.c.l.b16 %v2971
  %v3011 = vunpack.c.l.b16 %v2972
  %v3012 = vunpack.c.l.b16 %v2973
  %v3013 = vunpack.c.l.b16 %v2974
  %v3014 = vunpack.c.l.b16 %v2975
  %v3015 = vunpack.c.l.b16 %v2976
  %v3016 = vunpack.c.l.b16 %v2977
  %v3017 = vunpack.c.l.b16 %v2978
  %v3018 = vunpack.c.l.b16 %v2979
  %v3019 = vunpack.c.l.b16 %v2980
  %v3020 = vpack.c.b16 %v3005, %v3004
  %v3021 = vpack.c.b16 %v3007, %v3006
  %v3022 = vpack.c.b16 %v3009, %v3008
  %v3023 = vpack.c.b16 %v3011, %v3010
  %v3024 = vpack.c.b16 %v3013, %v3012
  %v3025 = vpack.c.b16 %v3015, %v3014
  %v3026 = vpack.c.b16 %v3017, %v3016
  %v3027 = vpack.c.b16 %v3019, %v3018
  %3036 = vmatprep.subr.bf16.mxu0 0
  %3037 = vmatpush1.bf16.msra.mxu0 %v3027
  %3038 = vmatprep.subr.bf16.mxu0 0
  %3039 = vmatpush1.bf16.msra.mxu0 %v3026
  %3040 = vmatprep.subr.bf16.mxu0 0
  %3041 = vmatpush1.bf16.msra.mxu0 %v3025
  %3042 = vmatprep.subr.bf16.mxu0 0
  %3043 = vmatpush1.bf16.msra.mxu0 %v3024
  %3044 = vmatprep.subr.bf16.mxu0 0
  %3045 = vmatpush1.bf16.msra.mxu0 %v3023
  %3046 = vmatprep.subr.bf16.mxu0 0
  %3047 = vmatpush1.bf16.msra.mxu0 %v3022
  %3048 = vmatprep.subr.bf16.mxu0 0
  %3049 = vmatpush1.bf16.msra.mxu0 %v3021
  %3050 = vmatprep.subr.bf16.mxu0 0
  %3051 = vmatpush1.bf16.msra.mxu0 %v3020
  %3052 = vmatprep.subr.bf16.mxu0 0
  %3053 = vmatpush2.bf16.msra.mxu0 0
  %3054 = vmatprep.subr.bf16.mxu0 0
  %3055 = vmatpush2.bf16.msra.mxu0 0
  %3056 = vmatprep.subr.bf16.mxu0 0
  %3057 = vmatpush2.bf16.msra.mxu0 0
  %3058 = vmatprep.subr.bf16.mxu0 0
  %3059 = vmatpush2.bf16.msra.mxu0 0
  %3060 = vmatprep.subr.bf16.mxu0 0
  %3061 = vmatpush2.bf16.msra.mxu0 0
  %3062 = vmatprep.subr.bf16.mxu0 0
  %3063 = vmatpush2.bf16.msra.mxu0 0
  %3064 = vmatprep.subr.bf16.mxu0 0
  %3065 = vmatpush2.bf16.msra.mxu0 0
  %3066 = vmatprep.subr.bf16.mxu0 0
  %3067 = vmatpush2.bf16.msra.mxu0 0
  %3068 = vmatprep.mubr.bf16.mxu0 0
  %3069 = vmatmul.mubr.bf16.gmra.mxu0 %v2964
  %v3070 = vpop.f32.mrf.mxu0
  %v3071 = vadd.f32 %v2986, %v3070
  %v3072 = vpop.f32.mrf.mxu0
  %v3073 = vpop.f32.mrf.mxu0
  %v3074 = vpop.f32.mrf.mxu0
  %3075 = vdwg.mxu0
  %v3076 = vlaneseq
  %v3077 = vand.u32 %v3076, 127
  %vm3078 = vcmp.lt.s32.totalorder %v3077, 10
  %v3079 = vsel %vm3078, %v3071, -1e+30
  %3080 = vmax.xlane.f32.xlu0 %v3079
  %v3081 = vpop.xlane.xlu0 %3080
  %v3082 = vsub.f32 %v3079, %v3081
  %v3083 = vmul.f32 %v3082, 1.442695
  %v3084 = vpow.pop %v3083
  %3085 = vadd.xlane.f32.xlu0 %v3084
  %v3086 = vpop.xlane.xlu0 %3085
  %v3087 = vlog2.pop %v3086
  %v3088 = vmul.f32 %v3087, 0.6931472
  %v3089 = vsub.f32 %v3082, %v3088
  %3090 = vst [vmem:[%s7] sm:$0xff] %v3089
  // Predicated region
  $region30: #{net_forward_pallas.3} parent=0 // pred_check
    _
  $region31: #{net_forward_pallas.3} parent=0 // pred_check_branch
    %3092 = sbr.rel (0) target = $region33
  $region32: #{net_forward_pallas.3} parent=0 // pred_region
    _
  $region33: #{net_forward_pallas.3} parent=0 // pred_fallthru
    _
  // Predicated region
  $region34: #{net_forward_pallas.3} parent=0 // pred_check
    _
  $region35: #{net_forward_pallas.3} parent=0 // pred_check_branch
    %3094 = sbr.rel (0) target = $region37
  $region36: #{net_forward_pallas.3} parent=0 // pred_region
    _
  $region37: #{net_forward_pallas.3} parent=0 // pred_fallthru
    _

// kernel: net_forward_pallas.2
$region0: #{net_forward_pallas.2}
  #allocation0 [shape = 'u32[]', space=smem, size = 0x4, offset = 0x4, fixed_abs, tag = 'smem constant byte address 0x4 - core index']
  #allocation1 [shape = 'u32[144,128]{1,0:T(1,128)}', space=vmem, size = 0x12000, scoped, tag = 'internal scratch']
  #allocation2 [shape = 'f32[256,128]{1,0:T(8,128)}', space=vmem, size = 0x20000, scoped, tag = 'scratch operand']
  #allocation3 [shape = 'f32[196,128]{1,0:T(8,128)}', space=vmem, size = 0x19000, scoped, tag = 'scratch operand']
  %s0 = inlined_call_operand.vmem [shape: bf16[2,4,196,32], index: 0, kind: input, shape index: {}]
  %s1 = inlined_call_operand.vmem [shape: bf16[32,128], index: 1, kind: input, shape index: {}]
  %s2 = inlined_call_operand.vmem [shape: f32[1,128], index: 2, kind: input, shape index: {}]
  %s3 = inlined_call_operand.vmem [shape: bf16[25,128,128], index: 3, kind: input, shape index: {}]
  %s4 = inlined_call_operand.vmem [shape: f32[1,128], index: 4, kind: input, shape index: {}]
  %s5 = inlined_call_operand.vmem [shape: bf16[2,32,128], index: 5, kind: output, shape index: {}]
  %s6 = sld [smem:[#allocation0]]
  $region53: #{net_forward_pallas.2} parent=0
    _
  %s8 = ssub.s32 1, %s6
  %s9 = scalar_select 0, %s8, %s6
  loop: start=0, step=1, limit=4
  $region2: #{net_forward_pallas.2} parent=0 // loop_pre_header
    _
  $region3: #{net_forward_pallas.2} parent=0 // loop_header
    %s11 = sphi 0, %s15
    %p12 = scmp.ge.s32.totalorder %s11, 4
    %s21 = sphi 0, %s23
    %s24 = sphi 0, %s21
    %s25 = sphi 0, %s24
    %s41 = sphi 0, %s25
    %s45 = sphi 0, %s45
    %s47 = sphi 0, %s45
    %s48 = sphi 0, %s47
    %s62 = sphi 0, %s48
    %s66 = sphi 0, %s66
    %s68 = sphi 0, %s66
    %s69 = sphi 0, %s68
    %s83 = sphi 0, %s69
    %s87 = sphi 0, %s87
    %s89 = sphi 0, %s87
    %s90 = sphi 0, %s89
    %s104 = sphi 0, %s90
    %s108 = sphi 0, %s108
    %s110 = sphi 0, %s108
    %s111 = sphi 0, %s110
    %s125 = sphi 0, %s111
    %s131 = sphi 0, %s133
    %s134 = sphi 0, %s131
    %s135 = sphi 0, %s134
    %s151 = sphi 0, %s135
  $region4: #{net_forward_pallas.2} parent=0 // loop_header_branch
    %14 = sbr.rel (%p12) target = $region8
  $region5: #{net_forward_pallas.2} parent=0 // loop_body
    %s16 = ssub.s32 %s11, 1
    %s17 = ssub.s32 %s11, 2
    %s18 = sadd.s32 %s11, 1
    %s19 = ssub.s32 %s11, %s18
    %p20 = scmp.eq.s32.totalorder %s19, 0
    %s22 = sadd.s32 %s21, 1
    %s23 = scalar_select %p20, %s21, %s22
    %p26 = pneg %p20
    %p27 = scmp.eq.s32.totalorder %s11, 1
    %p28 = por %p26, %p27
    %p29 = scmp.ne.s32.totalorder %s21, %s24
    %p30 = scmp.eq.s32.totalorder %s11, 0
    %p31 = por %p29, %p30
    %p32 = scmp.ne.s32.totalorder %s21, %s24
    %p33 = scmp.eq.s32.totalorder %s16, 1
    %p34 = por %p32, %p33
    %p35 = scmp.ne.s32.totalorder %s24, %s25
    %p36 = scmp.eq.s32.totalorder %s16, 0
    %p37 = por %p35, %p36
    %p38 = scmp.ne.s32.totalorder %s24, %s25
    %p39 = scmp.eq.s32.totalorder %s17, 1
    %p40 = por %p38, %p39
    %p42 = scmp.ne.s32.totalorder %s25, %s41
    %p43 = scmp.eq.s32.totalorder %s17, 0
    %p44 = por %p42, %p43
    %s46 = sadd.s32 %s45, 1
    %p49 = scmp.eq.s32.totalorder %s11, 1
    %p50 = scmp.ne.s32.totalorder %s45, %s47
    %p51 = scmp.eq.s32.totalorder %s11, 0
    %p52 = por %p50, %p51
    %p53 = scmp.ne.s32.totalorder %s45, %s47
    %p54 = scmp.eq.s32.totalorder %s16, 1
    %p55 = por %p53, %p54
    %p56 = scmp.ne.s32.totalorder %s47, %s48
    %p57 = scmp.eq.s32.totalorder %s16, 0
    %p58 = por %p56, %p57
    %p59 = scmp.ne.s32.totalorder %s47, %s48
    %p60 = scmp.eq.s32.totalorder %s17, 1
    %p61 = por %p59, %p60
    %p63 = scmp.ne.s32.totalorder %s48, %s62
    %p64 = scmp.eq.s32.totalorder %s17, 0
    %p65 = por %p63, %p64
    %s67 = sadd.s32 %s66, 1
    %p70 = scmp.eq.s32.totalorder %s11, 1
    %p71 = scmp.ne.s32.totalorder %s66, %s68
    %p72 = scmp.eq.s32.totalorder %s11, 0
    %p73 = por %p71, %p72
    %p74 = scmp.ne.s32.totalorder %s66, %s68
    %p75 = scmp.eq.s32.totalorder %s16, 1
    %p76 = por %p74, %p75
    %p77 = scmp.ne.s32.totalorder %s68, %s69
    %p78 = scmp.eq.s32.totalorder %s16, 0
    %p79 = por %p77, %p78
    %p80 = scmp.ne.s32.totalorder %s68, %s69
    %p81 = scmp.eq.s32.totalorder %s17, 1
    %p82 = por %p80, %p81
    %p84 = scmp.ne.s32.totalorder %s69, %s83
    %p85 = scmp.eq.s32.totalorder %s17, 0
    %p86 = por %p84, %p85
    %s88 = sadd.s32 %s87, 1
    %p91 = scmp.eq.s32.totalorder %s11, 1
    %p92 = scmp.ne.s32.totalorder %s87, %s89
    %p93 = scmp.eq.s32.totalorder %s11, 0
    %p94 = por %p92, %p93
    %p95 = scmp.ne.s32.totalorder %s87, %s89
    %p96 = scmp.eq.s32.totalorder %s16, 1
    %p97 = por %p95, %p96
    %p98 = scmp.ne.s32.totalorder %s89, %s90
    %p99 = scmp.eq.s32.totalorder %s16, 0
    %p100 = por %p98, %p99
    %p101 = scmp.ne.s32.totalorder %s89, %s90
    %p102 = scmp.eq.s32.totalorder %s17, 1
    %p103 = por %p101, %p102
    %p105 = scmp.ne.s32.totalorder %s90, %s104
    %p106 = scmp.eq.s32.totalorder %s17, 0
    %p107 = por %p105, %p106
    %s109 = sadd.s32 %s108, 1
    %p112 = scmp.eq.s32.totalorder %s11, 1
    %p113 = scmp.ne.s32.totalorder %s108, %s110
    %p114 = scmp.eq.s32.totalorder %s11, 0
    %p115 = por %p113, %p114
    %p116 = scmp.ne.s32.totalorder %s108, %s110
    %p117 = scmp.eq.s32.totalorder %s16, 1
    %p118 = por %p116, %p117
    %p119 = scmp.ne.s32.totalorder %s110, %s111
    %p120 = scmp.eq.s32.totalorder %s16, 0
    %p121 = por %p119, %p120
    %p122 = scmp.ne.s32.totalorder %s110, %s111
    %p123 = scmp.eq.s32.totalorder %s17, 1
    %p124 = por %p122, %p123
    %p126 = scmp.ne.s32.totalorder %s111, %s125
    %p127 = scmp.eq.s32.totalorder %s17, 0
    %p128 = por %p126, %p127
    %s129 = ssub.s32 %s11, %s18
    %p130 = scmp.eq.s32.totalorder %s129, 0
    %s132 = sadd.s32 %s131, 1
    %s133 = scalar_select %p130, %s131, %s132
    %p136 = pneg %p130
    %p137 = scmp.eq.s32.totalorder %s11, 1
    %p138 = por %p136, %p137
    %p139 = scmp.ne.s32.totalorder %s131, %s134
    %p140 = scmp.eq.s32.totalorder %s11, 0
    %p141 = por %p139, %p140
    %p142 = scmp.ne.s32.totalorder %s131, %s134
    %p143 = scmp.eq.s32.totalorder %s16, 1
    %p144 = por %p142, %p143
    %p145 = scmp.ne.s32.totalorder %s134, %s135
    %p146 = scmp.eq.s32.totalorder %s16, 0
    %p147 = por %p145, %p146
    %p148 = scmp.ne.s32.totalorder %s134, %s135
    %p149 = scmp.eq.s32.totalorder %s17, 1
    %p150 = por %p148, %p149
    %p152 = scmp.ne.s32.totalorder %s135, %s151
    %p153 = scmp.eq.s32.totalorder %s17, 0
    %p154 = por %p152, %p153
    %p155 = scmp.le.s32.totalorder 1, %s11
    %p156 = scmp.lt.s32.totalorder %s11, 3
    %p157 = pnand %p155, %p156
    %p158 = pneg %p157
    // Predicated region
    $region9: #{net_forward_pallas.2} parent=5 // pred_check
      _
    $region10: #{net_forward_pallas.2} parent=5 // pred_check_branch
      %160 = sbr.rel (%p157) target = $region12
    $region11: #{net_forward_pallas.2} parent=5 // pred_region
      %s161 = ssub.s32 %s11, 1
      // Predicated region
      $region13: #{net_forward_pallas.2} parent=11 // pred_check
        %p162 = pneg %p58
      $region14: #{net_forward_pallas.2} parent=11 // pred_check_branch
        %164 = sbr.rel (%p162) target = $region16
      $region15: #{net_forward_pallas.2} parent=11 // pred_region
        _
      $region16: #{net_forward_pallas.2} parent=11 // pred_fallthru
        _
      // Predicated region
      $region17: #{net_forward_pallas.2} parent=11 // pred_check
        %p165 = pneg %p79
      $region18: #{net_forward_pallas.2} parent=11 // pred_check_branch
        %167 = sbr.rel (%p165) target = $region20
      $region19: #{net_forward_pallas.2} parent=11 // pred_region
        _
      $region20: #{net_forward_pallas.2} parent=11 // pred_fallthru
        _
      // Predicated region
      $region21: #{net_forward_pallas.2} parent=11 // pred_check
        %p168 = pneg %p100
      $region22: #{net_forward_pallas.2} parent=11 // pred_check_branch
        %170 = sbr.rel (%p168) target = $region24
      $region23: #{net_forward_pallas.2} parent=11 // pred_region
        _
      $region24: #{net_forward_pallas.2} parent=11 // pred_fallthru
        _
      // Predicated region
      $region25: #{net_forward_pallas.2} parent=11 // pred_check
        %p171 = pneg %p121
      $region26: #{net_forward_pallas.2} parent=11 // pred_check_branch
        %173 = sbr.rel (%p171) target = $region28
      $region27: #{net_forward_pallas.2} parent=11 // pred_region
        _
      $region28: #{net_forward_pallas.2} parent=11 // pred_fallthru
        _
    $region12: #{net_forward_pallas.2} parent=5 // pred_fallthru
      _
    %p174 = scmp.lt.s32.totalorder %s11, 2
    // Predicated region
    $region29: #{net_forward_pallas.2} parent=5 // pred_check
      %p175 = pneg %p174
    $region30: #{net_forward_pallas.2} parent=5 // pred_check_branch
      %177 = sbr.rel (%p175) target = $region32
    $region31: #{net_forward_pallas.2} parent=5 // pred_region
      // Predicated region
      $region33: #{net_forward_pallas.2} parent=31 // pred_check
        %p178 = pneg %p31
      $region34: #{net_forward_pallas.2} parent=31 // pred_check_branch
        %180 = sbr.rel (%p178) target = $region36
      $region35: #{net_forward_pallas.2} parent=31 // pred_region
        %p181 = scmp.lt.s32.totalorder %s11, 1
        %s182 = scalar_select %p181, %s11, 1
        %s183 = smul.addr %s182, 100
        %s184 = smul.addr %s183, 4
        %s185 = scalar_lea.vmem %s0, %s184
      $region36: #{net_forward_pallas.2} parent=31 // pred_fallthru
        _
    $region32: #{net_forward_pallas.2} parent=5 // pred_fallthru
      _
    %p186 = scmp.le.s32.totalorder 1, %s11
    %p187 = scmp.lt.s32.totalorder %s11, 3
    %p188 = pnand %p186, %p187
    %p189 = pneg %p188
    // Predicated region
    $region37: #{net_forward_pallas.2} parent=5 // pred_check
      _
    $region38: #{net_forward_pallas.2} parent=5 // pred_check_branch
      %191 = sbr.rel (%p188) target = $region40
    $region39: #{net_forward_pallas.2} parent=5 // pred_region
      %s192 = ssub.s32 %s11, 1
      %p193 = scmp.lt.s32.totalorder %s16, 1
      %s194 = scalar_select %p193, %s16, 1
      %s195 = smul.addr %s194, 100
      %s196 = smul.addr %s195, 4
      %s197 = scalar_lea.vmem %s0, %s196
      %p198 = pneg %p37
      %p199 = pneg %p34
      %p200 = pneg %p58
      %p201 = pneg %p55
      %p202 = pneg %p79
      %p203 = pneg %p76
      %p204 = pneg %p100
      %p205 = pneg %p97
      %p206 = pneg %p121
      %p207 = pneg %p118
      %p208 = pneg %p147
      %p209 = pneg %p144
      %p210 = scmp.lt.s32.totalorder %s16, 1
      %s211 = scalar_select %p210, %s16, 1
      %s212 = smul.addr %s211, 4
      %s213 = smul.addr %s212, 4
      %s214 = scalar_lea.vmem %s5, %s213
      %p215 = scmp.lt.s32.totalorder %s16, 1
      %s216 = scalar_select %p215, %s16, 1
      %s217 = smul.addr %s216, 100
      %s218 = smul.addr %s217, 4
      %s219 = scalar_lea.vmem %s0, %s218
      %p220 = scmp.lt.s32.totalorder %s16, 1
      %s221 = scalar_select %p220, %s16, 1
      %s222 = smul.addr %s221, 4
      %s223 = smul.addr %s222, 4
      %s224 = scalar_lea.vmem %s5, %s223
      %v226 = vld [vmem:[%s1] sm:$0xf]
      %v227 = vld [vmem:[%s1 + $0x4] sm:$0xf]
      %v228 = vld [vmem:[%s1 + $0x8] sm:$0xf]
      %v229 = vld [vmem:[%s1 + $0xc] sm:$0xf]
      %v230 = vld [vmem:[%s219] sm:$0xf]
      %v231 = vld [vmem:[%s219 + $0x4] sm:$0xf]
      %v232 = vld [vmem:[%s219 + $0x8] sm:$0xf]
      %v233 = vld [vmem:[%s219 + $0xc] sm:$0xf]
      %v234 = vld [vmem:[%s219 + $0x10] sm:$0xf]
      %v235 = vld [vmem:[%s219 + $0x14] sm:$0xf]
      %v236 = vld [vmem:[%s219 + $0x18] sm:$0xf]
      %v237 = vld [vmem:[%s219 + $0x1c] sm:$0xf]
      %v238 = vld [vmem:[%s219 + $0x20] sm:$0xf]
      %v239 = vld [vmem:[%s219 + $0x24] sm:$0xf]
      %v240 = vld [vmem:[%s219 + $0x28] sm:$0xf]
      %v241 = vld [vmem:[%s219 + $0x2c] sm:$0xf]
      %v242 = vld [vmem:[%s219 + $0x30] sm:$0xf]
      %v243 = vld [vmem:[%s219 + $0x34] sm:$0xf]
      %v244 = vld [vmem:[%s219 + $0x38] sm:$0xf]
      %v245 = vld [vmem:[%s219 + $0x3c] sm:$0xf]
      %v246 = vld [vmem:[%s219 + $0x40] sm:$0xf]
      %v247 = vld [vmem:[%s219 + $0x44] sm:$0xf]
      %v248 = vld [vmem:[%s219 + $0x48] sm:$0xf]
      %v249 = vld [vmem:[%s219 + $0x4c] sm:$0xf]
      %v250 = vld [vmem:[%s219 + $0x50] sm:$0xf]
      %v251 = vld [vmem:[%s219 + $0x54] sm:$0xf]
      %v252 = vld [vmem:[%s219 + $0x58] sm:$0xf]
      %v253 = vld [vmem:[%s219 + $0x5c] sm:$0xf]
      %v254 = vld [vmem:[%s219 + $0x60] sm:$0x3]
      %v280 = vunpack.c.l.b16 %v230
      %v281 = vunpack.c.l.b16 %v231
      %v282 = vunpack.c.l.b16 %v232
      %v283 = vunpack.c.l.b16 %v233
      %v284 = vunpack.c.l.b16 %v234
      %v285 = vunpack.c.l.b16 %v235
      %v286 = vunpack.c.l.b16 %v236
      %v287 = vunpack.c.l.b16 %v237
      %v288 = vunpack.c.l.b16 %v238
      %v289 = vunpack.c.l.b16 %v239
      %v290 = vunpack.c.l.b16 %v240
      %v291 = vunpack.c.l.b16 %v241
      %v292 = vunpack.c.l.b16 %v242
      %v293 = vunpack.c.l.b16 %v243
      %v294 = vunpack.c.l.b16 %v244
      %v295 = vunpack.c.l.b16 %v245
      %v296 = vunpack.c.l.b16 %v246
      %v297 = vunpack.c.l.b16 %v247
      %v298 = vunpack.c.l.b16 %v248
      %v299 = vunpack.c.l.b16 %v249
      %v300 = vunpack.c.l.b16 %v250
      %v301 = vunpack.c.l.b16 %v251
      %v302 = vunpack.c.l.b16 %v252
      %v303 = vunpack.c.l.b16 %v253
      %v304 = vunpack.c.l.b16 %v254
      %v305 = vpack.c.b16 %v281, %v280
      %v306 = vpack.c.b16 %v283, %v282
      %v307 = vpack.c.b16 %v285, %v284
      %v308 = vpack.c.b16 %v287, %v286
      %v309 = vpack.c.b16 %v289, %v288
      %v310 = vpack.c.b16 %v291, %v290
      %v311 = vpack.c.b16 %v293, %v292
      %v312 = vpack.c.b16 %v295, %v294
      %v313 = vpack.c.b16 %v297, %v296
      %v314 = vpack.c.b16 %v299, %v298
      %v315 = vpack.c.b16 %v301, %v300
      %v316 = vpack.c.b16 %v303, %v302
      %v317 = vpack.c.b16 %v304, %v304
      %v322 = vunpack.c.l.b16 %v226
      %v323 = vunpack.c.l.b16 %v227
      %v324 = vunpack.c.l.b16 %v228
      %v325 = vunpack.c.l.b16 %v229
      %v326 = vpack.c.b16 %v323, %v322
      %v327 = vpack.c.b16 %v325, %v324
      %vm330 = vcmask 261120
      %v332 = vsel %vm330, %v305, 0
      %v335 = vsel %vm330, %v306, 0
      %v338 = vsel %vm330, %v307, 0
      %v341 = vsel %vm330, %v308, 0
      %v344 = vsel %vm330, %v309, 0
      %v347 = vsel %vm330, %v310, 0
      %v350 = vsel %vm330, %v311, 0
      %v353 = vsel %vm330, %v312, 0
      %v356 = vsel %vm330, %v313, 0
      %v359 = vsel %vm330, %v314, 0
      %v362 = vsel %vm330, %v315, 0
      %v365 = vsel %vm330, %v316, 0
      %v368 = vsel %vm330, %v317, 0
      %370 = vmatprep.subr.bf16.mxu0 0
      %371 = vmatpush1.bf16.msra.mxu0 0
      %372 = vmatprep.subr.bf16.mxu0 0
      %373 = vmatpush1.bf16.msra.mxu0 0
      %374 = vmatprep.subr.bf16.mxu0 0
      %375 = vmatpush1.bf16.msra.mxu0 0
      %376 = vmatprep.subr.bf16.mxu0 0
      %377 = vmatpush1.bf16.msra.mxu0 0
      %378 = vmatprep.subr.bf16.mxu0 0
      %379 = vmatpush1.bf16.msra.mxu0 0
      %380 = vmatprep.subr.bf16.mxu0 0
      %381 = vmatpush1.bf16.msra.mxu0 0
      %382 = vmatprep.subr.bf16.mxu0 0
      %383 = vmatpush1.bf16.msra.mxu0 %v327
      %384 = vmatprep.subr.bf16.mxu0 0
      %385 = vmatpush1.bf16.msra.mxu0 %v326
      %386 = vmatprep.subr.bf16.mxu0 0
      %387 = vmatpush2.bf16.msra.mxu0 0
      %388 = vmatprep.subr.bf16.mxu0 0
      %389 = vmatpush2.bf16.msra.mxu0 0
      %390 = vmatprep.subr.bf16.mxu0 0
      %391 = vmatpush2.bf16.msra.mxu0 0
      %392 = vmatprep.subr.bf16.mxu0 0
      %393 = vmatpush2.bf16.msra.mxu0 0
      %394 = vmatprep.subr.bf16.mxu0 0
      %395 = vmatpush2.bf16.msra.mxu0 0
      %396 = vmatprep.subr.bf16.mxu0 0
      %397 = vmatpush2.bf16.msra.mxu0 0
      %398 = vmatprep.subr.bf16.mxu0 0
      %399 = vmatpush2.bf16.msra.mxu0 0
      %400 = vmatprep.subr.bf16.mxu0 0
      %401 = vmatpush2.bf16.msra.mxu0 0
      %402 = vmatprep.mubr.bf16.mxu0 0
      %403 = vmatmul.mubr.bf16.gmra.mxu0 %v332
      %v404 = vpop.f32.mrf.mxu0
      %v405 = vadd.f32 0.0, %v404
      %v406 = vpop.f32.mrf.mxu0
      %v407 = vpop.f32.mrf.mxu0
      %v408 = vadd.f32 0.0, %v407
      %v409 = vpop.f32.mrf.mxu0
      %410 = vmatprep.mubr.bf16.mxu0 0
      %411 = vmatmul.mubr.bf16.gmra.mxu0 %v335
      %v412 = vpop.f32.mrf.mxu0
      %v413 = vadd.f32 0.0, %v412
      %v414 = vpop.f32.mrf.mxu0
      %v415 = vpop.f32.mrf.mxu0
      %v416 = vadd.f32 0.0, %v415
      %v417 = vpop.f32.mrf.mxu0
      %418 = vmatprep.mubr.bf16.mxu0 0
      %419 = vmatmul.mubr.bf16.gmra.mxu0 %v338
      %v420 = vpop.f32.mrf.mxu0
      %v421 = vadd.f32 0.0, %v420
      %v422 = vpop.f32.mrf.mxu0
      %v423 = vpop.f32.mrf.mxu0
      %v424 = vadd.f32 0.0, %v423
      %v425 = vpop.f32.mrf.mxu0
      %426 = vmatprep.mubr.bf16.mxu0 0
      %427 = vmatmul.mubr.bf16.gmra.mxu0 %v341
      %v428 = vpop.f32.mrf.mxu0
      %v429 = vadd.f32 0.0, %v428
      %v430 = vpop.f32.mrf.mxu0
      %v431 = vpop.f32.mrf.mxu0
      %v432 = vadd.f32 0.0, %v431
      %v433 = vpop.f32.mrf.mxu0
      %434 = vmatprep.mubr.bf16.mxu0 0
      %435 = vmatmul.mubr.bf16.gmra.mxu0 %v344
      %v436 = vpop.f32.mrf.mxu0
      %v437 = vadd.f32 0.0, %v436
      %v438 = vpop.f32.mrf.mxu0
      %v439 = vpop.f32.mrf.mxu0
      %v440 = vadd.f32 0.0, %v439
      %v441 = vpop.f32.mrf.mxu0
      %442 = vmatprep.mubr.bf16.mxu0 0
      %443 = vmatmul.mubr.bf16.gmra.mxu0 %v347
      %v444 = vpop.f32.mrf.mxu0
      %v445 = vadd.f32 0.0, %v444
      %v446 = vpop.f32.mrf.mxu0
      %v447 = vpop.f32.mrf.mxu0
      %v448 = vadd.f32 0.0, %v447
      %v449 = vpop.f32.mrf.mxu0
      %450 = vmatprep.mubr.bf16.mxu0 0
      %451 = vmatmul.mubr.bf16.gmra.mxu0 %v350
      %v452 = vpop.f32.mrf.mxu0
      %v453 = vadd.f32 0.0, %v452
      %v454 = vpop.f32.mrf.mxu0
      %v455 = vpop.f32.mrf.mxu0
      %v456 = vadd.f32 0.0, %v455
      %v457 = vpop.f32.mrf.mxu0
      %458 = vmatprep.mubr.bf16.mxu0 0
      %459 = vmatmul.mubr.bf16.gmra.mxu0 %v353
      %v460 = vpop.f32.mrf.mxu0
      %v461 = vadd.f32 0.0, %v460
      %v462 = vpop.f32.mrf.mxu0
      %v463 = vpop.f32.mrf.mxu0
      %v464 = vadd.f32 0.0, %v463
      %v465 = vpop.f32.mrf.mxu0
      %466 = vmatprep.mubr.bf16.mxu0 0
      %467 = vmatmul.mubr.bf16.gmra.mxu0 %v356
      %v468 = vpop.f32.mrf.mxu0
      %v469 = vadd.f32 0.0, %v468
      %v470 = vpop.f32.mrf.mxu0
      %v471 = vpop.f32.mrf.mxu0
      %v472 = vadd.f32 0.0, %v471
      %v473 = vpop.f32.mrf.mxu0
      %474 = vmatprep.mubr.bf16.mxu0 0
      %475 = vmatmul.mubr.bf16.gmra.mxu0 %v359
      %v476 = vpop.f32.mrf.mxu0
      %v477 = vadd.f32 0.0, %v476
      %v478 = vpop.f32.mrf.mxu0
      %v479 = vpop.f32.mrf.mxu0
      %v480 = vadd.f32 0.0, %v479
      %v481 = vpop.f32.mrf.mxu0
      %482 = vmatprep.mubr.bf16.mxu0 0
      %483 = vmatmul.mubr.bf16.gmra.mxu0 %v362
      %v484 = vpop.f32.mrf.mxu0
      %v485 = vadd.f32 0.0, %v484
      %v486 = vpop.f32.mrf.mxu0
      %v487 = vpop.f32.mrf.mxu0
      %v488 = vadd.f32 0.0, %v487
      %v489 = vpop.f32.mrf.mxu0
      %490 = vmatprep.mubr.bf16.mxu0 0
      %491 = vmatmul.mubr.bf16.gmra.mxu0 %v365
      %v492 = vpop.f32.mrf.mxu0
      %v493 = vadd.f32 0.0, %v492
      %v494 = vpop.f32.mrf.mxu0
      %v495 = vpop.f32.mrf.mxu0
      %v496 = vadd.f32 0.0, %v495
      %v497 = vpop.f32.mrf.mxu0
      %498 = vmatprep.mubr.bf16.mxu0 0
      %499 = vmatmul.mubr.bf16.gmra.mxu0 %v368
      %v500 = vpop.f32.mrf.mxu0
      %v501 = vadd.f32 0.0, %v500
      %v502 = vpop.f32.mrf.mxu0
      %v503 = vpop.f32.mrf.mxu0
      %v504 = vpop.f32.mrf.mxu0
      %505 = vdwg.mxu0
      %s506 = scalar_lea.vmem %s219, 100
      %v507 = vld [vmem:[%s506] sm:$0xf]
      %v508 = vld [vmem:[%s506 + $0x4] sm:$0xf]
      %v509 = vld [vmem:[%s506 + $0x8] sm:$0xf]
      %v510 = vld [vmem:[%s506 + $0xc] sm:$0xf]
      %v511 = vld [vmem:[%s506 + $0x10] sm:$0xf]
      %v512 = vld [vmem:[%s506 + $0x14] sm:$0xf]
      %v513 = vld [vmem:[%s506 + $0x18] sm:$0xf]
      %v514 = vld [vmem:[%s506 + $0x1c] sm:$0xf]
      %v515 = vld [vmem:[%s506 + $0x20] sm:$0xf]
      %v516 = vld [vmem:[%s506 + $0x24] sm:$0xf]
      %v517 = vld [vmem:[%s506 + $0x28] sm:$0xf]
      %v518 = vld [vmem:[%s506 + $0x2c] sm:$0xf]
      %v519 = vld [vmem:[%s506 + $0x30] sm:$0xf]
      %v520 = vld [vmem:[%s506 + $0x34] sm:$0xf]
      %v521 = vld [vmem:[%s506 + $0x38] sm:$0xf]
      %v522 = vld [vmem:[%s506 + $0x3c] sm:$0xf]
      %v523 = vld [vmem:[%s506 + $0x40] sm:$0xf]
      %v524 = vld [vmem:[%s506 + $0x44] sm:$0xf]
      %v525 = vld [vmem:[%s506 + $0x48] sm:$0xf]
      %v526 = vld [vmem:[%s506 + $0x4c] sm:$0xf]
      %v527 = vld [vmem:[%s506 + $0x50] sm:$0xf]
      %v528 = vld [vmem:[%s506 + $0x54] sm:$0xf]
      %v529 = vld [vmem:[%s506 + $0x58] sm:$0xf]
      %v530 = vld [vmem:[%s506 + $0x5c] sm:$0xf]
      %v531 = vld [vmem:[%s506 + $0x60] sm:$0x3]
      %v557 = vunpack.c.l.b16 %v507
      %v558 = vunpack.c.l.b16 %v508
      %v559 = vunpack.c.l.b16 %v509
      %v560 = vunpack.c.l.b16 %v510
      %v561 = vunpack.c.l.b16 %v511
      %v562 = vunpack.c.l.b16 %v512
      %v563 = vunpack.c.l.b16 %v513
      %v564 = vunpack.c.l.b16 %v514
      %v565 = vunpack.c.l.b16 %v515
      %v566 = vunpack.c.l.b16 %v516
      %v567 = vunpack.c.l.b16 %v517
      %v568 = vunpack.c.l.b16 %v518
      %v569 = vunpack.c.l.b16 %v519
      %v570 = vunpack.c.l.b16 %v520
      %v571 = vunpack.c.l.b16 %v521
      %v572 = vunpack.c.l.b16 %v522
      %v573 = vunpack.c.l.b16 %v523
      %v574 = vunpack.c.l.b16 %v524
      %v575 = vunpack.c.l.b16 %v525
      %v576 = vunpack.c.l.b16 %v526
      %v577 = vunpack.c.l.b16 %v527
      %v578 = vunpack.c.l.b16 %v528
      %v579 = vunpack.c.l.b16 %v529
      %v580 = vunpack.c.l.b16 %v530
      %v581 = vunpack.c.l.b16 %v531
      %v582 = vpack.c.b16 %v558, %v557
      %v583 = vpack.c.b16 %v560, %v559
      %v584 = vpack.c.b16 %v562, %v561
      %v585 = vpack.c.b16 %v564, %v563
      %v586 = vpack.c.b16 %v566, %v565
      %v587 = vpack.c.b16 %v568, %v567
      %v588 = vpack.c.b16 %v570, %v569
      %v589 = vpack.c.b16 %v572, %v571
      %v590 = vpack.c.b16 %v574, %v573
      %v591 = vpack.c.b16 %v576, %v575
      %v592 = vpack.c.b16 %v578, %v577
      %v593 = vpack.c.b16 %v580, %v579
      %v594 = vpack.c.b16 %v581, %v581
      %v596 = vsel %vm330, %v582, 0
      %v599 = vsel %vm330, %v583, 0
      %v602 = vsel %vm330, %v584, 0
      %v605 = vsel %vm330, %v585, 0
      %v608 = vsel %vm330, %v586, 0
      %v611 = vsel %vm330, %v587, 0
      %v614 = vsel %vm330, %v588, 0
      %v617 = vsel %vm330, %v589, 0
      %v620 = vsel %vm330, %v590, 0
      %v623 = vsel %vm330, %v591, 0
      %v626 = vsel %vm330, %v592, 0
      %v629 = vsel %vm330, %v593, 0
      %v632 = vsel %vm330, %v594, 0
      %634 = vmatprep.subr.bf16.mxu0 0
      %635 = vmatpush1.bf16.msra.mxu0 0
      %636 = vmatprep.subr.bf16.mxu0 0
      %637 = vmatpush1.bf16.msra.mxu0 0
      %638 = vmatprep.subr.bf16.mxu0 0
      %639 = vmatpush1.bf16.msra.mxu0 0
      %640 = vmatprep.subr.bf16.mxu0 0
      %641 = vmatpush1.bf16.msra.mxu0 0
      %642 = vmatprep.subr.bf16.mxu0 0
      %643 = vmatpush1.bf16.msra.mxu0 0
      %644 = vmatprep.subr.bf16.mxu0 0
      %645 = vmatpush1.bf16.msra.mxu0 0
      %646 = vmatprep.subr.bf16.mxu0 0
      %647 = vmatpush1.bf16.msra.mxu0 %v327
      %648 = vmatprep.subr.bf16.mxu0 0
      %649 = vmatpush1.bf16.msra.mxu0 %v326
      %650 = vmatprep.subr.bf16.mxu0 0
      %651 = vmatpush2.bf16.msra.mxu0 0
      %652 = vmatprep.subr.bf16.mxu0 0
      %653 = vmatpush2.bf16.msra.mxu0 0
      %654 = vmatprep.subr.bf16.mxu0 0
      %655 = vmatpush2.bf16.msra.mxu0 0
      %656 = vmatprep.subr.bf16.mxu0 0
      %657 = vmatpush2.bf16.msra.mxu0 0
      %658 = vmatprep.subr.bf16.mxu0 0
      %659 = vmatpush2.bf16.msra.mxu0 0
      %660 = vmatprep.subr.bf16.mxu0 0
      %661 = vmatpush2.bf16.msra.mxu0 0
      %662 = vmatprep.subr.bf16.mxu0 0
      %663 = vmatpush2.bf16.msra.mxu0 0
      %664 = vmatprep.subr.bf16.mxu0 0
      %665 = vmatpush2.bf16.msra.mxu0 0
      %666 = vmatprep.mubr.bf16.mxu0 0
      %667 = vmatmul.mubr.bf16.gmra.mxu0 %v596
      %v668 = vpop.f32.mrf.mxu0
      %v669 = vadd.f32 0.0, %v668
      %v670 = vpop.f32.mrf.mxu0
      %v671 = vpop.f32.mrf.mxu0
      %v672 = vadd.f32 0.0, %v671
      %v673 = vpop.f32.mrf.mxu0
      %674 = vmatprep.mubr.bf16.mxu0 0
      %675 = vmatmul.mubr.bf16.gmra.mxu0 %v599
      %v676 = vpop.f32.mrf.mxu0
      %v677 = vadd.f32 0.0, %v676
      %v678 = vpop.f32.mrf.mxu0
      %v679 = vpop.f32.mrf.mxu0
      %v680 = vadd.f32 0.0, %v679
      %v681 = vpop.f32.mrf.mxu0
      %682 = vmatprep.mubr.bf16.mxu0 0
      %683 = vmatmul.mubr.bf16.gmra.mxu0 %v602
      %v684 = vpop.f32.mrf.mxu0
      %v685 = vadd.f32 0.0, %v684
      %v686 = vpop.f32.mrf.mxu0
      %v687 = vpop.f32.mrf.mxu0
      %v688 = vadd.f32 0.0, %v687
      %v689 = vpop.f32.mrf.mxu0
      %690 = vmatprep.mubr.bf16.mxu0 0
      %691 = vmatmul.mubr.bf16.gmra.mxu0 %v605
      %v692 = vpop.f32.mrf.mxu0
      %v693 = vadd.f32 0.0, %v692
      %v694 = vpop.f32.mrf.mxu0
      %v695 = vpop.f32.mrf.mxu0
      %v696 = vadd.f32 0.0, %v695
      %v697 = vpop.f32.mrf.mxu0
      %698 = vmatprep.mubr.bf16.mxu0 0
      %699 = vmatmul.mubr.bf16.gmra.mxu0 %v608
      %v700 = vpop.f32.mrf.mxu0
      %v701 = vadd.f32 0.0, %v700
      %v702 = vpop.f32.mrf.mxu0
      %v703 = vpop.f32.mrf.mxu0
      %v704 = vadd.f32 0.0, %v703
      %v705 = vpop.f32.mrf.mxu0
      %706 = vmatprep.mubr.bf16.mxu0 0
      %707 = vmatmul.mubr.bf16.gmra.mxu0 %v611
      %v708 = vpop.f32.mrf.mxu0
      %v709 = vadd.f32 0.0, %v708
      %v710 = vpop.f32.mrf.mxu0
      %v711 = vpop.f32.mrf.mxu0
      %v712 = vadd.f32 0.0, %v711
      %v713 = vpop.f32.mrf.mxu0
      %714 = vmatprep.mubr.bf16.mxu0 0
      %715 = vmatmul.mubr.bf16.gmra.mxu0 %v614
      %v716 = vpop.f32.mrf.mxu0
      %v717 = vadd.f32 0.0, %v716
      %v718 = vpop.f32.mrf.mxu0
      %v719 = vpop.f32.mrf.mxu0
      %v720 = vadd.f32 0.0, %v719
      %v721 = vpop.f32.mrf.mxu0
      %722 = vmatprep.mubr.bf16.mxu0 0
      %723 = vmatmul.mubr.bf16.gmra.mxu0 %v617
      %v724 = vpop.f32.mrf.mxu0
      %v725 = vadd.f32 0.0, %v724
      %v726 = vpop.f32.mrf.mxu0
      %v727 = vpop.f32.mrf.mxu0
      %v728 = vadd.f32 0.0, %v727
      %v729 = vpop.f32.mrf.mxu0
      %730 = vmatprep.mubr.bf16.mxu0 0
      %731 = vmatmul.mubr.bf16.gmra.mxu0 %v620
      %v732 = vpop.f32.mrf.mxu0
      %v733 = vadd.f32 0.0, %v732
      %v734 = vpop.f32.mrf.mxu0
      %v735 = vpop.f32.mrf.mxu0
      %v736 = vadd.f32 0.0, %v735
      %v737 = vpop.f32.mrf.mxu0
      %738 = vmatprep.mubr.bf16.mxu0 0
      %739 = vmatmul.mubr.bf16.gmra.mxu0 %v623
      %v740 = vpop.f32.mrf.mxu0
      %v741 = vadd.f32 0.0, %v740
      %v742 = vpop.f32.mrf.mxu0
      %v743 = vpop.f32.mrf.mxu0
      %v744 = vadd.f32 0.0, %v743
      %v745 = vpop.f32.mrf.mxu0
      %746 = vmatprep.mubr.bf16.mxu0 0
      %747 = vmatmul.mubr.bf16.gmra.mxu0 %v626
      %v748 = vpop.f32.mrf.mxu0
      %v749 = vadd.f32 0.0, %v748
      %v750 = vpop.f32.mrf.mxu0
      %v751 = vpop.f32.mrf.mxu0
      %v752 = vadd.f32 0.0, %v751
      %v753 = vpop.f32.mrf.mxu0
      %754 = vmatprep.mubr.bf16.mxu0 0
      %755 = vmatmul.mubr.bf16.gmra.mxu0 %v629
      %v756 = vpop.f32.mrf.mxu0
      %v757 = vadd.f32 0.0, %v756
      %v758 = vpop.f32.mrf.mxu0
      %v759 = vpop.f32.mrf.mxu0
      %v760 = vadd.f32 0.0, %v759
      %v761 = vpop.f32.mrf.mxu0
      %762 = vmatprep.mubr.bf16.mxu0 0
      %763 = vmatmul.mubr.bf16.gmra.mxu0 %v632
      %v764 = vpop.f32.mrf.mxu0
      %v765 = vadd.f32 0.0, %v764
      %v766 = vpop.f32.mrf.mxu0
      %v767 = vpop.f32.mrf.mxu0
      %v768 = vpop.f32.mrf.mxu0
      %769 = vdwg.mxu0
      %v770 = vmax.f32 %v405, %v669
      %v771 = vmax.f32 %v408, %v672
      %v772 = vmax.f32 %v413, %v677
      %v773 = vmax.f32 %v416, %v680
      %v774 = vmax.f32 %v421, %v685
      %v775 = vmax.f32 %v424, %v688
      %v776 = vmax.f32 %v429, %v693
      %v777 = vmax.f32 %v432, %v696
      %v778 = vmax.f32 %v437, %v701
      %v779 = vmax.f32 %v440, %v704
      %v780 = vmax.f32 %v445, %v709
      %v781 = vmax.f32 %v448, %v712
      %v782 = vmax.f32 %v453, %v717
      %v783 = vmax.f32 %v456, %v720
      %v784 = vmax.f32 %v461, %v725
      %v785 = vmax.f32 %v464, %v728
      %v786 = vmax.f32 %v469, %v733
      %v787 = vmax.f32 %v472, %v736
      %v788 = vmax.f32 %v477, %v741
      %v789 = vmax.f32 %v480, %v744
      %v790 = vmax.f32 %v485, %v749
      %v791 = vmax.f32 %v488, %v752
      %v792 = vmax.f32 %v493, %v757
      %v793 = vmax.f32 %v496, %v760
      %v794 = vmax.f32 %v501, %v765
      %s795 = scalar_lea.vmem %s219, 200
      %v796 = vld [vmem:[%s795] sm:$0xf]
      %v797 = vld [vmem:[%s795 + $0x4] sm:$0xf]
      %v798 = vld [vmem:[%s795 + $0x8] sm:$0xf]
      %v799 = vld [vmem:[%s795 + $0xc] sm:$0xf]
      %v800 = vld [vmem:[%s795 + $0x10] sm:$0xf]
      %v801 = vld [vmem:[%s795 + $0x14] sm:$0xf]
      %v802 = vld [vmem:[%s795 + $0x18] sm:$0xf]
      %v803 = vld [vmem:[%s795 + $0x1c] sm:$0xf]
      %v804 = vld [vmem:[%s795 + $0x20] sm:$0xf]
      %v805 = vld [vmem:[%s795 + $0x24] sm:$0xf]
      %v806 = vld [vmem:[%s795 + $0x28] sm:$0xf]
      %v807 = vld [vmem:[%s795 + $0x2c] sm:$0xf]
      %v808 = vld [vmem:[%s795 + $0x30] sm:$0xf]
      %v809 = vld [vmem:[%s795 + $0x34] sm:$0xf]
      %v810 = vld [vmem:[%s795 + $0x38] sm:$0xf]
      %v811 = vld [vmem:[%s795 + $0x3c] sm:$0xf]
      %v812 = vld [vmem:[%s795 + $0x40] sm:$0xf]
      %v813 = vld [vmem:[%s795 + $0x44] sm:$0xf]
      %v814 = vld [vmem:[%s795 + $0x48] sm:$0xf]
      %v815 = vld [vmem:[%s795 + $0x4c] sm:$0xf]
      %v816 = vld [vmem:[%s795 + $0x50] sm:$0xf]
      %v817 = vld [vmem:[%s795 + $0x54] sm:$0xf]
      %v818 = vld [vmem:[%s795 + $0x58] sm:$0xf]
      %v819 = vld [vmem:[%s795 + $0x5c] sm:$0xf]
      %v820 = vld [vmem:[%s795 + $0x60] sm:$0x3]
      %v846 = vunpack.c.l.b16 %v796
      %v847 = vunpack.c.l.b16 %v797
      %v848 = vunpack.c.l.b16 %v798
      %v849 = vunpack.c.l.b16 %v799
      %v850 = vunpack.c.l.b16 %v800
      %v851 = vunpack.c.l.b16 %v801
      %v852 = vunpack.c.l.b16 %v802
      %v853 = vunpack.c.l.b16 %v803
      %v854 = vunpack.c.l.b16 %v804
      %v855 = vunpack.c.l.b16 %v805
      %v856 = vunpack.c.l.b16 %v806
      %v857 = vunpack.c.l.b16 %v807
      %v858 = vunpack.c.l.b16 %v808
      %v859 = vunpack.c.l.b16 %v809
      %v860 = vunpack.c.l.b16 %v810
      %v861 = vunpack.c.l.b16 %v811
      %v862 = vunpack.c.l.b16 %v812
      %v863 = vunpack.c.l.b16 %v813
      %v864 = vunpack.c.l.b16 %v814
      %v865 = vunpack.c.l.b16 %v815
      %v866 = vunpack.c.l.b16 %v816
      %v867 = vunpack.c.l.b16 %v817
      %v868 = vunpack.c.l.b16 %v818
      %v869 = vunpack.c.l.b16 %v819
      %v870 = vunpack.c.l.b16 %v820
      %v871 = vpack.c.b16 %v847, %v846
      %v872 = vpack.c.b16 %v849, %v848
      %v873 = vpack.c.b16 %v851, %v850
      %v874 = vpack.c.b16 %v853, %v852
      %v875 = vpack.c.b16 %v855, %v854
      %v876 = vpack.c.b16 %v857, %v856
      %v877 = vpack.c.b16 %v859, %v858
      %v878 = vpack.c.b16 %v861, %v860
      %v879 = vpack.c.b16 %v863, %v862
      %v880 = vpack.c.b16 %v865, %v864
      %v881 = vpack.c.b16 %v867, %v866
      %v882 = vpack.c.b16 %v869, %v868
      %v883 = vpack.c.b16 %v870, %v870
      %v885 = vsel %vm330, %v871, 0
      %v888 = vsel %vm330, %v872, 0
      %v891 = vsel %vm330, %v873, 0
      %v894 = vsel %vm330, %v874, 0
      %v897 = vsel %vm330, %v875, 0
      %v900 = vsel %vm330, %v876, 0
      %v903 = vsel %vm330, %v877, 0
      %v906 = vsel %vm330, %v878, 0
      %v909 = vsel %vm330, %v879, 0
      %v912 = vsel %vm330, %v880, 0
      %v915 = vsel %vm330, %v881, 0
      %v918 = vsel %vm330, %v882, 0
      %v921 = vsel %vm330, %v883, 0
      %923 = vmatprep.subr.bf16.mxu0 0
      %924 = vmatpush1.bf16.msra.mxu0 0
      %925 = vmatprep.subr.bf16.mxu0 0
      %926 = vmatpush1.bf16.msra.mxu0 0
      %927 = vmatprep.subr.bf16.mxu0 0
      %928 = vmatpush1.bf16.msra.mxu0 0
      %929 = vmatprep.subr.bf16.mxu0 0
      %930 = vmatpush1.bf16.msra.mxu0 0
      %931 = vmatprep.subr.bf16.mxu0 0
      %932 = vmatpush1.bf16.msra.mxu0 0
      %933 = vmatprep.subr.bf16.mxu0 0
      %934 = vmatpush1.bf16.msra.mxu0 0
      %935 = vmatprep.subr.bf16.mxu0 0
      %936 = vmatpush1.bf16.msra.mxu0 %v327
      %937 = vmatprep.subr.bf16.mxu0 0
      %938 = vmatpush1.bf16.msra.mxu0 %v326
      %939 = vmatprep.subr.bf16.mxu0 0
      %940 = vmatpush2.bf16.msra.mxu0 0
      %941 = vmatprep.subr.bf16.mxu0 0
      %942 = vmatpush2.bf16.msra.mxu0 0
      %943 = vmatprep.subr.bf16.mxu0 0
      %944 = vmatpush2.bf16.msra.mxu0 0
      %945 = vmatprep.subr.bf16.mxu0 0
      %946 = vmatpush2.bf16.msra.mxu0 0
      %947 = vmatprep.subr.bf16.mxu0 0
      %948 = vmatpush2.bf16.msra.mxu0 0
      %949 = vmatprep.subr.bf16.mxu0 0
      %950 = vmatpush2.bf16.msra.mxu0 0
      %951 = vmatprep.subr.bf16.mxu0 0
      %952 = vmatpush2.bf16.msra.mxu0 0
      %953 = vmatprep.subr.bf16.mxu0 0
      %954 = vmatpush2.bf16.msra.mxu0 0
      %955 = vmatprep.mubr.bf16.mxu0 0
      %956 = vmatmul.mubr.bf16.gmra.mxu0 %v885
      %v957 = vpop.f32.mrf.mxu0
      %v958 = vadd.f32 0.0, %v957
      %v959 = vpop.f32.mrf.mxu0
      %v960 = vpop.f32.mrf.mxu0
      %v961 = vadd.f32 0.0, %v960
      %v962 = vpop.f32.mrf.mxu0
      %963 = vmatprep.mubr.bf16.mxu0 0
      %964 = vmatmul.mubr.bf16.gmra.mxu0 %v888
      %v965 = vpop.f32.mrf.mxu0
      %v966 = vadd.f32 0.0, %v965
      %v967 = vpop.f32.mrf.mxu0
      %v968 = vpop.f32.mrf.mxu0
      %v969 = vadd.f32 0.0, %v968
      %v970 = vpop.f32.mrf.mxu0
      %971 = vmatprep.mubr.bf16.mxu0 0
      %972 = vmatmul.mubr.bf16.gmra.mxu0 %v891
      %v973 = vpop.f32.mrf.mxu0
      %v974 = vadd.f32 0.0, %v973
      %v975 = vpop.f32.mrf.mxu0
      %v976 = vpop.f32.mrf.mxu0
      %v977 = vadd.f32 0.0, %v976
      %v978 = vpop.f32.mrf.mxu0
      %979 = vmatprep.mubr.bf16.mxu0 0
      %980 = vmatmul.mubr.bf16.gmra.mxu0 %v894
      %v981 = vpop.f32.mrf.mxu0
      %v982 = vadd.f32 0.0, %v981
      %v983 = vpop.f32.mrf.mxu0
      %v984 = vpop.f32.mrf.mxu0
      %v985 = vadd.f32 0.0, %v984
      %v986 = vpop.f32.mrf.mxu0
      %987 = vmatprep.mubr.bf16.mxu0 0
      %988 = vmatmul.mubr.bf16.gmra.mxu0 %v897
      %v989 = vpop.f32.mrf.mxu0
      %v990 = vadd.f32 0.0, %v989
      %v991 = vpop.f32.mrf.mxu0
      %v992 = vpop.f32.mrf.mxu0
      %v993 = vadd.f32 0.0, %v992
      %v994 = vpop.f32.mrf.mxu0
      %995 = vmatprep.mubr.bf16.mxu0 0
      %996 = vmatmul.mubr.bf16.gmra.mxu0 %v900
      %v997 = vpop.f32.mrf.mxu0
      %v998 = vadd.f32 0.0, %v997
      %v999 = vpop.f32.mrf.mxu0
      %v1000 = vpop.f32.mrf.mxu0
      %v1001 = vadd.f32 0.0, %v1000
      %v1002 = vpop.f32.mrf.mxu0
      %1003 = vmatprep.mubr.bf16.mxu0 0
      %1004 = vmatmul.mubr.bf16.gmra.mxu0 %v903
      %v1005 = vpop.f32.mrf.mxu0
      %v1006 = vadd.f32 0.0, %v1005
      %v1007 = vpop.f32.mrf.mxu0
      %v1008 = vpop.f32.mrf.mxu0
      %v1009 = vadd.f32 0.0, %v1008
      %v1010 = vpop.f32.mrf.mxu0
      %1011 = vmatprep.mubr.bf16.mxu0 0
      %1012 = vmatmul.mubr.bf16.gmra.mxu0 %v906
      %v1013 = vpop.f32.mrf.mxu0
      %v1014 = vadd.f32 0.0, %v1013
      %v1015 = vpop.f32.mrf.mxu0
      %v1016 = vpop.f32.mrf.mxu0
      %v1017 = vadd.f32 0.0, %v1016
      %v1018 = vpop.f32.mrf.mxu0
      %1019 = vmatprep.mubr.bf16.mxu0 0
      %1020 = vmatmul.mubr.bf16.gmra.mxu0 %v909
      %v1021 = vpop.f32.mrf.mxu0
      %v1022 = vadd.f32 0.0, %v1021
      %v1023 = vpop.f32.mrf.mxu0
      %v1024 = vpop.f32.mrf.mxu0
      %v1025 = vadd.f32 0.0, %v1024
      %v1026 = vpop.f32.mrf.mxu0
      %1027 = vmatprep.mubr.bf16.mxu0 0
      %1028 = vmatmul.mubr.bf16.gmra.mxu0 %v912
      %v1029 = vpop.f32.mrf.mxu0
      %v1030 = vadd.f32 0.0, %v1029
      %v1031 = vpop.f32.mrf.mxu0
      %v1032 = vpop.f32.mrf.mxu0
      %v1033 = vadd.f32 0.0, %v1032
      %v1034 = vpop.f32.mrf.mxu0
      %1035 = vmatprep.mubr.bf16.mxu0 0
      %1036 = vmatmul.mubr.bf16.gmra.mxu0 %v915
      %v1037 = vpop.f32.mrf.mxu0
      %v1038 = vadd.f32 0.0, %v1037
      %v1039 = vpop.f32.mrf.mxu0
      %v1040 = vpop.f32.mrf.mxu0
      %v1041 = vadd.f32 0.0, %v1040
      %v1042 = vpop.f32.mrf.mxu0
      %1043 = vmatprep.mubr.bf16.mxu0 0
      %1044 = vmatmul.mubr.bf16.gmra.mxu0 %v918
      %v1045 = vpop.f32.mrf.mxu0
      %v1046 = vadd.f32 0.0, %v1045
      %v1047 = vpop.f32.mrf.mxu0
      %v1048 = vpop.f32.mrf.mxu0
      %v1049 = vadd.f32 0.0, %v1048
      %v1050 = vpop.f32.mrf.mxu0
      %1051 = vmatprep.mubr.bf16.mxu0 0
      %1052 = vmatmul.mubr.bf16.gmra.mxu0 %v921
      %v1053 = vpop.f32.mrf.mxu0
      %v1054 = vadd.f32 0.0, %v1053
      %v1055 = vpop.f32.mrf.mxu0
      %v1056 = vpop.f32.mrf.mxu0
      %v1057 = vpop.f32.mrf.mxu0
      %1058 = vdwg.mxu0
      %v1059 = vmax.f32 %v770, %v958
      %v1060 = vmax.f32 %v771, %v961
      %v1061 = vmax.f32 %v772, %v966
      %v1062 = vmax.f32 %v773, %v969
      %v1063 = vmax.f32 %v774, %v974
      %v1064 = vmax.f32 %v775, %v977
      %v1065 = vmax.f32 %v776, %v982
      %v1066 = vmax.f32 %v777, %v985
      %v1067 = vmax.f32 %v778, %v990
      %v1068 = vmax.f32 %v779, %v993
      %v1069 = vmax.f32 %v780, %v998
      %v1070 = vmax.f32 %v781, %v1001
      %v1071 = vmax.f32 %v782, %v1006
      %v1072 = vmax.f32 %v783, %v1009
      %v1073 = vmax.f32 %v784, %v1014
      %v1074 = vmax.f32 %v785, %v1017
      %v1075 = vmax.f32 %v786, %v1022
      %v1076 = vmax.f32 %v787, %v1025
      %v1077 = vmax.f32 %v788, %v1030
      %v1078 = vmax.f32 %v789, %v1033
      %v1079 = vmax.f32 %v790, %v1038
      %v1080 = vmax.f32 %v791, %v1041
      %v1081 = vmax.f32 %v792, %v1046
      %v1082 = vmax.f32 %v793, %v1049
      %v1083 = vmax.f32 %v794, %v1054
      %s1084 = scalar_lea.vmem %s219, 300
      %v1085 = vld [vmem:[%s1084] sm:$0xf]
      %v1086 = vld [vmem:[%s1084 + $0x4] sm:$0xf]
      %v1087 = vld [vmem:[%s1084 + $0x8] sm:$0xf]
      %v1088 = vld [vmem:[%s1084 + $0xc] sm:$0xf]
      %v1089 = vld [vmem:[%s1084 + $0x10] sm:$0xf]
      %v1090 = vld [vmem:[%s1084 + $0x14] sm:$0xf]
      %v1091 = vld [vmem:[%s1084 + $0x18] sm:$0xf]
      %v1092 = vld [vmem:[%s1084 + $0x1c] sm:$0xf]
      %v1093 = vld [vmem:[%s1084 + $0x20] sm:$0xf]
      %v1094 = vld [vmem:[%s1084 + $0x24] sm:$0xf]
      %v1095 = vld [vmem:[%s1084 + $0x28] sm:$0xf]
      %v1096 = vld [vmem:[%s1084 + $0x2c] sm:$0xf]
      %v1097 = vld [vmem:[%s1084 + $0x30] sm:$0xf]
      %v1098 = vld [vmem:[%s1084 + $0x34] sm:$0xf]
      %v1099 = vld [vmem:[%s1084 + $0x38] sm:$0xf]
      %v1100 = vld [vmem:[%s1084 + $0x3c] sm:$0xf]
      %v1101 = vld [vmem:[%s1084 + $0x40] sm:$0xf]
      %v1102 = vld [vmem:[%s1084 + $0x44] sm:$0xf]
      %v1103 = vld [vmem:[%s1084 + $0x48] sm:$0xf]
      %v1104 = vld [vmem:[%s1084 + $0x4c] sm:$0xf]
      %v1105 = vld [vmem:[%s1084 + $0x50] sm:$0xf]
      %v1106 = vld [vmem:[%s1084 + $0x54] sm:$0xf]
      %v1107 = vld [vmem:[%s1084 + $0x58] sm:$0xf]
      %v1108 = vld [vmem:[%s1084 + $0x5c] sm:$0xf]
      %v1109 = vld [vmem:[%s1084 + $0x60] sm:$0x3]
      %v1135 = vunpack.c.l.b16 %v1085
      %v1136 = vunpack.c.l.b16 %v1086
      %v1137 = vunpack.c.l.b16 %v1087
      %v1138 = vunpack.c.l.b16 %v1088
      %v1139 = vunpack.c.l.b16 %v1089
      %v1140 = vunpack.c.l.b16 %v1090
      %v1141 = vunpack.c.l.b16 %v1091
      %v1142 = vunpack.c.l.b16 %v1092
      %v1143 = vunpack.c.l.b16 %v1093
      %v1144 = vunpack.c.l.b16 %v1094
      %v1145 = vunpack.c.l.b16 %v1095
      %v1146 = vunpack.c.l.b16 %v1096
      %v1147 = vunpack.c.l.b16 %v1097
      %v1148 = vunpack.c.l.b16 %v1098
      %v1149 = vunpack.c.l.b16 %v1099
      %v1150 = vunpack.c.l.b16 %v1100
      %v1151 = vunpack.c.l.b16 %v1101
      %v1152 = vunpack.c.l.b16 %v1102
      %v1153 = vunpack.c.l.b16 %v1103
      %v1154 = vunpack.c.l.b16 %v1104
      %v1155 = vunpack.c.l.b16 %v1105
      %v1156 = vunpack.c.l.b16 %v1106
      %v1157 = vunpack.c.l.b16 %v1107
      %v1158 = vunpack.c.l.b16 %v1108
      %v1159 = vunpack.c.l.b16 %v1109
      %v1160 = vpack.c.b16 %v1136, %v1135
      %v1161 = vpack.c.b16 %v1138, %v1137
      %v1162 = vpack.c.b16 %v1140, %v1139
      %v1163 = vpack.c.b16 %v1142, %v1141
      %v1164 = vpack.c.b16 %v1144, %v1143
      %v1165 = vpack.c.b16 %v1146, %v1145
      %v1166 = vpack.c.b16 %v1148, %v1147
      %v1167 = vpack.c.b16 %v1150, %v1149
      %v1168 = vpack.c.b16 %v1152, %v1151
      %v1169 = vpack.c.b16 %v1154, %v1153
      %v1170 = vpack.c.b16 %v1156, %v1155
      %v1171 = vpack.c.b16 %v1158, %v1157
      %v1172 = vpack.c.b16 %v1159, %v1159
      %v1174 = vsel %vm330, %v1160, 0
      %v1177 = vsel %vm330, %v1161, 0
      %v1180 = vsel %vm330, %v1162, 0
      %v1183 = vsel %vm330, %v1163, 0
      %v1186 = vsel %vm330, %v1164, 0
      %v1189 = vsel %vm330, %v1165, 0
      %v1192 = vsel %vm330, %v1166, 0
      %v1195 = vsel %vm330, %v1167, 0
      %v1198 = vsel %vm330, %v1168, 0
      %v1201 = vsel %vm330, %v1169, 0
      %v1204 = vsel %vm330, %v1170, 0
      %v1207 = vsel %vm330, %v1171, 0
      %v1210 = vsel %vm330, %v1172, 0
      %1212 = vmatprep.subr.bf16.mxu0 0
      %1213 = vmatpush1.bf16.msra.mxu0 0
      %1214 = vmatprep.subr.bf16.mxu0 0
      %1215 = vmatpush1.bf16.msra.mxu0 0
      %1216 = vmatprep.subr.bf16.mxu0 0
      %1217 = vmatpush1.bf16.msra.mxu0 0
      %1218 = vmatprep.subr.bf16.mxu0 0
      %1219 = vmatpush1.bf16.msra.mxu0 0
      %1220 = vmatprep.subr.bf16.mxu0 0
      %1221 = vmatpush1.bf16.msra.mxu0 0
      %1222 = vmatprep.subr.bf16.mxu0 0
      %1223 = vmatpush1.bf16.msra.mxu0 0
      %1224 = vmatprep.subr.bf16.mxu0 0
      %1225 = vmatpush1.bf16.msra.mxu0 %v327
      %1226 = vmatprep.subr.bf16.mxu0 0
      %1227 = vmatpush1.bf16.msra.mxu0 %v326
      %1228 = vmatprep.subr.bf16.mxu0 0
      %1229 = vmatpush2.bf16.msra.mxu0 0
      %1230 = vmatprep.subr.bf16.mxu0 0
      %1231 = vmatpush2.bf16.msra.mxu0 0
      %1232 = vmatprep.subr.bf16.mxu0 0
      %1233 = vmatpush2.bf16.msra.mxu0 0
      %1234 = vmatprep.subr.bf16.mxu0 0
      %1235 = vmatpush2.bf16.msra.mxu0 0
      %1236 = vmatprep.subr.bf16.mxu0 0
      %1237 = vmatpush2.bf16.msra.mxu0 0
      %1238 = vmatprep.subr.bf16.mxu0 0
      %1239 = vmatpush2.bf16.msra.mxu0 0
      %1240 = vmatprep.subr.bf16.mxu0 0
      %1241 = vmatpush2.bf16.msra.mxu0 0
      %1242 = vmatprep.subr.bf16.mxu0 0
      %1243 = vmatpush2.bf16.msra.mxu0 0
      %1244 = vmatprep.mubr.bf16.mxu0 0
      %1245 = vmatmul.mubr.bf16.gmra.mxu0 %v1174
      %v1246 = vpop.f32.mrf.mxu0
      %v1247 = vadd.f32 0.0, %v1246
      %v1248 = vpop.f32.mrf.mxu0
      %v1249 = vpop.f32.mrf.mxu0
      %v1250 = vadd.f32 0.0, %v1249
      %v1251 = vpop.f32.mrf.mxu0
      %1252 = vmatprep.mubr.bf16.mxu0 0
      %1253 = vmatmul.mubr.bf16.gmra.mxu0 %v1177
      %v1254 = vpop.f32.mrf.mxu0
      %v1255 = vadd.f32 0.0, %v1254
      %v1256 = vpop.f32.mrf.mxu0
      %v1257 = vpop.f32.mrf.mxu0
      %v1258 = vadd.f32 0.0, %v1257
      %v1259 = vpop.f32.mrf.mxu0
      %1260 = vmatprep.mubr.bf16.mxu0 0
      %1261 = vmatmul.mubr.bf16.gmra.mxu0 %v1180
      %v1262 = vpop.f32.mrf.mxu0
      %v1263 = vadd.f32 0.0, %v1262
      %v1264 = vpop.f32.mrf.mxu0
      %v1265 = vpop.f32.mrf.mxu0
      %v1266 = vadd.f32 0.0, %v1265
      %v1267 = vpop.f32.mrf.mxu0
      %1268 = vmatprep.mubr.bf16.mxu0 0
      %1269 = vmatmul.mubr.bf16.gmra.mxu0 %v1183
      %v1270 = vpop.f32.mrf.mxu0
      %v1271 = vadd.f32 0.0, %v1270
      %v1272 = vpop.f32.mrf.mxu0
      %v1273 = vpop.f32.mrf.mxu0
      %v1274 = vadd.f32 0.0, %v1273
      %v1275 = vpop.f32.mrf.mxu0
      %1276 = vmatprep.mubr.bf16.mxu0 0
      %1277 = vmatmul.mubr.bf16.gmra.mxu0 %v1186
      %v1278 = vpop.f32.mrf.mxu0
      %v1279 = vadd.f32 0.0, %v1278
      %v1280 = vpop.f32.mrf.mxu0
      %v1281 = vpop.f32.mrf.mxu0
      %v1282 = vadd.f32 0.0, %v1281
      %v1283 = vpop.f32.mrf.mxu0
      %1284 = vmatprep.mubr.bf16.mxu0 0
      %1285 = vmatmul.mubr.bf16.gmra.mxu0 %v1189
      %v1286 = vpop.f32.mrf.mxu0
      %v1287 = vadd.f32 0.0, %v1286
      %v1288 = vpop.f32.mrf.mxu0
      %v1289 = vpop.f32.mrf.mxu0
      %v1290 = vadd.f32 0.0, %v1289
      %v1291 = vpop.f32.mrf.mxu0
      %1292 = vmatprep.mubr.bf16.mxu0 0
      %1293 = vmatmul.mubr.bf16.gmra.mxu0 %v1192
      %v1294 = vpop.f32.mrf.mxu0
      %v1295 = vadd.f32 0.0, %v1294
      %v1296 = vpop.f32.mrf.mxu0
      %v1297 = vpop.f32.mrf.mxu0
      %v1298 = vadd.f32 0.0, %v1297
      %v1299 = vpop.f32.mrf.mxu0
      %1300 = vmatprep.mubr.bf16.mxu0 0
      %1301 = vmatmul.mubr.bf16.gmra.mxu0 %v1195
      %v1302 = vpop.f32.mrf.mxu0
      %v1303 = vadd.f32 0.0, %v1302
      %v1304 = vpop.f32.mrf.mxu0
      %v1305 = vpop.f32.mrf.mxu0
      %v1306 = vadd.f32 0.0, %v1305
      %v1307 = vpop.f32.mrf.mxu0
      %1308 = vmatprep.mubr.bf16.mxu0 0
      %1309 = vmatmul.mubr.bf16.gmra.mxu0 %v1198
      %v1310 = vpop.f32.mrf.mxu0
      %v1311 = vadd.f32 0.0, %v1310
      %v1312 = vpop.f32.mrf.mxu0
      %v1313 = vpop.f32.mrf.mxu0
      %v1314 = vadd.f32 0.0, %v1313
      %v1315 = vpop.f32.mrf.mxu0
      %1316 = vmatprep.mubr.bf16.mxu0 0
      %1317 = vmatmul.mubr.bf16.gmra.mxu0 %v1201
      %v1318 = vpop.f32.mrf.mxu0
      %v1319 = vadd.f32 0.0, %v1318
      %v1320 = vpop.f32.mrf.mxu0
      %v1321 = vpop.f32.mrf.mxu0
      %v1322 = vadd.f32 0.0, %v1321
      %v1323 = vpop.f32.mrf.mxu0
      %1324 = vmatprep.mubr.bf16.mxu0 0
      %1325 = vmatmul.mubr.bf16.gmra.mxu0 %v1204
      %v1326 = vpop.f32.mrf.mxu0
      %v1327 = vadd.f32 0.0, %v1326
      %v1328 = vpop.f32.mrf.mxu0
      %v1329 = vpop.f32.mrf.mxu0
      %v1330 = vadd.f32 0.0, %v1329
      %v1331 = vpop.f32.mrf.mxu0
      %1332 = vmatprep.mubr.bf16.mxu0 0
      %1333 = vmatmul.mubr.bf16.gmra.mxu0 %v1207
      %v1334 = vpop.f32.mrf.mxu0
      %v1335 = vadd.f32 0.0, %v1334
      %v1336 = vpop.f32.mrf.mxu0
      %v1337 = vpop.f32.mrf.mxu0
      %v1338 = vadd.f32 0.0, %v1337
      %v1339 = vpop.f32.mrf.mxu0
      %1340 = vmatprep.mubr.bf16.mxu0 0
      %1341 = vmatmul.mubr.bf16.gmra.mxu0 %v1210
      %v1342 = vpop.f32.mrf.mxu0
      %v1343 = vadd.f32 0.0, %v1342
      %v1344 = vpop.f32.mrf.mxu0
      %v1345 = vpop.f32.mrf.mxu0
      %v1346 = vpop.f32.mrf.mxu0
      %1347 = vdwg.mxu0
      %v1348 = vmax.f32 %v1059, %v1247
      %v1349 = vmax.f32 %v1060, %v1250
      %v1350 = vmax.f32 %v1061, %v1255
      %v1351 = vmax.f32 %v1062, %v1258
      %v1352 = vmax.f32 %v1063, %v1263
      %v1353 = vmax.f32 %v1064, %v1266
      %v1354 = vmax.f32 %v1065, %v1271
      %v1355 = vmax.f32 %v1066, %v1274
      %v1356 = vmax.f32 %v1067, %v1279
      %v1357 = vmax.f32 %v1068, %v1282
      %v1358 = vmax.f32 %v1069, %v1287
      %v1359 = vmax.f32 %v1070, %v1290
      %v1360 = vmax.f32 %v1071, %v1295
      %v1361 = vmax.f32 %v1072, %v1298
      %v1362 = vmax.f32 %v1073, %v1303
      %v1363 = vmax.f32 %v1074, %v1306
      %v1364 = vmax.f32 %v1075, %v1311
      %v1365 = vmax.f32 %v1076, %v1314
      %v1366 = vmax.f32 %v1077, %v1319
      %v1367 = vmax.f32 %v1078, %v1322
      %v1368 = vmax.f32 %v1079, %v1327
      %v1369 = vmax.f32 %v1080, %v1330
      %v1370 = vmax.f32 %v1081, %v1335
      %v1371 = vmax.f32 %v1082, %v1338
      %v1372 = vmax.f32 %v1083, %v1343
      %v1373 = vld [vmem:[%s2] sm:$0x1]
      %v1375 = vlaneseq
      %v1376 = vshrl.u32 %v1375, 7
      %v1377 = vsub.s32 0, %v1376
      %v1378 = vrot.slane %v1373, %v1377
      %v1380 = vadd.f32 %v1348, %v1378
      %v1381 = vadd.f32 %v1349, %v1378
      %v1382 = vadd.f32 %v1350, %v1378
      %v1383 = vadd.f32 %v1351, %v1378
      %v1384 = vadd.f32 %v1352, %v1378
      %v1385 = vadd.f32 %v1353, %v1378
      %v1386 = vadd.f32 %v1354, %v1378
      %v1387 = vadd.f32 %v1355, %v1378
      %v1388 = vadd.f32 %v1356, %v1378
      %v1389 = vadd.f32 %v1357, %v1378
      %v1390 = vadd.f32 %v1358, %v1378
      %v1391 = vadd.f32 %v1359, %v1378
      %v1392 = vadd.f32 %v1360, %v1378
      %v1393 = vadd.f32 %v1361, %v1378
      %v1394 = vadd.f32 %v1362, %v1378
      %v1395 = vadd.f32 %v1363, %v1378
      %v1396 = vadd.f32 %v1364, %v1378
      %v1397 = vadd.f32 %v1365, %v1378
      %v1398 = vadd.f32 %v1366, %v1378
      %v1399 = vadd.f32 %v1367, %v1378
      %v1400 = vadd.f32 %v1368, %v1378
      %v1401 = vadd.f32 %v1369, %v1378
      %v1402 = vadd.f32 %v1370, %v1378
      %v1403 = vadd.f32 %v1371, %v1378
      %v1404 = vadd.f32 %v1372, %v1378
      %v1405 = vmax.f32 %v1380, 0.0
      %v1406 = vmax.f32 %v1381, 0.0
      %v1407 = vmax.f32 %v1382, 0.0
      %v1408 = vmax.f32 %v1383, 0.0
      %v1409 = vmax.f32 %v1384, 0.0
      %v1410 = vmax.f32 %v1385, 0.0
      %v1411 = vmax.f32 %v1386, 0.0
      %v1412 = vmax.f32 %v1387, 0.0
      %v1413 = vmax.f32 %v1388, 0.0
      %v1414 = vmax.f32 %v1389, 0.0
      %v1415 = vmax.f32 %v1390, 0.0
      %v1416 = vmax.f32 %v1391, 0.0
      %v1417 = vmax.f32 %v1392, 0.0
      %v1418 = vmax.f32 %v1393, 0.0
      %v1419 = vmax.f32 %v1394, 0.0
      %v1420 = vmax.f32 %v1395, 0.0
      %v1421 = vmax.f32 %v1396, 0.0
      %v1422 = vmax.f32 %v1397, 0.0
      %v1423 = vmax.f32 %v1398, 0.0
      %v1424 = vmax.f32 %v1399, 0.0
      %v1425 = vmax.f32 %v1400, 0.0
      %v1426 = vmax.f32 %v1401, 0.0
      %v1427 = vmax.f32 %v1402, 0.0
      %v1428 = vmax.f32 %v1403, 0.0
      %v1429 = vmax.f32 %v1404, 0.0
      %1430 = vst [vmem:[#allocation2] sm:$0xff] 0.0
      %1431 = vst [vmem:[#allocation2 + $0x8] sm:$0xff] 0.0
      %1432 = vst [vmem:[#allocation2 + $0x10] sm:$0xff] 0.0
      %1433 = vst [vmem:[#allocation2 + $0x18] sm:$0xff] 0.0
      %1434 = vst [vmem:[#allocation2 + $0x20] sm:$0xff] 0.0
      %1435 = vst [vmem:[#allocation2 + $0x28] sm:$0xff] 0.0
      %1436 = vst [vmem:[#allocation2 + $0x30] sm:$0xff] 0.0
      %1437 = vst [vmem:[#allocation2 + $0x38] sm:$0xff] 0.0
      %1438 = vst [vmem:[#allocation2 + $0x40] sm:$0xff] 0.0
      %1439 = vst [vmem:[#allocation2 + $0x48] sm:$0xff] 0.0
      %1440 = vst [vmem:[#allocation2 + $0x50] sm:$0xff] 0.0
      %1441 = vst [vmem:[#allocation2 + $0x58] sm:$0xff] 0.0
      %1442 = vst [vmem:[#allocation2 + $0x60] sm:$0xff] 0.0
      %1443 = vst [vmem:[#allocation2 + $0x68] sm:$0xff] 0.0
      %1444 = vst [vmem:[#allocation2 + $0x70] sm:$0xff] 0.0
      %1445 = vst [vmem:[#allocation2 + $0x78] sm:$0xff] 0.0
      %1446 = vst [vmem:[#allocation2 + $0x80] sm:$0xff] 0.0
      %1447 = vst [vmem:[#allocation2 + $0x88] sm:$0xff] 0.0
      %1448 = vst [vmem:[#allocation2 + $0x90] sm:$0xff] 0.0
      %1449 = vst [vmem:[#allocation2 + $0x98] sm:$0xff] 0.0
      %1450 = vst [vmem:[#allocation2 + $0xa0] sm:$0xff] 0.0
      %1451 = vst [vmem:[#allocation2 + $0xa8] sm:$0xff] 0.0
      %1452 = vst [vmem:[#allocation2 + $0xb0] sm:$0xff] 0.0
      %1453 = vst [vmem:[#allocation2 + $0xb8] sm:$0xff] 0.0
      %1454 = vst [vmem:[#allocation2 + $0xc0] sm:$0xff] 0.0
      %1455 = vst [vmem:[#allocation2 + $0xc8] sm:$0xff] 0.0
      %1456 = vst [vmem:[#allocation2 + $0xd0] sm:$0xff] 0.0
      %1457 = vst [vmem:[#allocation2 + $0xd8] sm:$0xff] 0.0
      %1458 = vst [vmem:[#allocation2 + $0xe0] sm:$0xff] 0.0
      %1459 = vst [vmem:[#allocation2 + $0xe8] sm:$0xff] 0.0
      %1460 = vst [vmem:[#allocation2 + $0xf0] sm:$0xff] 0.0
      %1461 = vst [vmem:[#allocation2 + $0xf8] sm:$0xff] 0.0
      %1462 = vst [vmem:[#allocation2] sm:$0xff] %v1405
      %1463 = vst [vmem:[#allocation2 + $0x8] sm:$0xff] %v1406
      %1464 = vst [vmem:[#allocation2 + $0x10] sm:$0xff] %v1407
      %1465 = vst [vmem:[#allocation2 + $0x18] sm:$0xff] %v1408
      %1466 = vst [vmem:[#allocation2 + $0x20] sm:$0xff] %v1409
      %1467 = vst [vmem:[#allocation2 + $0x28] sm:$0xff] %v1410
      %1468 = vst [vmem:[#allocation2 + $0x30] sm:$0xff] %v1411
      %1469 = vst [vmem:[#allocation2 + $0x38] sm:$0xff] %v1412
      %1470 = vst [vmem:[#allocation2 + $0x40] sm:$0xff] %v1413
      %1471 = vst [vmem:[#allocation2 + $0x48] sm:$0xff] %v1414
      %1472 = vst [vmem:[#allocation2 + $0x50] sm:$0xff] %v1415
      %1473 = vst [vmem:[#allocation2 + $0x58] sm:$0xff] %v1416
      %1474 = vst [vmem:[#allocation2 + $0x60] sm:$0xff] %v1417
      %1475 = vst [vmem:[#allocation2 + $0x68] sm:$0xff] %v1418
      %1476 = vst [vmem:[#allocation2 + $0x70] sm:$0xff] %v1419
      %1477 = vst [vmem:[#allocation2 + $0x78] sm:$0xff] %v1420
      %1478 = vst [vmem:[#allocation2 + $0x80] sm:$0xff] %v1421
      %1479 = vst [vmem:[#allocation2 + $0x88] sm:$0xff] %v1422
      %1480 = vst [vmem:[#allocation2 + $0x90] sm:$0xff] %v1423
      %1481 = vst [vmem:[#allocation2 + $0x98] sm:$0xff] %v1424
      %1482 = vst [vmem:[#allocation2 + $0xa0] sm:$0xff] %v1425
      %1483 = vst [vmem:[#allocation2 + $0xa8] sm:$0xff] %v1426
      %1484 = vst [vmem:[#allocation2 + $0xb0] sm:$0xff] %v1427
      %1485 = vst [vmem:[#allocation2 + $0xb8] sm:$0xff] %v1428
      %1486 = vst [vmem:[#allocation2 + $0xc0] sm:$0xf] %v1429
      %v1487 = vld [vmem:[#allocation2] sm:$0xff]
      %v1488 = vld [vmem:[#allocation2 + $0x8] sm:$0xff]
      %v1489 = vld [vmem:[#allocation2 + $0x10] sm:$0xff]
      %v1490 = vld [vmem:[#allocation2 + $0x18] sm:$0xff]
      %v1491 = vld [vmem:[#allocation2 + $0x20] sm:$0xff]
      %v1492 = vld [vmem:[#allocation2 + $0x28] sm:$0xff]
      %v1493 = vld [vmem:[#allocation2 + $0x30] sm:$0xff]
      %v1494 = vld [vmem:[#allocation2 + $0x38] sm:$0xff]
      %v1495 = vld [vmem:[#allocation2 + $0x40] sm:$0xff]
      %v1496 = vld [vmem:[#allocation2 + $0x48] sm:$0xff]
      %v1497 = vld [vmem:[#allocation2 + $0x50] sm:$0xff]
      %v1498 = vld [vmem:[#allocation2 + $0x58] sm:$0xff]
      %v1499 = vld [vmem:[#allocation2 + $0x60] sm:$0xff]
      %v1500 = vld [vmem:[#allocation2 + $0x68] sm:$0xff]
      %v1501 = vld [vmem:[#allocation2 + $0x70] sm:$0xff]
      %v1502 = vld [vmem:[#allocation2 + $0x78] sm:$0xff]
      %v1503 = vld [vmem:[#allocation2 + $0x80] sm:$0xff]
      %v1504 = vld [vmem:[#allocation2 + $0x88] sm:$0xff]
      %v1505 = vld [vmem:[#allocation2 + $0x90] sm:$0xff]
      %v1506 = vld [vmem:[#allocation2 + $0x98] sm:$0xff]
      %v1507 = vld [vmem:[#allocation2 + $0xa0] sm:$0xff]
      %v1508 = vld [vmem:[#allocation2 + $0xa8] sm:$0xff]
      %v1509 = vld [vmem:[#allocation2 + $0xb0] sm:$0xff]
      %v1510 = vld [vmem:[#allocation2 + $0xb8] sm:$0xff]
      %v1511 = vld [vmem:[#allocation2 + $0xc0] sm:$0xf]
      %v1512 = vpack.c.bf16 %v1488, %v1487
      %v1513 = vpack.c.bf16 %v1490, %v1489
      %v1514 = vpack.c.bf16 %v1492, %v1491
      %v1515 = vpack.c.bf16 %v1494, %v1493
      %v1516 = vpack.c.bf16 %v1496, %v1495
      %v1517 = vpack.c.bf16 %v1498, %v1497
      %v1518 = vpack.c.bf16 %v1500, %v1499
      %v1519 = vpack.c.bf16 %v1502, %v1501
      %v1520 = vpack.c.bf16 %v1504, %v1503
      %v1521 = vpack.c.bf16 %v1506, %v1505
      %v1522 = vpack.c.bf16 %v1508, %v1507
      %v1523 = vpack.c.bf16 %v1510, %v1509
      %v1524 = vpack.c.bf16 %v1511, %v1511
      %v1525 = vld [vmem:[%s3] sm:$0xf]
      %v1526 = vld [vmem:[%s3 + $0x4] sm:$0xf]
      %v1527 = vld [vmem:[%s3 + $0x8] sm:$0xf]
      %v1528 = vld [vmem:[%s3 + $0xc] sm:$0xf]
      %v1529 = vld [vmem:[%s3 + $0x10] sm:$0xf]
      %v1530 = vld [vmem:[%s3 + $0x14] sm:$0xf]
      %v1531 = vld [vmem:[%s3 + $0x18] sm:$0xf]
      %v1532 = vld [vmem:[%s3 + $0x1c] sm:$0xf]
      %v1533 = vld [vmem:[%s3 + $0x20] sm:$0xf]
      %v1534 = vld [vmem:[%s3 + $0x24] sm:$0xf]
      %v1535 = vld [vmem:[%s3 + $0x28] sm:$0xf]
      %v1536 = vld [vmem:[%s3 + $0x2c] sm:$0xf]
      %v1537 = vld [vmem:[%s3 + $0x30] sm:$0xf]
      %v1538 = vld [vmem:[%s3 + $0x34] sm:$0xf]
      %v1539 = vld [vmem:[%s3 + $0x38] sm:$0xf]
      %v1540 = vld [vmem:[%s3 + $0x3c] sm:$0xf]
      %v1541 = vld [vmem:[#allocation2 + $0x1] sm:$0xff]
      %v1542 = vld [vmem:[#allocation2 + $0x9] sm:$0xff]
      %v1543 = vld [vmem:[#allocation2 + $0x11] sm:$0xff]
      %v1544 = vld [vmem:[#allocation2 + $0x19] sm:$0xff]
      %v1545 = vld [vmem:[#allocation2 + $0x21] sm:$0xff]
      %v1546 = vld [vmem:[#allocation2 + $0x29] sm:$0xff]
      %v1547 = vld [vmem:[#allocation2 + $0x31] sm:$0xff]
      %v1548 = vld [vmem:[#allocation2 + $0x39] sm:$0xff]
      %v1549 = vld [vmem:[#allocation2 + $0x41] sm:$0xff]
      %v1550 = vld [vmem:[#allocation2 + $0x49] sm:$0xff]
      %v1551 = vld [vmem:[#allocation2 + $0x51] sm:$0xff]
      %v1552 = vld [vmem:[#allocation2 + $0x59] sm:$0xff]
      %v1553 = vld [vmem:[#allocation2 + $0x61] sm:$0xff]
      %v1554 = vld [vmem:[#allocation2 + $0x69] sm:$0xff]
      %v1555 = vld [vmem:[#allocation2 + $0x71] sm:$0xff]
      %v1556 = vld [vmem:[#allocation2 + $0x79] sm:$0xff]
      %v1557 = vld [vmem:[#allocation2 + $0x81] sm:$0xff]
      %v1558 = vld [vmem:[#allocation2 + $0x89] sm:$0xff]
      %v1559 = vld [vmem:[#allocation2 + $0x91] sm:$0xff]
      %v1560 = vld [vmem:[#allocation2 + $0x99] sm:$0xff]
      %v1561 = vld [vmem:[#allocation2 + $0xa1] sm:$0xff]
      %v1562 = vld [vmem:[#allocation2 + $0xa9] sm:$0xff]
      %v1563 = vld [vmem:[#allocation2 + $0xb1] sm:$0xff]
      %v1564 = vld [vmem:[#allocation2 + $0xb9] sm:$0xff]
      %v1565 = vld [vmem:[#allocation2 + $0xc1] sm:$0xf]
      %v1566 = vpack.c.bf16 %v1542, %v1541
      %v1567 = vpack.c.bf16 %v1544, %v1543
      %v1568 = vpack.c.bf16 %v1546, %v1545
      %v1569 = vpack.c.bf16 %v1548, %v1547
      %v1570 = vpack.c.bf16 %v1550, %v1549
      %v1571 = vpack.c.bf16 %v1552, %v1551
      %v1572 = vpack.c.bf16 %v1554, %v1553
      %v1573 = vpack.c.bf16 %v1556, %v1555
      %v1574 = vpack.c.bf16 %v1558, %v1557
      %v1575 = vpack.c.bf16 %v1560, %v1559
      %v1576 = vpack.c.bf16 %v1562, %v1561
      %v1577 = vpack.c.bf16 %v1564, %v1563
      %v1578 = vpack.c.bf16 %v1565, %v1565
      %s1579 = scalar_lea.vmem %s3, 64
      %v1580 = vld [vmem:[%s1579] sm:$0xf]
      %v1581 = vld [vmem:[%s1579 + $0x4] sm:$0xf]
      %v1582 = vld [vmem:[%s1579 + $0x8] sm:$0xf]
      %v1583 = vld [vmem:[%s1579 + $0xc] sm:$0xf]
      %v1584 = vld [vmem:[%s1579 + $0x10] sm:$0xf]
      %v1585 = vld [vmem:[%s1579 + $0x14] sm:$0xf]
      %v1586 = vld [vmem:[%s1579 + $0x18] sm:$0xf]
      %v1587 = vld [vmem:[%s1579 + $0x1c] sm:$0xf]
      %v1588 = vld [vmem:[%s1579 + $0x20] sm:$0xf]
      %v1589 = vld [vmem:[%s1579 + $0x24] sm:$0xf]
      %v1590 = vld [vmem:[%s1579 + $0x28] sm:$0xf]
      %v1591 = vld [vmem:[%s1579 + $0x2c] sm:$0xf]
      %v1592 = vld [vmem:[%s1579 + $0x30] sm:$0xf]
      %v1593 = vld [vmem:[%s1579 + $0x34] sm:$0xf]
      %v1594 = vld [vmem:[%s1579 + $0x38] sm:$0xf]
      %v1595 = vld [vmem:[%s1579 + $0x3c] sm:$0xf]
      %v1612 = vunpack.c.l.b16 %v1580
      %v1613 = vunpack.c.l.b16 %v1581
      %v1614 = vunpack.c.l.b16 %v1582
      %v1615 = vunpack.c.l.b16 %v1583
      %v1616 = vunpack.c.l.b16 %v1584
      %v1617 = vunpack.c.l.b16 %v1585
      %v1618 = vunpack.c.l.b16 %v1586
      %v1619 = vunpack.c.l.b16 %v1587
      %v1620 = vunpack.c.l.b16 %v1588
      %v1621 = vunpack.c.l.b16 %v1589
      %v1622 = vunpack.c.l.b16 %v1590
      %v1623 = vunpack.c.l.b16 %v1591
      %v1624 = vunpack.c.l.b16 %v1592
      %v1625 = vunpack.c.l.b16 %v1593
      %v1626 = vunpack.c.l.b16 %v1594
      %v1627 = vunpack.c.l.b16 %v1595
      %v1628 = vpack.c.b16 %v1613, %v1612
      %v1629 = vpack.c.b16 %v1615, %v1614
      %v1630 = vpack.c.b16 %v1617, %v1616
      %v1631 = vpack.c.b16 %v1619, %v1618
      %v1632 = vpack.c.b16 %v1621, %v1620
      %v1633 = vpack.c.b16 %v1623, %v1622
      %v1634 = vpack.c.b16 %v1625, %v1624
      %v1635 = vpack.c.b16 %v1627, %v1626
      %1644 = vmatprep.subr.bf16.mxu0 0
      %1645 = vmatpush1.bf16.msra.mxu0 %v1635
      %1646 = vmatprep.subr.bf16.mxu0 0
      %1647 = vmatpush1.bf16.msra.mxu0 %v1634
      %1648 = vmatprep.subr.bf16.mxu0 0
      %1649 = vmatpush1.bf16.msra.mxu0 %v1633
      %1650 = vmatprep.subr.bf16.mxu0 0
      %1651 = vmatpush1.bf16.msra.mxu0 %v1632
      %1652 = vmatprep.subr.bf16.mxu0 0
      %1653 = vmatpush1.bf16.msra.mxu0 %v1631
      %1654 = vmatprep.subr.bf16.mxu0 0
      %1655 = vmatpush1.bf16.msra.mxu0 %v1630
      %1656 = vmatprep.subr.bf16.mxu0 0
      %1657 = vmatpush1.bf16.msra.mxu0 %v1629
      %1658 = vmatprep.subr.bf16.mxu0 0
      %1659 = vmatpush1.bf16.msra.mxu0 %v1628
      %1660 = vmatprep.subr.bf16.mxu0 0
      %1661 = vmatpush2.bf16.msra.mxu0 0
      %1662 = vmatprep.subr.bf16.mxu0 0
      %1663 = vmatpush2.bf16.msra.mxu0 0
      %1664 = vmatprep.subr.bf16.mxu0 0
      %1665 = vmatpush2.bf16.msra.mxu0 0
      %1666 = vmatprep.subr.bf16.mxu0 0
      %1667 = vmatpush2.bf16.msra.mxu0 0
      %1668 = vmatprep.subr.bf16.mxu0 0
      %1669 = vmatpush2.bf16.msra.mxu0 0
      %1670 = vmatprep.subr.bf16.mxu0 0
      %1671 = vmatpush2.bf16.msra.mxu0 0
      %1672 = vmatprep.subr.bf16.mxu0 0
      %1673 = vmatpush2.bf16.msra.mxu0 0
      %1674 = vmatprep.subr.bf16.mxu0 0
      %1675 = vmatpush2.bf16.msra.mxu0 0
      %1676 = vmatprep.mubr.bf16.mxu0 0
      %1677 = vmatmul.mubr.bf16.gmra.mxu0 %v1566
      %v1678 = vpop.f32.mrf.mxu0
      %v1679 = vadd.f32 0.0, %v1678
      %v1680 = vpop.f32.mrf.mxu0
      %v1681 = vpop.f32.mrf.mxu0
      %v1682 = vadd.f32 0.0, %v1681
      %v1683 = vpop.f32.mrf.mxu0
      %1684 = vmatprep.mubr.bf16.mxu0 0
      %1685 = vmatmul.mubr.bf16.gmra.mxu0 %v1567
      %v1686 = vpop.f32.mrf.mxu0
      %v1687 = vadd.f32 0.0, %v1686
      %v1688 = vpop.f32.mrf.mxu0
      %v1689 = vpop.f32.mrf.mxu0
      %v1690 = vadd.f32 0.0, %v1689
      %v1691 = vpop.f32.mrf.mxu0
      %1692 = vmatprep.mubr.bf16.mxu0 0
      %1693 = vmatmul.mubr.bf16.gmra.mxu0 %v1568
      %v1694 = vpop.f32.mrf.mxu0
      %v1695 = vadd.f32 0.0, %v1694
      %v1696 = vpop.f32.mrf.mxu0
      %v1697 = vpop.f32.mrf.mxu0
      %v1698 = vadd.f32 0.0, %v1697
      %v1699 = vpop.f32.mrf.mxu0
      %1700 = vmatprep.mubr.bf16.mxu0 0
      %1701 = vmatmul.mubr.bf16.gmra.mxu0 %v1569
      %v1702 = vpop.f32.mrf.mxu0
      %v1703 = vadd.f32 0.0, %v1702
      %v1704 = vpop.f32.mrf.mxu0
      %v1705 = vpop.f32.mrf.mxu0
      %v1706 = vadd.f32 0.0, %v1705
      %v1707 = vpop.f32.mrf.mxu0
      %1708 = vmatprep.mubr.bf16.mxu0 0
      %1709 = vmatmul.mubr.bf16.gmra.mxu0 %v1570
      %v1710 = vpop.f32.mrf.mxu0
      %v1711 = vadd.f32 0.0, %v1710
      %v1712 = vpop.f32.mrf.mxu0
      %v1713 = vpop.f32.mrf.mxu0
      %v1714 = vadd.f32 0.0, %v1713
      %v1715 = vpop.f32.mrf.mxu0
      %1716 = vmatprep.mubr.bf16.mxu0 0
      %1717 = vmatmul.mubr.bf16.gmra.mxu0 %v1571
      %v1718 = vpop.f32.mrf.mxu0
      %v1719 = vadd.f32 0.0, %v1718
      %v1720 = vpop.f32.mrf.mxu0
      %v1721 = vpop.f32.mrf.mxu0
      %v1722 = vadd.f32 0.0, %v1721
      %v1723 = vpop.f32.mrf.mxu0
      %1724 = vmatprep.mubr.bf16.mxu0 0
      %1725 = vmatmul.mubr.bf16.gmra.mxu0 %v1572
      %v1726 = vpop.f32.mrf.mxu0
      %v1727 = vadd.f32 0.0, %v1726
      %v1728 = vpop.f32.mrf.mxu0
      %v1729 = vpop.f32.mrf.mxu0
      %v1730 = vadd.f32 0.0, %v1729
      %v1731 = vpop.f32.mrf.mxu0
      %1732 = vmatprep.mubr.bf16.mxu0 0
      %1733 = vmatmul.mubr.bf16.gmra.mxu0 %v1573
      %v1734 = vpop.f32.mrf.mxu0
      %v1735 = vadd.f32 0.0, %v1734
      %v1736 = vpop.f32.mrf.mxu0
      %v1737 = vpop.f32.mrf.mxu0
      %v1738 = vadd.f32 0.0, %v1737
      %v1739 = vpop.f32.mrf.mxu0
      %1740 = vmatprep.mubr.bf16.mxu0 0
      %1741 = vmatmul.mubr.bf16.gmra.mxu0 %v1574
      %v1742 = vpop.f32.mrf.mxu0
      %v1743 = vadd.f32 0.0, %v1742
      %v1744 = vpop.f32.mrf.mxu0
      %v1745 = vpop.f32.mrf.mxu0
      %v1746 = vadd.f32 0.0, %v1745
      %v1747 = vpop.f32.mrf.mxu0
      %1748 = vmatprep.mubr.bf16.mxu0 0
      %1749 = vmatmul.mubr.bf16.gmra.mxu0 %v1575
      %v1750 = vpop.f32.mrf.mxu0
      %v1751 = vadd.f32 0.0, %v1750
      %v1752 = vpop.f32.mrf.mxu0
      %v1753 = vpop.f32.mrf.mxu0
      %v1754 = vadd.f32 0.0, %v1753
      %v1755 = vpop.f32.mrf.mxu0
      %1756 = vmatprep.mubr.bf16.mxu0 0
      %1757 = vmatmul.mubr.bf16.gmra.mxu0 %v1576
      %v1758 = vpop.f32.mrf.mxu0
      %v1759 = vadd.f32 0.0, %v1758
      %v1760 = vpop.f32.mrf.mxu0
      %v1761 = vpop.f32.mrf.mxu0
      %v1762 = vadd.f32 0.0, %v1761
      %v1763 = vpop.f32.mrf.mxu0
      %1764 = vmatprep.mubr.bf16.mxu0 0
      %1765 = vmatmul.mubr.bf16.gmra.mxu0 %v1577
      %v1766 = vpop.f32.mrf.mxu0
      %v1767 = vadd.f32 0.0, %v1766
      %v1768 = vpop.f32.mrf.mxu0
      %v1769 = vpop.f32.mrf.mxu0
      %v1770 = vadd.f32 0.0, %v1769
      %v1771 = vpop.f32.mrf.mxu0
      %1772 = vmatprep.mubr.bf16.mxu0 0
      %1773 = vmatmul.mubr.bf16.gmra.mxu0 %v1578
      %v1774 = vpop.f32.mrf.mxu0
      %v1775 = vadd.f32 0.0, %v1774
      %v1776 = vpop.f32.mrf.mxu0
      %v1777 = vpop.f32.mrf.mxu0
      %v1778 = vpop.f32.mrf.mxu0
      %1779 = vdwg.mxu0
      %v1796 = vunpack.c.l.b16 %v1525
      %v1797 = vunpack.c.l.b16 %v1526
      %v1798 = vunpack.c.l.b16 %v1527
      %v1799 = vunpack.c.l.b16 %v1528
      %v1800 = vunpack.c.l.b16 %v1529
      %v1801 = vunpack.c.l.b16 %v1530
      %v1802 = vunpack.c.l.b16 %v1531
      %v1803 = vunpack.c.l.b16 %v1532
      %v1804 = vunpack.c.l.b16 %v1533
      %v1805 = vunpack.c.l.b16 %v1534
      %v1806 = vunpack.c.l.b16 %v1535
      %v1807 = vunpack.c.l.b16 %v1536
      %v1808 = vunpack.c.l.b16 %v1537
      %v1809 = vunpack.c.l.b16 %v1538
      %v1810 = vunpack.c.l.b16 %v1539
      %v1811 = vunpack.c.l.b16 %v1540
      %v1812 = vpack.c.b16 %v1797, %v1796
      %v1813 = vpack.c.b16 %v1799, %v1798
      %v1814 = vpack.c.b16 %v1801, %v1800
      %v1815 = vpack.c.b16 %v1803, %v1802
      %v1816 = vpack.c.b16 %v1805, %v1804
      %v1817 = vpack.c.b16 %v1807, %v1806
      %v1818 = vpack.c.b16 %v1809, %v1808
      %v1819 = vpack.c.b16 %v1811, %v1810
      %1828 = vmatprep.subr.bf16.mxu0 0
      %1829 = vmatpush1.bf16.msra.mxu0 %v1819
      %1830 = vmatprep.subr.bf16.mxu0 0
      %1831 = vmatpush1.bf16.msra.mxu0 %v1818
      %1832 = vmatprep.subr.bf16.mxu0 0
      %1833 = vmatpush1.bf16.msra.mxu0 %v1817
      %1834 = vmatprep.subr.bf16.mxu0 0
      %1835 = vmatpush1.bf16.msra.mxu0 %v1816
      %1836 = vmatprep.subr.bf16.mxu0 0
      %1837 = vmatpush1.bf16.msra.mxu0 %v1815
      %1838 = vmatprep.subr.bf16.mxu0 0
      %1839 = vmatpush1.bf16.msra.mxu0 %v1814
      %1840 = vmatprep.subr.bf16.mxu0 0
      %1841 = vmatpush1.bf16.msra.mxu0 %v1813
      %1842 = vmatprep.subr.bf16.mxu0 0
      %1843 = vmatpush1.bf16.msra.mxu0 %v1812
      %1844 = vmatprep.subr.bf16.mxu0 0
      %1845 = vmatpush2.bf16.msra.mxu0 0
      %1846 = vmatprep.subr.bf16.mxu0 0
      %1847 = vmatpush2.bf16.msra.mxu0 0
      %1848 = vmatprep.subr.bf16.mxu0 0
      %1849 = vmatpush2.bf16.msra.mxu0 0
      %1850 = vmatprep.subr.bf16.mxu0 0
      %1851 = vmatpush2.bf16.msra.mxu0 0
      %1852 = vmatprep.subr.bf16.mxu0 0
      %1853 = vmatpush2.bf16.msra.mxu0 0
      %1854 = vmatprep.subr.bf16.mxu0 0
      %1855 = vmatpush2.bf16.msra.mxu0 0
      %1856 = vmatprep.subr.bf16.mxu0 0
      %1857 = vmatpush2.bf16.msra.mxu0 0
      %1858 = vmatprep.subr.bf16.mxu0 0
      %1859 = vmatpush2.bf16.msra.mxu0 0
      %1860 = vmatprep.mubr.bf16.mxu0 0
      %1861 = vmatmul.mubr.bf16.gmra.mxu0 %v1512
      %v1862 = vpop.f32.mrf.mxu0
      %v1863 = vadd.f32 %v1679, %v1862
      %v1864 = vpop.f32.mrf.mxu0
      %v1865 = vpop.f32.mrf.mxu0
      %v1866 = vadd.f32 %v1682, %v1865
      %v1867 = vpop.f32.mrf.mxu0
      %1868 = vmatprep.mubr.bf16.mxu0 0
      %1869 = vmatmul.mubr.bf16.gmra.mxu0 %v1513
      %v1870 = vpop.f32.mrf.mxu0
      %v1871 = vadd.f32 %v1687, %v1870
      %v1872 = vpop.f32.mrf.mxu0
      %v1873 = vpop.f32.mrf.mxu0
      %v1874 = vadd.f32 %v1690, %v1873
      %v1875 = vpop.f32.mrf.mxu0
      %1876 = vmatprep.mubr.bf16.mxu0 0
      %1877 = vmatmul.mubr.bf16.gmra.mxu0 %v1514
      %v1878 = vpop.f32.mrf.mxu0
      %v1879 = vadd.f32 %v1695, %v1878
      %v1880 = vpop.f32.mrf.mxu0
      %v1881 = vpop.f32.mrf.mxu0
      %v1882 = vadd.f32 %v1698, %v1881
      %v1883 = vpop.f32.mrf.mxu0
      %1884 = vmatprep.mubr.bf16.mxu0 0
      %1885 = vmatmul.mubr.bf16.gmra.mxu0 %v1515
      %v1886 = vpop.f32.mrf.mxu0
      %v1887 = vadd.f32 %v1703, %v1886
      %v1888 = vpop.f32.mrf.mxu0
      %v1889 = vpop.f32.mrf.mxu0
      %v1890 = vadd.f32 %v1706, %v1889
      %v1891 = vpop.f32.mrf.mxu0
      %1892 = vmatprep.mubr.bf16.mxu0 0
      %1893 = vmatmul.mubr.bf16.gmra.mxu0 %v1516
      %v1894 = vpop.f32.mrf.mxu0
      %v1895 = vadd.f32 %v1711, %v1894
      %v1896 = vpop.f32.mrf.mxu0
      %v1897 = vpop.f32.mrf.mxu0
      %v1898 = vadd.f32 %v1714, %v1897
      %v1899 = vpop.f32.mrf.mxu0
      %1900 = vmatprep.mubr.bf16.mxu0 0
      %1901 = vmatmul.mubr.bf16.gmra.mxu0 %v1517
      %v1902 = vpop.f32.mrf.mxu0
      %v1903 = vadd.f32 %v1719, %v1902
      %v1904 = vpop.f32.mrf.mxu0
      %v1905 = vpop.f32.mrf.mxu0
      %v1906 = vadd.f32 %v1722, %v1905
      %v1907 = vpop.f32.mrf.mxu0
      %1908 = vmatprep.mubr.bf16.mxu0 0
      %1909 = vmatmul.mubr.bf16.gmra.mxu0 %v1518
      %v1910 = vpop.f32.mrf.mxu0
      %v1911 = vadd.f32 %v1727, %v1910
      %v1912 = vpop.f32.mrf.mxu0
      %v1913 = vpop.f32.mrf.mxu0
      %v1914 = vadd.f32 %v1730, %v1913
      %v1915 = vpop.f32.mrf.mxu0
      %1916 = vmatprep.mubr.bf16.mxu0 0
      %1917 = vmatmul.mubr.bf16.gmra.mxu0 %v1519
      %v1918 = vpop.f32.mrf.mxu0
      %v1919 = vadd.f32 %v1735, %v1918
      %v1920 = vpop.f32.mrf.mxu0
      %v1921 = vpop.f32.mrf.mxu0
      %v1922 = vadd.f32 %v1738, %v1921
      %v1923 = vpop.f32.mrf.mxu0
      %1924 = vmatprep.mubr.bf16.mxu0 0
      %1925 = vmatmul.mubr.bf16.gmra.mxu0 %v1520
      %v1926 = vpop.f32.mrf.mxu0
      %v1927 = vadd.f32 %v1743, %v1926
      %v1928 = vpop.f32.mrf.mxu0
      %v1929 = vpop.f32.mrf.mxu0
      %v1930 = vadd.f32 %v1746, %v1929
      %v1931 = vpop.f32.mrf.mxu0
      %1932 = vmatprep.mubr.bf16.mxu0 0
      %1933 = vmatmul.mubr.bf16.gmra.mxu0 %v1521
      %v1934 = vpop.f32.mrf.mxu0
      %v1935 = vadd.f32 %v1751, %v1934
      %v1936 = vpop.f32.mrf.mxu0
      %v1937 = vpop.f32.mrf.mxu0
      %v1938 = vadd.f32 %v1754, %v1937
      %v1939 = vpop.f32.mrf.mxu0
      %1940 = vmatprep.mubr.bf16.mxu0 0
      %1941 = vmatmul.mubr.bf16.gmra.mxu0 %v1522
      %v1942 = vpop.f32.mrf.mxu0
      %v1943 = vadd.f32 %v1759, %v1942
      %v1944 = vpop.f32.mrf.mxu0
      %v1945 = vpop.f32.mrf.mxu0
      %v1946 = vadd.f32 %v1762, %v1945
      %v1947 = vpop.f32.mrf.mxu0
      %1948 = vmatprep.mubr.bf16.mxu0 0
      %1949 = vmatmul.mubr.bf16.gmra.mxu0 %v1523
      %v1950 = vpop.f32.mrf.mxu0
      %v1951 = vadd.f32 %v1767, %v1950
      %v1952 = vpop.f32.mrf.mxu0
      %v1953 = vpop.f32.mrf.mxu0
      %v1954 = vadd.f32 %v1770, %v1953
      %v1955 = vpop.f32.mrf.mxu0
      %1956 = vmatprep.mubr.bf16.mxu0 0
      %1957 = vmatmul.mubr.bf16.gmra.mxu0 %v1524
      %v1958 = vpop.f32.mrf.mxu0
      %v1959 = vadd.f32 %v1775, %v1958
      %v1960 = vpop.f32.mrf.mxu0
      %v1961 = vpop.f32.mrf.mxu0
      %v1962 = vpop.f32.mrf.mxu0
      %1963 = vdwg.mxu0
      %v1964 = vld [vmem:[#allocation2 + $0x2] sm:$0xff]
      %v1965 = vld [vmem:[#allocation2 + $0xa] sm:$0xff]
      %v1966 = vld [vmem:[#allocation2 + $0x12] sm:$0xff]
      %v1967 = vld [vmem:[#allocation2 + $0x1a] sm:$0xff]
      %v1968 = vld [vmem:[#allocation2 + $0x22] sm:$0xff]
      %v1969 = vld [vmem:[#allocation2 + $0x2a] sm:$0xff]
      %v1970 = vld [vmem:[#allocation2 + $0x32] sm:$0xff]
      %v1971 = vld [vmem:[#allocation2 + $0x3a] sm:$0xff]
      %v1972 = vld [vmem:[#allocation2 + $0x42] sm:$0xff]
      %v1973 = vld [vmem:[#allocation2 + $0x4a] sm:$0xff]
      %v1974 = vld [vmem:[#allocation2 + $0x52] sm:$0xff]
      %v1975 = vld [vmem:[#allocation2 + $0x5a] sm:$0xff]
      %v1976 = vld [vmem:[#allocation2 + $0x62] sm:$0xff]
      %v1977 = vld [vmem:[#allocation2 + $0x6a] sm:$0xff]
      %v1978 = vld [vmem:[#allocation2 + $0x72] sm:$0xff]
      %v1979 = vld [vmem:[#allocation2 + $0x7a] sm:$0xff]
      %v1980 = vld [vmem:[#allocation2 + $0x82] sm:$0xff]
      %v1981 = vld [vmem:[#allocation2 + $0x8a] sm:$0xff]
      %v1982 = vld [vmem:[#allocation2 + $0x92] sm:$0xff]
      %v1983 = vld [vmem:[#allocation2 + $0x9a] sm:$0xff]
      %v1984 = vld [vmem:[#allocation2 + $0xa2] sm:$0xff]
      %v1985 = vld [vmem:[#allocation2 + $0xaa] sm:$0xff]
      %v1986 = vld [vmem:[#allocation2 + $0xb2] sm:$0xff]
      %v1987 = vld [vmem:[#allocation2 + $0xba] sm:$0xff]
      %v1988 = vld [vmem:[#allocation2 + $0xc2] sm:$0xf]
      %v1989 = vpack.c.bf16 %v1965, %v1964
      %v1990 = vpack.c.bf16 %v1967, %v1966
      %v1991 = vpack.c.bf16 %v1969, %v1968
      %v1992 = vpack.c.bf16 %v1971, %v1970
      %v1993 = vpack.c.bf16 %v1973, %v1972
      %v1994 = vpack.c.bf16 %v1975, %v1974
      %v1995 = vpack.c.bf16 %v1977, %v1976
      %v1996 = vpack.c.bf16 %v1979, %v1978
      %v1997 = vpack.c.bf16 %v1981, %v1980
      %v1998 = vpack.c.bf16 %v1983, %v1982
      %v1999 = vpack.c.bf16 %v1985, %v1984
      %v2000 = vpack.c.bf16 %v1987, %v1986
      %v2001 = vpack.c.bf16 %v1988, %v1988
      %s2002 = scalar_lea.vmem %s3, 128
      %v2003 = vld [vmem:[%s2002] sm:$0xf]
      %v2004 = vld [vmem:[%s2002 + $0x4] sm:$0xf]
      %v2005 = vld [vmem:[%s2002 + $0x8] sm:$0xf]
      %v2006 = vld [vmem:[%s2002 + $0xc] sm:$0xf]
      %v2007 = vld [vmem:[%s2002 + $0x10] sm:$0xf]
      %v2008 = vld [vmem:[%s2002 + $0x14] sm:$0xf]
      %v2009 = vld [vmem:[%s2002 + $0x18] sm:$0xf]
      %v2010 = vld [vmem:[%s2002 + $0x1c] sm:$0xf]
      %v2011 = vld [vmem:[%s2002 + $0x20] sm:$0xf]
      %v2012 = vld [vmem:[%s2002 + $0x24] sm:$0xf]
      %v2013 = vld [vmem:[%s2002 + $0x28] sm:$0xf]
      %v2014 = vld [vmem:[%s2002 + $0x2c] sm:$0xf]
      %v2015 = vld [vmem:[%s2002 + $0x30] sm:$0xf]
      %v2016 = vld [vmem:[%s2002 + $0x34] sm:$0xf]
      %v2017 = vld [vmem:[%s2002 + $0x38] sm:$0xf]
      %v2018 = vld [vmem:[%s2002 + $0x3c] sm:$0xf]
      %v2035 = vunpack.c.l.b16 %v2003
      %v2036 = vunpack.c.l.b16 %v2004
      %v2037 = vunpack.c.l.b16 %v2005
      %v2038 = vunpack.c.l.b16 %v2006
      %v2039 = vunpack.c.l.b16 %v2007
      %v2040 = vunpack.c.l.b16 %v2008
      %v2041 = vunpack.c.l.b16 %v2009
      %v2042 = vunpack.c.l.b16 %v2010
      %v2043 = vunpack.c.l.b16 %v2011
      %v2044 = vunpack.c.l.b16 %v2012
      %v2045 = vunpack.c.l.b16 %v2013
      %v2046 = vunpack.c.l.b16 %v2014
      %v2047 = vunpack.c.l.b16 %v2015
      %v2048 = vunpack.c.l.b16 %v2016
      %v2049 = vunpack.c.l.b16 %v2017
      %v2050 = vunpack.c.l.b16 %v2018
      %v2051 = vpack.c.b16 %v2036, %v2035
      %v2052 = vpack.c.b16 %v2038, %v2037
      %v2053 = vpack.c.b16 %v2040, %v2039
      %v2054 = vpack.c.b16 %v2042, %v2041
      %v2055 = vpack.c.b16 %v2044, %v2043
      %v2056 = vpack.c.b16 %v2046, %v2045
      %v2057 = vpack.c.b16 %v2048, %v2047
      %v2058 = vpack.c.b16 %v2050, %v2049
      %2067 = vmatprep.subr.bf16.mxu0 0
      %2068 = vmatpush1.bf16.msra.mxu0 %v2058
      %2069 = vmatprep.subr.bf16.mxu0 0
      %2070 = vmatpush1.bf16.msra.mxu0 %v2057
      %2071 = vmatprep.subr.bf16.mxu0 0
      %2072 = vmatpush1.bf16.msra.mxu0 %v2056
      %2073 = vmatprep.subr.bf16.mxu0 0
      %2074 = vmatpush1.bf16.msra.mxu0 %v2055
      %2075 = vmatprep.subr.bf16.mxu0 0
      %2076 = vmatpush1.bf16.msra.mxu0 %v2054
      %2077 = vmatprep.subr.bf16.mxu0 0
      %2078 = vmatpush1.bf16.msra.mxu0 %v2053
      %2079 = vmatprep.subr.bf16.mxu0 0
      %2080 = vmatpush1.bf16.msra.mxu0 %v2052
      %2081 = vmatprep.subr.bf16.mxu0 0
      %2082 = vmatpush1.bf16.msra.mxu0 %v2051
      %2083 = vmatprep.subr.bf16.mxu0 0
      %2084 = vmatpush2.bf16.msra.mxu0 0
      %2085 = vmatprep.subr.bf16.mxu0 0
      %2086 = vmatpush2.bf16.msra.mxu0 0
      %2087 = vmatprep.subr.bf16.mxu0 0
      %2088 = vmatpush2.bf16.msra.mxu0 0
      %2089 = vmatprep.subr.bf16.mxu0 0
      %2090 = vmatpush2.bf16.msra.mxu0 0
      %2091 = vmatprep.subr.bf16.mxu0 0
      %2092 = vmatpush2.bf16.msra.mxu0 0
      %2093 = vmatprep.subr.bf16.mxu0 0
      %2094 = vmatpush2.bf16.msra.mxu0 0
      %2095 = vmatprep.subr.bf16.mxu0 0
      %2096 = vmatpush2.bf16.msra.mxu0 0
      %2097 = vmatprep.subr.bf16.mxu0 0
      %2098 = vmatpush2.bf16.msra.mxu0 0
      %2099 = vmatprep.mubr.bf16.mxu0 0
      %2100 = vmatmul.mubr.bf16.gmra.mxu0 %v1989
      %v2101 = vpop.f32.mrf.mxu0
      %v2102 = vadd.f32 0.0, %v2101
      %v2103 = vpop.f32.mrf.mxu0
      %v2104 = vpop.f32.mrf.mxu0
      %v2105 = vadd.f32 0.0, %v2104
      %v2106 = vpop.f32.mrf.mxu0
      %2107 = vmatprep.mubr.bf16.mxu0 0
      %2108 = vmatmul.mubr.bf16.gmra.mxu0 %v1990
      %v2109 = vpop.f32.mrf.mxu0
      %v2110 = vadd.f32 0.0, %v2109
      %v2111 = vpop.f32.mrf.mxu0
      %v2112 = vpop.f32.mrf.mxu0
      %v2113 = vadd.f32 0.0, %v2112
      %v2114 = vpop.f32.mrf.mxu0
      %2115 = vmatprep.mubr.bf16.mxu0 0
      %2116 = vmatmul.mubr.bf16.gmra.mxu0 %v1991
      %v2117 = vpop.f32.mrf.mxu0
      %v2118 = vadd.f32 0.0, %v2117
      %v2119 = vpop.f32.mrf.mxu0
      %v2120 = vpop.f32.mrf.mxu0
      %v2121 = vadd.f32 0.0, %v2120
      %v2122 = vpop.f32.mrf.mxu0
      %2123 = vmatprep.mubr.bf16.mxu0 0
      %2124 = vmatmul.mubr.bf16.gmra.mxu0 %v1992
      %v2125 = vpop.f32.mrf.mxu0
      %v2126 = vadd.f32 0.0, %v2125
      %v2127 = vpop.f32.mrf.mxu0
      %v2128 = vpop.f32.mrf.mxu0
      %v2129 = vadd.f32 0.0, %v2128
      %v2130 = vpop.f32.mrf.mxu0
      %2131 = vmatprep.mubr.bf16.mxu0 0
      %2132 = vmatmul.mubr.bf16.gmra.mxu0 %v1993
      %v2133 = vpop.f32.mrf.mxu0
      %v2134 = vadd.f32 0.0, %v2133
      %v2135 = vpop.f32.mrf.mxu0
      %v2136 = vpop.f32.mrf.mxu0
      %v2137 = vadd.f32 0.0, %v2136
      %v2138 = vpop.f32.mrf.mxu0
      %2139 = vmatprep.mubr.bf16.mxu0 0
      %2140 = vmatmul.mubr.bf16.gmra.mxu0 %v1994
      %v2141 = vpop.f32.mrf.mxu0
      %v2142 = vadd.f32 0.0, %v2141
      %v2143 = vpop.f32.mrf.mxu0
      %v2144 = vpop.f32.mrf.mxu0
      %v2145 = vadd.f32 0.0, %v2144
      %v2146 = vpop.f32.mrf.mxu0
      %2147 = vmatprep.mubr.bf16.mxu0 0
      %2148 = vmatmul.mubr.bf16.gmra.mxu0 %v1995
      %v2149 = vpop.f32.mrf.mxu0
      %v2150 = vadd.f32 0.0, %v2149
      %v2151 = vpop.f32.mrf.mxu0
      %v2152 = vpop.f32.mrf.mxu0
      %v2153 = vadd.f32 0.0, %v2152
      %v2154 = vpop.f32.mrf.mxu0
      %2155 = vmatprep.mubr.bf16.mxu0 0
      %2156 = vmatmul.mubr.bf16.gmra.mxu0 %v1996
      %v2157 = vpop.f32.mrf.mxu0
      %v2158 = vadd.f32 0.0, %v2157
      %v2159 = vpop.f32.mrf.mxu0
      %v2160 = vpop.f32.mrf.mxu0
      %v2161 = vadd.f32 0.0, %v2160
      %v2162 = vpop.f32.mrf.mxu0
      %2163 = vmatprep.mubr.bf16.mxu0 0
      %2164 = vmatmul.mubr.bf16.gmra.mxu0 %v1997
      %v2165 = vpop.f32.mrf.mxu0
      %v2166 = vadd.f32 0.0, %v2165
      %v2167 = vpop.f32.mrf.mxu0
      %v2168 = vpop.f32.mrf.mxu0
      %v2169 = vadd.f32 0.0, %v2168
      %v2170 = vpop.f32.mrf.mxu0
      %2171 = vmatprep.mubr.bf16.mxu0 0
      %2172 = vmatmul.mubr.bf16.gmra.mxu0 %v1998
      %v2173 = vpop.f32.mrf.mxu0
      %v2174 = vadd.f32 0.0, %v2173
      %v2175 = vpop.f32.mrf.mxu0
      %v2176 = vpop.f32.mrf.mxu0
      %v2177 = vadd.f32 0.0, %v2176
      %v2178 = vpop.f32.mrf.mxu0
      %2179 = vmatprep.mubr.bf16.mxu0 0
      %2180 = vmatmul.mubr.bf16.gmra.mxu0 %v1999
      %v2181 = vpop.f32.mrf.mxu0
      %v2182 = vadd.f32 0.0, %v2181
      %v2183 = vpop.f32.mrf.mxu0
      %v2184 = vpop.f32.mrf.mxu0
      %v2185 = vadd.f32 0.0, %v2184
      %v2186 = vpop.f32.mrf.mxu0
      %2187 = vmatprep.mubr.bf16.mxu0 0
      %2188 = vmatmul.mubr.bf16.gmra.mxu0 %v2000
      %v2189 = vpop.f32.mrf.mxu0
      %v2190 = vadd.f32 0.0, %v2189
      %v2191 = vpop.f32.mrf.mxu0
      %v2192 = vpop.f32.mrf.mxu0
      %v2193 = vadd.f32 0.0, %v2192
      %v2194 = vpop.f32.mrf.mxu0
      %2195 = vmatprep.mubr.bf16.mxu0 0
      %2196 = vmatmul.mubr.bf16.gmra.mxu0 %v2001
      %v2197 = vpop.f32.mrf.mxu0
      %v2198 = vadd.f32 0.0, %v2197
      %v2199 = vpop.f32.mrf.mxu0
      %v2200 = vpop.f32.mrf.mxu0
      %v2201 = vpop.f32.mrf.mxu0
      %2202 = vdwg.mxu0
      %v2203 = vadd.f32 %v1863, %v2102
      %v2204 = vadd.f32 %v1866, %v2105
      %v2205 = vadd.f32 %v1871, %v2110
      %v2206 = vadd.f32 %v1874, %v2113
      %v2207 = vadd.f32 %v1879, %v2118
      %v2208 = vadd.f32 %v1882, %v2121
      %v2209 = vadd.f32 %v1887, %v2126
      %v2210 = vadd.f32 %v1890, %v2129
      %v2211 = vadd.f32 %v1895, %v2134
      %v2212 = vadd.f32 %v1898, %v2137
      %v2213 = vadd.f32 %v1903, %v2142
      %v2214 = vadd.f32 %v1906, %v2145
      %v2215 = vadd.f32 %v1911, %v2150
      %v2216 = vadd.f32 %v1914, %v2153
      %v2217 = vadd.f32 %v1919, %v2158
      %v2218 = vadd.f32 %v1922, %v2161
      %v2219 = vadd.f32 %v1927, %v2166
      %v2220 = vadd.f32 %v1930, %v2169
      %v2221 = vadd.f32 %v1935, %v2174
      %v2222 = vadd.f32 %v1938, %v2177
      %v2223 = vadd.f32 %v1943, %v2182
      %v2224 = vadd.f32 %v1946, %v2185
      %v2225 = vadd.f32 %v1951, %v2190
      %v2226 = vadd.f32 %v1954, %v2193
      %v2227 = vadd.f32 %v1959, %v2198
      %v2228 = vld [vmem:[#allocation2 + $0x3] sm:$0xff]
      %v2229 = vld [vmem:[#allocation2 + $0xb] sm:$0xff]
      %v2230 = vld [vmem:[#allocation2 + $0x13] sm:$0xff]
      %v2231 = vld [vmem:[#allocation2 + $0x1b] sm:$0xff]
      %v2232 = vld [vmem:[#allocation2 + $0x23] sm:$0xff]
      %v2233 = vld [vmem:[#allocation2 + $0x2b] sm:$0xff]
      %v2234 = vld [vmem:[#allocation2 + $0x33] sm:$0xff]
      %v2235 = vld [vmem:[#allocation2 + $0x3b] sm:$0xff]
      %v2236 = vld [vmem:[#allocation2 + $0x43] sm:$0xff]
      %v2237 = vld [vmem:[#allocation2 + $0x4b] sm:$0xff]
      %v2238 = vld [vmem:[#allocation2 + $0x53] sm:$0xff]
      %v2239 = vld [vmem:[#allocation2 + $0x5b] sm:$0xff]
      %v2240 = vld [vmem:[#allocation2 + $0x63] sm:$0xff]
      %v2241 = vld [vmem:[#allocation2 + $0x6b] sm:$0xff]
      %v2242 = vld [vmem:[#allocation2 + $0x73] sm:$0xff]
      %v2243 = vld [vmem:[#allocation2 + $0x7b] sm:$0xff]
      %v2244 = vld [vmem:[#allocation2 + $0x83] sm:$0xff]
      %v2245 = vld [vmem:[#allocation2 + $0x8b] sm:$0xff]
      %v2246 = vld [vmem:[#allocation2 + $0x93] sm:$0xff]
      %v2247 = vld [vmem:[#allocation2 + $0x9b] sm:$0xff]
      %v2248 = vld [vmem:[#allocation2 + $0xa3] sm:$0xff]
      %v2249 = vld [vmem:[#allocation2 + $0xab] sm:$0xff]
      %v2250 = vld [vmem:[#allocation2 + $0xb3] sm:$0xff]
      %v2251 = vld [vmem:[#allocation2 + $0xbb] sm:$0xff]
      %v2252 = vld [vmem:[#allocation2 + $0xc3] sm:$0xf]
      %v2253 = vpack.c.bf16 %v2229, %v2228
      %v2254 = vpack.c.bf16 %v2231, %v2230
      %v2255 = vpack.c.bf16 %v2233, %v2232
      %v2256 = vpack.c.bf16 %v2235, %v2234
      %v2257 = vpack.c.bf16 %v2237, %v2236
      %v2258 = vpack.c.bf16 %v2239, %v2238
      %v2259 = vpack.c.bf16 %v2241, %v2240
      %v2260 = vpack.c.bf16 %v2243, %v2242
      %v2261 = vpack.c.bf16 %v2245, %v2244
      %v2262 = vpack.c.bf16 %v2247, %v2246
      %v2263 = vpack.c.bf16 %v2249, %v2248
      %v2264 = vpack.c.bf16 %v2251, %v2250
      %v2265 = vpack.c.bf16 %v2252, %v2252
      %s2266 = scalar_lea.vmem %s3, 192
      %v2267 = vld [vmem:[%s2266] sm:$0xf]
      %v2268 = vld [vmem:[%s2266 + $0x4] sm:$0xf]
      %v2269 = vld [vmem:[%s2266 + $0x8] sm:$0xf]
      %v2270 = vld [vmem:[%s2266 + $0xc] sm:$0xf]
      %v2271 = vld [vmem:[%s2266 + $0x10] sm:$0xf]
      %v2272 = vld [vmem:[%s2266 + $0x14] sm:$0xf]
      %v2273 = vld [vmem:[%s2266 + $0x18] sm:$0xf]
      %v2274 = vld [vmem:[%s2266 + $0x1c] sm:$0xf]
      %v2275 = vld [vmem:[%s2266 + $0x20] sm:$0xf]
      %v2276 = vld [vmem:[%s2266 + $0x24] sm:$0xf]
      %v2277 = vld [vmem:[%s2266 + $0x28] sm:$0xf]
      %v2278 = vld [vmem:[%s2266 + $0x2c] sm:$0xf]
      %v2279 = vld [vmem:[%s2266 + $0x30] sm:$0xf]
      %v2280 = vld [vmem:[%s2266 + $0x34] sm:$0xf]
      %v2281 = vld [vmem:[%s2266 + $0x38] sm:$0xf]
      %v2282 = vld [vmem:[%s2266 + $0x3c] sm:$0xf]
      %v2299 = vunpack.c.l.b16 %v2267
      %v2300 = vunpack.c.l.b16 %v2268
      %v2301 = vunpack.c.l.b16 %v2269
      %v2302 = vunpack.c.l.b16 %v2270
      %v2303 = vunpack.c.l.b16 %v2271
      %v2304 = vunpack.c.l.b16 %v2272
      %v2305 = vunpack.c.l.b16 %v2273
      %v2306 = vunpack.c.l.b16 %v2274
      %v2307 = vunpack.c.l.b16 %v2275
      %v2308 = vunpack.c.l.b16 %v2276
      %v2309 = vunpack.c.l.b16 %v2277
      %v2310 = vunpack.c.l.b16 %v2278
      %v2311 = vunpack.c.l.b16 %v2279
      %v2312 = vunpack.c.l.b16 %v2280
      %v2313 = vunpack.c.l.b16 %v2281
      %v2314 = vunpack.c.l.b16 %v2282
      %v2315 = vpack.c.b16 %v2300, %v2299
      %v2316 = vpack.c.b16 %v2302, %v2301
      %v2317 = vpack.c.b16 %v2304, %v2303
      %v2318 = vpack.c.b16 %v2306, %v2305
      %v2319 = vpack.c.b16 %v2308, %v2307
      %v2320 = vpack.c.b16 %v2310, %v2309
      %v2321 = vpack.c.b16 %v2312, %v2311
      %v2322 = vpack.c.b16 %v2314, %v2313
      %2331 = vmatprep.subr.bf16.mxu0 0
      %2332 = vmatpush1.bf16.msra.mxu0 %v2322
      %2333 = vmatprep.subr.bf16.mxu0 0
      %2334 = vmatpush1.bf16.msra.mxu0 %v2321
      %2335 = vmatprep.subr.bf16.mxu0 0
      %2336 = vmatpush1.bf16.msra.mxu0 %v2320
      %2337 = vmatprep.subr.bf16.mxu0 0
      %2338 = vmatpush1.bf16.msra.mxu0 %v2319
      %2339 = vmatprep.subr.bf16.mxu0 0
      %2340 = vmatpush1.bf16.msra.mxu0 %v2318
      %2341 = vmatprep.subr.bf16.mxu0 0
      %2342 = vmatpush1.bf16.msra.mxu0 %v2317
      %2343 = vmatprep.subr.bf16.mxu0 0
      %2344 = vmatpush1.bf16.msra.mxu0 %v2316
      %2345 = vmatprep.subr.bf16.mxu0 0
      %2346 = vmatpush1.bf16.msra.mxu0 %v2315
      %2347 = vmatprep.subr.bf16.mxu0 0
      %2348 = vmatpush2.bf16.msra.mxu0 0
      %2349 = vmatprep.subr.bf16.mxu0 0
      %2350 = vmatpush2.bf16.msra.mxu0 0
      %2351 = vmatprep.subr.bf16.mxu0 0
      %2352 = vmatpush2.bf16.msra.mxu0 0
      %2353 = vmatprep.subr.bf16.mxu0 0
      %2354 = vmatpush2.bf16.msra.mxu0 0
      %2355 = vmatprep.subr.bf16.mxu0 0
      %2356 = vmatpush2.bf16.msra.mxu0 0
      %2357 = vmatprep.subr.bf16.mxu0 0
      %2358 = vmatpush2.bf16.msra.mxu0 0
      %2359 = vmatprep.subr.bf16.mxu0 0
      %2360 = vmatpush2.bf16.msra.mxu0 0
      %2361 = vmatprep.subr.bf16.mxu0 0
      %2362 = vmatpush2.bf16.msra.mxu0 0
      %2363 = vmatprep.mubr.bf16.mxu0 0
      %2364 = vmatmul.mubr.bf16.gmra.mxu0 %v2253
      %v2365 = vpop.f32.mrf.mxu0
      %v2366 = vadd.f32 0.0, %v2365
      %v2367 = vpop.f32.mrf.mxu0
      %v2368 = vpop.f32.mrf.mxu0
      %v2369 = vadd.f32 0.0, %v2368
      %v2370 = vpop.f32.mrf.mxu0
      %2371 = vmatprep.mubr.bf16.mxu0 0
      %2372 = vmatmul.mubr.bf16.gmra.mxu0 %v2254
      %v2373 = vpop.f32.mrf.mxu0
      %v2374 = vadd.f32 0.0, %v2373
      %v2375 = vpop.f32.mrf.mxu0
      %v2376 = vpop.f32.mrf.mxu0
      %v2377 = vadd.f32 0.0, %v2376
      %v2378 = vpop.f32.mrf.mxu0
      %2379 = vmatprep.mubr.bf16.mxu0 0
      %2380 = vmatmul.mubr.bf16.gmra.mxu0 %v2255
      %v2381 = vpop.f32.mrf.mxu0
      %v2382 = vadd.f32 0.0, %v2381
      %v2383 = vpop.f32.mrf.mxu0
      %v2384 = vpop.f32.mrf.mxu0
      %v2385 = vadd.f32 0.0, %v2384
      %v2386 = vpop.f32.mrf.mxu0
      %2387 = vmatprep.mubr.bf16.mxu0 0
      %2388 = vmatmul.mubr.bf16.gmra.mxu0 %v2256
      %v2389 = vpop.f32.mrf.mxu0
      %v2390 = vadd.f32 0.0, %v2389
      %v2391 = vpop.f32.mrf.mxu0
      %v2392 = vpop.f32.mrf.mxu0
      %v2393 = vadd.f32 0.0, %v2392
      %v2394 = vpop.f32.mrf.mxu0
      %2395 = vmatprep.mubr.bf16.mxu0 0
      %2396 = vmatmul.mubr.bf16.gmra.mxu0 %v2257
      %v2397 = vpop.f32.mrf.mxu0
      %v2398 = vadd.f32 0.0, %v2397
      %v2399 = vpop.f32.mrf.mxu0
      %v2400 = vpop.f32.mrf.mxu0
      %v2401 = vadd.f32 0.0, %v2400
      %v2402 = vpop.f32.mrf.mxu0
      %2403 = vmatprep.mubr.bf16.mxu0 0
      %2404 = vmatmul.mubr.bf16.gmra.mxu0 %v2258
      %v2405 = vpop.f32.mrf.mxu0
      %v2406 = vadd.f32 0.0, %v2405
      %v2407 = vpop.f32.mrf.mxu0
      %v2408 = vpop.f32.mrf.mxu0
      %v2409 = vadd.f32 0.0, %v2408
      %v2410 = vpop.f32.mrf.mxu0
      %2411 = vmatprep.mubr.bf16.mxu0 0
      %2412 = vmatmul.mubr.bf16.gmra.mxu0 %v2259
      %v2413 = vpop.f32.mrf.mxu0
      %v2414 = vadd.f32 0.0, %v2413
      %v2415 = vpop.f32.mrf.mxu0
      %v2416 = vpop.f32.mrf.mxu0
      %v2417 = vadd.f32 0.0, %v2416
      %v2418 = vpop.f32.mrf.mxu0
      %2419 = vmatprep.mubr.bf16.mxu0 0
      %2420 = vmatmul.mubr.bf16.gmra.mxu0 %v2260
      %v2421 = vpop.f32.mrf.mxu0
      %v2422 = vadd.f32 0.0, %v2421
      %v2423 = vpop.f32.mrf.mxu0
      %v2424 = vpop.f32.mrf.mxu0
      %v2425 = vadd.f32 0.0, %v2424
      %v2426 = vpop.f32.mrf.mxu0
      %2427 = vmatprep.mubr.bf16.mxu0 0
      %2428 = vmatmul.mubr.bf16.gmra.mxu0 %v2261
      %v2429 = vpop.f32.mrf.mxu0
      %v2430 = vadd.f32 0.0, %v2429
      %v2431 = vpop.f32.mrf.mxu0
      %v2432 = vpop.f32.mrf.mxu0
      %v2433 = vadd.f32 0.0, %v2432
      %v2434 = vpop.f32.mrf.mxu0
      %2435 = vmatprep.mubr.bf16.mxu0 0
      %2436 = vmatmul.mubr.bf16.gmra.mxu0 %v2262
      %v2437 = vpop.f32.mrf.mxu0
      %v2438 = vadd.f32 0.0, %v2437
      %v2439 = vpop.f32.mrf.mxu0
      %v2440 = vpop.f32.mrf.mxu0
      %v2441 = vadd.f32 0.0, %v2440
      %v2442 = vpop.f32.mrf.mxu0
      %2443 = vmatprep.mubr.bf16.mxu0 0
      %2444 = vmatmul.mubr.bf16.gmra.mxu0 %v2263
      %v2445 = vpop.f32.mrf.mxu0
      %v2446 = vadd.f32 0.0, %v2445
      %v2447 = vpop.f32.mrf.mxu0
      %v2448 = vpop.f32.mrf.mxu0
      %v2449 = vadd.f32 0.0, %v2448
      %v2450 = vpop.f32.mrf.mxu0
      %2451 = vmatprep.mubr.bf16.mxu0 0
      %2452 = vmatmul.mubr.bf16.gmra.mxu0 %v2264
      %v2453 = vpop.f32.mrf.mxu0
      %v2454 = vadd.f32 0.0, %v2453
      %v2455 = vpop.f32.mrf.mxu0
      %v2456 = vpop.f32.mrf.mxu0
      %v2457 = vadd.f32 0.0, %v2456
      %v2458 = vpop.f32.mrf.mxu0
      %2459 = vmatprep.mubr.bf16.mxu0 0
      %2460 = vmatmul.mubr.bf16.gmra.mxu0 %v2265
      %v2461 = vpop.f32.mrf.mxu0
      %v2462 = vadd.f32 0.0, %v2461
      %v2463 = vpop.f32.mrf.mxu0
      %v2464 = vpop.f32.mrf.mxu0
      %v2465 = vpop.f32.mrf.mxu0
      %2466 = vdwg.mxu0
      %v2467 = vadd.f32 %v2203, %v2366
      %v2468 = vadd.f32 %v2204, %v2369
      %v2469 = vadd.f32 %v2205, %v2374
      %v2470 = vadd.f32 %v2206, %v2377
      %v2471 = vadd.f32 %v2207, %v2382
      %v2472 = vadd.f32 %v2208, %v2385
      %v2473 = vadd.f32 %v2209, %v2390
      %v2474 = vadd.f32 %v2210, %v2393
      %v2475 = vadd.f32 %v2211, %v2398
      %v2476 = vadd.f32 %v2212, %v2401
      %v2477 = vadd.f32 %v2213, %v2406
      %v2478 = vadd.f32 %v2214, %v2409
      %v2479 = vadd.f32 %v2215, %v2414
      %v2480 = vadd.f32 %v2216, %v2417
      %v2481 = vadd.f32 %v2217, %v2422
      %v2482 = vadd.f32 %v2218, %v2425
      %v2483 = vadd.f32 %v2219, %v2430
      %v2484 = vadd.f32 %v2220, %v2433
      %v2485 = vadd.f32 %v2221, %v2438
      %v2486 = vadd.f32 %v2222, %v2441
      %v2487 = vadd.f32 %v2223, %v2446
      %v2488 = vadd.f32 %v2224, %v2449
      %v2489 = vadd.f32 %v2225, %v2454
      %v2490 = vadd.f32 %v2226, %v2457
      %v2491 = vadd.f32 %v2227, %v2462
      %v2492 = vld [vmem:[#allocation2 + $0x4] sm:$0xff]
      %v2493 = vld [vmem:[#allocation2 + $0xc] sm:$0xff]
      %v2494 = vld [vmem:[#allocation2 + $0x14] sm:$0xff]
      %v2495 = vld [vmem:[#allocation2 + $0x1c] sm:$0xff]
      %v2496 = vld [vmem:[#allocation2 + $0x24] sm:$0xff]
      %v2497 = vld [vmem:[#allocation2 + $0x2c] sm:$0xff]
      %v2498 = vld [vmem:[#allocation2 + $0x34] sm:$0xff]
      %v2499 = vld [vmem:[#allocation2 + $0x3c] sm:$0xff]
      %v2500 = vld [vmem:[#allocation2 + $0x44] sm:$0xff]
      %v2501 = vld [vmem:[#allocation2 + $0x4c] sm:$0xff]
      %v2502 = vld [vmem:[#allocation2 + $0x54] sm:$0xff]
      %v2503 = vld [vmem:[#allocation2 + $0x5c] sm:$0xff]
      %v2504 = vld [vmem:[#allocation2 + $0x64] sm:$0xff]
      %v2505 = vld [vmem:[#allocation2 + $0x6c] sm:$0xff]
      %v2506 = vld [vmem:[#allocation2 + $0x74] sm:$0xff]
      %v2507 = vld [vmem:[#allocation2 + $0x7c] sm:$0xff]
      %v2508 = vld [vmem:[#allocation2 + $0x84] sm:$0xff]
      %v2509 = vld [vmem:[#allocation2 + $0x8c] sm:$0xff]
      %v2510 = vld [vmem:[#allocation2 + $0x94] sm:$0xff]
      %v2511 = vld [vmem:[#allocation2 + $0x9c] sm:$0xff]
      %v2512 = vld [vmem:[#allocation2 + $0xa4] sm:$0xff]
      %v2513 = vld [vmem:[#allocation2 + $0xac] sm:$0xff]
      %v2514 = vld [vmem:[#allocation2 + $0xb4] sm:$0xff]
      %v2515 = vld [vmem:[#allocation2 + $0xbc] sm:$0xff]
      %v2516 = vld [vmem:[#allocation2 + $0xc4] sm:$0xf]
      %v2517 = vpack.c.bf16 %v2493, %v2492
      %v2518 = vpack.c.bf16 %v2495, %v2494
      %v2519 = vpack.c.bf16 %v2497, %v2496
      %v2520 = vpack.c.bf16 %v2499, %v2498
      %v2521 = vpack.c.bf16 %v2501, %v2500
      %v2522 = vpack.c.bf16 %v2503, %v2502
      %v2523 = vpack.c.bf16 %v2505, %v2504
      %v2524 = vpack.c.bf16 %v2507, %v2506
      %v2525 = vpack.c.bf16 %v2509, %v2508
      %v2526 = vpack.c.bf16 %v2511, %v2510
      %v2527 = vpack.c.bf16 %v2513, %v2512
      %v2528 = vpack.c.bf16 %v2515, %v2514
      %v2529 = vpack.c.bf16 %v2516, %v2516
      %s2530 = scalar_lea.vmem %s3, 256
      %v2531 = vld [vmem:[%s2530] sm:$0xf]
      %v2532 = vld [vmem:[%s2530 + $0x4] sm:$0xf]
      %v2533 = vld [vmem:[%s2530 + $0x8] sm:$0xf]
      %v2534 = vld [vmem:[%s2530 + $0xc] sm:$0xf]
      %v2535 = vld [vmem:[%s2530 + $0x10] sm:$0xf]
      %v2536 = vld [vmem:[%s2530 + $0x14] sm:$0xf]
      %v2537 = vld [vmem:[%s2530 + $0x18] sm:$0xf]
      %v2538 = vld [vmem:[%s2530 + $0x1c] sm:$0xf]
      %v2539 = vld [vmem:[%s2530 + $0x20] sm:$0xf]
      %v2540 = vld [vmem:[%s2530 + $0x24] sm:$0xf]
      %v2541 = vld [vmem:[%s2530 + $0x28] sm:$0xf]
      %v2542 = vld [vmem:[%s2530 + $0x2c] sm:$0xf]
      %v2543 = vld [vmem:[%s2530 + $0x30] sm:$0xf]
      %v2544 = vld [vmem:[%s2530 + $0x34] sm:$0xf]
      %v2545 = vld [vmem:[%s2530 + $0x38] sm:$0xf]
      %v2546 = vld [vmem:[%s2530 + $0x3c] sm:$0xf]
      %v2563 = vunpack.c.l.b16 %v2531
      %v2564 = vunpack.c.l.b16 %v2532
      %v2565 = vunpack.c.l.b16 %v2533
      %v2566 = vunpack.c.l.b16 %v2534
      %v2567 = vunpack.c.l.b16 %v2535
      %v2568 = vunpack.c.l.b16 %v2536
      %v2569 = vunpack.c.l.b16 %v2537
      %v2570 = vunpack.c.l.b16 %v2538
      %v2571 = vunpack.c.l.b16 %v2539
      %v2572 = vunpack.c.l.b16 %v2540
      %v2573 = vunpack.c.l.b16 %v2541
      %v2574 = vunpack.c.l.b16 %v2542
      %v2575 = vunpack.c.l.b16 %v2543
      %v2576 = vunpack.c.l.b16 %v2544
      %v2577 = vunpack.c.l.b16 %v2545
      %v2578 = vunpack.c.l.b16 %v2546
      %v2579 = vpack.c.b16 %v2564, %v2563
      %v2580 = vpack.c.b16 %v2566, %v2565
      %v2581 = vpack.c.b16 %v2568, %v2567
      %v2582 = vpack.c.b16 %v2570, %v2569
      %v2583 = vpack.c.b16 %v2572, %v2571
      %v2584 = vpack.c.b16 %v2574, %v2573
      %v2585 = vpack.c.b16 %v2576, %v2575
      %v2586 = vpack.c.b16 %v2578, %v2577
      %2595 = vmatprep.subr.bf16.mxu0 0
      %2596 = vmatpush1.bf16.msra.mxu0 %v2586
      %2597 = vmatprep.subr.bf16.mxu0 0
      %2598 = vmatpush1.bf16.msra.mxu0 %v2585
      %2599 = vmatprep.subr.bf16.mxu0 0
      %2600 = vmatpush1.bf16.msra.mxu0 %v2584
      %2601 = vmatprep.subr.bf16.mxu0 0
      %2602 = vmatpush1.bf16.msra.mxu0 %v2583
      %2603 = vmatprep.subr.bf16.mxu0 0
      %2604 = vmatpush1.bf16.msra.mxu0 %v2582
      %2605 = vmatprep.subr.bf16.mxu0 0
      %2606 = vmatpush1.bf16.msra.mxu0 %v2581
      %2607 = vmatprep.subr.bf16.mxu0 0
      %2608 = vmatpush1.bf16.msra.mxu0 %v2580
      %2609 = vmatprep.subr.bf16.mxu0 0
      %2610 = vmatpush1.bf16.msra.mxu0 %v2579
      %2611 = vmatprep.subr.bf16.mxu0 0
      %2612 = vmatpush2.bf16.msra.mxu0 0
      %2613 = vmatprep.subr.bf16.mxu0 0
      %2614 = vmatpush2.bf16.msra.mxu0 0
      %2615 = vmatprep.subr.bf16.mxu0 0
      %2616 = vmatpush2.bf16.msra.mxu0 0
      %2617 = vmatprep.subr.bf16.mxu0 0
      %2618 = vmatpush2.bf16.msra.mxu0 0
      %2619 = vmatprep.subr.bf16.mxu0 0
      %2620 = vmatpush2.bf16.msra.mxu0 0
      %2621 = vmatprep.subr.bf16.mxu0 0
      %2622 = vmatpush2.bf16.msra.mxu0 0
      %2623 = vmatprep.subr.bf16.mxu0 0
      %2624 = vmatpush2.bf16.msra.mxu0 0
      %2625 = vmatprep.subr.bf16.mxu0 0
      %2626 = vmatpush2.bf16.msra.mxu0 0
      %2627 = vmatprep.mubr.bf16.mxu0 0
      %2628 = vmatmul.mubr.bf16.gmra.mxu0 %v2517
      %v2629 = vpop.f32.mrf.mxu0
      %v2630 = vadd.f32 0.0, %v2629
      %v2631 = vpop.f32.mrf.mxu0
      %v2632 = vpop.f32.mrf.mxu0
      %v2633 = vadd.f32 0.0, %v2632
      %v2634 = vpop.f32.mrf.mxu0
      %2635 = vmatprep.mubr.bf16.mxu0 0
      %2636 = vmatmul.mubr.bf16.gmra.mxu0 %v2518
      %v2637 = vpop.f32.mrf.mxu0
      %v2638 = vadd.f32 0.0, %v2637
      %v2639 = vpop.f32.mrf.mxu0
      %v2640 = vpop.f32.mrf.mxu0
      %v2641 = vadd.f32 0.0, %v2640
      %v2642 = vpop.f32.mrf.mxu0
      %2643 = vmatprep.mubr.bf16.mxu0 0
      %2644 = vmatmul.mubr.bf16.gmra.mxu0 %v2519
      %v2645 = vpop.f32.mrf.mxu0
      %v2646 = vadd.f32 0.0, %v2645
      %v2647 = vpop.f32.mrf.mxu0
      %v2648 = vpop.f32.mrf.mxu0
      %v2649 = vadd.f32 0.0, %v2648
      %v2650 = vpop.f32.mrf.mxu0
      %2651 = vmatprep.mubr.bf16.mxu0 0
      %2652 = vmatmul.mubr.bf16.gmra.mxu0 %v2520
      %v2653 = vpop.f32.mrf.mxu0
      %v2654 = vadd.f32 0.0, %v2653
      %v2655 = vpop.f32.mrf.mxu0
      %v2656 = vpop.f32.mrf.mxu0
      %v2657 = vadd.f32 0.0, %v2656
      %v2658 = vpop.f32.mrf.mxu0
      %2659 = vmatprep.mubr.bf16.mxu0 0
      %2660 = vmatmul.mubr.bf16.gmra.mxu0 %v2521
      %v2661 = vpop.f32.mrf.mxu0
      %v2662 = vadd.f32 0.0, %v2661
      %v2663 = vpop.f32.mrf.mxu0
      %v2664 = vpop.f32.mrf.mxu0
      %v2665 = vadd.f32 0.0, %v2664
      %v2666 = vpop.f32.mrf.mxu0
      %2667 = vmatprep.mubr.bf16.mxu0 0
      %2668 = vmatmul.mubr.bf16.gmra.mxu0 %v2522
      %v2669 = vpop.f32.mrf.mxu0
      %v2670 = vadd.f32 0.0, %v2669
      %v2671 = vpop.f32.mrf.mxu0
      %v2672 = vpop.f32.mrf.mxu0
      %v2673 = vadd.f32 0.0, %v2672
      %v2674 = vpop.f32.mrf.mxu0
      %2675 = vmatprep.mubr.bf16.mxu0 0
      %2676 = vmatmul.mubr.bf16.gmra.mxu0 %v2523
      %v2677 = vpop.f32.mrf.mxu0
      %v2678 = vadd.f32 0.0, %v2677
      %v2679 = vpop.f32.mrf.mxu0
      %v2680 = vpop.f32.mrf.mxu0
      %v2681 = vadd.f32 0.0, %v2680
      %v2682 = vpop.f32.mrf.mxu0
      %2683 = vmatprep.mubr.bf16.mxu0 0
      %2684 = vmatmul.mubr.bf16.gmra.mxu0 %v2524
      %v2685 = vpop.f32.mrf.mxu0
      %v2686 = vadd.f32 0.0, %v2685
      %v2687 = vpop.f32.mrf.mxu0
      %v2688 = vpop.f32.mrf.mxu0
      %v2689 = vadd.f32 0.0, %v2688
      %v2690 = vpop.f32.mrf.mxu0
      %2691 = vmatprep.mubr.bf16.mxu0 0
      %2692 = vmatmul.mubr.bf16.gmra.mxu0 %v2525
      %v2693 = vpop.f32.mrf.mxu0
      %v2694 = vadd.f32 0.0, %v2693
      %v2695 = vpop.f32.mrf.mxu0
      %v2696 = vpop.f32.mrf.mxu0
      %v2697 = vadd.f32 0.0, %v2696
      %v2698 = vpop.f32.mrf.mxu0
      %2699 = vmatprep.mubr.bf16.mxu0 0
      %2700 = vmatmul.mubr.bf16.gmra.mxu0 %v2526
      %v2701 = vpop.f32.mrf.mxu0
      %v2702 = vadd.f32 0.0, %v2701
      %v2703 = vpop.f32.mrf.mxu0
      %v2704 = vpop.f32.mrf.mxu0
      %v2705 = vadd.f32 0.0, %v2704
      %v2706 = vpop.f32.mrf.mxu0
      %2707 = vmatprep.mubr.bf16.mxu0 0
      %2708 = vmatmul.mubr.bf16.gmra.mxu0 %v2527
      %v2709 = vpop.f32.mrf.mxu0
      %v2710 = vadd.f32 0.0, %v2709
      %v2711 = vpop.f32.mrf.mxu0
      %v2712 = vpop.f32.mrf.mxu0
      %v2713 = vadd.f32 0.0, %v2712
      %v2714 = vpop.f32.mrf.mxu0
      %2715 = vmatprep.mubr.bf16.mxu0 0
      %2716 = vmatmul.mubr.bf16.gmra.mxu0 %v2528
      %v2717 = vpop.f32.mrf.mxu0
      %v2718 = vadd.f32 0.0, %v2717
      %v2719 = vpop.f32.mrf.mxu0
      %v2720 = vpop.f32.mrf.mxu0
      %v2721 = vadd.f32 0.0, %v2720
      %v2722 = vpop.f32.mrf.mxu0
      %2723 = vmatprep.mubr.bf16.mxu0 0
      %2724 = vmatmul.mubr.bf16.gmra.mxu0 %v2529
      %v2725 = vpop.f32.mrf.mxu0
      %v2726 = vadd.f32 0.0, %v2725
      %v2727 = vpop.f32.mrf.mxu0
      %v2728 = vpop.f32.mrf.mxu0
      %v2729 = vpop.f32.mrf.mxu0
      %2730 = vdwg.mxu0
      %v2731 = vadd.f32 %v2467, %v2630
      %v2732 = vadd.f32 %v2468, %v2633
      %v2733 = vadd.f32 %v2469, %v2638
      %v2734 = vadd.f32 %v2470, %v2641
      %v2735 = vadd.f32 %v2471, %v2646
      %v2736 = vadd.f32 %v2472, %v2649
      %v2737 = vadd.f32 %v2473, %v2654
      %v2738 = vadd.f32 %v2474, %v2657
      %v2739 = vadd.f32 %v2475, %v2662
      %v2740 = vadd.f32 %v2476, %v2665
      %v2741 = vadd.f32 %v2477, %v2670
      %v2742 = vadd.f32 %v2478, %v2673
      %v2743 = vadd.f32 %v2479, %v2678
      %v2744 = vadd.f32 %v2480, %v2681
      %v2745 = vadd.f32 %v2481, %v2686
      %v2746 = vadd.f32 %v2482, %v2689
      %v2747 = vadd.f32 %v2483, %v2694
      %v2748 = vadd.f32 %v2484, %v2697
      %v2749 = vadd.f32 %v2485, %v2702
      %v2750 = vadd.f32 %v2486, %v2705
      %v2751 = vadd.f32 %v2487, %v2710
      %v2752 = vadd.f32 %v2488, %v2713
      %v2753 = vadd.f32 %v2489, %v2718
      %v2754 = vadd.f32 %v2490, %v2721
      %v2755 = vadd.f32 %v2491, %v2726
      %v2756 = vld [vmem:[#allocation2 + $0xe] sm:$0xff]
      %v2757 = vld [vmem:[#allocation2 + $0x16] sm:$0xff]
      %v2758 = vld [vmem:[#allocation2 + $0x1e] sm:$0xff]
      %v2759 = vld [vmem:[#allocation2 + $0x26] sm:$0xff]
      %v2760 = vld [vmem:[#allocation2 + $0x2e] sm:$0xff]
      %v2761 = vld [vmem:[#allocation2 + $0x36] sm:$0xff]
      %v2762 = vld [vmem:[#allocation2 + $0x3e] sm:$0xff]
      %v2763 = vld [vmem:[#allocation2 + $0x46] sm:$0xff]
      %v2764 = vld [vmem:[#allocation2 + $0x4e] sm:$0xff]
      %v2765 = vld [vmem:[#allocation2 + $0x56] sm:$0xff]
      %v2766 = vld [vmem:[#allocation2 + $0x5e] sm:$0xff]
      %v2767 = vld [vmem:[#allocation2 + $0x66] sm:$0xff]
      %v2768 = vld [vmem:[#allocation2 + $0x6e] sm:$0xff]
      %v2769 = vld [vmem:[#allocation2 + $0x76] sm:$0xff]
      %v2770 = vld [vmem:[#allocation2 + $0x7e] sm:$0xff]
      %v2771 = vld [vmem:[#allocation2 + $0x86] sm:$0xff]
      %v2772 = vld [vmem:[#allocation2 + $0x8e] sm:$0xff]
      %v2773 = vld [vmem:[#allocation2 + $0x96] sm:$0xff]
      %v2774 = vld [vmem:[#allocation2 + $0x9e] sm:$0xff]
      %v2775 = vld [vmem:[#allocation2 + $0xa6] sm:$0xff]
      %v2776 = vld [vmem:[#allocation2 + $0xae] sm:$0xff]
      %v2777 = vld [vmem:[#allocation2 + $0xb6] sm:$0xff]
      %v2778 = vld [vmem:[#allocation2 + $0xbe] sm:$0xff]
      %v2779 = vld [vmem:[#allocation2 + $0xc6] sm:$0xff]
      %v2780 = vld [vmem:[#allocation2 + $0xce] sm:$0xf]
      %v2781 = vpack.c.bf16 %v2757, %v2756
      %v2782 = vpack.c.bf16 %v2759, %v2758
      %v2783 = vpack.c.bf16 %v2761, %v2760
      %v2784 = vpack.c.bf16 %v2763, %v2762
      %v2785 = vpack.c.bf16 %v2765, %v2764
      %v2786 = vpack.c.bf16 %v2767, %v2766
      %v2787 = vpack.c.bf16 %v2769, %v2768
      %v2788 = vpack.c.bf16 %v2771, %v2770
      %v2789 = vpack.c.bf16 %v2773, %v2772
      %v2790 = vpack.c.bf16 %v2775, %v2774
      %v2791 = vpack.c.bf16 %v2777, %v2776
      %v2792 = vpack.c.bf16 %v2779, %v2778
      %v2793 = vpack.c.bf16 %v2780, %v2780
      %s2794 = scalar_lea.vmem %s3, 320
      %v2795 = vld [vmem:[%s2794] sm:$0xf]
      %v2796 = vld [vmem:[%s2794 + $0x4] sm:$0xf]
      %v2797 = vld [vmem:[%s2794 + $0x8] sm:$0xf]
      %v2798 = vld [vmem:[%s2794 + $0xc] sm:$0xf]
      %v2799 = vld [vmem:[%s2794 + $0x10] sm:$0xf]
      %v2800 = vld [vmem:[%s2794 + $0x14] sm:$0xf]
      %v2801 = vld [vmem:[%s2794 + $0x18] sm:$0xf]
      %v2802 = vld [vmem:[%s2794 + $0x1c] sm:$0xf]
      %v2803 = vld [vmem:[%s2794 + $0x20] sm:$0xf]
      %v2804 = vld [vmem:[%s2794 + $0x24] sm:$0xf]
      %v2805 = vld [vmem:[%s2794 + $0x28] sm:$0xf]
      %v2806 = vld [vmem:[%s2794 + $0x2c] sm:$0xf]
      %v2807 = vld [vmem:[%s2794 + $0x30] sm:$0xf]
      %v2808 = vld [vmem:[%s2794 + $0x34] sm:$0xf]
      %v2809 = vld [vmem:[%s2794 + $0x38] sm:$0xf]
      %v2810 = vld [vmem:[%s2794 + $0x3c] sm:$0xf]
      %v2827 = vunpack.c.l.b16 %v2795
      %v2828 = vunpack.c.l.b16 %v2796
      %v2829 = vunpack.c.l.b16 %v2797
      %v2830 = vunpack.c.l.b16 %v2798
      %v2831 = vunpack.c.l.b16 %v2799
      %v2832 = vunpack.c.l.b16 %v2800
      %v2833 = vunpack.c.l.b16 %v2801
      %v2834 = vunpack.c.l.b16 %v2802
      %v2835 = vunpack.c.l.b16 %v2803
      %v2836 = vunpack.c.l.b16 %v2804
      %v2837 = vunpack.c.l.b16 %v2805
      %v2838 = vunpack.c.l.b16 %v2806
      %v2839 = vunpack.c.l.b16 %v2807
      %v2840 = vunpack.c.l.b16 %v2808
      %v2841 = vunpack.c.l.b16 %v2809
      %v2842 = vunpack.c.l.b16 %v2810
      %v2843 = vpack.c.b16 %v2828, %v2827
      %v2844 = vpack.c.b16 %v2830, %v2829
      %v2845 = vpack.c.b16 %v2832, %v2831
      %v2846 = vpack.c.b16 %v2834, %v2833
      %v2847 = vpack.c.b16 %v2836, %v2835
      %v2848 = vpack.c.b16 %v2838, %v2837
      %v2849 = vpack.c.b16 %v2840, %v2839
      %v2850 = vpack.c.b16 %v2842, %v2841
      %2859 = vmatprep.subr.bf16.mxu0 0
      %2860 = vmatpush1.bf16.msra.mxu0 %v2850
      %2861 = vmatprep.subr.bf16.mxu0 0
      %2862 = vmatpush1.bf16.msra.mxu0 %v2849
      %2863 = vmatprep.subr.bf16.mxu0 0
      %2864 = vmatpush1.bf16.msra.mxu0 %v2848
      %2865 = vmatprep.subr.bf16.mxu0 0
      %2866 = vmatpush1.bf16.msra.mxu0 %v2847
      %2867 = vmatprep.subr.bf16.mxu0 0
      %2868 = vmatpush1.bf16.msra.mxu0 %v2846
      %2869 = vmatprep.subr.bf16.mxu0 0
      %2870 = vmatpush1.bf16.msra.mxu0 %v2845
      %2871 = vmatprep.subr.bf16.mxu0 0
      %2872 = vmatpush1.bf16.msra.mxu0 %v2844
      %2873 = vmatprep.subr.bf16.mxu0 0
      %2874 = vmatpush1.bf16.msra.mxu0 %v2843
      %2875 = vmatprep.subr.bf16.mxu0 0
      %2876 = vmatpush2.bf16.msra.mxu0 0
      %2877 = vmatprep.subr.bf16.mxu0 0
      %2878 = vmatpush2.bf16.msra.mxu0 0
      %2879 = vmatprep.subr.bf16.mxu0 0
      %2880 = vmatpush2.bf16.msra.mxu0 0
      %2881 = vmatprep.subr.bf16.mxu0 0
      %2882 = vmatpush2.bf16.msra.mxu0 0
      %2883 = vmatprep.subr.bf16.mxu0 0
      %2884 = vmatpush2.bf16.msra.mxu0 0
      %2885 = vmatprep.subr.bf16.mxu0 0
      %2886 = vmatpush2.bf16.msra.mxu0 0
      %2887 = vmatprep.subr.bf16.mxu0 0
      %2888 = vmatpush2.bf16.msra.mxu0 0
      %2889 = vmatprep.subr.bf16.mxu0 0
      %2890 = vmatpush2.bf16.msra.mxu0 0
      %2891 = vmatprep.mubr.bf16.mxu0 0
      %2892 = vmatmul.mubr.bf16.gmra.mxu0 %v2781
      %v2893 = vpop.f32.mrf.mxu0
      %v2894 = vadd.f32 0.0, %v2893
      %v2895 = vpop.f32.mrf.mxu0
      %v2896 = vpop.f32.mrf.mxu0
      %v2897 = vadd.f32 0.0, %v2896
      %v2898 = vpop.f32.mrf.mxu0
      %2899 = vmatprep.mubr.bf16.mxu0 0
      %2900 = vmatmul.mubr.bf16.gmra.mxu0 %v2782
      %v2901 = vpop.f32.mrf.mxu0
      %v2902 = vadd.f32 0.0, %v2901
      %v2903 = vpop.f32.mrf.mxu0
      %v2904 = vpop.f32.mrf.mxu0
      %v2905 = vadd.f32 0.0, %v2904
      %v2906 = vpop.f32.mrf.mxu0
      %2907 = vmatprep.mubr.bf16.mxu0 0
      %2908 = vmatmul.mubr.bf16.gmra.mxu0 %v2783
      %v2909 = vpop.f32.mrf.mxu0
      %v2910 = vadd.f32 0.0, %v2909
      %v2911 = vpop.f32.mrf.mxu0
      %v2912 = vpop.f32.mrf.mxu0
      %v2913 = vadd.f32 0.0, %v2912
      %v2914 = vpop.f32.mrf.mxu0
      %2915 = vmatprep.mubr.bf16.mxu0 0
      %2916 = vmatmul.mubr.bf16.gmra.mxu0 %v2784
      %v2917 = vpop.f32.mrf.mxu0
      %v2918 = vadd.f32 0.0, %v2917
      %v2919 = vpop.f32.mrf.mxu0
      %v2920 = vpop.f32.mrf.mxu0
      %v2921 = vadd.f32 0.0, %v2920
      %v2922 = vpop.f32.mrf.mxu0
      %2923 = vmatprep.mubr.bf16.mxu0 0
      %2924 = vmatmul.mubr.bf16.gmra.mxu0 %v2785
      %v2925 = vpop.f32.mrf.mxu0
      %v2926 = vadd.f32 0.0, %v2925
      %v2927 = vpop.f32.mrf.mxu0
      %v2928 = vpop.f32.mrf.mxu0
      %v2929 = vadd.f32 0.0, %v2928
      %v2930 = vpop.f32.mrf.mxu0
      %2931 = vmatprep.mubr.bf16.mxu0 0
      %2932 = vmatmul.mubr.bf16.gmra.mxu0 %v2786
      %v2933 = vpop.f32.mrf.mxu0
      %v2934 = vadd.f32 0.0, %v2933
      %v2935 = vpop.f32.mrf.mxu0
      %v2936 = vpop.f32.mrf.mxu0
      %v2937 = vadd.f32 0.0, %v2936
      %v2938 = vpop.f32.mrf.mxu0
      %2939 = vmatprep.mubr.bf16.mxu0 0
      %2940 = vmatmul.mubr.bf16.gmra.mxu0 %v2787
      %v2941 = vpop.f32.mrf.mxu0
      %v2942 = vadd.f32 0.0, %v2941
      %v2943 = vpop.f32.mrf.mxu0
      %v2944 = vpop.f32.mrf.mxu0
      %v2945 = vadd.f32 0.0, %v2944
      %v2946 = vpop.f32.mrf.mxu0
      %2947 = vmatprep.mubr.bf16.mxu0 0
      %2948 = vmatmul.mubr.bf16.gmra.mxu0 %v2788
      %v2949 = vpop.f32.mrf.mxu0
      %v2950 = vadd.f32 0.0, %v2949
      %v2951 = vpop.f32.mrf.mxu0
      %v2952 = vpop.f32.mrf.mxu0
      %v2953 = vadd.f32 0.0, %v2952
      %v2954 = vpop.f32.mrf.mxu0
      %2955 = vmatprep.mubr.bf16.mxu0 0
      %2956 = vmatmul.mubr.bf16.gmra.mxu0 %v2789
      %v2957 = vpop.f32.mrf.mxu0
      %v2958 = vadd.f32 0.0, %v2957
      %v2959 = vpop.f32.mrf.mxu0
      %v2960 = vpop.f32.mrf.mxu0
      %v2961 = vadd.f32 0.0, %v2960
      %v2962 = vpop.f32.mrf.mxu0
      %2963 = vmatprep.mubr.bf16.mxu0 0
      %2964 = vmatmul.mubr.bf16.gmra.mxu0 %v2790
      %v2965 = vpop.f32.mrf.mxu0
      %v2966 = vadd.f32 0.0, %v2965
      %v2967 = vpop.f32.mrf.mxu0
      %v2968 = vpop.f32.mrf.mxu0
      %v2969 = vadd.f32 0.0, %v2968
      %v2970 = vpop.f32.mrf.mxu0
      %2971 = vmatprep.mubr.bf16.mxu0 0
      %2972 = vmatmul.mubr.bf16.gmra.mxu0 %v2791
      %v2973 = vpop.f32.mrf.mxu0
      %v2974 = vadd.f32 0.0, %v2973
      %v2975 = vpop.f32.mrf.mxu0
      %v2976 = vpop.f32.mrf.mxu0
      %v2977 = vadd.f32 0.0, %v2976
      %v2978 = vpop.f32.mrf.mxu0
      %2979 = vmatprep.mubr.bf16.mxu0 0
      %2980 = vmatmul.mubr.bf16.gmra.mxu0 %v2792
      %v2981 = vpop.f32.mrf.mxu0
      %v2982 = vadd.f32 0.0, %v2981
      %v2983 = vpop.f32.mrf.mxu0
      %v2984 = vpop.f32.mrf.mxu0
      %v2985 = vadd.f32 0.0, %v2984
      %v2986 = vpop.f32.mrf.mxu0
      %2987 = vmatprep.mubr.bf16.mxu0 0
      %2988 = vmatmul.mubr.bf16.gmra.mxu0 %v2793
      %v2989 = vpop.f32.mrf.mxu0
      %v2990 = vadd.f32 0.0, %v2989
      %v2991 = vpop.f32.mrf.mxu0
      %v2992 = vpop.f32.mrf.mxu0
      %v2993 = vpop.f32.mrf.mxu0
      %2994 = vdwg.mxu0
      %v2995 = vadd.f32 %v2731, %v2894
      %v2996 = vadd.f32 %v2732, %v2897
      %v2997 = vadd.f32 %v2733, %v2902
      %v2998 = vadd.f32 %v2734, %v2905
      %v2999 = vadd.f32 %v2735, %v2910
      %v3000 = vadd.f32 %v2736, %v2913
      %v3001 = vadd.f32 %v2737, %v2918
      %v3002 = vadd.f32 %v2738, %v2921
      %v3003 = vadd.f32 %v2739, %v2926
      %v3004 = vadd.f32 %v2740, %v2929
      %v3005 = vadd.f32 %v2741, %v2934
      %v3006 = vadd.f32 %v2742, %v2937
      %v3007 = vadd.f32 %v2743, %v2942
      %v3008 = vadd.f32 %v2744, %v2945
      %v3009 = vadd.f32 %v2745, %v2950
      %v3010 = vadd.f32 %v2746, %v2953
      %v3011 = vadd.f32 %v2747, %v2958
      %v3012 = vadd.f32 %v2748, %v2961
      %v3013 = vadd.f32 %v2749, %v2966
      %v3014 = vadd.f32 %v2750, %v2969
      %v3015 = vadd.f32 %v2751, %v2974
      %v3016 = vadd.f32 %v2752, %v2977
      %v3017 = vadd.f32 %v2753, %v2982
      %v3018 = vadd.f32 %v2754, %v2985
      %v3019 = vadd.f32 %v2755, %v2990
      %v3020 = vld [vmem:[#allocation2 + $0xf] sm:$0xff]
      %v3021 = vld [vmem:[#allocation2 + $0x17] sm:$0xff]
      %v3022 = vld [vmem:[#allocation2 + $0x1f] sm:$0xff]
      %v3023 = vld [vmem:[#allocation2 + $0x27] sm:$0xff]
      %v3024 = vld [vmem:[#allocation2 + $0x2f] sm:$0xff]
      %v3025 = vld [vmem:[#allocation2 + $0x37] sm:$0xff]
      %v3026 = vld [vmem:[#allocation2 + $0x3f] sm:$0xff]
      %v3027 = vld [vmem:[#allocation2 + $0x47] sm:$0xff]
      %v3028 = vld [vmem:[#allocation2 + $0x4f] sm:$0xff]
      %v3029 = vld [vmem:[#allocation2 + $0x57] sm:$0xff]
      %v3030 = vld [vmem:[#allocation2 + $0x5f] sm:$0xff]
      %v3031 = vld [vmem:[#allocation2 + $0x67] sm:$0xff]
      %v3032 = vld [vmem:[#allocation2 + $0x6f] sm:$0xff]
      %v3033 = vld [vmem:[#allocation2 + $0x77] sm:$0xff]
      %v3034 = vld [vmem:[#allocation2 + $0x7f] sm:$0xff]
      %v3035 = vld [vmem:[#allocation2 + $0x87] sm:$0xff]
      %v3036 = vld [vmem:[#allocation2 + $0x8f] sm:$0xff]
      %v3037 = vld [vmem:[#allocation2 + $0x97] sm:$0xff]
      %v3038 = vld [vmem:[#allocation2 + $0x9f] sm:$0xff]
      %v3039 = vld [vmem:[#allocation2 + $0xa7] sm:$0xff]
      %v3040 = vld [vmem:[#allocation2 + $0xaf] sm:$0xff]
      %v3041 = vld [vmem:[#allocation2 + $0xb7] sm:$0xff]
      %v3042 = vld [vmem:[#allocation2 + $0xbf] sm:$0xff]
      %v3043 = vld [vmem:[#allocation2 + $0xc7] sm:$0xff]
      %v3044 = vld [vmem:[#allocation2 + $0xcf] sm:$0xf]
      %v3045 = vpack.c.bf16 %v3021, %v3020
      %v3046 = vpack.c.bf16 %v3023, %v3022
      %v3047 = vpack.c.bf16 %v3025, %v3024
      %v3048 = vpack.c.bf16 %v3027, %v3026
      %v3049 = vpack.c.bf16 %v3029, %v3028
      %v3050 = vpack.c.bf16 %v3031, %v3030
      %v3051 = vpack.c.bf16 %v3033, %v3032
      %v3052 = vpack.c.bf16 %v3035, %v3034
      %v3053 = vpack.c.bf16 %v3037, %v3036
      %v3054 = vpack.c.bf16 %v3039, %v3038
      %v3055 = vpack.c.bf16 %v3041, %v3040
      %v3056 = vpack.c.bf16 %v3043, %v3042
      %v3057 = vpack.c.bf16 %v3044, %v3044
      %s3058 = scalar_lea.vmem %s3, 384
      %v3059 = vld [vmem:[%s3058] sm:$0xf]
      %v3060 = vld [vmem:[%s3058 + $0x4] sm:$0xf]
      %v3061 = vld [vmem:[%s3058 + $0x8] sm:$0xf]
      %v3062 = vld [vmem:[%s3058 + $0xc] sm:$0xf]
      %v3063 = vld [vmem:[%s3058 + $0x10] sm:$0xf]
      %v3064 = vld [vmem:[%s3058 + $0x14] sm:$0xf]
      %v3065 = vld [vmem:[%s3058 + $0x18] sm:$0xf]
      %v3066 = vld [vmem:[%s3058 + $0x1c] sm:$0xf]
      %v3067 = vld [vmem:[%s3058 + $0x20] sm:$0xf]
      %v3068 = vld [vmem:[%s3058 + $0x24] sm:$0xf]
      %v3069 = vld [vmem:[%s3058 + $0x28] sm:$0xf]
      %v3070 = vld [vmem:[%s3058 + $0x2c] sm:$0xf]
      %v3071 = vld [vmem:[%s3058 + $0x30] sm:$0xf]
      %v3072 = vld [vmem:[%s3058 + $0x34] sm:$0xf]
      %v3073 = vld [vmem:[%s3058 + $0x38] sm:$0xf]
      %v3074 = vld [vmem:[%s3058 + $0x3c] sm:$0xf]
      %v3091 = vunpack.c.l.b16 %v3059
      %v3092 = vunpack.c.l.b16 %v3060
      %v3093 = vunpack.c.l.b16 %v3061
      %v3094 = vunpack.c.l.b16 %v3062
      %v3095 = vunpack.c.l.b16 %v3063
      %v3096 = vunpack.c.l.b16 %v3064
      %v3097 = vunpack.c.l.b16 %v3065
      %v3098 = vunpack.c.l.b16 %v3066
      %v3099 = vunpack.c.l.b16 %v3067
      %v3100 = vunpack.c.l.b16 %v3068
      %v3101 = vunpack.c.l.b16 %v3069
      %v3102 = vunpack.c.l.b16 %v3070
      %v3103 = vunpack.c.l.b16 %v3071
      %v3104 = vunpack.c.l.b16 %v3072
      %v3105 = vunpack.c.l.b16 %v3073
      %v3106 = vunpack.c.l.b16 %v3074
      %v3107 = vpack.c.b16 %v3092, %v3091
      %v3108 = vpack.c.b16 %v3094, %v3093
      %v3109 = vpack.c.b16 %v3096, %v3095
      %v3110 = vpack.c.b16 %v3098, %v3097
      %v3111 = vpack.c.b16 %v3100, %v3099
      %v3112 = vpack.c.b16 %v3102, %v3101
      %v3113 = vpack.c.b16 %v3104, %v3103
      %v3114 = vpack.c.b16 %v3106, %v3105
      %3123 = vmatprep.subr.bf16.mxu0 0
      %3124 = vmatpush1.bf16.msra.mxu0 %v3114
      %3125 = vmatprep.subr.bf16.mxu0 0
      %3126 = vmatpush1.bf16.msra.mxu0 %v3113
      %3127 = vmatprep.subr.bf16.mxu0 0
      %3128 = vmatpush1.bf16.msra.mxu0 %v3112
      %3129 = vmatprep.subr.bf16.mxu0 0
      %3130 = vmatpush1.bf16.msra.mxu0 %v3111
      %3131 = vmatprep.subr.bf16.mxu0 0
      %3132 = vmatpush1.bf16.msra.mxu0 %v3110
      %3133 = vmatprep.subr.bf16.mxu0 0
      %3134 = vmatpush1.bf16.msra.mxu0 %v3109
      %3135 = vmatprep.subr.bf16.mxu0 0
      %3136 = vmatpush1.bf16.msra.mxu0 %v3108
      %3137 = vmatprep.subr.bf16.mxu0 0
      %3138 = vmatpush1.bf16.msra.mxu0 %v3107
      %3139 = vmatprep.subr.bf16.mxu0 0
      %3140 = vmatpush2.bf16.msra.mxu0 0
      %3141 = vmatprep.subr.bf16.mxu0 0
      %3142 = vmatpush2.bf16.msra.mxu0 0
      %3143 = vmatprep.subr.bf16.mxu0 0
      %3144 = vmatpush2.bf16.msra.mxu0 0
      %3145 = vmatprep.subr.bf16.mxu0 0
      %3146 = vmatpush2.bf16.msra.mxu0 0
      %3147 = vmatprep.subr.bf16.mxu0 0
      %3148 = vmatpush2.bf16.msra.mxu0 0
      %3149 = vmatprep.subr.bf16.mxu0 0
      %3150 = vmatpush2.bf16.msra.mxu0 0
      %3151 = vmatprep.subr.bf16.mxu0 0
      %3152 = vmatpush2.bf16.msra.mxu0 0
      %3153 = vmatprep.subr.bf16.mxu0 0
      %3154 = vmatpush2.bf16.msra.mxu0 0
      %3155 = vmatprep.mubr.bf16.mxu0 0
      %3156 = vmatmul.mubr.bf16.gmra.mxu0 %v3045
      %v3157 = vpop.f32.mrf.mxu0
      %v3158 = vadd.f32 0.0, %v3157
      %v3159 = vpop.f32.mrf.mxu0
      %v3160 = vpop.f32.mrf.mxu0
      %v3161 = vadd.f32 0.0, %v3160
      %v3162 = vpop.f32.mrf.mxu0
      %3163 = vmatprep.mubr.bf16.mxu0 0
      %3164 = vmatmul.mubr.bf16.gmra.mxu0 %v3046
      %v3165 = vpop.f32.mrf.mxu0
      %v3166 = vadd.f32 0.0, %v3165
      %v3167 = vpop.f32.mrf.mxu0
      %v3168 = vpop.f32.mrf.mxu0
      %v3169 = vadd.f32 0.0, %v3168
      %v3170 = vpop.f32.mrf.mxu0
      %3171 = vmatprep.mubr.bf16.mxu0 0
      %3172 = vmatmul.mubr.bf16.gmra.mxu0 %v3047
      %v3173 = vpop.f32.mrf.mxu0
      %v3174 = vadd.f32 0.0, %v3173
      %v3175 = vpop.f32.mrf.mxu0
      %v3176 = vpop.f32.mrf.mxu0
      %v3177 = vadd.f32 0.0, %v3176
      %v3178 = vpop.f32.mrf.mxu0
      %3179 = vmatprep.mubr.bf16.mxu0 0
      %3180 = vmatmul.mubr.bf16.gmra.mxu0 %v3048
      %v3181 = vpop.f32.mrf.mxu0
      %v3182 = vadd.f32 0.0, %v3181
      %v3183 = vpop.f32.mrf.mxu0
      %v3184 = vpop.f32.mrf.mxu0
      %v3185 = vadd.f32 0.0, %v3184
      %v3186 = vpop.f32.mrf.mxu0
      %3187 = vmatprep.mubr.bf16.mxu0 0
      %3188 = vmatmul.mubr.bf16.gmra.mxu0 %v3049
      %v3189 = vpop.f32.mrf.mxu0
      %v3190 = vadd.f32 0.0, %v3189
      %v3191 = vpop.f32.mrf.mxu0
      %v3192 = vpop.f32.mrf.mxu0
      %v3193 = vadd.f32 0.0, %v3192
      %v3194 = vpop.f32.mrf.mxu0
      %3195 = vmatprep.mubr.bf16.mxu0 0
      %3196 = vmatmul.mubr.bf16.gmra.mxu0 %v3050
      %v3197 = vpop.f32.mrf.mxu0
      %v3198 = vadd.f32 0.0, %v3197
      %v3199 = vpop.f32.mrf.mxu0
      %v3200 = vpop.f32.mrf.mxu0
      %v3201 = vadd.f32 0.0, %v3200
      %v3202 = vpop.f32.mrf.mxu0
      %3203 = vmatprep.mubr.bf16.mxu0 0
      %3204 = vmatmul.mubr.bf16.gmra.mxu0 %v3051
      %v3205 = vpop.f32.mrf.mxu0
      %v3206 = vadd.f32 0.0, %v3205
      %v3207 = vpop.f32.mrf.mxu0
      %v3208 = vpop.f32.mrf.mxu0
      %v3209 = vadd.f32 0.0, %v3208
      %v3210 = vpop.f32.mrf.mxu0
      %3211 = vmatprep.mubr.bf16.mxu0 0
      %3212 = vmatmul.mubr.bf16.gmra.mxu0 %v3052
      %v3213 = vpop.f32.mrf.mxu0
      %v3214 = vadd.f32 0.0, %v3213
      %v3215 = vpop.f32.mrf.mxu0
      %v3216 = vpop.f32.mrf.mxu0
      %v3217 = vadd.f32 0.0, %v3216
      %v3218 = vpop.f32.mrf.mxu0
      %3219 = vmatprep.mubr.bf16.mxu0 0
      %3220 = vmatmul.mubr.bf16.gmra.mxu0 %v3053
      %v3221 = vpop.f32.mrf.mxu0
      %v3222 = vadd.f32 0.0, %v3221
      %v3223 = vpop.f32.mrf.mxu0
      %v3224 = vpop.f32.mrf.mxu0
      %v3225 = vadd.f32 0.0, %v3224
      %v3226 = vpop.f32.mrf.mxu0
      %3227 = vmatprep.mubr.bf16.mxu0 0
      %3228 = vmatmul.mubr.bf16.gmra.mxu0 %v3054
      %v3229 = vpop.f32.mrf.mxu0
      %v3230 = vadd.f32 0.0, %v3229
      %v3231 = vpop.f32.mrf.mxu0
      %v3232 = vpop.f32.mrf.mxu0
      %v3233 = vadd.f32 0.0, %v3232
      %v3234 = vpop.f32.mrf.mxu0
      %3235 = vmatprep.mubr.bf16.mxu0 0
      %3236 = vmatmul.mubr.bf16.gmra.mxu0 %v3055
      %v3237 = vpop.f32.mrf.mxu0
      %v3238 = vadd.f32 0.0, %v3237
      %v3239 = vpop.f32.mrf.mxu0
      %v3240 = vpop.f32.mrf.mxu0
      %v3241 = vadd.f32 0.0, %v3240
      %v3242 = vpop.f32.mrf.mxu0
      %3243 = vmatprep.mubr.bf16.mxu0 0
      %3244 = vmatmul.mubr.bf16.gmra.mxu0 %v3056
      %v3245 = vpop.f32.mrf.mxu0
      %v3246 = vadd.f32 0.0, %v3245
      %v3247 = vpop.f32.mrf.mxu0
      %v3248 = vpop.f32.mrf.mxu0
      %v3249 = vadd.f32 0.0, %v3248
      %v3250 = vpop.f32.mrf.mxu0
      %3251 = vmatprep.mubr.bf16.mxu0 0
      %3252 = vmatmul.mubr.bf16.gmra.mxu0 %v3057
      %v3253 = vpop.f32.mrf.mxu0
      %v3254 = vadd.f32 0.0, %v3253
      %v3255 = vpop.f32.mrf.mxu0
      %v3256 = vpop.f32.mrf.mxu0
      %v3257 = vpop.f32.mrf.mxu0
      %3258 = vdwg.mxu0
      %v3259 = vadd.f32 %v2995, %v3158
      %v3260 = vadd.f32 %v2996, %v3161
      %v3261 = vadd.f32 %v2997, %v3166
      %v3262 = vadd.f32 %v2998, %v3169
      %v3263 = vadd.f32 %v2999, %v3174
      %v3264 = vadd.f32 %v3000, %v3177
      %v3265 = vadd.f32 %v3001, %v3182
      %v3266 = vadd.f32 %v3002, %v3185
      %v3267 = vadd.f32 %v3003, %v3190
      %v3268 = vadd.f32 %v3004, %v3193
      %v3269 = vadd.f32 %v3005, %v3198
      %v3270 = vadd.f32 %v3006, %v3201
      %v3271 = vadd.f32 %v3007, %v3206
      %v3272 = vadd.f32 %v3008, %v3209
      %v3273 = vadd.f32 %v3009, %v3214
      %v3274 = vadd.f32 %v3010, %v3217
      %v3275 = vadd.f32 %v3011, %v3222
      %v3276 = vadd.f32 %v3012, %v3225
      %v3277 = vadd.f32 %v3013, %v3230
      %v3278 = vadd.f32 %v3014, %v3233
      %v3279 = vadd.f32 %v3015, %v3238
      %v3280 = vadd.f32 %v3016, %v3241
      %v3281 = vadd.f32 %v3017, %v3246
      %v3282 = vadd.f32 %v3018, %v3249
      %v3283 = vadd.f32 %v3019, %v3254
      %v3284 = vld [vmem:[#allocation2 + $0x10] sm:$0xff]
      %v3285 = vld [vmem:[#allocation2 + $0x18] sm:$0xff]
      %v3286 = vld [vmem:[#allocation2 + $0x20] sm:$0xff]
      %v3287 = vld [vmem:[#allocation2 + $0x28] sm:$0xff]
      %v3288 = vld [vmem:[#allocation2 + $0x30] sm:$0xff]
      %v3289 = vld [vmem:[#allocation2 + $0x38] sm:$0xff]
      %v3290 = vld [vmem:[#allocation2 + $0x40] sm:$0xff]
      %v3291 = vld [vmem:[#allocation2 + $0x48] sm:$0xff]
      %v3292 = vld [vmem:[#allocation2 + $0x50] sm:$0xff]
      %v3293 = vld [vmem:[#allocation2 + $0x58] sm:$0xff]
      %v3294 = vld [vmem:[#allocation2 + $0x60] sm:$0xff]
      %v3295 = vld [vmem:[#allocation2 + $0x68] sm:$0xff]
      %v3296 = vld [vmem:[#allocation2 + $0x70] sm:$0xff]
      %v3297 = vld [vmem:[#allocation2 + $0x78] sm:$0xff]
      %v3298 = vld [vmem:[#allocation2 + $0x80] sm:$0xff]
      %v3299 = vld [vmem:[#allocation2 + $0x88] sm:$0xff]
      %v3300 = vld [vmem:[#allocation2 + $0x90] sm:$0xff]
      %v3301 = vld [vmem:[#allocation2 + $0x98] sm:$0xff]
      %v3302 = vld [vmem:[#allocation2 + $0xa0] sm:$0xff]
      %v3303 = vld [vmem:[#allocation2 + $0xa8] sm:$0xff]
      %v3304 = vld [vmem:[#allocation2 + $0xb0] sm:$0xff]
      %v3305 = vld [vmem:[#allocation2 + $0xb8] sm:$0xff]
      %v3306 = vld [vmem:[#allocation2 + $0xc0] sm:$0xff]
      %v3307 = vld [vmem:[#allocation2 + $0xc8] sm:$0xff]
      %v3308 = vld [vmem:[#allocation2 + $0xd0] sm:$0xf]
      %v3309 = vpack.c.bf16 %v3285, %v3284
      %v3310 = vpack.c.bf16 %v3287, %v3286
      %v3311 = vpack.c.bf16 %v3289, %v3288
      %v3312 = vpack.c.bf16 %v3291, %v3290
      %v3313 = vpack.c.bf16 %v3293, %v3292
      %v3314 = vpack.c.bf16 %v3295, %v3294
      %v3315 = vpack.c.bf16 %v3297, %v3296
      %v3316 = vpack.c.bf16 %v3299, %v3298
      %v3317 = vpack.c.bf16 %v3301, %v3300
      %v3318 = vpack.c.bf16 %v3303, %v3302
      %v3319 = vpack.c.bf16 %v3305, %v3304
      %v3320 = vpack.c.bf16 %v3307, %v3306
      %v3321 = vpack.c.bf16 %v3308, %v3308
      %s3322 = scalar_lea.vmem %s3, 448
      %v3323 = vld [vmem:[%s3322] sm:$0xf]
      %v3324 = vld [vmem:[%s3322 + $0x4] sm:$0xf]
      %v3325 = vld [vmem:[%s3322 + $0x8] sm:$0xf]
      %v3326 = vld [vmem:[%s3322 + $0xc] sm:$0xf]
      %v3327 = vld [vmem:[%s3322 + $0x10] sm:$0xf]
      %v3328 = vld [vmem:[%s3322 + $0x14] sm:$0xf]
      %v3329 = vld [vmem:[%s3322 + $0x18] sm:$0xf]
      %v3330 = vld [vmem:[%s3322 + $0x1c] sm:$0xf]
      %v3331 = vld [vmem:[%s3322 + $0x20] sm:$0xf]
      %v3332 = vld [vmem:[%s3322 + $0x24] sm:$0xf]
      %v3333 = vld [vmem:[%s3322 + $0x28] sm:$0xf]
      %v3334 = vld [vmem:[%s3322 + $0x2c] sm:$0xf]
      %v3335 = vld [vmem:[%s3322 + $0x30] sm:$0xf]
      %v3336 = vld [vmem:[%s3322 + $0x34] sm:$0xf]
      %v3337 = vld [vmem:[%s3322 + $0x38] sm:$0xf]
      %v3338 = vld [vmem:[%s3322 + $0x3c] sm:$0xf]
      %v3355 = vunpack.c.l.b16 %v3323
      %v3356 = vunpack.c.l.b16 %v3324
      %v3357 = vunpack.c.l.b16 %v3325
      %v3358 = vunpack.c.l.b16 %v3326
      %v3359 = vunpack.c.l.b16 %v3327
      %v3360 = vunpack.c.l.b16 %v3328
      %v3361 = vunpack.c.l.b16 %v3329
      %v3362 = vunpack.c.l.b16 %v3330
      %v3363 = vunpack.c.l.b16 %v3331
      %v3364 = vunpack.c.l.b16 %v3332
      %v3365 = vunpack.c.l.b16 %v3333
      %v3366 = vunpack.c.l.b16 %v3334
      %v3367 = vunpack.c.l.b16 %v3335
      %v3368 = vunpack.c.l.b16 %v3336
      %v3369 = vunpack.c.l.b16 %v3337
      %v3370 = vunpack.c.l.b16 %v3338
      %v3371 = vpack.c.b16 %v3356, %v3355
      %v3372 = vpack.c.b16 %v3358, %v3357
      %v3373 = vpack.c.b16 %v3360, %v3359
      %v3374 = vpack.c.b16 %v3362, %v3361
      %v3375 = vpack.c.b16 %v3364, %v3363
      %v3376 = vpack.c.b16 %v3366, %v3365
      %v3377 = vpack.c.b16 %v3368, %v3367
      %v3378 = vpack.c.b16 %v3370, %v3369
      %3387 = vmatprep.subr.bf16.mxu0 0
      %3388 = vmatpush1.bf16.msra.mxu0 %v3378
      %3389 = vmatprep.subr.bf16.mxu0 0
      %3390 = vmatpush1.bf16.msra.mxu0 %v3377
      %3391 = vmatprep.subr.bf16.mxu0 0
      %3392 = vmatpush1.bf16.msra.mxu0 %v3376
      %3393 = vmatprep.subr.bf16.mxu0 0
      %3394 = vmatpush1.bf16.msra.mxu0 %v3375
      %3395 = vmatprep.subr.bf16.mxu0 0
      %3396 = vmatpush1.bf16.msra.mxu0 %v3374
      %3397 = vmatprep.subr.bf16.mxu0 0
      %3398 = vmatpush1.bf16.msra.mxu0 %v3373
      %3399 = vmatprep.subr.bf16.mxu0 0
      %3400 = vmatpush1.bf16.msra.mxu0 %v3372
      %3401 = vmatprep.subr.bf16.mxu0 0
      %3402 = vmatpush1.bf16.msra.mxu0 %v3371
      %3403 = vmatprep.subr.bf16.mxu0 0
      %3404 = vmatpush2.bf16.msra.mxu0 0
      %3405 = vmatprep.subr.bf16.mxu0 0
      %3406 = vmatpush2.bf16.msra.mxu0 0
      %3407 = vmatprep.subr.bf16.mxu0 0
      %3408 = vmatpush2.bf16.msra.mxu0 0
      %3409 = vmatprep.subr.bf16.mxu0 0
      %3410 = vmatpush2.bf16.msra.mxu0 0
      %3411 = vmatprep.subr.bf16.mxu0 0
      %3412 = vmatpush2.bf16.msra.mxu0 0
      %3413 = vmatprep.subr.bf16.mxu0 0
      %3414 = vmatpush2.bf16.msra.mxu0 0
      %3415 = vmatprep.subr.bf16.mxu0 0
      %3416 = vmatpush2.bf16.msra.mxu0 0
      %3417 = vmatprep.subr.bf16.mxu0 0
      %3418 = vmatpush2.bf16.msra.mxu0 0
      %3419 = vmatprep.mubr.bf16.mxu0 0
      %3420 = vmatmul.mubr.bf16.gmra.mxu0 %v3309
      %v3421 = vpop.f32.mrf.mxu0
      %v3422 = vadd.f32 0.0, %v3421
      %v3423 = vpop.f32.mrf.mxu0
      %v3424 = vpop.f32.mrf.mxu0
      %v3425 = vadd.f32 0.0, %v3424
      %v3426 = vpop.f32.mrf.mxu0
      %3427 = vmatprep.mubr.bf16.mxu0 0
      %3428 = vmatmul.mubr.bf16.gmra.mxu0 %v3310
      %v3429 = vpop.f32.mrf.mxu0
      %v3430 = vadd.f32 0.0, %v3429
      %v3431 = vpop.f32.mrf.mxu0
      %v3432 = vpop.f32.mrf.mxu0
      %v3433 = vadd.f32 0.0, %v3432
      %v3434 = vpop.f32.mrf.mxu0
      %3435 = vmatprep.mubr.bf16.mxu0 0
      %3436 = vmatmul.mubr.bf16.gmra.mxu0 %v3311
      %v3437 = vpop.f32.mrf.mxu0
      %v3438 = vadd.f32 0.0, %v3437
      %v3439 = vpop.f32.mrf.mxu0
      %v3440 = vpop.f32.mrf.mxu0
      %v3441 = vadd.f32 0.0, %v3440
      %v3442 = vpop.f32.mrf.mxu0
      %3443 = vmatprep.mubr.bf16.mxu0 0
      %3444 = vmatmul.mubr.bf16.gmra.mxu0 %v3312
      %v3445 = vpop.f32.mrf.mxu0
      %v3446 = vadd.f32 0.0, %v3445
      %v3447 = vpop.f32.mrf.mxu0
      %v3448 = vpop.f32.mrf.mxu0
      %v3449 = vadd.f32 0.0, %v3448
      %v3450 = vpop.f32.mrf.mxu0
      %3451 = vmatprep.mubr.bf16.mxu0 0
      %3452 = vmatmul.mubr.bf16.gmra.mxu0 %v3313
      %v3453 = vpop.f32.mrf.mxu0
      %v3454 = vadd.f32 0.0, %v3453
      %v3455 = vpop.f32.mrf.mxu0
      %v3456 = vpop.f32.mrf.mxu0
      %v3457 = vadd.f32 0.0, %v3456
      %v3458 = vpop.f32.mrf.mxu0
      %3459 = vmatprep.mubr.bf16.mxu0 0
      %3460 = vmatmul.mubr.bf16.gmra.mxu0 %v3314
      %v3461 = vpop.f32.mrf.mxu0
      %v3462 = vadd.f32 0.0, %v3461
      %v3463 = vpop.f32.mrf.mxu0
      %v3464 = vpop.f32.mrf.mxu0
      %v3465 = vadd.f32 0.0, %v3464
      %v3466 = vpop.f32.mrf.mxu0
      %3467 = vmatprep.mubr.bf16.mxu0 0
      %3468 = vmatmul.mubr.bf16.gmra.mxu0 %v3315
      %v3469 = vpop.f32.mrf.mxu0
      %v3470 = vadd.f32 0.0, %v3469
      %v3471 = vpop.f32.mrf.mxu0
      %v3472 = vpop.f32.mrf.mxu0
      %v3473 = vadd.f32 0.0, %v3472
      %v3474 = vpop.f32.mrf.mxu0
      %3475 = vmatprep.mubr.bf16.mxu0 0
      %3476 = vmatmul.mubr.bf16.gmra.mxu0 %v3316
      %v3477 = vpop.f32.mrf.mxu0
      %v3478 = vadd.f32 0.0, %v3477
      %v3479 = vpop.f32.mrf.mxu0
      %v3480 = vpop.f32.mrf.mxu0
      %v3481 = vadd.f32 0.0, %v3480
      %v3482 = vpop.f32.mrf.mxu0
      %3483 = vmatprep.mubr.bf16.mxu0 0
      %3484 = vmatmul.mubr.bf16.gmra.mxu0 %v3317
      %v3485 = vpop.f32.mrf.mxu0
      %v3486 = vadd.f32 0.0, %v3485
      %v3487 = vpop.f32.mrf.mxu0
      %v3488 = vpop.f32.mrf.mxu0
      %v3489 = vadd.f32 0.0, %v3488
      %v3490 = vpop.f32.mrf.mxu0
      %3491 = vmatprep.mubr.bf16.mxu0 0
      %3492 = vmatmul.mubr.bf16.gmra.mxu0 %v3318
      %v3493 = vpop.f32.mrf.mxu0
      %v3494 = vadd.f32 0.0, %v3493
      %v3495 = vpop.f32.mrf.mxu0
      %v3496 = vpop.f32.mrf.mxu0
      %v3497 = vadd.f32 0.0, %v3496
      %v3498 = vpop.f32.mrf.mxu0
      %3499 = vmatprep.mubr.bf16.mxu0 0
      %3500 = vmatmul.mubr.bf16.gmra.mxu0 %v3319
      %v3501 = vpop.f32.mrf.mxu0
      %v3502 = vadd.f32 0.0, %v3501
      %v3503 = vpop.f32.mrf.mxu0
      %v3504 = vpop.f32.mrf.mxu0
      %v3505 = vadd.f32 0.0, %v3504
      %v3506 = vpop.f32.mrf.mxu0
      %3507 = vmatprep.mubr.bf16.mxu0 0
      %3508 = vmatmul.mubr.bf16.gmra.mxu0 %v3320
      %v3509 = vpop.f32.mrf.mxu0
      %v3510 = vadd.f32 0.0, %v3509
      %v3511 = vpop.f32.mrf.mxu0
      %v3512 = vpop.f32.mrf.mxu0
      %v3513 = vadd.f32 0.0, %v3512
      %v3514 = vpop.f32.mrf.mxu0
      %3515 = vmatprep.mubr.bf16.mxu0 0
      %3516 = vmatmul.mubr.bf16.gmra.mxu0 %v3321
      %v3517 = vpop.f32.mrf.mxu0
      %v3518 = vadd.f32 0.0, %v3517
      %v3519 = vpop.f32.mrf.mxu0
      %v3520 = vpop.f32.mrf.mxu0
      %v3521 = vpop.f32.mrf.mxu0
      %3522 = vdwg.mxu0
      %v3523 = vadd.f32 %v3259, %v3422
      %v3524 = vadd.f32 %v3260, %v3425
      %v3525 = vadd.f32 %v3261, %v3430
      %v3526 = vadd.f32 %v3262, %v3433
      %v3527 = vadd.f32 %v3263, %v3438
      %v3528 = vadd.f32 %v3264, %v3441
      %v3529 = vadd.f32 %v3265, %v3446
      %v3530 = vadd.f32 %v3266, %v3449
      %v3531 = vadd.f32 %v3267, %v3454
      %v3532 = vadd.f32 %v3268, %v3457
      %v3533 = vadd.f32 %v3269, %v3462
      %v3534 = vadd.f32 %v3270, %v3465
      %v3535 = vadd.f32 %v3271, %v3470
      %v3536 = vadd.f32 %v3272, %v3473
      %v3537 = vadd.f32 %v3273, %v3478
      %v3538 = vadd.f32 %v3274, %v3481
      %v3539 = vadd.f32 %v3275, %v3486
      %v3540 = vadd.f32 %v3276, %v3489
      %v3541 = vadd.f32 %v3277, %v3494
      %v3542 = vadd.f32 %v3278, %v3497
      %v3543 = vadd.f32 %v3279, %v3502
      %v3544 = vadd.f32 %v3280, %v3505
      %v3545 = vadd.f32 %v3281, %v3510
      %v3546 = vadd.f32 %v3282, %v3513
      %v3547 = vadd.f32 %v3283, %v3518
      %v3548 = vld [vmem:[#allocation2 + $0x11] sm:$0xff]
      %v3549 = vld [vmem:[#allocation2 + $0x19] sm:$0xff]
      %v3550 = vld [vmem:[#allocation2 + $0x21] sm:$0xff]
      %v3551 = vld [vmem:[#allocation2 + $0x29] sm:$0xff]
      %v3552 = vld [vmem:[#allocation2 + $0x31] sm:$0xff]
      %v3553 = vld [vmem:[#allocation2 + $0x39] sm:$0xff]
      %v3554 = vld [vmem:[#allocation2 + $0x41] sm:$0xff]
      %v3555 = vld [vmem:[#allocation2 + $0x49] sm:$0xff]
      %v3556 = vld [vmem:[#allocation2 + $0x51] sm:$0xff]
      %v3557 = vld [vmem:[#allocation2 + $0x59] sm:$0xff]
      %v3558 = vld [vmem:[#allocation2 + $0x61] sm:$0xff]
      %v3559 = vld [vmem:[#allocation2 + $0x69] sm:$0xff]
      %v3560 = vld [vmem:[#allocation2 + $0x71] sm:$0xff]
      %v3561 = vld [vmem:[#allocation2 + $0x79] sm:$0xff]
      %v3562 = vld [vmem:[#allocation2 + $0x81] sm:$0xff]
      %v3563 = vld [vmem:[#allocation2 + $0x89] sm:$0xff]
      %v3564 = vld [vmem:[#allocation2 + $0x91] sm:$0xff]
      %v3565 = vld [vmem:[#allocation2 + $0x99] sm:$0xff]
      %v3566 = vld [vmem:[#allocation2 + $0xa1] sm:$0xff]
      %v3567 = vld [vmem:[#allocation2 + $0xa9] sm:$0xff]
      %v3568 = vld [vmem:[#allocation2 + $0xb1] sm:$0xff]
      %v3569 = vld [vmem:[#allocation2 + $0xb9] sm:$0xff]
      %v3570 = vld [vmem:[#allocation2 + $0xc1] sm:$0xff]
      %v3571 = vld [vmem:[#allocation2 + $0xc9] sm:$0xff]
      %v3572 = vld [vmem:[#allocation2 + $0xd1] sm:$0xf]
      %v3573 = vpack.c.bf16 %v3549, %v3548
      %v3574 = vpack.c.bf16 %v3551, %v3550
      %v3575 = vpack.c.bf16 %v3553, %v3552
      %v3576 = vpack.c.bf16 %v3555, %v3554
      %v3577 = vpack.c.bf16 %v3557, %v3556
      %v3578 = vpack.c.bf16 %v3559, %v3558
      %v3579 = vpack.c.bf16 %v3561, %v3560
      %v3580 = vpack.c.bf16 %v3563, %v3562
      %v3581 = vpack.c.bf16 %v3565, %v3564
      %v3582 = vpack.c.bf16 %v3567, %v3566
      %v3583 = vpack.c.bf16 %v3569, %v3568
      %v3584 = vpack.c.bf16 %v3571, %v3570
      %v3585 = vpack.c.bf16 %v3572, %v3572
      %s3586 = scalar_lea.vmem %s3, 512
      %v3587 = vld [vmem:[%s3586] sm:$0xf]
      %v3588 = vld [vmem:[%s3586 + $0x4] sm:$0xf]
      %v3589 = vld [vmem:[%s3586 + $0x8] sm:$0xf]
      %v3590 = vld [vmem:[%s3586 + $0xc] sm:$0xf]
      %v3591 = vld [vmem:[%s3586 + $0x10] sm:$0xf]
      %v3592 = vld [vmem:[%s3586 + $0x14] sm:$0xf]
      %v3593 = vld [vmem:[%s3586 + $0x18] sm:$0xf]
      %v3594 = vld [vmem:[%s3586 + $0x1c] sm:$0xf]
      %v3595 = vld [vmem:[%s3586 + $0x20] sm:$0xf]
      %v3596 = vld [vmem:[%s3586 + $0x24] sm:$0xf]
      %v3597 = vld [vmem:[%s3586 + $0x28] sm:$0xf]
      %v3598 = vld [vmem:[%s3586 + $0x2c] sm:$0xf]
      %v3599 = vld [vmem:[%s3586 + $0x30] sm:$0xf]
      %v3600 = vld [vmem:[%s3586 + $0x34] sm:$0xf]
      %v3601 = vld [vmem:[%s3586 + $0x38] sm:$0xf]
      %v3602 = vld [vmem:[%s3586 + $0x3c] sm:$0xf]
      %v3619 = vunpack.c.l.b16 %v3587
      %v3620 = vunpack.c.l.b16 %v3588
      %v3621 = vunpack.c.l.b16 %v3589
      %v3622 = vunpack.c.l.b16 %v3590
      %v3623 = vunpack.c.l.b16 %v3591
      %v3624 = vunpack.c.l.b16 %v3592
      %v3625 = vunpack.c.l.b16 %v3593
      %v3626 = vunpack.c.l.b16 %v3594
      %v3627 = vunpack.c.l.b16 %v3595
      %v3628 = vunpack.c.l.b16 %v3596
      %v3629 = vunpack.c.l.b16 %v3597
      %v3630 = vunpack.c.l.b16 %v3598
      %v3631 = vunpack.c.l.b16 %v3599
      %v3632 = vunpack.c.l.b16 %v3600
      %v3633 = vunpack.c.l.b16 %v3601
      %v3634 = vunpack.c.l.b16 %v3602
      %v3635 = vpack.c.b16 %v3620, %v3619
      %v3636 = vpack.c.b16 %v3622, %v3621
      %v3637 = vpack.c.b16 %v3624, %v3623
      %v3638 = vpack.c.b16 %v3626, %v3625
      %v3639 = vpack.c.b16 %v3628, %v3627
      %v3640 = vpack.c.b16 %v3630, %v3629
      %v3641 = vpack.c.b16 %v3632, %v3631
      %v3642 = vpack.c.b16 %v3634, %v3633
      %3651 = vmatprep.subr.bf16.mxu0 0
      %3652 = vmatpush1.bf16.msra.mxu0 %v3642
      %3653 = vmatprep.subr.bf16.mxu0 0
      %3654 = vmatpush1.bf16.msra.mxu0 %v3641
      %3655 = vmatprep.subr.bf16.mxu0 0
      %3656 = vmatpush1.bf16.msra.mxu0 %v3640
      %3657 = vmatprep.subr.bf16.mxu0 0
      %3658 = vmatpush1.bf16.msra.mxu0 %v3639
      %3659 = vmatprep.subr.bf16.mxu0 0
      %3660 = vmatpush1.bf16.msra.mxu0 %v3638
      %3661 = vmatprep.subr.bf16.mxu0 0
      %3662 = vmatpush1.bf16.msra.mxu0 %v3637
      %3663 = vmatprep.subr.bf16.mxu0 0
      %3664 = vmatpush1.bf16.msra.mxu0 %v3636
      %3665 = vmatprep.subr.bf16.mxu0 0
      %3666 = vmatpush1.bf16.msra.mxu0 %v3635
      %3667 = vmatprep.subr.bf16.mxu0 0
      %3668 = vmatpush2.bf16.msra.mxu0 0
      %3669 = vmatprep.subr.bf16.mxu0 0
      %3670 = vmatpush2.bf16.msra.mxu0 0
      %3671 = vmatprep.subr.bf16.mxu0 0
      %3672 = vmatpush2.bf16.msra.mxu0 0
      %3673 = vmatprep.subr.bf16.mxu0 0
      %3674 = vmatpush2.bf16.msra.mxu0 0
      %3675 = vmatprep.subr.bf16.mxu0 0
      %3676 = vmatpush2.bf16.msra.mxu0 0
      %3677 = vmatprep.subr.bf16.mxu0 0
      %3678 = vmatpush2.bf16.msra.mxu0 0
      %3679 = vmatprep.subr.bf16.mxu0 0
      %3680 = vmatpush2.bf16.msra.mxu0 0
      %3681 = vmatprep.subr.bf16.mxu0 0
      %3682 = vmatpush2.bf16.msra.mxu0 0
      %3683 = vmatprep.mubr.bf16.mxu0 0
      %3684 = vmatmul.mubr.bf16.gmra.mxu0 %v3573
      %v3685 = vpop.f32.mrf.mxu0
      %v3686 = vadd.f32 0.0, %v3685
      %v3687 = vpop.f32.mrf.mxu0
      %v3688 = vpop.f32.mrf.mxu0
      %v3689 = vadd.f32 0.0, %v3688
      %v3690 = vpop.f32.mrf.mxu0
      %3691 = vmatprep.mubr.bf16.mxu0 0
      %3692 = vmatmul.mubr.bf16.gmra.mxu0 %v3574
      %v3693 = vpop.f32.mrf.mxu0
      %v3694 = vadd.f32 0.0, %v3693
      %v3695 = vpop.f32.mrf.mxu0
      %v3696 = vpop.f32.mrf.mxu0
      %v3697 = vadd.f32 0.0, %v3696
      %v3698 = vpop.f32.mrf.mxu0
      %3699 = vmatprep.mubr.bf16.mxu0 0
      %3700 = vmatmul.mubr.bf16.gmra.mxu0 %v3575
      %v3701 = vpop.f32.mrf.mxu0
      %v3702 = vadd.f32 0.0, %v3701
      %v3703 = vpop.f32.mrf.mxu0
      %v3704 = vpop.f32.mrf.mxu0
      %v3705 = vadd.f32 0.0, %v3704
      %v3706 = vpop.f32.mrf.mxu0
      %3707 = vmatprep.mubr.bf16.mxu0 0
      %3708 = vmatmul.mubr.bf16.gmra.mxu0 %v3576
      %v3709 = vpop.f32.mrf.mxu0
      %v3710 = vadd.f32 0.0, %v3709
      %v3711 = vpop.f32.mrf.mxu0
      %v3712 = vpop.f32.mrf.mxu0
      %v3713 = vadd.f32 0.0, %v3712
      %v3714 = vpop.f32.mrf.mxu0
      %3715 = vmatprep.mubr.bf16.mxu0 0
      %3716 = vmatmul.mubr.bf16.gmra.mxu0 %v3577
      %v3717 = vpop.f32.mrf.mxu0
      %v3718 = vadd.f32 0.0, %v3717
      %v3719 = vpop.f32.mrf.mxu0
      %v3720 = vpop.f32.mrf.mxu0
      %v3721 = vadd.f32 0.0, %v3720
      %v3722 = vpop.f32.mrf.mxu0
      %3723 = vmatprep.mubr.bf16.mxu0 0
      %3724 = vmatmul.mubr.bf16.gmra.mxu0 %v3578
      %v3725 = vpop.f32.mrf.mxu0
      %v3726 = vadd.f32 0.0, %v3725
      %v3727 = vpop.f32.mrf.mxu0
      %v3728 = vpop.f32.mrf.mxu0
      %v3729 = vadd.f32 0.0, %v3728
      %v3730 = vpop.f32.mrf.mxu0
      %3731 = vmatprep.mubr.bf16.mxu0 0
      %3732 = vmatmul.mubr.bf16.gmra.mxu0 %v3579
      %v3733 = vpop.f32.mrf.mxu0
      %v3734 = vadd.f32 0.0, %v3733
      %v3735 = vpop.f32.mrf.mxu0
      %v3736 = vpop.f32.mrf.mxu0
      %v3737 = vadd.f32 0.0, %v3736
      %v3738 = vpop.f32.mrf.mxu0
      %3739 = vmatprep.mubr.bf16.mxu0 0
      %3740 = vmatmul.mubr.bf16.gmra.mxu0 %v3580
      %v3741 = vpop.f32.mrf.mxu0
      %v3742 = vadd.f32 0.0, %v3741
      %v3743 = vpop.f32.mrf.mxu0
      %v3744 = vpop.f32.mrf.mxu0
      %v3745 = vadd.f32 0.0, %v3744
      %v3746 = vpop.f32.mrf.mxu0
      %3747 = vmatprep.mubr.bf16.mxu0 0
      %3748 = vmatmul.mubr.bf16.gmra.mxu0 %v3581
      %v3749 = vpop.f32.mrf.mxu0
      %v3750 = vadd.f32 0.0, %v3749
      %v3751 = vpop.f32.mrf.mxu0
      %v3752 = vpop.f32.mrf.mxu0
      %v3753 = vadd.f32 0.0, %v3752
      %v3754 = vpop.f32.mrf.mxu0
      %3755 = vmatprep.mubr.bf16.mxu0 0
      %3756 = vmatmul.mubr.bf16.gmra.mxu0 %v3582
      %v3757 = vpop.f32.mrf.mxu0
      %v3758 = vadd.f32 0.0, %v3757
      %v3759 = vpop.f32.mrf.mxu0
      %v3760 = vpop.f32.mrf.mxu0
      %v3761 = vadd.f32 0.0, %v3760
      %v3762 = vpop.f32.mrf.mxu0
      %3763 = vmatprep.mubr.bf16.mxu0 0
      %3764 = vmatmul.mubr.bf16.gmra.mxu0 %v3583
      %v3765 = vpop.f32.mrf.mxu0
      %v3766 = vadd.f32 0.0, %v3765
      %v3767 = vpop.f32.mrf.mxu0
      %v3768 = vpop.f32.mrf.mxu0
      %v3769 = vadd.f32 0.0, %v3768
      %v3770 = vpop.f32.mrf.mxu0
      %3771 = vmatprep.mubr.bf16.mxu0 0
      %3772 = vmatmul.mubr.bf16.gmra.mxu0 %v3584
      %v3773 = vpop.f32.mrf.mxu0
      %v3774 = vadd.f32 0.0, %v3773
      %v3775 = vpop.f32.mrf.mxu0
      %v3776 = vpop.f32.mrf.mxu0
      %v3777 = vadd.f32 0.0, %v3776
      %v3778 = vpop.f32.mrf.mxu0
      %3779 = vmatprep.mubr.bf16.mxu0 0
      %3780 = vmatmul.mubr.bf16.gmra.mxu0 %v3585
      %v3781 = vpop.f32.mrf.mxu0
      %v3782 = vadd.f32 0.0, %v3781
      %v3783 = vpop.f32.mrf.mxu0
      %v3784 = vpop.f32.mrf.mxu0
      %v3785 = vpop.f32.mrf.mxu0
      %3786 = vdwg.mxu0
      %v3787 = vadd.f32 %v3523, %v3686
      %v3788 = vadd.f32 %v3524, %v3689
      %v3789 = vadd.f32 %v3525, %v3694
      %v3790 = vadd.f32 %v3526, %v3697
      %v3791 = vadd.f32 %v3527, %v3702
      %v3792 = vadd.f32 %v3528, %v3705
      %v3793 = vadd.f32 %v3529, %v3710
      %v3794 = vadd.f32 %v3530, %v3713
      %v3795 = vadd.f32 %v3531, %v3718
      %v3796 = vadd.f32 %v3532, %v3721
      %v3797 = vadd.f32 %v3533, %v3726
      %v3798 = vadd.f32 %v3534, %v3729
      %v3799 = vadd.f32 %v3535, %v3734
      %v3800 = vadd.f32 %v3536, %v3737
      %v3801 = vadd.f32 %v3537, %v3742
      %v3802 = vadd.f32 %v3538, %v3745
      %v3803 = vadd.f32 %v3539, %v3750
      %v3804 = vadd.f32 %v3540, %v3753
      %v3805 = vadd.f32 %v3541, %v3758
      %v3806 = vadd.f32 %v3542, %v3761
      %v3807 = vadd.f32 %v3543, %v3766
      %v3808 = vadd.f32 %v3544, %v3769
      %v3809 = vadd.f32 %v3545, %v3774
      %v3810 = vadd.f32 %v3546, %v3777
      %v3811 = vadd.f32 %v3547, %v3782
      %v3812 = vld [vmem:[#allocation2 + $0x12] sm:$0xff]
      %v3813 = vld [vmem:[#allocation2 + $0x1a] sm:$0xff]
      %v3814 = vld [vmem:[#allocation2 + $0x22] sm:$0xff]
      %v3815 = vld [vmem:[#allocation2 + $0x2a] sm:$0xff]
      %v3816 = vld [vmem:[#allocation2 + $0x32] sm:$0xff]
      %v3817 = vld [vmem:[#allocation2 + $0x3a] sm:$0xff]
      %v3818 = vld [vmem:[#allocation2 + $0x42] sm:$0xff]
      %v3819 = vld [vmem:[#allocation2 + $0x4a] sm:$0xff]
      %v3820 = vld [vmem:[#allocation2 + $0x52] sm:$0xff]
      %v3821 = vld [vmem:[#allocation2 + $0x5a] sm:$0xff]
      %v3822 = vld [vmem:[#allocation2 + $0x62] sm:$0xff]
      %v3823 = vld [vmem:[#allocation2 + $0x6a] sm:$0xff]
      %v3824 = vld [vmem:[#allocation2 + $0x72] sm:$0xff]
      %v3825 = vld [vmem:[#allocation2 + $0x7a] sm:$0xff]
      %v3826 = vld [vmem:[#allocation2 + $0x82] sm:$0xff]
      %v3827 = vld [vmem:[#allocation2 + $0x8a] sm:$0xff]
      %v3828 = vld [vmem:[#allocation2 + $0x92] sm:$0xff]
      %v3829 = vld [vmem:[#allocation2 + $0x9a] sm:$0xff]
      %v3830 = vld [vmem:[#allocation2 + $0xa2] sm:$0xff]
      %v3831 = vld [vmem:[#allocation2 + $0xaa] sm:$0xff]
      %v3832 = vld [vmem:[#allocation2 + $0xb2] sm:$0xff]
      %v3833 = vld [vmem:[#allocation2 + $0xba] sm:$0xff]
      %v3834 = vld [vmem:[#allocation2 + $0xc2] sm:$0xff]
      %v3835 = vld [vmem:[#allocation2 + $0xca] sm:$0xff]
      %v3836 = vld [vmem:[#allocation2 + $0xd2] sm:$0xf]
      %v3837 = vpack.c.bf16 %v3813, %v3812
      %v3838 = vpack.c.bf16 %v3815, %v3814
      %v3839 = vpack.c.bf16 %v3817, %v3816
      %v3840 = vpack.c.bf16 %v3819, %v3818
      %v3841 = vpack.c.bf16 %v3821, %v3820
      %v3842 = vpack.c.bf16 %v3823, %v3822
      %v3843 = vpack.c.bf16 %v3825, %v3824
      %v3844 = vpack.c.bf16 %v3827, %v3826
      %v3845 = vpack.c.bf16 %v3829, %v3828
      %v3846 = vpack.c.bf16 %v3831, %v3830
      %v3847 = vpack.c.bf16 %v3833, %v3832
      %v3848 = vpack.c.bf16 %v3835, %v3834
      %v3849 = vpack.c.bf16 %v3836, %v3836
      %s3850 = scalar_lea.vmem %s3, 576
      %v3851 = vld [vmem:[%s3850] sm:$0xf]
      %v3852 = vld [vmem:[%s3850 + $0x4] sm:$0xf]
      %v3853 = vld [vmem:[%s3850 + $0x8] sm:$0xf]
      %v3854 = vld [vmem:[%s3850 + $0xc] sm:$0xf]
      %v3855 = vld [vmem:[%s3850 + $0x10] sm:$0xf]
      %v3856 = vld [vmem:[%s3850 + $0x14] sm:$0xf]
      %v3857 = vld [vmem:[%s3850 + $0x18] sm:$0xf]
      %v3858 = vld [vmem:[%s3850 + $0x1c] sm:$0xf]
      %v3859 = vld [vmem:[%s3850 + $0x20] sm:$0xf]
      %v3860 = vld [vmem:[%s3850 + $0x24] sm:$0xf]
      %v3861 = vld [vmem:[%s3850 + $0x28] sm:$0xf]
      %v3862 = vld [vmem:[%s3850 + $0x2c] sm:$0xf]
      %v3863 = vld [vmem:[%s3850 + $0x30] sm:$0xf]
      %v3864 = vld [vmem:[%s3850 + $0x34] sm:$0xf]
      %v3865 = vld [vmem:[%s3850 + $0x38] sm:$0xf]
      %v3866 = vld [vmem:[%s3850 + $0x3c] sm:$0xf]
      %v3883 = vunpack.c.l.b16 %v3851
      %v3884 = vunpack.c.l.b16 %v3852
      %v3885 = vunpack.c.l.b16 %v3853
      %v3886 = vunpack.c.l.b16 %v3854
      %v3887 = vunpack.c.l.b16 %v3855
      %v3888 = vunpack.c.l.b16 %v3856
      %v3889 = vunpack.c.l.b16 %v3857
      %v3890 = vunpack.c.l.b16 %v3858
      %v3891 = vunpack.c.l.b16 %v3859
      %v3892 = vunpack.c.l.b16 %v3860
      %v3893 = vunpack.c.l.b16 %v3861
      %v3894 = vunpack.c.l.b16 %v3862
      %v3895 = vunpack.c.l.b16 %v3863
      %v3896 = vunpack.c.l.b16 %v3864
      %v3897 = vunpack.c.l.b16 %v3865
      %v3898 = vunpack.c.l.b16 %v3866
      %v3899 = vpack.c.b16 %v3884, %v3883
      %v3900 = vpack.c.b16 %v3886, %v3885
      %v3901 = vpack.c.b16 %v3888, %v3887
      %v3902 = vpack.c.b16 %v3890, %v3889
      %v3903 = vpack.c.b16 %v3892, %v3891
      %v3904 = vpack.c.b16 %v3894, %v3893
      %v3905 = vpack.c.b16 %v3896, %v3895
      %v3906 = vpack.c.b16 %v3898, %v3897
      %3915 = vmatprep.subr.bf16.mxu0 0
      %3916 = vmatpush1.bf16.msra.mxu0 %v3906
      %3917 = vmatprep.subr.bf16.mxu0 0
      %3918 = vmatpush1.bf16.msra.mxu0 %v3905
      %3919 = vmatprep.subr.bf16.mxu0 0
      %3920 = vmatpush1.bf16.msra.mxu0 %v3904
      %3921 = vmatprep.subr.bf16.mxu0 0
      %3922 = vmatpush1.bf16.msra.mxu0 %v3903
      %3923 = vmatprep.subr.bf16.mxu0 0
      %3924 = vmatpush1.bf16.msra.mxu0 %v3902
      %3925 = vmatprep.subr.bf16.mxu0 0
      %3926 = vmatpush1.bf16.msra.mxu0 %v3901
      %3927 = vmatprep.subr.bf16.mxu0 0
      %3928 = vmatpush1.bf16.msra.mxu0 %v3900
      %3929 = vmatprep.subr.bf16.mxu0 0
      %3930 = vmatpush1.bf16.msra.mxu0 %v3899
      %3931 = vmatprep.subr.bf16.mxu0 0
      %3932 = vmatpush2.bf16.msra.mxu0 0
      %3933 = vmatprep.subr.bf16.mxu0 0
      %3934 = vmatpush2.bf16.msra.mxu0 0
      %3935 = vmatprep.subr.bf16.mxu0 0
      %3936 = vmatpush2.bf16.msra.mxu0 0
      %3937 = vmatprep.subr.bf16.mxu0 0
      %3938 = vmatpush2.bf16.msra.mxu0 0
      %3939 = vmatprep.subr.bf16.mxu0 0
      %3940 = vmatpush2.bf16.msra.mxu0 0
      %3941 = vmatprep.subr.bf16.mxu0 0
      %3942 = vmatpush2.bf16.msra.mxu0 0
      %3943 = vmatprep.subr.bf16.mxu0 0
      %3944 = vmatpush2.bf16.msra.mxu0 0
      %3945 = vmatprep.subr.bf16.mxu0 0
      %3946 = vmatpush2.bf16.msra.mxu0 0
      %3947 = vmatprep.mubr.bf16.mxu0 0
      %3948 = vmatmul.mubr.bf16.gmra.mxu0 %v3837
      %v3949 = vpop.f32.mrf.mxu0
      %v3950 = vadd.f32 0.0, %v3949
      %v3951 = vpop.f32.mrf.mxu0
      %v3952 = vpop.f32.mrf.mxu0
      %v3953 = vadd.f32 0.0, %v3952
      %v3954 = vpop.f32.mrf.mxu0
      %3955 = vmatprep.mubr.bf16.mxu0 0
      %3956 = vmatmul.mubr.bf16.gmra.mxu0 %v3838
      %v3957 = vpop.f32.mrf.mxu0
      %v3958 = vadd.f32 0.0, %v3957
      %v3959 = vpop.f32.mrf.mxu0
      %v3960 = vpop.f32.mrf.mxu0
      %v3961 = vadd.f32 0.0, %v3960
      %v3962 = vpop.f32.mrf.mxu0
      %3963 = vmatprep.mubr.bf16.mxu0 0
      %3964 = vmatmul.mubr.bf16.gmra.mxu0 %v3839
      %v3965 = vpop.f32.mrf.mxu0
      %v3966 = vadd.f32 0.0, %v3965
      %v3967 = vpop.f32.mrf.mxu0
      %v3968 = vpop.f32.mrf.mxu0
      %v3969 = vadd.f32 0.0, %v3968
      %v3970 = vpop.f32.mrf.mxu0
      %3971 = vmatprep.mubr.bf16.mxu0 0
      %3972 = vmatmul.mubr.bf16.gmra.mxu0 %v3840
      %v3973 = vpop.f32.mrf.mxu0
      %v3974 = vadd.f32 0.0, %v3973
      %v3975 = vpop.f32.mrf.mxu0
      %v3976 = vpop.f32.mrf.mxu0
      %v3977 = vadd.f32 0.0, %v3976
      %v3978 = vpop.f32.mrf.mxu0
      %3979 = vmatprep.mubr.bf16.mxu0 0
      %3980 = vmatmul.mubr.bf16.gmra.mxu0 %v3841
      %v3981 = vpop.f32.mrf.mxu0
      %v3982 = vadd.f32 0.0, %v3981
      %v3983 = vpop.f32.mrf.mxu0
      %v3984 = vpop.f32.mrf.mxu0
      %v3985 = vadd.f32 0.0, %v3984
      %v3986 = vpop.f32.mrf.mxu0
      %3987 = vmatprep.mubr.bf16.mxu0 0
      %3988 = vmatmul.mubr.bf16.gmra.mxu0 %v3842
      %v3989 = vpop.f32.mrf.mxu0
      %v3990 = vadd.f32 0.0, %v3989
      %v3991 = vpop.f32.mrf.mxu0
      %v3992 = vpop.f32.mrf.mxu0
      %v3993 = vadd.f32 0.0, %v3992
      %v3994 = vpop.f32.mrf.mxu0
      %3995 = vmatprep.mubr.bf16.mxu0 0
      %3996 = vmatmul.mubr.bf16.gmra.mxu0 %v3843
      %v3997 = vpop.f32.mrf.mxu0
      %v3998 = vadd.f32 0.0, %v3997
      %v3999 = vpop.f32.mrf.mxu0
      %v4000 = vpop.f32.mrf.mxu0
      %v4001 = vadd.f32 0.0, %v4000
      %v4002 = vpop.f32.mrf.mxu0
      %4003 = vmatprep.mubr.bf16.mxu0 0
      %4004 = vmatmul.mubr.bf16.gmra.mxu0 %v3844
      %v4005 = vpop.f32.mrf.mxu0
      %v4006 = vadd.f32 0.0, %v4005
      %v4007 = vpop.f32.mrf.mxu0
      %v4008 = vpop.f32.mrf.mxu0
      %v4009 = vadd.f32 0.0, %v4008
      %v4010 = vpop.f32.mrf.mxu0
      %4011 = vmatprep.mubr.bf16.mxu0 0
      %4012 = vmatmul.mubr.bf16.gmra.mxu0 %v3845
      %v4013 = vpop.f32.mrf.mxu0
      %v4014 = vadd.f32 0.0, %v4013
      %v4015 = vpop.f32.mrf.mxu0
      %v4016 = vpop.f32.mrf.mxu0
      %v4017 = vadd.f32 0.0, %v4016
      %v4018 = vpop.f32.mrf.mxu0
      %4019 = vmatprep.mubr.bf16.mxu0 0
      %4020 = vmatmul.mubr.bf16.gmra.mxu0 %v3846
      %v4021 = vpop.f32.mrf.mxu0
      %v4022 = vadd.f32 0.0, %v4021
      %v4023 = vpop.f32.mrf.mxu0
      %v4024 = vpop.f32.mrf.mxu0
      %v4025 = vadd.f32 0.0, %v4024
      %v4026 = vpop.f32.mrf.mxu0
      %4027 = vmatprep.mubr.bf16.mxu0 0
      %4028 = vmatmul.mubr.bf16.gmra.mxu0 %v3847
      %v4029 = vpop.f32.mrf.mxu0
      %v4030 = vadd.f32 0.0, %v4029
      %v4031 = vpop.f32.mrf.mxu0
      %v4032 = vpop.f32.mrf.mxu0
      %v4033 = vadd.f32 0.0, %v4032
      %v4034 = vpop.f32.mrf.mxu0
      %4035 = vmatprep.mubr.bf16.mxu0 0
      %4036 = vmatmul.mubr.bf16.gmra.mxu0 %v3848
      %v4037 = vpop.f32.mrf.mxu0
      %v4038 = vadd.f32 0.0, %v4037
      %v4039 = vpop.f32.mrf.mxu0
      %v4040 = vpop.f32.mrf.mxu0
      %v4041 = vadd.f32 0.0, %v4040
      %v4042 = vpop.f32.mrf.mxu0
      %4043 = vmatprep.mubr.bf16.mxu0 0
      %4044 = vmatmul.mubr.bf16.gmra.mxu0 %v3849
      %v4045 = vpop.f32.mrf.mxu0
      %v4046 = vadd.f32 0.0, %v4045
      %v4047 = vpop.f32.mrf.mxu0
      %v4048 = vpop.f32.mrf.mxu0
      %v4049 = vpop.f32.mrf.mxu0
      %4050 = vdwg.mxu0
      %v4051 = vadd.f32 %v3787, %v3950
      %v4052 = vadd.f32 %v3788, %v3953
      %v4053 = vadd.f32 %v3789, %v3958
      %v4054 = vadd.f32 %v3790, %v3961
      %v4055 = vadd.f32 %v3791, %v3966
      %v4056 = vadd.f32 %v3792, %v3969
      %v4057 = vadd.f32 %v3793, %v3974
      %v4058 = vadd.f32 %v3794, %v3977
      %v4059 = vadd.f32 %v3795, %v3982
      %v4060 = vadd.f32 %v3796, %v3985
      %v4061 = vadd.f32 %v3797, %v3990
      %v4062 = vadd.f32 %v3798, %v3993
      %v4063 = vadd.f32 %v3799, %v3998
      %v4064 = vadd.f32 %v3800, %v4001
      %v4065 = vadd.f32 %v3801, %v4006
      %v4066 = vadd.f32 %v3802, %v4009
      %v4067 = vadd.f32 %v3803, %v4014
      %v4068 = vadd.f32 %v3804, %v4017
      %v4069 = vadd.f32 %v3805, %v4022
      %v4070 = vadd.f32 %v3806, %v4025
      %v4071 = vadd.f32 %v3807, %v4030
      %v4072 = vadd.f32 %v3808, %v4033
      %v4073 = vadd.f32 %v3809, %v4038
      %v4074 = vadd.f32 %v3810, %v4041
      %v4075 = vadd.f32 %v3811, %v4046
      %v4076 = vld [vmem:[#allocation2 + $0x1c] sm:$0xff]
      %v4077 = vld [vmem:[#allocation2 + $0x24] sm:$0xff]
      %v4078 = vld [vmem:[#allocation2 + $0x2c] sm:$0xff]
      %v4079 = vld [vmem:[#allocation2 + $0x34] sm:$0xff]
      %v4080 = vld [vmem:[#allocation2 + $0x3c] sm:$0xff]
      %v4081 = vld [vmem:[#allocation2 + $0x44] sm:$0xff]
      %v4082 = vld [vmem:[#allocation2 + $0x4c] sm:$0xff]
      %v4083 = vld [vmem:[#allocation2 + $0x54] sm:$0xff]
      %v4084 = vld [vmem:[#allocation2 + $0x5c] sm:$0xff]
      %v4085 = vld [vmem:[#allocation2 + $0x64] sm:$0xff]
      %v4086 = vld [vmem:[#allocation2 + $0x6c] sm:$0xff]
      %v4087 = vld [vmem:[#allocation2 + $0x74] sm:$0xff]
      %v4088 = vld [vmem:[#allocation2 + $0x7c] sm:$0xff]
      %v4089 = vld [vmem:[#allocation2 + $0x84] sm:$0xff]
      %v4090 = vld [vmem:[#allocation2 + $0x8c] sm:$0xff]
      %v4091 = vld [vmem:[#allocation2 + $0x94] sm:$0xff]
      %v4092 = vld [vmem:[#allocation2 + $0x9c] sm:$0xff]
      %v4093 = vld [vmem:[#allocation2 + $0xa4] sm:$0xff]
      %v4094 = vld [vmem:[#allocation2 + $0xac] sm:$0xff]
      %v4095 = vld [vmem:[#allocation2 + $0xb4] sm:$0xff]
      %v4096 = vld [vmem:[#allocation2 + $0xbc] sm:$0xff]
      %v4097 = vld [vmem:[#allocation2 + $0xc4] sm:$0xff]
      %v4098 = vld [vmem:[#allocation2 + $0xcc] sm:$0xff]
      %v4099 = vld [vmem:[#allocation2 + $0xd4] sm:$0xff]
      %v4100 = vld [vmem:[#allocation2 + $0xdc] sm:$0xf]
      %v4101 = vpack.c.bf16 %v4077, %v4076
      %v4102 = vpack.c.bf16 %v4079, %v4078
      %v4103 = vpack.c.bf16 %v4081, %v4080
      %v4104 = vpack.c.bf16 %v4083, %v4082
      %v4105 = vpack.c.bf16 %v4085, %v4084
      %v4106 = vpack.c.bf16 %v4087, %v4086
      %v4107 = vpack.c.bf16 %v4089, %v4088
      %v4108 = vpack.c.bf16 %v4091, %v4090
      %v4109 = vpack.c.bf16 %v4093, %v4092
      %v4110 = vpack.c.bf16 %v4095, %v4094
      %v4111 = vpack.c.bf16 %v4097, %v4096
      %v4112 = vpack.c.bf16 %v4099, %v4098
      %v4113 = vpack.c.bf16 %v4100, %v4100
      %s4114 = scalar_lea.vmem %s3, 640
      %v4115 = vld [vmem:[%s4114] sm:$0xf]
      %v4116 = vld [vmem:[%s4114 + $0x4] sm:$0xf]
      %v4117 = vld [vmem:[%s4114 + $0x8] sm:$0xf]
      %v4118 = vld [vmem:[%s4114 + $0xc] sm:$0xf]
      %v4119 = vld [vmem:[%s4114 + $0x10] sm:$0xf]
      %v4120 = vld [vmem:[%s4114 + $0x14] sm:$0xf]
      %v4121 = vld [vmem:[%s4114 + $0x18] sm:$0xf]
      %v4122 = vld [vmem:[%s4114 + $0x1c] sm:$0xf]
      %v4123 = vld [vmem:[%s4114 + $0x20] sm:$0xf]
      %v4124 = vld [vmem:[%s4114 + $0x24] sm:$0xf]
      %v4125 = vld [vmem:[%s4114 + $0x28] sm:$0xf]
      %v4126 = vld [vmem:[%s4114 + $0x2c] sm:$0xf]
      %v4127 = vld [vmem:[%s4114 + $0x30] sm:$0xf]
      %v4128 = vld [vmem:[%s4114 + $0x34] sm:$0xf]
      %v4129 = vld [vmem:[%s4114 + $0x38] sm:$0xf]
      %v4130 = vld [vmem:[%s4114 + $0x3c] sm:$0xf]
      %v4147 = vunpack.c.l.b16 %v4115
      %v4148 = vunpack.c.l.b16 %v4116
      %v4149 = vunpack.c.l.b16 %v4117
      %v4150 = vunpack.c.l.b16 %v4118
      %v4151 = vunpack.c.l.b16 %v4119
      %v4152 = vunpack.c.l.b16 %v4120
      %v4153 = vunpack.c.l.b16 %v4121
      %v4154 = vunpack.c.l.b16 %v4122
      %v4155 = vunpack.c.l.b16 %v4123
      %v4156 = vunpack.c.l.b16 %v4124
      %v4157 = vunpack.c.l.b16 %v4125
      %v4158 = vunpack.c.l.b16 %v4126
      %v4159 = vunpack.c.l.b16 %v4127
      %v4160 = vunpack.c.l.b16 %v4128
      %v4161 = vunpack.c.l.b16 %v4129
      %v4162 = vunpack.c.l.b16 %v4130
      %v4163 = vpack.c.b16 %v4148, %v4147
      %v4164 = vpack.c.b16 %v4150, %v4149
      %v4165 = vpack.c.b16 %v4152, %v4151
      %v4166 = vpack.c.b16 %v4154, %v4153
      %v4167 = vpack.c.b16 %v4156, %v4155
      %v4168 = vpack.c.b16 %v4158, %v4157
      %v4169 = vpack.c.b16 %v4160, %v4159
      %v4170 = vpack.c.b16 %v4162, %v4161
      %4179 = vmatprep.subr.bf16.mxu0 0
      %4180 = vmatpush1.bf16.msra.mxu0 %v4170
      %4181 = vmatprep.subr.bf16.mxu0 0
      %4182 = vmatpush1.bf16.msra.mxu0 %v4169
      %4183 = vmatprep.subr.bf16.mxu0 0
      %4184 = vmatpush1.bf16.msra.mxu0 %v4168
      %4185 = vmatprep.subr.bf16.mxu0 0
      %4186 = vmatpush1.bf16.msra.mxu0 %v4167
      %4187 = vmatprep.subr.bf16.mxu0 0
      %4188 = vmatpush1.bf16.msra.mxu0 %v4166
      %4189 = vmatprep.subr.bf16.mxu0 0
      %4190 = vmatpush1.bf16.msra.mxu0 %v4165
      %4191 = vmatprep.subr.bf16.mxu0 0
      %4192 = vmatpush1.bf16.msra.mxu0 %v4164
      %4193 = vmatprep.subr.bf16.mxu0 0
      %4194 = vmatpush1.bf16.msra.mxu0 %v4163
      %4195 = vmatprep.subr.bf16.mxu0 0
      %4196 = vmatpush2.bf16.msra.mxu0 0
      %4197 = vmatprep.subr.bf16.mxu0 0
      %4198 = vmatpush2.bf16.msra.mxu0 0
      %4199 = vmatprep.subr.bf16.mxu0 0
      %4200 = vmatpush2.bf16.msra.mxu0 0
      %4201 = vmatprep.subr.bf16.mxu0 0
      %4202 = vmatpush2.bf16.msra.mxu0 0
      %4203 = vmatprep.subr.bf16.mxu0 0
      %4204 = vmatpush2.bf16.msra.mxu0 0
      %4205 = vmatprep.subr.bf16.mxu0 0
      %4206 = vmatpush2.bf16.msra.mxu0 0
      %4207 = vmatprep.subr.bf16.mxu0 0
      %4208 = vmatpush2.bf16.msra.mxu0 0
      %4209 = vmatprep.subr.bf16.mxu0 0
      %4210 = vmatpush2.bf16.msra.mxu0 0
      %4211 = vmatprep.mubr.bf16.mxu0 0
      %4212 = vmatmul.mubr.bf16.gmra.mxu0 %v4101
      %v4213 = vpop.f32.mrf.mxu0
      %v4214 = vadd.f32 0.0, %v4213
      %v4215 = vpop.f32.mrf.mxu0
      %v4216 = vpop.f32.mrf.mxu0
      %v4217 = vadd.f32 0.0, %v4216
      %v4218 = vpop.f32.mrf.mxu0
      %4219 = vmatprep.mubr.bf16.mxu0 0
      %4220 = vmatmul.mubr.bf16.gmra.mxu0 %v4102
      %v4221 = vpop.f32.mrf.mxu0
      %v4222 = vadd.f32 0.0, %v4221
      %v4223 = vpop.f32.mrf.mxu0
      %v4224 = vpop.f32.mrf.mxu0
      %v4225 = vadd.f32 0.0, %v4224
      %v4226 = vpop.f32.mrf.mxu0
      %4227 = vmatprep.mubr.bf16.mxu0 0
      %4228 = vmatmul.mubr.bf16.gmra.mxu0 %v4103
      %v4229 = vpop.f32.mrf.mxu0
      %v4230 = vadd.f32 0.0, %v4229
      %v4231 = vpop.f32.mrf.mxu0
      %v4232 = vpop.f32.mrf.mxu0
      %v4233 = vadd.f32 0.0, %v4232
      %v4234 = vpop.f32.mrf.mxu0
      %4235 = vmatprep.mubr.bf16.mxu0 0
      %4236 = vmatmul.mubr.bf16.gmra.mxu0 %v4104
      %v4237 = vpop.f32.mrf.mxu0
      %v4238 = vadd.f32 0.0, %v4237
      %v4239 = vpop.f32.mrf.mxu0
      %v4240 = vpop.f32.mrf.mxu0
      %v4241 = vadd.f32 0.0, %v4240
      %v4242 = vpop.f32.mrf.mxu0
      %4243 = vmatprep.mubr.bf16.mxu0 0
      %4244 = vmatmul.mubr.bf16.gmra.mxu0 %v4105
      %v4245 = vpop.f32.mrf.mxu0
      %v4246 = vadd.f32 0.0, %v4245
      %v4247 = vpop.f32.mrf.mxu0
      %v4248 = vpop.f32.mrf.mxu0
      %v4249 = vadd.f32 0.0, %v4248
      %v4250 = vpop.f32.mrf.mxu0
      %4251 = vmatprep.mubr.bf16.mxu0 0
      %4252 = vmatmul.mubr.bf16.gmra.mxu0 %v4106
      %v4253 = vpop.f32.mrf.mxu0
      %v4254 = vadd.f32 0.0, %v4253
      %v4255 = vpop.f32.mrf.mxu0
      %v4256 = vpop.f32.mrf.mxu0
      %v4257 = vadd.f32 0.0, %v4256
      %v4258 = vpop.f32.mrf.mxu0
      %4259 = vmatprep.mubr.bf16.mxu0 0
      %4260 = vmatmul.mubr.bf16.gmra.mxu0 %v4107
      %v4261 = vpop.f32.mrf.mxu0
      %v4262 = vadd.f32 0.0, %v4261
      %v4263 = vpop.f32.mrf.mxu0
      %v4264 = vpop.f32.mrf.mxu0
      %v4265 = vadd.f32 0.0, %v4264
      %v4266 = vpop.f32.mrf.mxu0
      %4267 = vmatprep.mubr.bf16.mxu0 0
      %4268 = vmatmul.mubr.bf16.gmra.mxu0 %v4108
      %v4269 = vpop.f32.mrf.mxu0
      %v4270 = vadd.f32 0.0, %v4269
      %v4271 = vpop.f32.mrf.mxu0
      %v4272 = vpop.f32.mrf.mxu0
      %v4273 = vadd.f32 0.0, %v4272
      %v4274 = vpop.f32.mrf.mxu0
      %4275 = vmatprep.mubr.bf16.mxu0 0
      %4276 = vmatmul.mubr.bf16.gmra.mxu0 %v4109
      %v4277 = vpop.f32.mrf.mxu0
      %v4278 = vadd.f32 0.0, %v4277
      %v4279 = vpop.f32.mrf.mxu0
      %v4280 = vpop.f32.mrf.mxu0
      %v4281 = vadd.f32 0.0, %v4280
      %v4282 = vpop.f32.mrf.mxu0
      %4283 = vmatprep.mubr.bf16.mxu0 0
      %4284 = vmatmul.mubr.bf16.gmra.mxu0 %v4110
      %v4285 = vpop.f32.mrf.mxu0
      %v4286 = vadd.f32 0.0, %v4285
      %v4287 = vpop.f32.mrf.mxu0
      %v4288 = vpop.f32.mrf.mxu0
      %v4289 = vadd.f32 0.0, %v4288
      %v4290 = vpop.f32.mrf.mxu0
      %4291 = vmatprep.mubr.bf16.mxu0 0
      %4292 = vmatmul.mubr.bf16.gmra.mxu0 %v4111
      %v4293 = vpop.f32.mrf.mxu0
      %v4294 = vadd.f32 0.0, %v4293
      %v4295 = vpop.f32.mrf.mxu0
      %v4296 = vpop.f32.mrf.mxu0
      %v4297 = vadd.f32 0.0, %v4296
      %v4298 = vpop.f32.mrf.mxu0
      %4299 = vmatprep.mubr.bf16.mxu0 0
      %4300 = vmatmul.mubr.bf16.gmra.mxu0 %v4112
      %v4301 = vpop.f32.mrf.mxu0
      %v4302 = vadd.f32 0.0, %v4301
      %v4303 = vpop.f32.mrf.mxu0
      %v4304 = vpop.f32.mrf.mxu0
      %v4305 = vadd.f32 0.0, %v4304
      %v4306 = vpop.f32.mrf.mxu0
      %4307 = vmatprep.mubr.bf16.mxu0 0
      %4308 = vmatmul.mubr.bf16.gmra.mxu0 %v4113
      %v4309 = vpop.f32.mrf.mxu0
      %v4310 = vadd.f32 0.0, %v4309
      %v4311 = vpop.f32.mrf.mxu0
      %v4312 = vpop.f32.mrf.mxu0
      %v4313 = vpop.f32.mrf.mxu0
      %4314 = vdwg.mxu0
      %v4315 = vadd.f32 %v4051, %v4214
      %v4316 = vadd.f32 %v4052, %v4217
      %v4317 = vadd.f32 %v4053, %v4222
      %v4318 = vadd.f32 %v4054, %v4225
      %v4319 = vadd.f32 %v4055, %v4230
      %v4320 = vadd.f32 %v4056, %v4233
      %v4321 = vadd.f32 %v4057, %v4238
      %v4322 = vadd.f32 %v4058, %v4241
      %v4323 = vadd.f32 %v4059, %v4246
      %v4324 = vadd.f32 %v4060, %v4249
      %v4325 = vadd.f32 %v4061, %v4254
      %v4326 = vadd.f32 %v4062, %v4257
      %v4327 = vadd.f32 %v4063, %v4262
      %v4328 = vadd.f32 %v4064, %v4265
      %v4329 = vadd.f32 %v4065, %v4270
      %v4330 = vadd.f32 %v4066, %v4273
      %v4331 = vadd.f32 %v4067, %v4278
      %v4332 = vadd.f32 %v4068, %v4281
      %v4333 = vadd.f32 %v4069, %v4286
      %v4334 = vadd.f32 %v4070, %v4289
      %v4335 = vadd.f32 %v4071, %v4294
      %v4336 = vadd.f32 %v4072, %v4297
      %v4337 = vadd.f32 %v4073, %v4302
      %v4338 = vadd.f32 %v4074, %v4305
      %v4339 = vadd.f32 %v4075, %v4310
      %v4340 = vld [vmem:[#allocation2 + $0x1d] sm:$0xff]
      %v4341 = vld [vmem:[#allocation2 + $0x25] sm:$0xff]
      %v4342 = vld [vmem:[#allocation2 + $0x2d] sm:$0xff]
      %v4343 = vld [vmem:[#allocation2 + $0x35] sm:$0xff]
      %v4344 = vld [vmem:[#allocation2 + $0x3d] sm:$0xff]
      %v4345 = vld [vmem:[#allocation2 + $0x45] sm:$0xff]
      %v4346 = vld [vmem:[#allocation2 + $0x4d] sm:$0xff]
      %v4347 = vld [vmem:[#allocation2 + $0x55] sm:$0xff]
      %v4348 = vld [vmem:[#allocation2 + $0x5d] sm:$0xff]
      %v4349 = vld [vmem:[#allocation2 + $0x65] sm:$0xff]
      %v4350 = vld [vmem:[#allocation2 + $0x6d] sm:$0xff]
      %v4351 = vld [vmem:[#allocation2 + $0x75] sm:$0xff]
      %v4352 = vld [vmem:[#allocation2 + $0x7d] sm:$0xff]
      %v4353 = vld [vmem:[#allocation2 + $0x85] sm:$0xff]
      %v4354 = vld [vmem:[#allocation2 + $0x8d] sm:$0xff]
      %v4355 = vld [vmem:[#allocation2 + $0x95] sm:$0xff]
      %v4356 = vld [vmem:[#allocation2 + $0x9d] sm:$0xff]
      %v4357 = vld [vmem:[#allocation2 + $0xa5] sm:$0xff]
      %v4358 = vld [vmem:[#allocation2 + $0xad] sm:$0xff]
      %v4359 = vld [vmem:[#allocation2 + $0xb5] sm:$0xff]
      %v4360 = vld [vmem:[#allocation2 + $0xbd] sm:$0xff]
      %v4361 = vld [vmem:[#allocation2 + $0xc5] sm:$0xff]
      %v4362 = vld [vmem:[#allocation2 + $0xcd] sm:$0xff]
      %v4363 = vld [vmem:[#allocation2 + $0xd5] sm:$0xff]
      %v4364 = vld [vmem:[#allocation2 + $0xdd] sm:$0xf]
      %v4365 = vpack.c.bf16 %v4341, %v4340
      %v4366 = vpack.c.bf16 %v4343, %v4342
      %v4367 = vpack.c.bf16 %v4345, %v4344
      %v4368 = vpack.c.bf16 %v4347, %v4346
      %v4369 = vpack.c.bf16 %v4349, %v4348
      %v4370 = vpack.c.bf16 %v4351, %v4350
      %v4371 = vpack.c.bf16 %v4353, %v4352
      %v4372 = vpack.c.bf16 %v4355, %v4354
      %v4373 = vpack.c.bf16 %v4357, %v4356
      %v4374 = vpack.c.bf16 %v4359, %v4358
      %v4375 = vpack.c.bf16 %v4361, %v4360
      %v4376 = vpack.c.bf16 %v4363, %v4362
      %v4377 = vpack.c.bf16 %v4364, %v4364
      %s4378 = scalar_lea.vmem %s3, 704
      %v4379 = vld [vmem:[%s4378] sm:$0xf]
      %v4380 = vld [vmem:[%s4378 + $0x4] sm:$0xf]
      %v4381 = vld [vmem:[%s4378 + $0x8] sm:$0xf]
      %v4382 = vld [vmem:[%s4378 + $0xc] sm:$0xf]
      %v4383 = vld [vmem:[%s4378 + $0x10] sm:$0xf]
      %v4384 = vld [vmem:[%s4378 + $0x14] sm:$0xf]
      %v4385 = vld [vmem:[%s4378 + $0x18] sm:$0xf]
      %v4386 = vld [vmem:[%s4378 + $0x1c] sm:$0xf]
      %v4387 = vld [vmem:[%s4378 + $0x20] sm:$0xf]
      %v4388 = vld [vmem:[%s4378 + $0x24] sm:$0xf]
      %v4389 = vld [vmem:[%s4378 + $0x28] sm:$0xf]
      %v4390 = vld [vmem:[%s4378 + $0x2c] sm:$0xf]
      %v4391 = vld [vmem:[%s4378 + $0x30] sm:$0xf]
      %v4392 = vld [vmem:[%s4378 + $0x34] sm:$0xf]
      %v4393 = vld [vmem:[%s4378 + $0x38] sm:$0xf]
      %v4394 = vld [vmem:[%s4378 + $0x3c] sm:$0xf]
      %v4411 = vunpack.c.l.b16 %v4379
      %v4412 = vunpack.c.l.b16 %v4380
      %v4413 = vunpack.c.l.b16 %v4381
      %v4414 = vunpack.c.l.b16 %v4382
      %v4415 = vunpack.c.l.b16 %v4383
      %v4416 = vunpack.c.l.b16 %v4384
      %v4417 = vunpack.c.l.b16 %v4385
      %v4418 = vunpack.c.l.b16 %v4386
      %v4419 = vunpack.c.l.b16 %v4387
      %v4420 = vunpack.c.l.b16 %v4388
      %v4421 = vunpack.c.l.b16 %v4389
      %v4422 = vunpack.c.l.b16 %v4390
      %v4423 = vunpack.c.l.b16 %v4391
      %v4424 = vunpack.c.l.b16 %v4392
      %v4425 = vunpack.c.l.b16 %v4393
      %v4426 = vunpack.c.l.b16 %v4394
      %v4427 = vpack.c.b16 %v4412, %v4411
      %v4428 = vpack.c.b16 %v4414, %v4413
      %v4429 = vpack.c.b16 %v4416, %v4415
      %v4430 = vpack.c.b16 %v4418, %v4417
      %v4431 = vpack.c.b16 %v4420, %v4419
      %v4432 = vpack.c.b16 %v4422, %v4421
      %v4433 = vpack.c.b16 %v4424, %v4423
      %v4434 = vpack.c.b16 %v4426, %v4425
      %4443 = vmatprep.subr.bf16.mxu0 0
      %4444 = vmatpush1.bf16.msra.mxu0 %v4434
      %4445 = vmatprep.subr.bf16.mxu0 0
      %4446 = vmatpush1.bf16.msra.mxu0 %v4433
      %4447 = vmatprep.subr.bf16.mxu0 0
      %4448 = vmatpush1.bf16.msra.mxu0 %v4432
      %4449 = vmatprep.subr.bf16.mxu0 0
      %4450 = vmatpush1.bf16.msra.mxu0 %v4431
      %4451 = vmatprep.subr.bf16.mxu0 0
      %4452 = vmatpush1.bf16.msra.mxu0 %v4430
      %4453 = vmatprep.subr.bf16.mxu0 0
      %4454 = vmatpush1.bf16.msra.mxu0 %v4429
      %4455 = vmatprep.subr.bf16.mxu0 0
      %4456 = vmatpush1.bf16.msra.mxu0 %v4428
      %4457 = vmatprep.subr.bf16.mxu0 0
      %4458 = vmatpush1.bf16.msra.mxu0 %v4427
      %4459 = vmatprep.subr.bf16.mxu0 0
      %4460 = vmatpush2.bf16.msra.mxu0 0
      %4461 = vmatprep.subr.bf16.mxu0 0
      %4462 = vmatpush2.bf16.msra.mxu0 0
      %4463 = vmatprep.subr.bf16.mxu0 0
      %4464 = vmatpush2.bf16.msra.mxu0 0
      %4465 = vmatprep.subr.bf16.mxu0 0
      %4466 = vmatpush2.bf16.msra.mxu0 0
      %4467 = vmatprep.subr.bf16.mxu0 0
      %4468 = vmatpush2.bf16.msra.mxu0 0
      %4469 = vmatprep.subr.bf16.mxu0 0
      %4470 = vmatpush2.bf16.msra.mxu0 0
      %4471 = vmatprep.subr.bf16.mxu0 0
      %4472 = vmatpush2.bf16.msra.mxu0 0
      %4473 = vmatprep.subr.bf16.mxu0 0
      %4474 = vmatpush2.bf16.msra.mxu0 0
      %4475 = vmatprep.mubr.bf16.mxu0 0
      %4476 = vmatmul.mubr.bf16.gmra.mxu0 %v4365
      %v4477 = vpop.f32.mrf.mxu0
      %v4478 = vadd.f32 0.0, %v4477
      %v4479 = vpop.f32.mrf.mxu0
      %v4480 = vpop.f32.mrf.mxu0
      %v4481 = vadd.f32 0.0, %v4480
      %v4482 = vpop.f32.mrf.mxu0
      %4483 = vmatprep.mubr.bf16.mxu0 0
      %4484 = vmatmul.mubr.bf16.gmra.mxu0 %v4366
      %v4485 = vpop.f32.mrf.mxu0
      %v4486 = vadd.f32 0.0, %v4485
      %v4487 = vpop.f32.mrf.mxu0
      %v4488 = vpop.f32.mrf.mxu0
      %v4489 = vadd.f32 0.0, %v4488
      %v4490 = vpop.f32.mrf.mxu0
      %4491 = vmatprep.mubr.bf16.mxu0 0
      %4492 = vmatmul.mubr.bf16.gmra.mxu0 %v4367
      %v4493 = vpop.f32.mrf.mxu0
      %v4494 = vadd.f32 0.0, %v4493
      %v4495 = vpop.f32.mrf.mxu0
      %v4496 = vpop.f32.mrf.mxu0
      %v4497 = vadd.f32 0.0, %v4496
      %v4498 = vpop.f32.mrf.mxu0
      %4499 = vmatprep.mubr.bf16.mxu0 0
      %4500 = vmatmul.mubr.bf16.gmra.mxu0 %v4368
      %v4501 = vpop.f32.mrf.mxu0
      %v4502 = vadd.f32 0.0, %v4501
      %v4503 = vpop.f32.mrf.mxu0
      %v4504 = vpop.f32.mrf.mxu0
      %v4505 = vadd.f32 0.0, %v4504
      %v4506 = vpop.f32.mrf.mxu0
      %4507 = vmatprep.mubr.bf16.mxu0 0
      %4508 = vmatmul.mubr.bf16.gmra.mxu0 %v4369
      %v4509 = vpop.f32.mrf.mxu0
      %v4510 = vadd.f32 0.0, %v4509
      %v4511 = vpop.f32.mrf.mxu0
      %v4512 = vpop.f32.mrf.mxu0
      %v4513 = vadd.f32 0.0, %v4512
      %v4514 = vpop.f32.mrf.mxu0
      %4515 = vmatprep.mubr.bf16.mxu0 0
      %4516 = vmatmul.mubr.bf16.gmra.mxu0 %v4370
      %v4517 = vpop.f32.mrf.mxu0
      %v4518 = vadd.f32 0.0, %v4517
      %v4519 = vpop.f32.mrf.mxu0
      %v4520 = vpop.f32.mrf.mxu0
      %v4521 = vadd.f32 0.0, %v4520
      %v4522 = vpop.f32.mrf.mxu0
      %4523 = vmatprep.mubr.bf16.mxu0 0
      %4524 = vmatmul.mubr.bf16.gmra.mxu0 %v4371
      %v4525 = vpop.f32.mrf.mxu0
      %v4526 = vadd.f32 0.0, %v4525
      %v4527 = vpop.f32.mrf.mxu0
      %v4528 = vpop.f32.mrf.mxu0
      %v4529 = vadd.f32 0.0, %v4528
      %v4530 = vpop.f32.mrf.mxu0
      %4531 = vmatprep.mubr.bf16.mxu0 0
      %4532 = vmatmul.mubr.bf16.gmra.mxu0 %v4372
      %v4533 = vpop.f32.mrf.mxu0
      %v4534 = vadd.f32 0.0, %v4533
      %v4535 = vpop.f32.mrf.mxu0
      %v4536 = vpop.f32.mrf.mxu0
      %v4537 = vadd.f32 0.0, %v4536
      %v4538 = vpop.f32.mrf.mxu0
      %4539 = vmatprep.mubr.bf16.mxu0 0
      %4540 = vmatmul.mubr.bf16.gmra.mxu0 %v4373
      %v4541 = vpop.f32.mrf.mxu0
      %v4542 = vadd.f32 0.0, %v4541
      %v4543 = vpop.f32.mrf.mxu0
      %v4544 = vpop.f32.mrf.mxu0
      %v4545 = vadd.f32 0.0, %v4544
      %v4546 = vpop.f32.mrf.mxu0
      %4547 = vmatprep.mubr.bf16.mxu0 0
      %4548 = vmatmul.mubr.bf16.gmra.mxu0 %v4374
      %v4549 = vpop.f32.mrf.mxu0
      %v4550 = vadd.f32 0.0, %v4549
      %v4551 = vpop.f32.mrf.mxu0
      %v4552 = vpop.f32.mrf.mxu0
      %v4553 = vadd.f32 0.0, %v4552
      %v4554 = vpop.f32.mrf.mxu0
      %4555 = vmatprep.mubr.bf16.mxu0 0
      %4556 = vmatmul.mubr.bf16.gmra.mxu0 %v4375
      %v4557 = vpop.f32.mrf.mxu0
      %v4558 = vadd.f32 0.0, %v4557
      %v4559 = vpop.f32.mrf.mxu0
      %v4560 = vpop.f32.mrf.mxu0
      %v4561 = vadd.f32 0.0, %v4560
      %v4562 = vpop.f32.mrf.mxu0
      %4563 = vmatprep.mubr.bf16.mxu0 0
      %4564 = vmatmul.mubr.bf16.gmra.mxu0 %v4376
      %v4565 = vpop.f32.mrf.mxu0
      %v4566 = vadd.f32 0.0, %v4565
      %v4567 = vpop.f32.mrf.mxu0
      %v4568 = vpop.f32.mrf.mxu0
      %v4569 = vadd.f32 0.0, %v4568
      %v4570 = vpop.f32.mrf.mxu0
      %4571 = vmatprep.mubr.bf16.mxu0 0
      %4572 = vmatmul.mubr.bf16.gmra.mxu0 %v4377
      %v4573 = vpop.f32.mrf.mxu0
      %v4574 = vadd.f32 0.0, %v4573
      %v4575 = vpop.f32.mrf.mxu0
      %v4576 = vpop.f32.mrf.mxu0
      %v4577 = vpop.f32.mrf.mxu0
      %4578 = vdwg.mxu0
      %v4579 = vadd.f32 %v4315, %v4478
      %v4580 = vadd.f32 %v4316, %v4481
      %v4581 = vadd.f32 %v4317, %v4486
      %v4582 = vadd.f32 %v4318, %v4489
      %v4583 = vadd.f32 %v4319, %v4494
      %v4584 = vadd.f32 %v4320, %v4497
      %v4585 = vadd.f32 %v4321, %v4502
      %v4586 = vadd.f32 %v4322, %v4505
      %v4587 = vadd.f32 %v4323, %v4510
      %v4588 = vadd.f32 %v4324, %v4513
      %v4589 = vadd.f32 %v4325, %v4518
      %v4590 = vadd.f32 %v4326, %v4521
      %v4591 = vadd.f32 %v4327, %v4526
      %v4592 = vadd.f32 %v4328, %v4529
      %v4593 = vadd.f32 %v4329, %v4534
      %v4594 = vadd.f32 %v4330, %v4537
      %v4595 = vadd.f32 %v4331, %v4542
      %v4596 = vadd.f32 %v4332, %v4545
      %v4597 = vadd.f32 %v4333, %v4550
      %v4598 = vadd.f32 %v4334, %v4553
      %v4599 = vadd.f32 %v4335, %v4558
      %v4600 = vadd.f32 %v4336, %v4561
      %v4601 = vadd.f32 %v4337, %v4566
      %v4602 = vadd.f32 %v4338, %v4569
      %v4603 = vadd.f32 %v4339, %v4574
      %v4604 = vld [vmem:[#allocation2 + $0x1e] sm:$0xff]
      %v4605 = vld [vmem:[#allocation2 + $0x26] sm:$0xff]
      %v4606 = vld [vmem:[#allocation2 + $0x2e] sm:$0xff]
      %v4607 = vld [vmem:[#allocation2 + $0x36] sm:$0xff]
      %v4608 = vld [vmem:[#allocation2 + $0x3e] sm:$0xff]
      %v4609 = vld [vmem:[#allocation2 + $0x46] sm:$0xff]
      %v4610 = vld [vmem:[#allocation2 + $0x4e] sm:$0xff]
      %v4611 = vld [vmem:[#allocation2 + $0x56] sm:$0xff]
      %v4612 = vld [vmem:[#allocation2 + $0x5e] sm:$0xff]
      %v4613 = vld [vmem:[#allocation2 + $0x66] sm:$0xff]
      %v4614 = vld [vmem:[#allocation2 + $0x6e] sm:$0xff]
      %v4615 = vld [vmem:[#allocation2 + $0x76] sm:$0xff]
      %v4616 = vld [vmem:[#allocation2 + $0x7e] sm:$0xff]
      %v4617 = vld [vmem:[#allocation2 + $0x86] sm:$0xff]
      %v4618 = vld [vmem:[#allocation2 + $0x8e] sm:$0xff]
      %v4619 = vld [vmem:[#allocation2 + $0x96] sm:$0xff]
      %v4620 = vld [vmem:[#allocation2 + $0x9e] sm:$0xff]
      %v4621 = vld [vmem:[#allocation2 + $0xa6] sm:$0xff]
      %v4622 = vld [vmem:[#allocation2 + $0xae] sm:$0xff]
      %v4623 = vld [vmem:[#allocation2 + $0xb6] sm:$0xff]
      %v4624 = vld [vmem:[#allocation2 + $0xbe] sm:$0xff]
      %v4625 = vld [vmem:[#allocation2 + $0xc6] sm:$0xff]
      %v4626 = vld [vmem:[#allocation2 + $0xce] sm:$0xff]
      %v4627 = vld [vmem:[#allocation2 + $0xd6] sm:$0xff]
      %v4628 = vld [vmem:[#allocation2 + $0xde] sm:$0xf]
      %v4629 = vpack.c.bf16 %v4605, %v4604
      %v4630 = vpack.c.bf16 %v4607, %v4606
      %v4631 = vpack.c.bf16 %v4609, %v4608
      %v4632 = vpack.c.bf16 %v4611, %v4610
      %v4633 = vpack.c.bf16 %v4613, %v4612
      %v4634 = vpack.c.bf16 %v4615, %v4614
      %v4635 = vpack.c.bf16 %v4617, %v4616
      %v4636 = vpack.c.bf16 %v4619, %v4618
      %v4637 = vpack.c.bf16 %v4621, %v4620
      %v4638 = vpack.c.bf16 %v4623, %v4622
      %v4639 = vpack.c.bf16 %v4625, %v4624
      %v4640 = vpack.c.bf16 %v4627, %v4626
      %v4641 = vpack.c.bf16 %v4628, %v4628
      %s4642 = scalar_lea.vmem %s3, 768
      %v4643 = vld [vmem:[%s4642] sm:$0xf]
      %v4644 = vld [vmem:[%s4642 + $0x4] sm:$0xf]
      %v4645 = vld [vmem:[%s4642 + $0x8] sm:$0xf]
      %v4646 = vld [vmem:[%s4642 + $0xc] sm:$0xf]
      %v4647 = vld [vmem:[%s4642 + $0x10] sm:$0xf]
      %v4648 = vld [vmem:[%s4642 + $0x14] sm:$0xf]
      %v4649 = vld [vmem:[%s4642 + $0x18] sm:$0xf]
      %v4650 = vld [vmem:[%s4642 + $0x1c] sm:$0xf]
      %v4651 = vld [vmem:[%s4642 + $0x20] sm:$0xf]
      %v4652 = vld [vmem:[%s4642 + $0x24] sm:$0xf]
      %v4653 = vld [vmem:[%s4642 + $0x28] sm:$0xf]
      %v4654 = vld [vmem:[%s4642 + $0x2c] sm:$0xf]
      %v4655 = vld [vmem:[%s4642 + $0x30] sm:$0xf]
      %v4656 = vld [vmem:[%s4642 + $0x34] sm:$0xf]
      %v4657 = vld [vmem:[%s4642 + $0x38] sm:$0xf]
      %v4658 = vld [vmem:[%s4642 + $0x3c] sm:$0xf]
      %v4675 = vunpack.c.l.b16 %v4643
      %v4676 = vunpack.c.l.b16 %v4644
      %v4677 = vunpack.c.l.b16 %v4645
      %v4678 = vunpack.c.l.b16 %v4646
      %v4679 = vunpack.c.l.b16 %v4647
      %v4680 = vunpack.c.l.b16 %v4648
      %v4681 = vunpack.c.l.b16 %v4649
      %v4682 = vunpack.c.l.b16 %v4650
      %v4683 = vunpack.c.l.b16 %v4651
      %v4684 = vunpack.c.l.b16 %v4652
      %v4685 = vunpack.c.l.b16 %v4653
      %v4686 = vunpack.c.l.b16 %v4654
      %v4687 = vunpack.c.l.b16 %v4655
      %v4688 = vunpack.c.l.b16 %v4656
      %v4689 = vunpack.c.l.b16 %v4657
      %v4690 = vunpack.c.l.b16 %v4658
      %v4691 = vpack.c.b16 %v4676, %v4675
      %v4692 = vpack.c.b16 %v4678, %v4677
      %v4693 = vpack.c.b16 %v4680, %v4679
      %v4694 = vpack.c.b16 %v4682, %v4681
      %v4695 = vpack.c.b16 %v4684, %v4683
      %v4696 = vpack.c.b16 %v4686, %v4685
      %v4697 = vpack.c.b16 %v4688, %v4687
      %v4698 = vpack.c.b16 %v4690, %v4689
      %4707 = vmatprep.subr.bf16.mxu0 0
      %4708 = vmatpush1.bf16.msra.mxu0 %v4698
      %4709 = vmatprep.subr.bf16.mxu0 0
      %4710 = vmatpush1.bf16.msra.mxu0 %v4697
      %4711 = vmatprep.subr.bf16.mxu0 0
      %4712 = vmatpush1.bf16.msra.mxu0 %v4696
      %4713 = vmatprep.subr.bf16.mxu0 0
      %4714 = vmatpush1.bf16.msra.mxu0 %v4695
      %4715 = vmatprep.subr.bf16.mxu0 0
      %4716 = vmatpush1.bf16.msra.mxu0 %v4694
      %4717 = vmatprep.subr.bf16.mxu0 0
      %4718 = vmatpush1.bf16.msra.mxu0 %v4693
      %4719 = vmatprep.subr.bf16.mxu0 0
      %4720 = vmatpush1.bf16.msra.mxu0 %v4692
      %4721 = vmatprep.subr.bf16.mxu0 0
      %4722 = vmatpush1.bf16.msra.mxu0 %v4691
      %4723 = vmatprep.subr.bf16.mxu0 0
      %4724 = vmatpush2.bf16.msra.mxu0 0
      %4725 = vmatprep.subr.bf16.mxu0 0
      %4726 = vmatpush2.bf16.msra.mxu0 0
      %4727 = vmatprep.subr.bf16.mxu0 0
      %4728 = vmatpush2.bf16.msra.mxu0 0
      %4729 = vmatprep.subr.bf16.mxu0 0
      %4730 = vmatpush2.bf16.msra.mxu0 0
      %4731 = vmatprep.subr.bf16.mxu0 0
      %4732 = vmatpush2.bf16.msra.mxu0 0
      %4733 = vmatprep.subr.bf16.mxu0 0
      %4734 = vmatpush2.bf16.msra.mxu0 0
      %4735 = vmatprep.subr.bf16.mxu0 0
      %4736 = vmatpush2.bf16.msra.mxu0 0
      %4737 = vmatprep.subr.bf16.mxu0 0
      %4738 = vmatpush2.bf16.msra.mxu0 0
      %4739 = vmatprep.mubr.bf16.mxu0 0
      %4740 = vmatmul.mubr.bf16.gmra.mxu0 %v4629
      %v4741 = vpop.f32.mrf.mxu0
      %v4742 = vadd.f32 0.0, %v4741
      %v4743 = vpop.f32.mrf.mxu0
      %v4744 = vpop.f32.mrf.mxu0
      %v4745 = vadd.f32 0.0, %v4744
      %v4746 = vpop.f32.mrf.mxu0
      %4747 = vmatprep.mubr.bf16.mxu0 0
      %4748 = vmatmul.mubr.bf16.gmra.mxu0 %v4630
      %v4749 = vpop.f32.mrf.mxu0
      %v4750 = vadd.f32 0.0, %v4749
      %v4751 = vpop.f32.mrf.mxu0
      %v4752 = vpop.f32.mrf.mxu0
      %v4753 = vadd.f32 0.0, %v4752
      %v4754 = vpop.f32.mrf.mxu0
      %4755 = vmatprep.mubr.bf16.mxu0 0
      %4756 = vmatmul.mubr.bf16.gmra.mxu0 %v4631
      %v4757 = vpop.f32.mrf.mxu0
      %v4758 = vadd.f32 0.0, %v4757
      %v4759 = vpop.f32.mrf.mxu0
      %v4760 = vpop.f32.mrf.mxu0
      %v4761 = vadd.f32 0.0, %v4760
      %v4762 = vpop.f32.mrf.mxu0
      %4763 = vmatprep.mubr.bf16.mxu0 0
      %4764 = vmatmul.mubr.bf16.gmra.mxu0 %v4632
      %v4765 = vpop.f32.mrf.mxu0
      %v4766 = vadd.f32 0.0, %v4765
      %v4767 = vpop.f32.mrf.mxu0
      %v4768 = vpop.f32.mrf.mxu0
      %v4769 = vadd.f32 0.0, %v4768
      %v4770 = vpop.f32.mrf.mxu0
      %4771 = vmatprep.mubr.bf16.mxu0 0
      %4772 = vmatmul.mubr.bf16.gmra.mxu0 %v4633
      %v4773 = vpop.f32.mrf.mxu0
      %v4774 = vadd.f32 0.0, %v4773
      %v4775 = vpop.f32.mrf.mxu0
      %v4776 = vpop.f32.mrf.mxu0
      %v4777 = vadd.f32 0.0, %v4776
      %v4778 = vpop.f32.mrf.mxu0
      %4779 = vmatprep.mubr.bf16.mxu0 0
      %4780 = vmatmul.mubr.bf16.gmra.mxu0 %v4634
      %v4781 = vpop.f32.mrf.mxu0
      %v4782 = vadd.f32 0.0, %v4781
      %v4783 = vpop.f32.mrf.mxu0
      %v4784 = vpop.f32.mrf.mxu0
      %v4785 = vadd.f32 0.0, %v4784
      %v4786 = vpop.f32.mrf.mxu0
      %4787 = vmatprep.mubr.bf16.mxu0 0
      %4788 = vmatmul.mubr.bf16.gmra.mxu0 %v4635
      %v4789 = vpop.f32.mrf.mxu0
      %v4790 = vadd.f32 0.0, %v4789
      %v4791 = vpop.f32.mrf.mxu0
      %v4792 = vpop.f32.mrf.mxu0
      %v4793 = vadd.f32 0.0, %v4792
      %v4794 = vpop.f32.mrf.mxu0
      %4795 = vmatprep.mubr.bf16.mxu0 0
      %4796 = vmatmul.mubr.bf16.gmra.mxu0 %v4636
      %v4797 = vpop.f32.mrf.mxu0
      %v4798 = vadd.f32 0.0, %v4797
      %v4799 = vpop.f32.mrf.mxu0
      %v4800 = vpop.f32.mrf.mxu0
      %v4801 = vadd.f32 0.0, %v4800
      %v4802 = vpop.f32.mrf.mxu0
      %4803 = vmatprep.mubr.bf16.mxu0 0
      %4804 = vmatmul.mubr.bf16.gmra.mxu0 %v4637
      %v4805 = vpop.f32.mrf.mxu0
      %v4806 = vadd.f32 0.0, %v4805
      %v4807 = vpop.f32.mrf.mxu0
      %v4808 = vpop.f32.mrf.mxu0
      %v4809 = vadd.f32 0.0, %v4808
      %v4810 = vpop.f32.mrf.mxu0
      %4811 = vmatprep.mubr.bf16.mxu0 0
      %4812 = vmatmul.mubr.bf16.gmra.mxu0 %v4638
      %v4813 = vpop.f32.mrf.mxu0
      %v4814 = vadd.f32 0.0, %v4813
      %v4815 = vpop.f32.mrf.mxu0
      %v4816 = vpop.f32.mrf.mxu0
      %v4817 = vadd.f32 0.0, %v4816
      %v4818 = vpop.f32.mrf.mxu0
      %4819 = vmatprep.mubr.bf16.mxu0 0
      %4820 = vmatmul.mubr.bf16.gmra.mxu0 %v4639
      %v4821 = vpop.f32.mrf.mxu0
      %v4822 = vadd.f32 0.0, %v4821
      %v4823 = vpop.f32.mrf.mxu0
      %v4824 = vpop.f32.mrf.mxu0
      %v4825 = vadd.f32 0.0, %v4824
      %v4826 = vpop.f32.mrf.mxu0
      %4827 = vmatprep.mubr.bf16.mxu0 0
      %4828 = vmatmul.mubr.bf16.gmra.mxu0 %v4640
      %v4829 = vpop.f32.mrf.mxu0
      %v4830 = vadd.f32 0.0, %v4829
      %v4831 = vpop.f32.mrf.mxu0
      %v4832 = vpop.f32.mrf.mxu0
      %v4833 = vadd.f32 0.0, %v4832
      %v4834 = vpop.f32.mrf.mxu0
      %4835 = vmatprep.mubr.bf16.mxu0 0
      %4836 = vmatmul.mubr.bf16.gmra.mxu0 %v4641
      %v4837 = vpop.f32.mrf.mxu0
      %v4838 = vadd.f32 0.0, %v4837
      %v4839 = vpop.f32.mrf.mxu0
      %v4840 = vpop.f32.mrf.mxu0
      %v4841 = vpop.f32.mrf.mxu0
      %4842 = vdwg.mxu0
      %v4843 = vadd.f32 %v4579, %v4742
      %v4844 = vadd.f32 %v4580, %v4745
      %v4845 = vadd.f32 %v4581, %v4750
      %v4846 = vadd.f32 %v4582, %v4753
      %v4847 = vadd.f32 %v4583, %v4758
      %v4848 = vadd.f32 %v4584, %v4761
      %v4849 = vadd.f32 %v4585, %v4766
      %v4850 = vadd.f32 %v4586, %v4769
      %v4851 = vadd.f32 %v4587, %v4774
      %v4852 = vadd.f32 %v4588, %v4777
      %v4853 = vadd.f32 %v4589, %v4782
      %v4854 = vadd.f32 %v4590, %v4785
      %v4855 = vadd.f32 %v4591, %v4790
      %v4856 = vadd.f32 %v4592, %v4793
      %v4857 = vadd.f32 %v4593, %v4798
      %v4858 = vadd.f32 %v4594, %v4801
      %v4859 = vadd.f32 %v4595, %v4806
      %v4860 = vadd.f32 %v4596, %v4809
      %v4861 = vadd.f32 %v4597, %v4814
      %v4862 = vadd.f32 %v4598, %v4817
      %v4863 = vadd.f32 %v4599, %v4822
      %v4864 = vadd.f32 %v4600, %v4825
      %v4865 = vadd.f32 %v4601, %v4830
      %v4866 = vadd.f32 %v4602, %v4833
      %v4867 = vadd.f32 %v4603, %v4838
      %v4868 = vld [vmem:[#allocation2 + $0x1f] sm:$0xff]
      %v4869 = vld [vmem:[#allocation2 + $0x27] sm:$0xff]
      %v4870 = vld [vmem:[#allocation2 + $0x2f] sm:$0xff]
      %v4871 = vld [vmem:[#allocation2 + $0x37] sm:$0xff]
      %v4872 = vld [vmem:[#allocation2 + $0x3f] sm:$0xff]
      %v4873 = vld [vmem:[#allocation2 + $0x47] sm:$0xff]
      %v4874 = vld [vmem:[#allocation2 + $0x4f] sm:$0xff]
      %v4875 = vld [vmem:[#allocation2 + $0x57] sm:$0xff]
      %v4876 = vld [vmem:[#allocation2 + $0x5f] sm:$0xff]
      %v4877 = vld [vmem:[#allocation2 + $0x67] sm:$0xff]
      %v4878 = vld [vmem:[#allocation2 + $0x6f] sm:$0xff]
      %v4879 = vld [vmem:[#allocation2 + $0x77] sm:$0xff]
      %v4880 = vld [vmem:[#allocation2 + $0x7f] sm:$0xff]
      %v4881 = vld [vmem:[#allocation2 + $0x87] sm:$0xff]
      %v4882 = vld [vmem:[#allocation2 + $0x8f] sm:$0xff]
      %v4883 = vld [vmem:[#allocation2 + $0x97] sm:$0xff]
      %v4884 = vld [vmem:[#allocation2 + $0x9f] sm:$0xff]
      %v4885 = vld [vmem:[#allocation2 + $0xa7] sm:$0xff]
      %v4886 = vld [vmem:[#allocation2 + $0xaf] sm:$0xff]
      %v4887 = vld [vmem:[#allocation2 + $0xb7] sm:$0xff]
      %v4888 = vld [vmem:[#allocation2 + $0xbf] sm:$0xff]
      %v4889 = vld [vmem:[#allocation2 + $0xc7] sm:$0xff]
      %v4890 = vld [vmem:[#allocation2 + $0xcf] sm:$0xff]
      %v4891 = vld [vmem:[#allocation2 + $0xd7] sm:$0xff]
      %v4892 = vld [vmem:[#allocation2 + $0xdf] sm:$0xf]
      %v4893 = vpack.c.bf16 %v4869, %v4868
      %v4894 = vpack.c.bf16 %v4871, %v4870
      %v4895 = vpack.c.bf16 %v4873, %v4872
      %v4896 = vpack.c.bf16 %v4875, %v4874
      %v4897 = vpack.c.bf16 %v4877, %v4876
      %v4898 = vpack.c.bf16 %v4879, %v4878
      %v4899 = vpack.c.bf16 %v4881, %v4880
      %v4900 = vpack.c.bf16 %v4883, %v4882
      %v4901 = vpack.c.bf16 %v4885, %v4884
      %v4902 = vpack.c.bf16 %v4887, %v4886
      %v4903 = vpack.c.bf16 %v4889, %v4888
      %v4904 = vpack.c.bf16 %v4891, %v4890
      %v4905 = vpack.c.bf16 %v4892, %v4892
      %s4906 = scalar_lea.vmem %s3, 832
      %v4907 = vld [vmem:[%s4906] sm:$0xf]
      %v4908 = vld [vmem:[%s4906 + $0x4] sm:$0xf]
      %v4909 = vld [vmem:[%s4906 + $0x8] sm:$0xf]
      %v4910 = vld [vmem:[%s4906 + $0xc] sm:$0xf]
      %v4911 = vld [vmem:[%s4906 + $0x10] sm:$0xf]
      %v4912 = vld [vmem:[%s4906 + $0x14] sm:$0xf]
      %v4913 = vld [vmem:[%s4906 + $0x18] sm:$0xf]
      %v4914 = vld [vmem:[%s4906 + $0x1c] sm:$0xf]
      %v4915 = vld [vmem:[%s4906 + $0x20] sm:$0xf]
      %v4916 = vld [vmem:[%s4906 + $0x24] sm:$0xf]
      %v4917 = vld [vmem:[%s4906 + $0x28] sm:$0xf]
      %v4918 = vld [vmem:[%s4906 + $0x2c] sm:$0xf]
      %v4919 = vld [vmem:[%s4906 + $0x30] sm:$0xf]
      %v4920 = vld [vmem:[%s4906 + $0x34] sm:$0xf]
      %v4921 = vld [vmem:[%s4906 + $0x38] sm:$0xf]
      %v4922 = vld [vmem:[%s4906 + $0x3c] sm:$0xf]
      %v4939 = vunpack.c.l.b16 %v4907
      %v4940 = vunpack.c.l.b16 %v4908
      %v4941 = vunpack.c.l.b16 %v4909
      %v4942 = vunpack.c.l.b16 %v4910
      %v4943 = vunpack.c.l.b16 %v4911
      %v4944 = vunpack.c.l.b16 %v4912
      %v4945 = vunpack.c.l.b16 %v4913
      %v4946 = vunpack.c.l.b16 %v4914
      %v4947 = vunpack.c.l.b16 %v4915
      %v4948 = vunpack.c.l.b16 %v4916
      %v4949 = vunpack.c.l.b16 %v4917
      %v4950 = vunpack.c.l.b16 %v4918
      %v4951 = vunpack.c.l.b16 %v4919
      %v4952 = vunpack.c.l.b16 %v4920
      %v4953 = vunpack.c.l.b16 %v4921
      %v4954 = vunpack.c.l.b16 %v4922
      %v4955 = vpack.c.b16 %v4940, %v4939
      %v4956 = vpack.c.b16 %v4942, %v4941
      %v4957 = vpack.c.b16 %v4944, %v4943
      %v4958 = vpack.c.b16 %v4946, %v4945
      %v4959 = vpack.c.b16 %v4948, %v4947
      %v4960 = vpack.c.b16 %v4950, %v4949
      %v4961 = vpack.c.b16 %v4952, %v4951
      %v4962 = vpack.c.b16 %v4954, %v4953
      %4971 = vmatprep.subr.bf16.mxu0 0
      %4972 = vmatpush1.bf16.msra.mxu0 %v4962
      %4973 = vmatprep.subr.bf16.mxu0 0
      %4974 = vmatpush1.bf16.msra.mxu0 %v4961
      %4975 = vmatprep.subr.bf16.mxu0 0
      %4976 = vmatpush1.bf16.msra.mxu0 %v4960
      %4977 = vmatprep.subr.bf16.mxu0 0
      %4978 = vmatpush1.bf16.msra.mxu0 %v4959
      %4979 = vmatprep.subr.bf16.mxu0 0
      %4980 = vmatpush1.bf16.msra.mxu0 %v4958
      %4981 = vmatprep.subr.bf16.mxu0 0
      %4982 = vmatpush1.bf16.msra.mxu0 %v4957
      %4983 = vmatprep.subr.bf16.mxu0 0
      %4984 = vmatpush1.bf16.msra.mxu0 %v4956
      %4985 = vmatprep.subr.bf16.mxu0 0
      %4986 = vmatpush1.bf16.msra.mxu0 %v4955
      %4987 = vmatprep.subr.bf16.mxu0 0
      %4988 = vmatpush2.bf16.msra.mxu0 0
      %4989 = vmatprep.subr.bf16.mxu0 0
      %4990 = vmatpush2.bf16.msra.mxu0 0
      %4991 = vmatprep.subr.bf16.mxu0 0
      %4992 = vmatpush2.bf16.msra.mxu0 0
      %4993 = vmatprep.subr.bf16.mxu0 0
      %4994 = vmatpush2.bf16.msra.mxu0 0
      %4995 = vmatprep.subr.bf16.mxu0 0
      %4996 = vmatpush2.bf16.msra.mxu0 0
      %4997 = vmatprep.subr.bf16.mxu0 0
      %4998 = vmatpush2.bf16.msra.mxu0 0
      %4999 = vmatprep.subr.bf16.mxu0 0
      %5000 = vmatpush2.bf16.msra.mxu0 0
      %5001 = vmatprep.subr.bf16.mxu0 0
      %5002 = vmatpush2.bf16.msra.mxu0 0
      %5003 = vmatprep.mubr.bf16.mxu0 0
      %5004 = vmatmul.mubr.bf16.gmra.mxu0 %v4893
      %v5005 = vpop.f32.mrf.mxu0
      %v5006 = vadd.f32 0.0, %v5005
      %v5007 = vpop.f32.mrf.mxu0
      %v5008 = vpop.f32.mrf.mxu0
      %v5009 = vadd.f32 0.0, %v5008
      %v5010 = vpop.f32.mrf.mxu0
      %5011 = vmatprep.mubr.bf16.mxu0 0
      %5012 = vmatmul.mubr.bf16.gmra.mxu0 %v4894
      %v5013 = vpop.f32.mrf.mxu0
      %v5014 = vadd.f32 0.0, %v5013
      %v5015 = vpop.f32.mrf.mxu0
      %v5016 = vpop.f32.mrf.mxu0
      %v5017 = vadd.f32 0.0, %v5016
      %v5018 = vpop.f32.mrf.mxu0
      %5019 = vmatprep.mubr.bf16.mxu0 0
      %5020 = vmatmul.mubr.bf16.gmra.mxu0 %v4895
      %v5021 = vpop.f32.mrf.mxu0
      %v5022 = vadd.f32 0.0, %v5021
      %v5023 = vpop.f32.mrf.mxu0
      %v5024 = vpop.f32.mrf.mxu0
      %v5025 = vadd.f32 0.0, %v5024
      %v5026 = vpop.f32.mrf.mxu0
      %5027 = vmatprep.mubr.bf16.mxu0 0
      %5028 = vmatmul.mubr.bf16.gmra.mxu0 %v4896
      %v5029 = vpop.f32.mrf.mxu0
      %v5030 = vadd.f32 0.0, %v5029
      %v5031 = vpop.f32.mrf.mxu0
      %v5032 = vpop.f32.mrf.mxu0
      %v5033 = vadd.f32 0.0, %v5032
      %v5034 = vpop.f32.mrf.mxu0
      %5035 = vmatprep.mubr.bf16.mxu0 0
      %5036 = vmatmul.mubr.bf16.gmra.mxu0 %v4897
      %v5037 = vpop.f32.mrf.mxu0
      %v5038 = vadd.f32 0.0, %v5037
      %v5039 = vpop.f32.mrf.mxu0
      %v5040 = vpop.f32.mrf.mxu0
      %v5041 = vadd.f32 0.0, %v5040
      %v5042 = vpop.f32.mrf.mxu0
      %5043 = vmatprep.mubr.bf16.mxu0 0
      %5044 = vmatmul.mubr.bf16.gmra.mxu0 %v4898
      %v5045 = vpop.f32.mrf.mxu0
      %v5046 = vadd.f32 0.0, %v5045
      %v5047 = vpop.f32.mrf.mxu0
      %v5048 = vpop.f32.mrf.mxu0
      %v5049 = vadd.f32 0.0, %v5048
      %v5050 = vpop.f32.mrf.mxu0
      %5051 = vmatprep.mubr.bf16.mxu0 0
      %5052 = vmatmul.mubr.bf16.gmra.mxu0 %v4899
      %v5053 = vpop.f32.mrf.mxu0
      %v5054 = vadd.f32 0.0, %v5053
      %v5055 = vpop.f32.mrf.mxu0
      %v5056 = vpop.f32.mrf.mxu0
      %v5057 = vadd.f32 0.0, %v5056
      %v5058 = vpop.f32.mrf.mxu0
      %5059 = vmatprep.mubr.bf16.mxu0 0
      %5060 = vmatmul.mubr.bf16.gmra.mxu0 %v4900
      %v5061 = vpop.f32.mrf.mxu0
      %v5062 = vadd.f32 0.0, %v5061
      %v5063 = vpop.f32.mrf.mxu0
      %v5064 = vpop.f32.mrf.mxu0
      %v5065 = vadd.f32 0.0, %v5064
      %v5066 = vpop.f32.mrf.mxu0
      %5067 = vmatprep.mubr.bf16.mxu0 0
      %5068 = vmatmul.mubr.bf16.gmra.mxu0 %v4901
      %v5069 = vpop.f32.mrf.mxu0
      %v5070 = vadd.f32 0.0, %v5069
      %v5071 = vpop.f32.mrf.mxu0
      %v5072 = vpop.f32.mrf.mxu0
      %v5073 = vadd.f32 0.0, %v5072
      %v5074 = vpop.f32.mrf.mxu0
      %5075 = vmatprep.mubr.bf16.mxu0 0
      %5076 = vmatmul.mubr.bf16.gmra.mxu0 %v4902
      %v5077 = vpop.f32.mrf.mxu0
      %v5078 = vadd.f32 0.0, %v5077
      %v5079 = vpop.f32.mrf.mxu0
      %v5080 = vpop.f32.mrf.mxu0
      %v5081 = vadd.f32 0.0, %v5080
      %v5082 = vpop.f32.mrf.mxu0
      %5083 = vmatprep.mubr.bf16.mxu0 0
      %5084 = vmatmul.mubr.bf16.gmra.mxu0 %v4903
      %v5085 = vpop.f32.mrf.mxu0
      %v5086 = vadd.f32 0.0, %v5085
      %v5087 = vpop.f32.mrf.mxu0
      %v5088 = vpop.f32.mrf.mxu0
      %v5089 = vadd.f32 0.0, %v5088
      %v5090 = vpop.f32.mrf.mxu0
      %5091 = vmatprep.mubr.bf16.mxu0 0
      %5092 = vmatmul.mubr.bf16.gmra.mxu0 %v4904
      %v5093 = vpop.f32.mrf.mxu0
      %v5094 = vadd.f32 0.0, %v5093
      %v5095 = vpop.f32.mrf.mxu0
      %v5096 = vpop.f32.mrf.mxu0
      %v5097 = vadd.f32 0.0, %v5096
      %v5098 = vpop.f32.mrf.mxu0
      %5099 = vmatprep.mubr.bf16.mxu0 0
      %5100 = vmatmul.mubr.bf16.gmra.mxu0 %v4905
      %v5101 = vpop.f32.mrf.mxu0
      %v5102 = vadd.f32 0.0, %v5101
      %v5103 = vpop.f32.mrf.mxu0
      %v5104 = vpop.f32.mrf.mxu0
      %v5105 = vpop.f32.mrf.mxu0
      %5106 = vdwg.mxu0
      %v5107 = vadd.f32 %v4843, %v5006
      %v5108 = vadd.f32 %v4844, %v5009
      %v5109 = vadd.f32 %v4845, %v5014
      %v5110 = vadd.f32 %v4846, %v5017
      %v5111 = vadd.f32 %v4847, %v5022
      %v5112 = vadd.f32 %v4848, %v5025
      %v5113 = vadd.f32 %v4849, %v5030
      %v5114 = vadd.f32 %v4850, %v5033
      %v5115 = vadd.f32 %v4851, %v5038
      %v5116 = vadd.f32 %v4852, %v5041
      %v5117 = vadd.f32 %v4853, %v5046
      %v5118 = vadd.f32 %v4854, %v5049
      %v5119 = vadd.f32 %v4855, %v5054
      %v5120 = vadd.f32 %v4856, %v5057
      %v5121 = vadd.f32 %v4857, %v5062
      %v5122 = vadd.f32 %v4858, %v5065
      %v5123 = vadd.f32 %v4859, %v5070
      %v5124 = vadd.f32 %v4860, %v5073
      %v5125 = vadd.f32 %v4861, %v5078
      %v5126 = vadd.f32 %v4862, %v5081
      %v5127 = vadd.f32 %v4863, %v5086
      %v5128 = vadd.f32 %v4864, %v5089
      %v5129 = vadd.f32 %v4865, %v5094
      %v5130 = vadd.f32 %v4866, %v5097
      %v5131 = vadd.f32 %v4867, %v5102
      %v5132 = vld [vmem:[#allocation2 + $0x20] sm:$0xff]
      %v5133 = vld [vmem:[#allocation2 + $0x28] sm:$0xff]
      %v5134 = vld [vmem:[#allocation2 + $0x30] sm:$0xff]
      %v5135 = vld [vmem:[#allocation2 + $0x38] sm:$0xff]
      %v5136 = vld [vmem:[#allocation2 + $0x40] sm:$0xff]
      %v5137 = vld [vmem:[#allocation2 + $0x48] sm:$0xff]
      %v5138 = vld [vmem:[#allocation2 + $0x50] sm:$0xff]
      %v5139 = vld [vmem:[#allocation2 + $0x58] sm:$0xff]
      %v5140 = vld [vmem:[#allocation2 + $0x60] sm:$0xff]
      %v5141 = vld [vmem:[#allocation2 + $0x68] sm:$0xff]
      %v5142 = vld [vmem:[#allocation2 + $0x70] sm:$0xff]
      %v5143 = vld [vmem:[#allocation2 + $0x78] sm:$0xff]
      %v5144 = vld [vmem:[#allocation2 + $0x80] sm:$0xff]
      %v5145 = vld [vmem:[#allocation2 + $0x88] sm:$0xff]
      %v5146 = vld [vmem:[#allocation2 + $0x90] sm:$0xff]
      %v5147 = vld [vmem:[#allocation2 + $0x98] sm:$0xff]
      %v5148 = vld [vmem:[#allocation2 + $0xa0] sm:$0xff]
      %v5149 = vld [vmem:[#allocation2 + $0xa8] sm:$0xff]
      %v5150 = vld [vmem:[#allocation2 + $0xb0] sm:$0xff]
      %v5151 = vld [vmem:[#allocation2 + $0xb8] sm:$0xff]
      %v5152 = vld [vmem:[#allocation2 + $0xc0] sm:$0xff]
      %v5153 = vld [vmem:[#allocation2 + $0xc8] sm:$0xff]
      %v5154 = vld [vmem:[#allocation2 + $0xd0] sm:$0xff]
      %v5155 = vld [vmem:[#allocation2 + $0xd8] sm:$0xff]
      %v5156 = vld [vmem:[#allocation2 + $0xe0] sm:$0xf]
      %v5157 = vpack.c.bf16 %v5133, %v5132
      %v5158 = vpack.c.bf16 %v5135, %v5134
      %v5159 = vpack.c.bf16 %v5137, %v5136
      %v5160 = vpack.c.bf16 %v5139, %v5138
      %v5161 = vpack.c.bf16 %v5141, %v5140
      %v5162 = vpack.c.bf16 %v5143, %v5142
      %v5163 = vpack.c.bf16 %v5145, %v5144
      %v5164 = vpack.c.bf16 %v5147, %v5146
      %v5165 = vpack.c.bf16 %v5149, %v5148
      %v5166 = vpack.c.bf16 %v5151, %v5150
      %v5167 = vpack.c.bf16 %v5153, %v5152
      %v5168 = vpack.c.bf16 %v5155, %v5154
      %v5169 = vpack.c.bf16 %v5156, %v5156
      %s5170 = scalar_lea.vmem %s3, 896
      %v5171 = vld [vmem:[%s5170] sm:$0xf]
      %v5172 = vld [vmem:[%s5170 + $0x4] sm:$0xf]
      %v5173 = vld [vmem:[%s5170 + $0x8] sm:$0xf]
      %v5174 = vld [vmem:[%s5170 + $0xc] sm:$0xf]
      %v5175 = vld [vmem:[%s5170 + $0x10] sm:$0xf]
      %v5176 = vld [vmem:[%s5170 + $0x14] sm:$0xf]
      %v5177 = vld [vmem:[%s5170 + $0x18] sm:$0xf]
      %v5178 = vld [vmem:[%s5170 + $0x1c] sm:$0xf]
      %v5179 = vld [vmem:[%s5170 + $0x20] sm:$0xf]
      %v5180 = vld [vmem:[%s5170 + $0x24] sm:$0xf]
      %v5181 = vld [vmem:[%s5170 + $0x28] sm:$0xf]
      %v5182 = vld [vmem:[%s5170 + $0x2c] sm:$0xf]
      %v5183 = vld [vmem:[%s5170 + $0x30] sm:$0xf]
      %v5184 = vld [vmem:[%s5170 + $0x34] sm:$0xf]
      %v5185 = vld [vmem:[%s5170 + $0x38] sm:$0xf]
      %v5186 = vld [vmem:[%s5170 + $0x3c] sm:$0xf]
      %v5203 = vunpack.c.l.b16 %v5171
      %v5204 = vunpack.c.l.b16 %v5172
      %v5205 = vunpack.c.l.b16 %v5173
      %v5206 = vunpack.c.l.b16 %v5174
      %v5207 = vunpack.c.l.b16 %v5175
      %v5208 = vunpack.c.l.b16 %v5176
      %v5209 = vunpack.c.l.b16 %v5177
      %v5210 = vunpack.c.l.b16 %v5178
      %v5211 = vunpack.c.l.b16 %v5179
      %v5212 = vunpack.c.l.b16 %v5180
      %v5213 = vunpack.c.l.b16 %v5181
      %v5214 = vunpack.c.l.b16 %v5182
      %v5215 = vunpack.c.l.b16 %v5183
      %v5216 = vunpack.c.l.b16 %v5184
      %v5217 = vunpack.c.l.b16 %v5185
      %v5218 = vunpack.c.l.b16 %v5186
      %v5219 = vpack.c.b16 %v5204, %v5203
      %v5220 = vpack.c.b16 %v5206, %v5205
      %v5221 = vpack.c.b16 %v5208, %v5207
      %v5222 = vpack.c.b16 %v5210, %v5209
      %v5223 = vpack.c.b16 %v5212, %v5211
      %v5224 = vpack.c.b16 %v5214, %v5213
      %v5225 = vpack.c.b16 %v5216, %v5215
      %v5226 = vpack.c.b16 %v5218, %v5217
      %5235 = vmatprep.subr.bf16.mxu0 0
      %5236 = vmatpush1.bf16.msra.mxu0 %v5226
      %5237 = vmatprep.subr.bf16.mxu0 0
      %5238 = vmatpush1.bf16.msra.mxu0 %v5225
      %5239 = vmatprep.subr.bf16.mxu0 0
      %5240 = vmatpush1.bf16.msra.mxu0 %v5224
      %5241 = vmatprep.subr.bf16.mxu0 0
      %5242 = vmatpush1.bf16.msra.mxu0 %v5223
      %5243 = vmatprep.subr.bf16.mxu0 0
      %5244 = vmatpush1.bf16.msra.mxu0 %v5222
      %5245 = vmatprep.subr.bf16.mxu0 0
      %5246 = vmatpush1.bf16.msra.mxu0 %v5221
      %5247 = vmatprep.subr.bf16.mxu0 0
      %5248 = vmatpush1.bf16.msra.mxu0 %v5220
      %5249 = vmatprep.subr.bf16.mxu0 0
      %5250 = vmatpush1.bf16.msra.mxu0 %v5219
      %5251 = vmatprep.subr.bf16.mxu0 0
      %5252 = vmatpush2.bf16.msra.mxu0 0
      %5253 = vmatprep.subr.bf16.mxu0 0
      %5254 = vmatpush2.bf16.msra.mxu0 0
      %5255 = vmatprep.subr.bf16.mxu0 0
      %5256 = vmatpush2.bf16.msra.mxu0 0
      %5257 = vmatprep.subr.bf16.mxu0 0
      %5258 = vmatpush2.bf16.msra.mxu0 0
      %5259 = vmatprep.subr.bf16.mxu0 0
      %5260 = vmatpush2.bf16.msra.mxu0 0
      %5261 = vmatprep.subr.bf16.mxu0 0
      %5262 = vmatpush2.bf16.msra.mxu0 0
      %5263 = vmatprep.subr.bf16.mxu0 0
      %5264 = vmatpush2.bf16.msra.mxu0 0
      %5265 = vmatprep.subr.bf16.mxu0 0
      %5266 = vmatpush2.bf16.msra.mxu0 0
      %5267 = vmatprep.mubr.bf16.mxu0 0
      %5268 = vmatmul.mubr.bf16.gmra.mxu0 %v5157
      %v5269 = vpop.f32.mrf.mxu0
      %v5270 = vadd.f32 0.0, %v5269
      %v5271 = vpop.f32.mrf.mxu0
      %v5272 = vpop.f32.mrf.mxu0
      %v5273 = vadd.f32 0.0, %v5272
      %v5274 = vpop.f32.mrf.mxu0
      %5275 = vmatprep.mubr.bf16.mxu0 0
      %5276 = vmatmul.mubr.bf16.gmra.mxu0 %v5158
      %v5277 = vpop.f32.mrf.mxu0
      %v5278 = vadd.f32 0.0, %v5277
      %v5279 = vpop.f32.mrf.mxu0
      %v5280 = vpop.f32.mrf.mxu0
      %v5281 = vadd.f32 0.0, %v5280
      %v5282 = vpop.f32.mrf.mxu0
      %5283 = vmatprep.mubr.bf16.mxu0 0
      %5284 = vmatmul.mubr.bf16.gmra.mxu0 %v5159
      %v5285 = vpop.f32.mrf.mxu0
      %v5286 = vadd.f32 0.0, %v5285
      %v5287 = vpop.f32.mrf.mxu0
      %v5288 = vpop.f32.mrf.mxu0
      %v5289 = vadd.f32 0.0, %v5288
      %v5290 = vpop.f32.mrf.mxu0
      %5291 = vmatprep.mubr.bf16.mxu0 0
      %5292 = vmatmul.mubr.bf16.gmra.mxu0 %v5160
      %v5293 = vpop.f32.mrf.mxu0
      %v5294 = vadd.f32 0.0, %v5293
      %v5295 = vpop.f32.mrf.mxu0
      %v5296 = vpop.f32.mrf.mxu0
      %v5297 = vadd.f32 0.0, %v5296
      %v5298 = vpop.f32.mrf.mxu0
      %5299 = vmatprep.mubr.bf16.mxu0 0
      %5300 = vmatmul.mubr.bf16.gmra.mxu0 %v5161
      %v5301 = vpop.f32.mrf.mxu0
      %v5302 = vadd.f32 0.0, %v5301
      %v5303 = vpop.f32.mrf.mxu0
      %v5304 = vpop.f32.mrf.mxu0
      %v5305 = vadd.f32 0.0, %v5304
      %v5306 = vpop.f32.mrf.mxu0
      %5307 = vmatprep.mubr.bf16.mxu0 0
      %5308 = vmatmul.mubr.bf16.gmra.mxu0 %v5162
      %v5309 = vpop.f32.mrf.mxu0
      %v5310 = vadd.f32 0.0, %v5309
      %v5311 = vpop.f32.mrf.mxu0
      %v5312 = vpop.f32.mrf.mxu0
      %v5313 = vadd.f32 0.0, %v5312
      %v5314 = vpop.f32.mrf.mxu0
      %5315 = vmatprep.mubr.bf16.mxu0 0
      %5316 = vmatmul.mubr.bf16.gmra.mxu0 %v5163
      %v5317 = vpop.f32.mrf.mxu0
      %v5318 = vadd.f32 0.0, %v5317
      %v5319 = vpop.f32.mrf.mxu0
      %v5320 = vpop.f32.mrf.mxu0
      %v5321 = vadd.f32 0.0, %v5320
      %v5322 = vpop.f32.mrf.mxu0
      %5323 = vmatprep.mubr.bf16.mxu0 0
      %5324 = vmatmul.mubr.bf16.gmra.mxu0 %v5164
      %v5325 = vpop.f32.mrf.mxu0
      %v5326 = vadd.f32 0.0, %v5325
      %v5327 = vpop.f32.mrf.mxu0
      %v5328 = vpop.f32.mrf.mxu0
      %v5329 = vadd.f32 0.0, %v5328
      %v5330 = vpop.f32.mrf.mxu0
      %5331 = vmatprep.mubr.bf16.mxu0 0
      %5332 = vmatmul.mubr.bf16.gmra.mxu0 %v5165
      %v5333 = vpop.f32.mrf.mxu0
      %v5334 = vadd.f32 0.0, %v5333
      %v5335 = vpop.f32.mrf.mxu0
      %v5336 = vpop.f32.mrf.mxu0
      %v5337 = vadd.f32 0.0, %v5336
      %v5338 = vpop.f32.mrf.mxu0
      %5339 = vmatprep.mubr.bf16.mxu0 0
      %5340 = vmatmul.mubr.bf16.gmra.mxu0 %v5166
      %v5341 = vpop.f32.mrf.mxu0
      %v5342 = vadd.f32 0.0, %v5341
      %v5343 = vpop.f32.mrf.mxu0
      %v5344 = vpop.f32.mrf.mxu0
      %v5345 = vadd.f32 0.0, %v5344
      %v5346 = vpop.f32.mrf.mxu0
      %5347 = vmatprep.mubr.bf16.mxu0 0
      %5348 = vmatmul.mubr.bf16.gmra.mxu0 %v5167
      %v5349 = vpop.f32.mrf.mxu0
      %v5350 = vadd.f32 0.0, %v5349
      %v5351 = vpop.f32.mrf.mxu0
      %v5352 = vpop.f32.mrf.mxu0
      %v5353 = vadd.f32 0.0, %v5352
      %v5354 = vpop.f32.mrf.mxu0
      %5355 = vmatprep.mubr.bf16.mxu0 0
      %5356 = vmatmul.mubr.bf16.gmra.mxu0 %v5168
      %v5357 = vpop.f32.mrf.mxu0
      %v5358 = vadd.f32 0.0, %v5357
      %v5359 = vpop.f32.mrf.mxu0
      %v5360 = vpop.f32.mrf.mxu0
      %v5361 = vadd.f32 0.0, %v5360
      %v5362 = vpop.f32.mrf.mxu0
      %5363 = vmatprep.mubr.bf16.mxu0 0
      %5364 = vmatmul.mubr.bf16.gmra.mxu0 %v5169
      %v5365 = vpop.f32.mrf.mxu0
      %v5366 = vadd.f32 0.0, %v5365
      %v5367 = vpop.f32.mrf.mxu0
      %v5368 = vpop.f32.mrf.mxu0
      %v5369 = vpop.f32.mrf.mxu0
      %5370 = vdwg.mxu0
      %v5371 = vadd.f32 %v5107, %v5270
      %v5372 = vadd.f32 %v5108, %v5273
      %v5373 = vadd.f32 %v5109, %v5278
      %v5374 = vadd.f32 %v5110, %v5281
      %v5375 = vadd.f32 %v5111, %v5286
      %v5376 = vadd.f32 %v5112, %v5289
      %v5377 = vadd.f32 %v5113, %v5294
      %v5378 = vadd.f32 %v5114, %v5297
      %v5379 = vadd.f32 %v5115, %v5302
      %v5380 = vadd.f32 %v5116, %v5305
      %v5381 = vadd.f32 %v5117, %v5310
      %v5382 = vadd.f32 %v5118, %v5313
      %v5383 = vadd.f32 %v5119, %v5318
      %v5384 = vadd.f32 %v5120, %v5321
      %v5385 = vadd.f32 %v5121, %v5326
      %v5386 = vadd.f32 %v5122, %v5329
      %v5387 = vadd.f32 %v5123, %v5334
      %v5388 = vadd.f32 %v5124, %v5337
      %v5389 = vadd.f32 %v5125, %v5342
      %v5390 = vadd.f32 %v5126, %v5345
      %v5391 = vadd.f32 %v5127, %v5350
      %v5392 = vadd.f32 %v5128, %v5353
      %v5393 = vadd.f32 %v5129, %v5358
      %v5394 = vadd.f32 %v5130, %v5361
      %v5395 = vadd.f32 %v5131, %v5366
      %v5396 = vld [vmem:[#allocation2 + $0x2a] sm:$0xff]
      %v5397 = vld [vmem:[#allocation2 + $0x32] sm:$0xff]
      %v5398 = vld [vmem:[#allocation2 + $0x3a] sm:$0xff]
      %v5399 = vld [vmem:[#allocation2 + $0x42] sm:$0xff]
      %v5400 = vld [vmem:[#allocation2 + $0x4a] sm:$0xff]
      %v5401 = vld [vmem:[#allocation2 + $0x52] sm:$0xff]
      %v5402 = vld [vmem:[#allocation2 + $0x5a] sm:$0xff]
      %v5403 = vld [vmem:[#allocation2 + $0x62] sm:$0xff]
      %v5404 = vld [vmem:[#allocation2 + $0x6a] sm:$0xff]
      %v5405 = vld [vmem:[#allocation2 + $0x72] sm:$0xff]
      %v5406 = vld [vmem:[#allocation2 + $0x7a] sm:$0xff]
      %v5407 = vld [vmem:[#allocation2 + $0x82] sm:$0xff]
      %v5408 = vld [vmem:[#allocation2 + $0x8a] sm:$0xff]
      %v5409 = vld [vmem:[#allocation2 + $0x92] sm:$0xff]
      %v5410 = vld [vmem:[#allocation2 + $0x9a] sm:$0xff]
      %v5411 = vld [vmem:[#allocation2 + $0xa2] sm:$0xff]
      %v5412 = vld [vmem:[#allocation2 + $0xaa] sm:$0xff]
      %v5413 = vld [vmem:[#allocation2 + $0xb2] sm:$0xff]
      %v5414 = vld [vmem:[#allocation2 + $0xba] sm:$0xff]
      %v5415 = vld [vmem:[#allocation2 + $0xc2] sm:$0xff]
      %v5416 = vld [vmem:[#allocation2 + $0xca] sm:$0xff]
      %v5417 = vld [vmem:[#allocation2 + $0xd2] sm:$0xff]
      %v5418 = vld [vmem:[#allocation2 + $0xda] sm:$0xff]
      %v5419 = vld [vmem:[#allocation2 + $0xe2] sm:$0xff]
      %v5420 = vld [vmem:[#allocation2 + $0xea] sm:$0xf]
      %v5421 = vpack.c.bf16 %v5397, %v5396
      %v5422 = vpack.c.bf16 %v5399, %v5398
      %v5423 = vpack.c.bf16 %v5401, %v5400
      %v5424 = vpack.c.bf16 %v5403, %v5402
      %v5425 = vpack.c.bf16 %v5405, %v5404
      %v5426 = vpack.c.bf16 %v5407, %v5406
      %v5427 = vpack.c.bf16 %v5409, %v5408
      %v5428 = vpack.c.bf16 %v5411, %v5410
      %v5429 = vpack.c.bf16 %v5413, %v5412
      %v5430 = vpack.c.bf16 %v5415, %v5414
      %v5431 = vpack.c.bf16 %v5417, %v5416
      %v5432 = vpack.c.bf16 %v5419, %v5418
      %v5433 = vpack.c.bf16 %v5420, %v5420
      %s5434 = scalar_lea.vmem %s3, 960
      %v5435 = vld [vmem:[%s5434] sm:$0xf]
      %v5436 = vld [vmem:[%s5434 + $0x4] sm:$0xf]
      %v5437 = vld [vmem:[%s5434 + $0x8] sm:$0xf]
      %v5438 = vld [vmem:[%s5434 + $0xc] sm:$0xf]
      %v5439 = vld [vmem:[%s5434 + $0x10] sm:$0xf]
      %v5440 = vld [vmem:[%s5434 + $0x14] sm:$0xf]
      %v5441 = vld [vmem:[%s5434 + $0x18] sm:$0xf]
      %v5442 = vld [vmem:[%s5434 + $0x1c] sm:$0xf]
      %v5443 = vld [vmem:[%s5434 + $0x20] sm:$0xf]
      %v5444 = vld [vmem:[%s5434 + $0x24] sm:$0xf]
      %v5445 = vld [vmem:[%s5434 + $0x28] sm:$0xf]
      %v5446 = vld [vmem:[%s5434 + $0x2c] sm:$0xf]
      %v5447 = vld [vmem:[%s5434 + $0x30] sm:$0xf]
      %v5448 = vld [vmem:[%s5434 + $0x34] sm:$0xf]
      %v5449 = vld [vmem:[%s5434 + $0x38] sm:$0xf]
      %v5450 = vld [vmem:[%s5434 + $0x3c] sm:$0xf]
      %v5467 = vunpack.c.l.b16 %v5435
      %v5468 = vunpack.c.l.b16 %v5436
      %v5469 = vunpack.c.l.b16 %v5437
      %v5470 = vunpack.c.l.b16 %v5438
      %v5471 = vunpack.c.l.b16 %v5439
      %v5472 = vunpack.c.l.b16 %v5440
      %v5473 = vunpack.c.l.b16 %v5441
      %v5474 = vunpack.c.l.b16 %v5442
      %v5475 = vunpack.c.l.b16 %v5443
      %v5476 = vunpack.c.l.b16 %v5444
      %v5477 = vunpack.c.l.b16 %v5445
      %v5478 = vunpack.c.l.b16 %v5446
      %v5479 = vunpack.c.l.b16 %v5447
      %v5480 = vunpack.c.l.b16 %v5448
      %v5481 = vunpack.c.l.b16 %v5449
      %v5482 = vunpack.c.l.b16 %v5450
      %v5483 = vpack.c.b16 %v5468, %v5467
      %v5484 = vpack.c.b16 %v5470, %v5469
      %v5485 = vpack.c.b16 %v5472, %v5471
      %v5486 = vpack.c.b16 %v5474, %v5473
      %v5487 = vpack.c.b16 %v5476, %v5475
      %v5488 = vpack.c.b16 %v5478, %v5477
      %v5489 = vpack.c.b16 %v5480, %v5479
      %v5490 = vpack.c.b16 %v5482, %v5481
      %5499 = vmatprep.subr.bf16.mxu0 0
      %5500 = vmatpush1.bf16.msra.mxu0 %v5490
      %5501 = vmatprep.subr.bf16.mxu0 0
      %5502 = vmatpush1.bf16.msra.mxu0 %v5489
      %5503 = vmatprep.subr.bf16.mxu0 0
      %5504 = vmatpush1.bf16.msra.mxu0 %v5488
      %5505 = vmatprep.subr.bf16.mxu0 0
      %5506 = vmatpush1.bf16.msra.mxu0 %v5487
      %5507 = vmatprep.subr.bf16.mxu0 0
      %5508 = vmatpush1.bf16.msra.mxu0 %v5486
      %5509 = vmatprep.subr.bf16.mxu0 0
      %5510 = vmatpush1.bf16.msra.mxu0 %v5485
      %5511 = vmatprep.subr.bf16.mxu0 0
      %5512 = vmatpush1.bf16.msra.mxu0 %v5484
      %5513 = vmatprep.subr.bf16.mxu0 0
      %5514 = vmatpush1.bf16.msra.mxu0 %v5483
      %5515 = vmatprep.subr.bf16.mxu0 0
      %5516 = vmatpush2.bf16.msra.mxu0 0
      %5517 = vmatprep.subr.bf16.mxu0 0
      %5518 = vmatpush2.bf16.msra.mxu0 0
      %5519 = vmatprep.subr.bf16.mxu0 0
      %5520 = vmatpush2.bf16.msra.mxu0 0
      %5521 = vmatprep.subr.bf16.mxu0 0
      %5522 = vmatpush2.bf16.msra.mxu0 0
      %5523 = vmatprep.subr.bf16.mxu0 0
      %5524 = vmatpush2.bf16.msra.mxu0 0
      %5525 = vmatprep.subr.bf16.mxu0 0
      %5526 = vmatpush2.bf16.msra.mxu0 0
      %5527 = vmatprep.subr.bf16.mxu0 0
      %5528 = vmatpush2.bf16.msra.mxu0 0
      %5529 = vmatprep.subr.bf16.mxu0 0
      %5530 = vmatpush2.bf16.msra.mxu0 0
      %5531 = vmatprep.mubr.bf16.mxu0 0
      %5532 = vmatmul.mubr.bf16.gmra.mxu0 %v5421
      %v5533 = vpop.f32.mrf.mxu0
      %v5534 = vadd.f32 0.0, %v5533
      %v5535 = vpop.f32.mrf.mxu0
      %v5536 = vpop.f32.mrf.mxu0
      %v5537 = vadd.f32 0.0, %v5536
      %v5538 = vpop.f32.mrf.mxu0
      %5539 = vmatprep.mubr.bf16.mxu0 0
      %5540 = vmatmul.mubr.bf16.gmra.mxu0 %v5422
      %v5541 = vpop.f32.mrf.mxu0
      %v5542 = vadd.f32 0.0, %v5541
      %v5543 = vpop.f32.mrf.mxu0
      %v5544 = vpop.f32.mrf.mxu0
      %v5545 = vadd.f32 0.0, %v5544
      %v5546 = vpop.f32.mrf.mxu0
      %5547 = vmatprep.mubr.bf16.mxu0 0
      %5548 = vmatmul.mubr.bf16.gmra.mxu0 %v5423
      %v5549 = vpop.f32.mrf.mxu0
      %v5550 = vadd.f32 0.0, %v5549
      %v5551 = vpop.f32.mrf.mxu0
      %v5552 = vpop.f32.mrf.mxu0
      %v5553 = vadd.f32 0.0, %v5552
      %v5554 = vpop.f32.mrf.mxu0
      %5555 = vmatprep.mubr.bf16.mxu0 0
      %5556 = vmatmul.mubr.bf16.gmra.mxu0 %v5424
      %v5557 = vpop.f32.mrf.mxu0
      %v5558 = vadd.f32 0.0, %v5557
      %v5559 = vpop.f32.mrf.mxu0
      %v5560 = vpop.f32.mrf.mxu0
      %v5561 = vadd.f32 0.0, %v5560
      %v5562 = vpop.f32.mrf.mxu0
      %5563 = vmatprep.mubr.bf16.mxu0 0
      %5564 = vmatmul.mubr.bf16.gmra.mxu0 %v5425
      %v5565 = vpop.f32.mrf.mxu0
      %v5566 = vadd.f32 0.0, %v5565
      %v5567 = vpop.f32.mrf.mxu0
      %v5568 = vpop.f32.mrf.mxu0
      %v5569 = vadd.f32 0.0, %v5568
      %v5570 = vpop.f32.mrf.mxu0
      %5571 = vmatprep.mubr.bf16.mxu0 0
      %5572 = vmatmul.mubr.bf16.gmra.mxu0 %v5426
      %v5573 = vpop.f32.mrf.mxu0
      %v5574 = vadd.f32 0.0, %v5573
      %v5575 = vpop.f32.mrf.mxu0
      %v5576 = vpop.f32.mrf.mxu0
      %v5577 = vadd.f32 0.0, %v5576
      %v5578 = vpop.f32.mrf.mxu0
      %5579 = vmatprep.mubr.bf16.mxu0 0
      %5580 = vmatmul.mubr.bf16.gmra.mxu0 %v5427
      %v5581 = vpop.f32.mrf.mxu0
      %v5582 = vadd.f32 0.0, %v5581
      %v5583 = vpop.f32.mrf.mxu0
      %v5584 = vpop.f32.mrf.mxu0
      %v5585 = vadd.f32 0.0, %v5584
      %v5586 = vpop.f32.mrf.mxu0
      %5587 = vmatprep.mubr.bf16.mxu0 0
      %5588 = vmatmul.mubr.bf16.gmra.mxu0 %v5428
      %v5589 = vpop.f32.mrf.mxu0
      %v5590 = vadd.f32 0.0, %v5589
      %v5591 = vpop.f32.mrf.mxu0
      %v5592 = vpop.f32.mrf.mxu0
      %v5593 = vadd.f32 0.0, %v5592
      %v5594 = vpop.f32.mrf.mxu0
      %5595 = vmatprep.mubr.bf16.mxu0 0
      %5596 = vmatmul.mubr.bf16.gmra.mxu0 %v5429
      %v5597 = vpop.f32.mrf.mxu0
      %v5598 = vadd.f32 0.0, %v5597
      %v5599 = vpop.f32.mrf.mxu0
      %v5600 = vpop.f32.mrf.mxu0
      %v5601 = vadd.f32 0.0, %v5600
      %v5602 = vpop.f32.mrf.mxu0
      %5603 = vmatprep.mubr.bf16.mxu0 0
      %5604 = vmatmul.mubr.bf16.gmra.mxu0 %v5430
      %v5605 = vpop.f32.mrf.mxu0
      %v5606 = vadd.f32 0.0, %v5605
      %v5607 = vpop.f32.mrf.mxu0
      %v5608 = vpop.f32.mrf.mxu0
      %v5609 = vadd.f32 0.0, %v5608
      %v5610 = vpop.f32.mrf.mxu0
      %5611 = vmatprep.mubr.bf16.mxu0 0
      %5612 = vmatmul.mubr.bf16.gmra.mxu0 %v5431
      %v5613 = vpop.f32.mrf.mxu0
      %v5614 = vadd.f32 0.0, %v5613
      %v5615 = vpop.f32.mrf.mxu0
      %v5616 = vpop.f32.mrf.mxu0
      %v5617 = vadd.f32 0.0, %v5616
      %v5618 = vpop.f32.mrf.mxu0
      %5619 = vmatprep.mubr.bf16.mxu0 0
      %5620 = vmatmul.mubr.bf16.gmra.mxu0 %v5432
      %v5621 = vpop.f32.mrf.mxu0
      %v5622 = vadd.f32 0.0, %v5621
      %v5623 = vpop.f32.mrf.mxu0
      %v5624 = vpop.f32.mrf.mxu0
      %v5625 = vadd.f32 0.0, %v5624
      %v5626 = vpop.f32.mrf.mxu0
      %5627 = vmatprep.mubr.bf16.mxu0 0
      %5628 = vmatmul.mubr.bf16.gmra.mxu0 %v5433
      %v5629 = vpop.f32.mrf.mxu0
      %v5630 = vadd.f32 0.0, %v5629
      %v5631 = vpop.f32.mrf.mxu0
      %v5632 = vpop.f32.mrf.mxu0
      %v5633 = vpop.f32.mrf.mxu0
      %5634 = vdwg.mxu0
      %v5635 = vadd.f32 %v5371, %v5534
      %v5636 = vadd.f32 %v5372, %v5537
      %v5637 = vadd.f32 %v5373, %v5542
      %v5638 = vadd.f32 %v5374, %v5545
      %v5639 = vadd.f32 %v5375, %v5550
      %v5640 = vadd.f32 %v5376, %v5553
      %v5641 = vadd.f32 %v5377, %v5558
      %v5642 = vadd.f32 %v5378, %v5561
      %v5643 = vadd.f32 %v5379, %v5566
      %v5644 = vadd.f32 %v5380, %v5569
      %v5645 = vadd.f32 %v5381, %v5574
      %v5646 = vadd.f32 %v5382, %v5577
      %v5647 = vadd.f32 %v5383, %v5582
      %v5648 = vadd.f32 %v5384, %v5585
      %v5649 = vadd.f32 %v5385, %v5590
      %v5650 = vadd.f32 %v5386, %v5593
      %v5651 = vadd.f32 %v5387, %v5598
      %v5652 = vadd.f32 %v5388, %v5601
      %v5653 = vadd.f32 %v5389, %v5606
      %v5654 = vadd.f32 %v5390, %v5609
      %v5655 = vadd.f32 %v5391, %v5614
      %v5656 = vadd.f32 %v5392, %v5617
      %v5657 = vadd.f32 %v5393, %v5622
      %v5658 = vadd.f32 %v5394, %v5625
      %v5659 = vadd.f32 %v5395, %v5630
      %v5660 = vld [vmem:[#allocation2 + $0x2b] sm:$0xff]
      %v5661 = vld [vmem:[#allocation2 + $0x33] sm:$0xff]
      %v5662 = vld [vmem:[#allocation2 + $0x3b] sm:$0xff]
      %v5663 = vld [vmem:[#allocation2 + $0x43] sm:$0xff]
      %v5664 = vld [vmem:[#allocation2 + $0x4b] sm:$0xff]
      %v5665 = vld [vmem:[#allocation2 + $0x53] sm:$0xff]
      %v5666 = vld [vmem:[#allocation2 + $0x5b] sm:$0xff]
      %v5667 = vld [vmem:[#allocation2 + $0x63] sm:$0xff]
      %v5668 = vld [vmem:[#allocation2 + $0x6b] sm:$0xff]
      %v5669 = vld [vmem:[#allocation2 + $0x73] sm:$0xff]
      %v5670 = vld [vmem:[#allocation2 + $0x7b] sm:$0xff]
      %v5671 = vld [vmem:[#allocation2 + $0x83] sm:$0xff]
      %v5672 = vld [vmem:[#allocation2 + $0x8b] sm:$0xff]
      %v5673 = vld [vmem:[#allocation2 + $0x93] sm:$0xff]
      %v5674 = vld [vmem:[#allocation2 + $0x9b] sm:$0xff]
      %v5675 = vld [vmem:[#allocation2 + $0xa3] sm:$0xff]
      %v5676 = vld [vmem:[#allocation2 + $0xab] sm:$0xff]
      %v5677 = vld [vmem:[#allocation2 + $0xb3] sm:$0xff]
      %v5678 = vld [vmem:[#allocation2 + $0xbb] sm:$0xff]
      %v5679 = vld [vmem:[#allocation2 + $0xc3] sm:$0xff]
      %v5680 = vld [vmem:[#allocation2 + $0xcb] sm:$0xff]
      %v5681 = vld [vmem:[#allocation2 + $0xd3] sm:$0xff]
      %v5682 = vld [vmem:[#allocation2 + $0xdb] sm:$0xff]
      %v5683 = vld [vmem:[#allocation2 + $0xe3] sm:$0xff]
      %v5684 = vld [vmem:[#allocation2 + $0xeb] sm:$0xf]
      %v5685 = vpack.c.bf16 %v5661, %v5660
      %v5686 = vpack.c.bf16 %v5663, %v5662
      %v5687 = vpack.c.bf16 %v5665, %v5664
      %v5688 = vpack.c.bf16 %v5667, %v5666
      %v5689 = vpack.c.bf16 %v5669, %v5668
      %v5690 = vpack.c.bf16 %v5671, %v5670
      %v5691 = vpack.c.bf16 %v5673, %v5672
      %v5692 = vpack.c.bf16 %v5675, %v5674
      %v5693 = vpack.c.bf16 %v5677, %v5676
      %v5694 = vpack.c.bf16 %v5679, %v5678
      %v5695 = vpack.c.bf16 %v5681, %v5680
      %v5696 = vpack.c.bf16 %v5683, %v5682
      %v5697 = vpack.c.bf16 %v5684, %v5684
      %s5698 = scalar_lea.vmem %s3, 1024
      %v5699 = vld [vmem:[%s5698] sm:$0xf]
      %v5700 = vld [vmem:[%s5698 + $0x4] sm:$0xf]
      %v5701 = vld [vmem:[%s5698 + $0x8] sm:$0xf]
      %v5702 = vld [vmem:[%s5698 + $0xc] sm:$0xf]
      %v5703 = vld [vmem:[%s5698 + $0x10] sm:$0xf]
      %v5704 = vld [vmem:[%s5698 + $0x14] sm:$0xf]
      %v5705 = vld [vmem:[%s5698 + $0x18] sm:$0xf]
      %v5706 = vld [vmem:[%s5698 + $0x1c] sm:$0xf]
      %v5707 = vld [vmem:[%s5698 + $0x20] sm:$0xf]
      %v5708 = vld [vmem:[%s5698 + $0x24] sm:$0xf]
      %v5709 = vld [vmem:[%s5698 + $0x28] sm:$0xf]
      %v5710 = vld [vmem:[%s5698 + $0x2c] sm:$0xf]
      %v5711 = vld [vmem:[%s5698 + $0x30] sm:$0xf]
      %v5712 = vld [vmem:[%s5698 + $0x34] sm:$0xf]
      %v5713 = vld [vmem:[%s5698 + $0x38] sm:$0xf]
      %v5714 = vld [vmem:[%s5698 + $0x3c] sm:$0xf]
      %v5731 = vunpack.c.l.b16 %v5699
      %v5732 = vunpack.c.l.b16 %v5700
      %v5733 = vunpack.c.l.b16 %v5701
      %v5734 = vunpack.c.l.b16 %v5702
      %v5735 = vunpack.c.l.b16 %v5703
      %v5736 = vunpack.c.l.b16 %v5704
      %v5737 = vunpack.c.l.b16 %v5705
      %v5738 = vunpack.c.l.b16 %v5706
      %v5739 = vunpack.c.l.b16 %v5707
      %v5740 = vunpack.c.l.b16 %v5708
      %v5741 = vunpack.c.l.b16 %v5709
      %v5742 = vunpack.c.l.b16 %v5710
      %v5743 = vunpack.c.l.b16 %v5711
      %v5744 = vunpack.c.l.b16 %v5712
      %v5745 = vunpack.c.l.b16 %v5713
      %v5746 = vunpack.c.l.b16 %v5714
      %v5747 = vpack.c.b16 %v5732, %v5731
      %v5748 = vpack.c.b16 %v5734, %v5733
      %v5749 = vpack.c.b16 %v5736, %v5735
      %v5750 = vpack.c.b16 %v5738, %v5737
      %v5751 = vpack.c.b16 %v5740, %v5739
      %v5752 = vpack.c.b16 %v5742, %v5741
      %v5753 = vpack.c.b16 %v5744, %v5743
      %v5754 = vpack.c.b16 %v5746, %v5745
      %5763 = vmatprep.subr.bf16.mxu0 0
      %5764 = vmatpush1.bf16.msra.mxu0 %v5754
      %5765 = vmatprep.subr.bf16.mxu0 0
      %5766 = vmatpush1.bf16.msra.mxu0 %v5753
      %5767 = vmatprep.subr.bf16.mxu0 0
      %5768 = vmatpush1.bf16.msra.mxu0 %v5752
      %5769 = vmatprep.subr.bf16.mxu0 0
      %5770 = vmatpush1.bf16.msra.mxu0 %v5751
      %5771 = vmatprep.subr.bf16.mxu0 0
      %5772 = vmatpush1.bf16.msra.mxu0 %v5750
      %5773 = vmatprep.subr.bf16.mxu0 0
      %5774 = vmatpush1.bf16.msra.mxu0 %v5749
      %5775 = vmatprep.subr.bf16.mxu0 0
      %5776 = vmatpush1.bf16.msra.mxu0 %v5748
      %5777 = vmatprep.subr.bf16.mxu0 0
      %5778 = vmatpush1.bf16.msra.mxu0 %v5747
      %5779 = vmatprep.subr.bf16.mxu0 0
      %5780 = vmatpush2.bf16.msra.mxu0 0
      %5781 = vmatprep.subr.bf16.mxu0 0
      %5782 = vmatpush2.bf16.msra.mxu0 0
      %5783 = vmatprep.subr.bf16.mxu0 0
      %5784 = vmatpush2.bf16.msra.mxu0 0
      %5785 = vmatprep.subr.bf16.mxu0 0
      %5786 = vmatpush2.bf16.msra.mxu0 0
      %5787 = vmatprep.subr.bf16.mxu0 0
      %5788 = vmatpush2.bf16.msra.mxu0 0
      %5789 = vmatprep.subr.bf16.mxu0 0
      %5790 = vmatpush2.bf16.msra.mxu0 0
      %5791 = vmatprep.subr.bf16.mxu0 0
      %5792 = vmatpush2.bf16.msra.mxu0 0
      %5793 = vmatprep.subr.bf16.mxu0 0
      %5794 = vmatpush2.bf16.msra.mxu0 0
      %5795 = vmatprep.mubr.bf16.mxu0 0
      %5796 = vmatmul.mubr.bf16.gmra.mxu0 %v5685
      %v5797 = vpop.f32.mrf.mxu0
      %v5798 = vadd.f32 0.0, %v5797
      %v5799 = vpop.f32.mrf.mxu0
      %v5800 = vpop.f32.mrf.mxu0
      %v5801 = vadd.f32 0.0, %v5800
      %v5802 = vpop.f32.mrf.mxu0
      %5803 = vmatprep.mubr.bf16.mxu0 0
      %5804 = vmatmul.mubr.bf16.gmra.mxu0 %v5686
      %v5805 = vpop.f32.mrf.mxu0
      %v5806 = vadd.f32 0.0, %v5805
      %v5807 = vpop.f32.mrf.mxu0
      %v5808 = vpop.f32.mrf.mxu0
      %v5809 = vadd.f32 0.0, %v5808
      %v5810 = vpop.f32.mrf.mxu0
      %5811 = vmatprep.mubr.bf16.mxu0 0
      %5812 = vmatmul.mubr.bf16.gmra.mxu0 %v5687
      %v5813 = vpop.f32.mrf.mxu0
      %v5814 = vadd.f32 0.0, %v5813
      %v5815 = vpop.f32.mrf.mxu0
      %v5816 = vpop.f32.mrf.mxu0
      %v5817 = vadd.f32 0.0, %v5816
      %v5818 = vpop.f32.mrf.mxu0
      %5819 = vmatprep.mubr.bf16.mxu0 0
      %5820 = vmatmul.mubr.bf16.gmra.mxu0 %v5688
      %v5821 = vpop.f32.mrf.mxu0
      %v5822 = vadd.f32 0.0, %v5821
      %v5823 = vpop.f32.mrf.mxu0
      %v5824 = vpop.f32.mrf.mxu0
      %v5825 = vadd.f32 0.0, %v5824
      %v5826 = vpop.f32.mrf.mxu0
      %5827 = vmatprep.mubr.bf16.mxu0 0
      %5828 = vmatmul.mubr.bf16.gmra.mxu0 %v5689
      %v5829 = vpop.f32.mrf.mxu0
      %v5830 = vadd.f32 0.0, %v5829
      %v5831 = vpop.f32.mrf.mxu0
      %v5832 = vpop.f32.mrf.mxu0
      %v5833 = vadd.f32 0.0, %v5832
      %v5834 = vpop.f32.mrf.mxu0
      %5835 = vmatprep.mubr.bf16.mxu0 0
      %5836 = vmatmul.mubr.bf16.gmra.mxu0 %v5690
      %v5837 = vpop.f32.mrf.mxu0
      %v5838 = vadd.f32 0.0, %v5837
      %v5839 = vpop.f32.mrf.mxu0
      %v5840 = vpop.f32.mrf.mxu0
      %v5841 = vadd.f32 0.0, %v5840
      %v5842 = vpop.f32.mrf.mxu0
      %5843 = vmatprep.mubr.bf16.mxu0 0
      %5844 = vmatmul.mubr.bf16.gmra.mxu0 %v5691
      %v5845 = vpop.f32.mrf.mxu0
      %v5846 = vadd.f32 0.0, %v5845
      %v5847 = vpop.f32.mrf.mxu0
      %v5848 = vpop.f32.mrf.mxu0
      %v5849 = vadd.f32 0.0, %v5848
      %v5850 = vpop.f32.mrf.mxu0
      %5851 = vmatprep.mubr.bf16.mxu0 0
      %5852 = vmatmul.mubr.bf16.gmra.mxu0 %v5692
      %v5853 = vpop.f32.mrf.mxu0
      %v5854 = vadd.f32 0.0, %v5853
      %v5855 = vpop.f32.mrf.mxu0
      %v5856 = vpop.f32.mrf.mxu0
      %v5857 = vadd.f32 0.0, %v5856
      %v5858 = vpop.f32.mrf.mxu0
      %5859 = vmatprep.mubr.bf16.mxu0 0
      %5860 = vmatmul.mubr.bf16.gmra.mxu0 %v5693
      %v5861 = vpop.f32.mrf.mxu0
      %v5862 = vadd.f32 0.0, %v5861
      %v5863 = vpop.f32.mrf.mxu0
      %v5864 = vpop.f32.mrf.mxu0
      %v5865 = vadd.f32 0.0, %v5864
      %v5866 = vpop.f32.mrf.mxu0
      %5867 = vmatprep.mubr.bf16.mxu0 0
      %5868 = vmatmul.mubr.bf16.gmra.mxu0 %v5694
      %v5869 = vpop.f32.mrf.mxu0
      %v5870 = vadd.f32 0.0, %v5869
      %v5871 = vpop.f32.mrf.mxu0
      %v5872 = vpop.f32.mrf.mxu0
      %v5873 = vadd.f32 0.0, %v5872
      %v5874 = vpop.f32.mrf.mxu0
      %5875 = vmatprep.mubr.bf16.mxu0 0
      %5876 = vmatmul.mubr.bf16.gmra.mxu0 %v5695
      %v5877 = vpop.f32.mrf.mxu0
      %v5878 = vadd.f32 0.0, %v5877
      %v5879 = vpop.f32.mrf.mxu0
      %v5880 = vpop.f32.mrf.mxu0
      %v5881 = vadd.f32 0.0, %v5880
      %v5882 = vpop.f32.mrf.mxu0
      %5883 = vmatprep.mubr.bf16.mxu0 0
      %5884 = vmatmul.mubr.bf16.gmra.mxu0 %v5696
      %v5885 = vpop.f32.mrf.mxu0
      %v5886 = vadd.f32 0.0, %v5885
      %v5887 = vpop.f32.mrf.mxu0
      %v5888 = vpop.f32.mrf.mxu0
      %v5889 = vadd.f32 0.0, %v5888
      %v5890 = vpop.f32.mrf.mxu0
      %5891 = vmatprep.mubr.bf16.mxu0 0
      %5892 = vmatmul.mubr.bf16.gmra.mxu0 %v5697
      %v5893 = vpop.f32.mrf.mxu0
      %v5894 = vadd.f32 0.0, %v5893
      %v5895 = vpop.f32.mrf.mxu0
      %v5896 = vpop.f32.mrf.mxu0
      %v5897 = vpop.f32.mrf.mxu0
      %5898 = vdwg.mxu0
      %v5899 = vadd.f32 %v5635, %v5798
      %v5900 = vadd.f32 %v5636, %v5801
      %v5901 = vadd.f32 %v5637, %v5806
      %v5902 = vadd.f32 %v5638, %v5809
      %v5903 = vadd.f32 %v5639, %v5814
      %v5904 = vadd.f32 %v5640, %v5817
      %v5905 = vadd.f32 %v5641, %v5822
      %v5906 = vadd.f32 %v5642, %v5825
      %v5907 = vadd.f32 %v5643, %v5830
      %v5908 = vadd.f32 %v5644, %v5833
      %v5909 = vadd.f32 %v5645, %v5838
      %v5910 = vadd.f32 %v5646, %v5841
      %v5911 = vadd.f32 %v5647, %v5846
      %v5912 = vadd.f32 %v5648, %v5849
      %v5913 = vadd.f32 %v5649, %v5854
      %v5914 = vadd.f32 %v5650, %v5857
      %v5915 = vadd.f32 %v5651, %v5862
      %v5916 = vadd.f32 %v5652, %v5865
      %v5917 = vadd.f32 %v5653, %v5870
      %v5918 = vadd.f32 %v5654, %v5873
      %v5919 = vadd.f32 %v5655, %v5878
      %v5920 = vadd.f32 %v5656, %v5881
      %v5921 = vadd.f32 %v5657, %v5886
      %v5922 = vadd.f32 %v5658, %v5889
      %v5923 = vadd.f32 %v5659, %v5894
      %v5924 = vld [vmem:[#allocation2 + $0x2c] sm:$0xff]
      %v5925 = vld [vmem:[#allocation2 + $0x34] sm:$0xff]
      %v5926 = vld [vmem:[#allocation2 + $0x3c] sm:$0xff]
      %v5927 = vld [vmem:[#allocation2 + $0x44] sm:$0xff]
      %v5928 = vld [vmem:[#allocation2 + $0x4c] sm:$0xff]
      %v5929 = vld [vmem:[#allocation2 + $0x54] sm:$0xff]
      %v5930 = vld [vmem:[#allocation2 + $0x5c] sm:$0xff]
      %v5931 = vld [vmem:[#allocation2 + $0x64] sm:$0xff]
      %v5932 = vld [vmem:[#allocation2 + $0x6c] sm:$0xff]
      %v5933 = vld [vmem:[#allocation2 + $0x74] sm:$0xff]
      %v5934 = vld [vmem:[#allocation2 + $0x7c] sm:$0xff]
      %v5935 = vld [vmem:[#allocation2 + $0x84] sm:$0xff]
      %v5936 = vld [vmem:[#allocation2 + $0x8c] sm:$0xff]
      %v5937 = vld [vmem:[#allocation2 + $0x94] sm:$0xff]
      %v5938 = vld [vmem:[#allocation2 + $0x9c] sm:$0xff]
      %v5939 = vld [vmem:[#allocation2 + $0xa4] sm:$0xff]
      %v5940 = vld [vmem:[#allocation2 + $0xac] sm:$0xff]
      %v5941 = vld [vmem:[#allocation2 + $0xb4] sm:$0xff]
      %v5942 = vld [vmem:[#allocation2 + $0xbc] sm:$0xff]
      %v5943 = vld [vmem:[#allocation2 + $0xc4] sm:$0xff]
      %v5944 = vld [vmem:[#allocation2 + $0xcc] sm:$0xff]
      %v5945 = vld [vmem:[#allocation2 + $0xd4] sm:$0xff]
      %v5946 = vld [vmem:[#allocation2 + $0xdc] sm:$0xff]
      %v5947 = vld [vmem:[#allocation2 + $0xe4] sm:$0xff]
      %v5948 = vld [vmem:[#allocation2 + $0xec] sm:$0xf]
      %v5949 = vpack.c.bf16 %v5925, %v5924
      %v5950 = vpack.c.bf16 %v5927, %v5926
      %v5951 = vpack.c.bf16 %v5929, %v5928
      %v5952 = vpack.c.bf16 %v5931, %v5930
      %v5953 = vpack.c.bf16 %v5933, %v5932
      %v5954 = vpack.c.bf16 %v5935, %v5934
      %v5955 = vpack.c.bf16 %v5937, %v5936
      %v5956 = vpack.c.bf16 %v5939, %v5938
      %v5957 = vpack.c.bf16 %v5941, %v5940
      %v5958 = vpack.c.bf16 %v5943, %v5942
      %v5959 = vpack.c.bf16 %v5945, %v5944
      %v5960 = vpack.c.bf16 %v5947, %v5946
      %v5961 = vpack.c.bf16 %v5948, %v5948
      %s5962 = scalar_lea.vmem %s3, 1088
      %v5963 = vld [vmem:[%s5962] sm:$0xf]
      %v5964 = vld [vmem:[%s5962 + $0x4] sm:$0xf]
      %v5965 = vld [vmem:[%s5962 + $0x8] sm:$0xf]
      %v5966 = vld [vmem:[%s5962 + $0xc] sm:$0xf]
      %v5967 = vld [vmem:[%s5962 + $0x10] sm:$0xf]
      %v5968 = vld [vmem:[%s5962 + $0x14] sm:$0xf]
      %v5969 = vld [vmem:[%s5962 + $0x18] sm:$0xf]
      %v5970 = vld [vmem:[%s5962 + $0x1c] sm:$0xf]
      %v5971 = vld [vmem:[%s5962 + $0x20] sm:$0xf]
      %v5972 = vld [vmem:[%s5962 + $0x24] sm:$0xf]
      %v5973 = vld [vmem:[%s5962 + $0x28] sm:$0xf]
      %v5974 = vld [vmem:[%s5962 + $0x2c] sm:$0xf]
      %v5975 = vld [vmem:[%s5962 + $0x30] sm:$0xf]
      %v5976 = vld [vmem:[%s5962 + $0x34] sm:$0xf]
      %v5977 = vld [vmem:[%s5962 + $0x38] sm:$0xf]
      %v5978 = vld [vmem:[%s5962 + $0x3c] sm:$0xf]
      %v5995 = vunpack.c.l.b16 %v5963
      %v5996 = vunpack.c.l.b16 %v5964
      %v5997 = vunpack.c.l.b16 %v5965
      %v5998 = vunpack.c.l.b16 %v5966
      %v5999 = vunpack.c.l.b16 %v5967
      %v6000 = vunpack.c.l.b16 %v5968
      %v6001 = vunpack.c.l.b16 %v5969
      %v6002 = vunpack.c.l.b16 %v5970
      %v6003 = vunpack.c.l.b16 %v5971
      %v6004 = vunpack.c.l.b16 %v5972
      %v6005 = vunpack.c.l.b16 %v5973
      %v6006 = vunpack.c.l.b16 %v5974
      %v6007 = vunpack.c.l.b16 %v5975
      %v6008 = vunpack.c.l.b16 %v5976
      %v6009 = vunpack.c.l.b16 %v5977
      %v6010 = vunpack.c.l.b16 %v5978
      %v6011 = vpack.c.b16 %v5996, %v5995
      %v6012 = vpack.c.b16 %v5998, %v5997
      %v6013 = vpack.c.b16 %v6000, %v5999
      %v6014 = vpack.c.b16 %v6002, %v6001
      %v6015 = vpack.c.b16 %v6004, %v6003
      %v6016 = vpack.c.b16 %v6006, %v6005
      %v6017 = vpack.c.b16 %v6008, %v6007
      %v6018 = vpack.c.b16 %v6010, %v6009
      %6027 = vmatprep.subr.bf16.mxu0 0
      %6028 = vmatpush1.bf16.msra.mxu0 %v6018
      %6029 = vmatprep.subr.bf16.mxu0 0
      %6030 = vmatpush1.bf16.msra.mxu0 %v6017
      %6031 = vmatprep.subr.bf16.mxu0 0
      %6032 = vmatpush1.bf16.msra.mxu0 %v6016
      %6033 = vmatprep.subr.bf16.mxu0 0
      %6034 = vmatpush1.bf16.msra.mxu0 %v6015
      %6035 = vmatprep.subr.bf16.mxu0 0
      %6036 = vmatpush1.bf16.msra.mxu0 %v6014
      %6037 = vmatprep.subr.bf16.mxu0 0
      %6038 = vmatpush1.bf16.msra.mxu0 %v6013
      %6039 = vmatprep.subr.bf16.mxu0 0
      %6040 = vmatpush1.bf16.msra.mxu0 %v6012
      %6041 = vmatprep.subr.bf16.mxu0 0
      %6042 = vmatpush1.bf16.msra.mxu0 %v6011
      %6043 = vmatprep.subr.bf16.mxu0 0
      %6044 = vmatpush2.bf16.msra.mxu0 0
      %6045 = vmatprep.subr.bf16.mxu0 0
      %6046 = vmatpush2.bf16.msra.mxu0 0
      %6047 = vmatprep.subr.bf16.mxu0 0
      %6048 = vmatpush2.bf16.msra.mxu0 0
      %6049 = vmatprep.subr.bf16.mxu0 0
      %6050 = vmatpush2.bf16.msra.mxu0 0
      %6051 = vmatprep.subr.bf16.mxu0 0
      %6052 = vmatpush2.bf16.msra.mxu0 0
      %6053 = vmatprep.subr.bf16.mxu0 0
      %6054 = vmatpush2.bf16.msra.mxu0 0
      %6055 = vmatprep.subr.bf16.mxu0 0
      %6056 = vmatpush2.bf16.msra.mxu0 0
      %6057 = vmatprep.subr.bf16.mxu0 0
      %6058 = vmatpush2.bf16.msra.mxu0 0
      %6059 = vmatprep.mubr.bf16.mxu0 0
      %6060 = vmatmul.mubr.bf16.gmra.mxu0 %v5949
      %v6061 = vpop.f32.mrf.mxu0
      %v6062 = vadd.f32 0.0, %v6061
      %v6063 = vpop.f32.mrf.mxu0
      %v6064 = vpop.f32.mrf.mxu0
      %v6065 = vadd.f32 0.0, %v6064
      %v6066 = vpop.f32.mrf.mxu0
      %6067 = vmatprep.mubr.bf16.mxu0 0
      %6068 = vmatmul.mubr.bf16.gmra.mxu0 %v5950
      %v6069 = vpop.f32.mrf.mxu0
      %v6070 = vadd.f32 0.0, %v6069
      %v6071 = vpop.f32.mrf.mxu0
      %v6072 = vpop.f32.mrf.mxu0
      %v6073 = vadd.f32 0.0, %v6072
      %v6074 = vpop.f32.mrf.mxu0
      %6075 = vmatprep.mubr.bf16.mxu0 0
      %6076 = vmatmul.mubr.bf16.gmra.mxu0 %v5951
      %v6077 = vpop.f32.mrf.mxu0
      %v6078 = vadd.f32 0.0, %v6077
      %v6079 = vpop.f32.mrf.mxu0
      %v6080 = vpop.f32.mrf.mxu0
      %v6081 = vadd.f32 0.0, %v6080
      %v6082 = vpop.f32.mrf.mxu0
      %6083 = vmatprep.mubr.bf16.mxu0 0
      %6084 = vmatmul.mubr.bf16.gmra.mxu0 %v5952
      %v6085 = vpop.f32.mrf.mxu0
      %v6086 = vadd.f32 0.0, %v6085
      %v6087 = vpop.f32.mrf.mxu0
      %v6088 = vpop.f32.mrf.mxu0
      %v6089 = vadd.f32 0.0, %v6088
      %v6090 = vpop.f32.mrf.mxu0
      %6091 = vmatprep.mubr.bf16.mxu0 0
      %6092 = vmatmul.mubr.bf16.gmra.mxu0 %v5953
      %v6093 = vpop.f32.mrf.mxu0
      %v6094 = vadd.f32 0.0, %v6093
      %v6095 = vpop.f32.mrf.mxu0
      %v6096 = vpop.f32.mrf.mxu0
      %v6097 = vadd.f32 0.0, %v6096
      %v6098 = vpop.f32.mrf.mxu0
      %6099 = vmatprep.mubr.bf16.mxu0 0
      %6100 = vmatmul.mubr.bf16.gmra.mxu0 %v5954
      %v6101 = vpop.f32.mrf.mxu0
      %v6102 = vadd.f32 0.0, %v6101
      %v6103 = vpop.f32.mrf.mxu0
      %v6104 = vpop.f32.mrf.mxu0
      %v6105 = vadd.f32 0.0, %v6104
      %v6106 = vpop.f32.mrf.mxu0
      %6107 = vmatprep.mubr.bf16.mxu0 0
      %6108 = vmatmul.mubr.bf16.gmra.mxu0 %v5955
      %v6109 = vpop.f32.mrf.mxu0
      %v6110 = vadd.f32 0.0, %v6109
      %v6111 = vpop.f32.mrf.mxu0
      %v6112 = vpop.f32.mrf.mxu0
      %v6113 = vadd.f32 0.0, %v6112
      %v6114 = vpop.f32.mrf.mxu0
      %6115 = vmatprep.mubr.bf16.mxu0 0
      %6116 = vmatmul.mubr.bf16.gmra.mxu0 %v5956
      %v6117 = vpop.f32.mrf.mxu0
      %v6118 = vadd.f32 0.0, %v6117
      %v6119 = vpop.f32.mrf.mxu0
      %v6120 = vpop.f32.mrf.mxu0
      %v6121 = vadd.f32 0.0, %v6120
      %v6122 = vpop.f32.mrf.mxu0
      %6123 = vmatprep.mubr.bf16.mxu0 0
      %6124 = vmatmul.mubr.bf16.gmra.mxu0 %v5957
      %v6125 = vpop.f32.mrf.mxu0
      %v6126 = vadd.f32 0.0, %v6125
      %v6127 = vpop.f32.mrf.mxu0
      %v6128 = vpop.f32.mrf.mxu0
      %v6129 = vadd.f32 0.0, %v6128
      %v6130 = vpop.f32.mrf.mxu0
      %6131 = vmatprep.mubr.bf16.mxu0 0
      %6132 = vmatmul.mubr.bf16.gmra.mxu0 %v5958
      %v6133 = vpop.f32.mrf.mxu0
      %v6134 = vadd.f32 0.0, %v6133
      %v6135 = vpop.f32.mrf.mxu0
      %v6136 = vpop.f32.mrf.mxu0
      %v6137 = vadd.f32 0.0, %v6136
      %v6138 = vpop.f32.mrf.mxu0
      %6139 = vmatprep.mubr.bf16.mxu0 0
      %6140 = vmatmul.mubr.bf16.gmra.mxu0 %v5959
      %v6141 = vpop.f32.mrf.mxu0
      %v6142 = vadd.f32 0.0, %v6141
      %v6143 = vpop.f32.mrf.mxu0
      %v6144 = vpop.f32.mrf.mxu0
      %v6145 = vadd.f32 0.0, %v6144
      %v6146 = vpop.f32.mrf.mxu0
      %6147 = vmatprep.mubr.bf16.mxu0 0
      %6148 = vmatmul.mubr.bf16.gmra.mxu0 %v5960
      %v6149 = vpop.f32.mrf.mxu0
      %v6150 = vadd.f32 0.0, %v6149
      %v6151 = vpop.f32.mrf.mxu0
      %v6152 = vpop.f32.mrf.mxu0
      %v6153 = vadd.f32 0.0, %v6152
      %v6154 = vpop.f32.mrf.mxu0
      %6155 = vmatprep.mubr.bf16.mxu0 0
      %6156 = vmatmul.mubr.bf16.gmra.mxu0 %v5961
      %v6157 = vpop.f32.mrf.mxu0
      %v6158 = vadd.f32 0.0, %v6157
      %v6159 = vpop.f32.mrf.mxu0
      %v6160 = vpop.f32.mrf.mxu0
      %v6161 = vpop.f32.mrf.mxu0
      %6162 = vdwg.mxu0
      %v6163 = vadd.f32 %v5899, %v6062
      %v6164 = vadd.f32 %v5900, %v6065
      %v6165 = vadd.f32 %v5901, %v6070
      %v6166 = vadd.f32 %v5902, %v6073
      %v6167 = vadd.f32 %v5903, %v6078
      %v6168 = vadd.f32 %v5904, %v6081
      %v6169 = vadd.f32 %v5905, %v6086
      %v6170 = vadd.f32 %v5906, %v6089
      %v6171 = vadd.f32 %v5907, %v6094
      %v6172 = vadd.f32 %v5908, %v6097
      %v6173 = vadd.f32 %v5909, %v6102
      %v6174 = vadd.f32 %v5910, %v6105
      %v6175 = vadd.f32 %v5911, %v6110
      %v6176 = vadd.f32 %v5912, %v6113
      %v6177 = vadd.f32 %v5913, %v6118
      %v6178 = vadd.f32 %v5914, %v6121
      %v6179 = vadd.f32 %v5915, %v6126
      %v6180 = vadd.f32 %v5916, %v6129
      %v6181 = vadd.f32 %v5917, %v6134
      %v6182 = vadd.f32 %v5918, %v6137
      %v6183 = vadd.f32 %v5919, %v6142
      %v6184 = vadd.f32 %v5920, %v6145
      %v6185 = vadd.f32 %v5921, %v6150
      %v6186 = vadd.f32 %v5922, %v6153
      %v6187 = vadd.f32 %v5923, %v6158
      %v6188 = vld [vmem:[#allocation2 + $0x2d] sm:$0xff]
      %v6189 = vld [vmem:[#allocation2 + $0x35] sm:$0xff]
      %v6190 = vld [vmem:[#allocation2 + $0x3d] sm:$0xff]
      %v6191 = vld [vmem:[#allocation2 + $0x45] sm:$0xff]
      %v6192 = vld [vmem:[#allocation2 + $0x4d] sm:$0xff]
      %v6193 = vld [vmem:[#allocation2 + $0x55] sm:$0xff]
      %v6194 = vld [vmem:[#allocation2 + $0x5d] sm:$0xff]
      %v6195 = vld [vmem:[#allocation2 + $0x65] sm:$0xff]
      %v6196 = vld [vmem:[#allocation2 + $0x6d] sm:$0xff]
      %v6197 = vld [vmem:[#allocation2 + $0x75] sm:$0xff]
      %v6198 = vld [vmem:[#allocation2 + $0x7d] sm:$0xff]
      %v6199 = vld [vmem:[#allocation2 + $0x85] sm:$0xff]
      %v6200 = vld [vmem:[#allocation2 + $0x8d] sm:$0xff]
      %v6201 = vld [vmem:[#allocation2 + $0x95] sm:$0xff]
      %v6202 = vld [vmem:[#allocation2 + $0x9d] sm:$0xff]
      %v6203 = vld [vmem:[#allocation2 + $0xa5] sm:$0xff]
      %v6204 = vld [vmem:[#allocation2 + $0xad] sm:$0xff]
      %v6205 = vld [vmem:[#allocation2 + $0xb5] sm:$0xff]
      %v6206 = vld [vmem:[#allocation2 + $0xbd] sm:$0xff]
      %v6207 = vld [vmem:[#allocation2 + $0xc5] sm:$0xff]
      %v6208 = vld [vmem:[#allocation2 + $0xcd] sm:$0xff]
      %v6209 = vld [vmem:[#allocation2 + $0xd5] sm:$0xff]
      %v6210 = vld [vmem:[#allocation2 + $0xdd] sm:$0xff]
      %v6211 = vld [vmem:[#allocation2 + $0xe5] sm:$0xff]
      %v6212 = vld [vmem:[#allocation2 + $0xed] sm:$0xf]
      %v6213 = vpack.c.bf16 %v6189, %v6188
      %v6214 = vpack.c.bf16 %v6191, %v6190
      %v6215 = vpack.c.bf16 %v6193, %v6192
      %v6216 = vpack.c.bf16 %v6195, %v6194
      %v6217 = vpack.c.bf16 %v6197, %v6196
      %v6218 = vpack.c.bf16 %v6199, %v6198
      %v6219 = vpack.c.bf16 %v6201, %v6200
      %v6220 = vpack.c.bf16 %v6203, %v6202
      %v6221 = vpack.c.bf16 %v6205, %v6204
      %v6222 = vpack.c.bf16 %v6207, %v6206
      %v6223 = vpack.c.bf16 %v6209, %v6208
      %v6224 = vpack.c.bf16 %v6211, %v6210
      %v6225 = vpack.c.bf16 %v6212, %v6212
      %s6226 = scalar_lea.vmem %s3, 1152
      %v6227 = vld [vmem:[%s6226] sm:$0xf]
      %v6228 = vld [vmem:[%s6226 + $0x4] sm:$0xf]
      %v6229 = vld [vmem:[%s6226 + $0x8] sm:$0xf]
      %v6230 = vld [vmem:[%s6226 + $0xc] sm:$0xf]
      %v6231 = vld [vmem:[%s6226 + $0x10] sm:$0xf]
      %v6232 = vld [vmem:[%s6226 + $0x14] sm:$0xf]
      %v6233 = vld [vmem:[%s6226 + $0x18] sm:$0xf]
      %v6234 = vld [vmem:[%s6226 + $0x1c] sm:$0xf]
      %v6235 = vld [vmem:[%s6226 + $0x20] sm:$0xf]
      %v6236 = vld [vmem:[%s6226 + $0x24] sm:$0xf]
      %v6237 = vld [vmem:[%s6226 + $0x28] sm:$0xf]
      %v6238 = vld [vmem:[%s6226 + $0x2c] sm:$0xf]
      %v6239 = vld [vmem:[%s6226 + $0x30] sm:$0xf]
      %v6240 = vld [vmem:[%s6226 + $0x34] sm:$0xf]
      %v6241 = vld [vmem:[%s6226 + $0x38] sm:$0xf]
      %v6242 = vld [vmem:[%s6226 + $0x3c] sm:$0xf]
      %v6259 = vunpack.c.l.b16 %v6227
      %v6260 = vunpack.c.l.b16 %v6228
      %v6261 = vunpack.c.l.b16 %v6229
      %v6262 = vunpack.c.l.b16 %v6230
      %v6263 = vunpack.c.l.b16 %v6231
      %v6264 = vunpack.c.l.b16 %v6232
      %v6265 = vunpack.c.l.b16 %v6233
      %v6266 = vunpack.c.l.b16 %v6234
      %v6267 = vunpack.c.l.b16 %v6235
      %v6268 = vunpack.c.l.b16 %v6236
      %v6269 = vunpack.c.l.b16 %v6237
      %v6270 = vunpack.c.l.b16 %v6238
      %v6271 = vunpack.c.l.b16 %v6239
      %v6272 = vunpack.c.l.b16 %v6240
      %v6273 = vunpack.c.l.b16 %v6241
      %v6274 = vunpack.c.l.b16 %v6242
      %v6275 = vpack.c.b16 %v6260, %v6259
      %v6276 = vpack.c.b16 %v6262, %v6261
      %v6277 = vpack.c.b16 %v6264, %v6263
      %v6278 = vpack.c.b16 %v6266, %v6265
      %v6279 = vpack.c.b16 %v6268, %v6267
      %v6280 = vpack.c.b16 %v6270, %v6269
      %v6281 = vpack.c.b16 %v6272, %v6271
      %v6282 = vpack.c.b16 %v6274, %v6273
      %6291 = vmatprep.subr.bf16.mxu0 0
      %6292 = vmatpush1.bf16.msra.mxu0 %v6282
      %6293 = vmatprep.subr.bf16.mxu0 0
      %6294 = vmatpush1.bf16.msra.mxu0 %v6281
      %6295 = vmatprep.subr.bf16.mxu0 0
      %6296 = vmatpush1.bf16.msra.mxu0 %v6280
      %6297 = vmatprep.subr.bf16.mxu0 0
      %6298 = vmatpush1.bf16.msra.mxu0 %v6279
      %6299 = vmatprep.subr.bf16.mxu0 0
      %6300 = vmatpush1.bf16.msra.mxu0 %v6278
      %6301 = vmatprep.subr.bf16.mxu0 0
      %6302 = vmatpush1.bf16.msra.mxu0 %v6277
      %6303 = vmatprep.subr.bf16.mxu0 0
      %6304 = vmatpush1.bf16.msra.mxu0 %v6276
      %6305 = vmatprep.subr.bf16.mxu0 0
      %6306 = vmatpush1.bf16.msra.mxu0 %v6275
      %6307 = vmatprep.subr.bf16.mxu0 0
      %6308 = vmatpush2.bf16.msra.mxu0 0
      %6309 = vmatprep.subr.bf16.mxu0 0
      %6310 = vmatpush2.bf16.msra.mxu0 0
      %6311 = vmatprep.subr.bf16.mxu0 0
      %6312 = vmatpush2.bf16.msra.mxu0 0
      %6313 = vmatprep.subr.bf16.mxu0 0
      %6314 = vmatpush2.bf16.msra.mxu0 0
      %6315 = vmatprep.subr.bf16.mxu0 0
      %6316 = vmatpush2.bf16.msra.mxu0 0
      %6317 = vmatprep.subr.bf16.mxu0 0
      %6318 = vmatpush2.bf16.msra.mxu0 0
      %6319 = vmatprep.subr.bf16.mxu0 0
      %6320 = vmatpush2.bf16.msra.mxu0 0
      %6321 = vmatprep.subr.bf16.mxu0 0
      %6322 = vmatpush2.bf16.msra.mxu0 0
      %6323 = vmatprep.mubr.bf16.mxu0 0
      %6324 = vmatmul.mubr.bf16.gmra.mxu0 %v6213
      %v6325 = vpop.f32.mrf.mxu0
      %v6326 = vadd.f32 0.0, %v6325
      %v6327 = vpop.f32.mrf.mxu0
      %v6328 = vpop.f32.mrf.mxu0
      %v6329 = vadd.f32 0.0, %v6328
      %v6330 = vpop.f32.mrf.mxu0
      %6331 = vmatprep.mubr.bf16.mxu0 0
      %6332 = vmatmul.mubr.bf16.gmra.mxu0 %v6214
      %v6333 = vpop.f32.mrf.mxu0
      %v6334 = vadd.f32 0.0, %v6333
      %v6335 = vpop.f32.mrf.mxu0
      %v6336 = vpop.f32.mrf.mxu0
      %v6337 = vadd.f32 0.0, %v6336
      %v6338 = vpop.f32.mrf.mxu0
      %6339 = vmatprep.mubr.bf16.mxu0 0
      %6340 = vmatmul.mubr.bf16.gmra.mxu0 %v6215
      %v6341 = vpop.f32.mrf.mxu0
      %v6342 = vadd.f32 0.0, %v6341
      %v6343 = vpop.f32.mrf.mxu0
      %v6344 = vpop.f32.mrf.mxu0
      %v6345 = vadd.f32 0.0, %v6344
      %v6346 = vpop.f32.mrf.mxu0
      %6347 = vmatprep.mubr.bf16.mxu0 0
      %6348 = vmatmul.mubr.bf16.gmra.mxu0 %v6216
      %v6349 = vpop.f32.mrf.mxu0
      %v6350 = vadd.f32 0.0, %v6349
      %v6351 = vpop.f32.mrf.mxu0
      %v6352 = vpop.f32.mrf.mxu0
      %v6353 = vadd.f32 0.0, %v6352
      %v6354 = vpop.f32.mrf.mxu0
      %6355 = vmatprep.mubr.bf16.mxu0 0
      %6356 = vmatmul.mubr.bf16.gmra.mxu0 %v6217
      %v6357 = vpop.f32.mrf.mxu0
      %v6358 = vadd.f32 0.0, %v6357
      %v6359 = vpop.f32.mrf.mxu0
      %v6360 = vpop.f32.mrf.mxu0
      %v6361 = vadd.f32 0.0, %v6360
      %v6362 = vpop.f32.mrf.mxu0
      %6363 = vmatprep.mubr.bf16.mxu0 0
      %6364 = vmatmul.mubr.bf16.gmra.mxu0 %v6218
      %v6365 = vpop.f32.mrf.mxu0
      %v6366 = vadd.f32 0.0, %v6365
      %v6367 = vpop.f32.mrf.mxu0
      %v6368 = vpop.f32.mrf.mxu0
      %v6369 = vadd.f32 0.0, %v6368
      %v6370 = vpop.f32.mrf.mxu0
      %6371 = vmatprep.mubr.bf16.mxu0 0
      %6372 = vmatmul.mubr.bf16.gmra.mxu0 %v6219
      %v6373 = vpop.f32.mrf.mxu0
      %v6374 = vadd.f32 0.0, %v6373
      %v6375 = vpop.f32.mrf.mxu0
      %v6376 = vpop.f32.mrf.mxu0
      %v6377 = vadd.f32 0.0, %v6376
      %v6378 = vpop.f32.mrf.mxu0
      %6379 = vmatprep.mubr.bf16.mxu0 0
      %6380 = vmatmul.mubr.bf16.gmra.mxu0 %v6220
      %v6381 = vpop.f32.mrf.mxu0
      %v6382 = vadd.f32 0.0, %v6381
      %v6383 = vpop.f32.mrf.mxu0
      %v6384 = vpop.f32.mrf.mxu0
      %v6385 = vadd.f32 0.0, %v6384
      %v6386 = vpop.f32.mrf.mxu0
      %6387 = vmatprep.mubr.bf16.mxu0 0
      %6388 = vmatmul.mubr.bf16.gmra.mxu0 %v6221
      %v6389 = vpop.f32.mrf.mxu0
      %v6390 = vadd.f32 0.0, %v6389
      %v6391 = vpop.f32.mrf.mxu0
      %v6392 = vpop.f32.mrf.mxu0
      %v6393 = vadd.f32 0.0, %v6392
      %v6394 = vpop.f32.mrf.mxu0
      %6395 = vmatprep.mubr.bf16.mxu0 0
      %6396 = vmatmul.mubr.bf16.gmra.mxu0 %v6222
      %v6397 = vpop.f32.mrf.mxu0
      %v6398 = vadd.f32 0.0, %v6397
      %v6399 = vpop.f32.mrf.mxu0
      %v6400 = vpop.f32.mrf.mxu0
      %v6401 = vadd.f32 0.0, %v6400
      %v6402 = vpop.f32.mrf.mxu0
      %6403 = vmatprep.mubr.bf16.mxu0 0
      %6404 = vmatmul.mubr.bf16.gmra.mxu0 %v6223
      %v6405 = vpop.f32.mrf.mxu0
      %v6406 = vadd.f32 0.0, %v6405
      %v6407 = vpop.f32.mrf.mxu0
      %v6408 = vpop.f32.mrf.mxu0
      %v6409 = vadd.f32 0.0, %v6408
      %v6410 = vpop.f32.mrf.mxu0
      %6411 = vmatprep.mubr.bf16.mxu0 0
      %6412 = vmatmul.mubr.bf16.gmra.mxu0 %v6224
      %v6413 = vpop.f32.mrf.mxu0
      %v6414 = vadd.f32 0.0, %v6413
      %v6415 = vpop.f32.mrf.mxu0
      %v6416 = vpop.f32.mrf.mxu0
      %v6417 = vadd.f32 0.0, %v6416
      %v6418 = vpop.f32.mrf.mxu0
      %6419 = vmatprep.mubr.bf16.mxu0 0
      %6420 = vmatmul.mubr.bf16.gmra.mxu0 %v6225
      %v6421 = vpop.f32.mrf.mxu0
      %v6422 = vadd.f32 0.0, %v6421
      %v6423 = vpop.f32.mrf.mxu0
      %v6424 = vpop.f32.mrf.mxu0
      %v6425 = vpop.f32.mrf.mxu0
      %6426 = vdwg.mxu0
      %v6427 = vadd.f32 %v6163, %v6326
      %v6428 = vadd.f32 %v6164, %v6329
      %v6429 = vadd.f32 %v6165, %v6334
      %v6430 = vadd.f32 %v6166, %v6337
      %v6431 = vadd.f32 %v6167, %v6342
      %v6432 = vadd.f32 %v6168, %v6345
      %v6433 = vadd.f32 %v6169, %v6350
      %v6434 = vadd.f32 %v6170, %v6353
      %v6435 = vadd.f32 %v6171, %v6358
      %v6436 = vadd.f32 %v6172, %v6361
      %v6437 = vadd.f32 %v6173, %v6366
      %v6438 = vadd.f32 %v6174, %v6369
      %v6439 = vadd.f32 %v6175, %v6374
      %v6440 = vadd.f32 %v6176, %v6377
      %v6441 = vadd.f32 %v6177, %v6382
      %v6442 = vadd.f32 %v6178, %v6385
      %v6443 = vadd.f32 %v6179, %v6390
      %v6444 = vadd.f32 %v6180, %v6393
      %v6445 = vadd.f32 %v6181, %v6398
      %v6446 = vadd.f32 %v6182, %v6401
      %v6447 = vadd.f32 %v6183, %v6406
      %v6448 = vadd.f32 %v6184, %v6409
      %v6449 = vadd.f32 %v6185, %v6414
      %v6450 = vadd.f32 %v6186, %v6417
      %v6451 = vadd.f32 %v6187, %v6422
      %v6452 = vld [vmem:[#allocation2 + $0x2e] sm:$0xff]
      %v6453 = vld [vmem:[#allocation2 + $0x36] sm:$0xff]
      %v6454 = vld [vmem:[#allocation2 + $0x3e] sm:$0xff]
      %v6455 = vld [vmem:[#allocation2 + $0x46] sm:$0xff]
      %v6456 = vld [vmem:[#allocation2 + $0x4e] sm:$0xff]
      %v6457 = vld [vmem:[#allocation2 + $0x56] sm:$0xff]
      %v6458 = vld [vmem:[#allocation2 + $0x5e] sm:$0xff]
      %v6459 = vld [vmem:[#allocation2 + $0x66] sm:$0xff]
      %v6460 = vld [vmem:[#allocation2 + $0x6e] sm:$0xff]
      %v6461 = vld [vmem:[#allocation2 + $0x76] sm:$0xff]
      %v6462 = vld [vmem:[#allocation2 + $0x7e] sm:$0xff]
      %v6463 = vld [vmem:[#allocation2 + $0x86] sm:$0xff]
      %v6464 = vld [vmem:[#allocation2 + $0x8e] sm:$0xff]
      %v6465 = vld [vmem:[#allocation2 + $0x96] sm:$0xff]
      %v6466 = vld [vmem:[#allocation2 + $0x9e] sm:$0xff]
      %v6467 = vld [vmem:[#allocation2 + $0xa6] sm:$0xff]
      %v6468 = vld [vmem:[#allocation2 + $0xae] sm:$0xff]
      %v6469 = vld [vmem:[#allocation2 + $0xb6] sm:$0xff]
      %v6470 = vld [vmem:[#allocation2 + $0xbe] sm:$0xff]
      %v6471 = vld [vmem:[#allocation2 + $0xc6] sm:$0xff]
      %v6472 = vld [vmem:[#allocation2 + $0xce] sm:$0xff]
      %v6473 = vld [vmem:[#allocation2 + $0xd6] sm:$0xff]
      %v6474 = vld [vmem:[#allocation2 + $0xde] sm:$0xff]
      %v6475 = vld [vmem:[#allocation2 + $0xe6] sm:$0xff]
      %v6476 = vld [vmem:[#allocation2 + $0xee] sm:$0xf]
      %v6477 = vpack.c.bf16 %v6453, %v6452
      %v6478 = vpack.c.bf16 %v6455, %v6454
      %v6479 = vpack.c.bf16 %v6457, %v6456
      %v6480 = vpack.c.bf16 %v6459, %v6458
      %v6481 = vpack.c.bf16 %v6461, %v6460
      %v6482 = vpack.c.bf16 %v6463, %v6462
      %v6483 = vpack.c.bf16 %v6465, %v6464
      %v6484 = vpack.c.bf16 %v6467, %v6466
      %v6485 = vpack.c.bf16 %v6469, %v6468
      %v6486 = vpack.c.bf16 %v6471, %v6470
      %v6487 = vpack.c.bf16 %v6473, %v6472
      %v6488 = vpack.c.bf16 %v6475, %v6474
      %v6489 = vpack.c.bf16 %v6476, %v6476
      %s6490 = scalar_lea.vmem %s3, 1216
      %v6491 = vld [vmem:[%s6490] sm:$0xf]
      %v6492 = vld [vmem:[%s6490 + $0x4] sm:$0xf]
      %v6493 = vld [vmem:[%s6490 + $0x8] sm:$0xf]
      %v6494 = vld [vmem:[%s6490 + $0xc] sm:$0xf]
      %v6495 = vld [vmem:[%s6490 + $0x10] sm:$0xf]
      %v6496 = vld [vmem:[%s6490 + $0x14] sm:$0xf]
      %v6497 = vld [vmem:[%s6490 + $0x18] sm:$0xf]
      %v6498 = vld [vmem:[%s6490 + $0x1c] sm:$0xf]
      %v6499 = vld [vmem:[%s6490 + $0x20] sm:$0xf]
      %v6500 = vld [vmem:[%s6490 + $0x24] sm:$0xf]
      %v6501 = vld [vmem:[%s6490 + $0x28] sm:$0xf]
      %v6502 = vld [vmem:[%s6490 + $0x2c] sm:$0xf]
      %v6503 = vld [vmem:[%s6490 + $0x30] sm:$0xf]
      %v6504 = vld [vmem:[%s6490 + $0x34] sm:$0xf]
      %v6505 = vld [vmem:[%s6490 + $0x38] sm:$0xf]
      %v6506 = vld [vmem:[%s6490 + $0x3c] sm:$0xf]
      %v6523 = vunpack.c.l.b16 %v6491
      %v6524 = vunpack.c.l.b16 %v6492
      %v6525 = vunpack.c.l.b16 %v6493
      %v6526 = vunpack.c.l.b16 %v6494
      %v6527 = vunpack.c.l.b16 %v6495
      %v6528 = vunpack.c.l.b16 %v6496
      %v6529 = vunpack.c.l.b16 %v6497
      %v6530 = vunpack.c.l.b16 %v6498
      %v6531 = vunpack.c.l.b16 %v6499
      %v6532 = vunpack.c.l.b16 %v6500
      %v6533 = vunpack.c.l.b16 %v6501
      %v6534 = vunpack.c.l.b16 %v6502
      %v6535 = vunpack.c.l.b16 %v6503
      %v6536 = vunpack.c.l.b16 %v6504
      %v6537 = vunpack.c.l.b16 %v6505
      %v6538 = vunpack.c.l.b16 %v6506
      %v6539 = vpack.c.b16 %v6524, %v6523
      %v6540 = vpack.c.b16 %v6526, %v6525
      %v6541 = vpack.c.b16 %v6528, %v6527
      %v6542 = vpack.c.b16 %v6530, %v6529
      %v6543 = vpack.c.b16 %v6532, %v6531
      %v6544 = vpack.c.b16 %v6534, %v6533
      %v6545 = vpack.c.b16 %v6536, %v6535
      %v6546 = vpack.c.b16 %v6538, %v6537
      %6555 = vmatprep.subr.bf16.mxu0 0
      %6556 = vmatpush1.bf16.msra.mxu0 %v6546
      %6557 = vmatprep.subr.bf16.mxu0 0
      %6558 = vmatpush1.bf16.msra.mxu0 %v6545
      %6559 = vmatprep.subr.bf16.mxu0 0
      %6560 = vmatpush1.bf16.msra.mxu0 %v6544
      %6561 = vmatprep.subr.bf16.mxu0 0
      %6562 = vmatpush1.bf16.msra.mxu0 %v6543
      %6563 = vmatprep.subr.bf16.mxu0 0
      %6564 = vmatpush1.bf16.msra.mxu0 %v6542
      %6565 = vmatprep.subr.bf16.mxu0 0
      %6566 = vmatpush1.bf16.msra.mxu0 %v6541
      %6567 = vmatprep.subr.bf16.mxu0 0
      %6568 = vmatpush1.bf16.msra.mxu0 %v6540
      %6569 = vmatprep.subr.bf16.mxu0 0
      %6570 = vmatpush1.bf16.msra.mxu0 %v6539
      %6571 = vmatprep.subr.bf16.mxu0 0
      %6572 = vmatpush2.bf16.msra.mxu0 0
      %6573 = vmatprep.subr.bf16.mxu0 0
      %6574 = vmatpush2.bf16.msra.mxu0 0
      %6575 = vmatprep.subr.bf16.mxu0 0
      %6576 = vmatpush2.bf16.msra.mxu0 0
      %6577 = vmatprep.subr.bf16.mxu0 0
      %6578 = vmatpush2.bf16.msra.mxu0 0
      %6579 = vmatprep.subr.bf16.mxu0 0
      %6580 = vmatpush2.bf16.msra.mxu0 0
      %6581 = vmatprep.subr.bf16.mxu0 0
      %6582 = vmatpush2.bf16.msra.mxu0 0
      %6583 = vmatprep.subr.bf16.mxu0 0
      %6584 = vmatpush2.bf16.msra.mxu0 0
      %6585 = vmatprep.subr.bf16.mxu0 0
      %6586 = vmatpush2.bf16.msra.mxu0 0
      %6587 = vmatprep.mubr.bf16.mxu0 0
      %6588 = vmatmul.mubr.bf16.gmra.mxu0 %v6477
      %v6589 = vpop.f32.mrf.mxu0
      %v6590 = vadd.f32 0.0, %v6589
      %v6591 = vpop.f32.mrf.mxu0
      %v6592 = vpop.f32.mrf.mxu0
      %v6593 = vadd.f32 0.0, %v6592
      %v6594 = vpop.f32.mrf.mxu0
      %6595 = vmatprep.mubr.bf16.mxu0 0
      %6596 = vmatmul.mubr.bf16.gmra.mxu0 %v6478
      %v6597 = vpop.f32.mrf.mxu0
      %v6598 = vadd.f32 0.0, %v6597
      %v6599 = vpop.f32.mrf.mxu0
      %v6600 = vpop.f32.mrf.mxu0
      %v6601 = vadd.f32 0.0, %v6600
      %v6602 = vpop.f32.mrf.mxu0
      %6603 = vmatprep.mubr.bf16.mxu0 0
      %6604 = vmatmul.mubr.bf16.gmra.mxu0 %v6479
      %v6605 = vpop.f32.mrf.mxu0
      %v6606 = vadd.f32 0.0, %v6605
      %v6607 = vpop.f32.mrf.mxu0
      %v6608 = vpop.f32.mrf.mxu0
      %v6609 = vadd.f32 0.0, %v6608
      %v6610 = vpop.f32.mrf.mxu0
      %6611 = vmatprep.mubr.bf16.mxu0 0
      %6612 = vmatmul.mubr.bf16.gmra.mxu0 %v6480
      %v6613 = vpop.f32.mrf.mxu0
      %v6614 = vadd.f32 0.0, %v6613
      %v6615 = vpop.f32.mrf.mxu0
      %v6616 = vpop.f32.mrf.mxu0
      %v6617 = vadd.f32 0.0, %v6616
      %v6618 = vpop.f32.mrf.mxu0
      %6619 = vmatprep.mubr.bf16.mxu0 0
      %6620 = vmatmul.mubr.bf16.gmra.mxu0 %v6481
      %v6621 = vpop.f32.mrf.mxu0
      %v6622 = vadd.f32 0.0, %v6621
      %v6623 = vpop.f32.mrf.mxu0
      %v6624 = vpop.f32.mrf.mxu0
      %v6625 = vadd.f32 0.0, %v6624
      %v6626 = vpop.f32.mrf.mxu0
      %6627 = vmatprep.mubr.bf16.mxu0 0
      %6628 = vmatmul.mubr.bf16.gmra.mxu0 %v6482
      %v6629 = vpop.f32.mrf.mxu0
      %v6630 = vadd.f32 0.0, %v6629
      %v6631 = vpop.f32.mrf.mxu0
      %v6632 = vpop.f32.mrf.mxu0
      %v6633 = vadd.f32 0.0, %v6632
      %v6634 = vpop.f32.mrf.mxu0
      %6635 = vmatprep.mubr.bf16.mxu0 0
      %6636 = vmatmul.mubr.bf16.gmra.mxu0 %v6483
      %v6637 = vpop.f32.mrf.mxu0
      %v6638 = vadd.f32 0.0, %v6637
      %v6639 = vpop.f32.mrf.mxu0
      %v6640 = vpop.f32.mrf.mxu0
      %v6641 = vadd.f32 0.0, %v6640
      %v6642 = vpop.f32.mrf.mxu0
      %6643 = vmatprep.mubr.bf16.mxu0 0
      %6644 = vmatmul.mubr.bf16.gmra.mxu0 %v6484
      %v6645 = vpop.f32.mrf.mxu0
      %v6646 = vadd.f32 0.0, %v6645
      %v6647 = vpop.f32.mrf.mxu0
      %v6648 = vpop.f32.mrf.mxu0
      %v6649 = vadd.f32 0.0, %v6648
      %v6650 = vpop.f32.mrf.mxu0
      %6651 = vmatprep.mubr.bf16.mxu0 0
      %6652 = vmatmul.mubr.bf16.gmra.mxu0 %v6485
      %v6653 = vpop.f32.mrf.mxu0
      %v6654 = vadd.f32 0.0, %v6653
      %v6655 = vpop.f32.mrf.mxu0
      %v6656 = vpop.f32.mrf.mxu0
      %v6657 = vadd.f32 0.0, %v6656
      %v6658 = vpop.f32.mrf.mxu0
      %6659 = vmatprep.mubr.bf16.mxu0 0
      %6660 = vmatmul.mubr.bf16.gmra.mxu0 %v6486
      %v6661 = vpop.f32.mrf.mxu0
      %v6662 = vadd.f32 0.0, %v6661
      %v6663 = vpop.f32.mrf.mxu0
      %v6664 = vpop.f32.mrf.mxu0
      %v6665 = vadd.f32 0.0, %v6664
      %v6666 = vpop.f32.mrf.mxu0
      %6667 = vmatprep.mubr.bf16.mxu0 0
      %6668 = vmatmul.mubr.bf16.gmra.mxu0 %v6487
      %v6669 = vpop.f32.mrf.mxu0
      %v6670 = vadd.f32 0.0, %v6669
      %v6671 = vpop.f32.mrf.mxu0
      %v6672 = vpop.f32.mrf.mxu0
      %v6673 = vadd.f32 0.0, %v6672
      %v6674 = vpop.f32.mrf.mxu0
      %6675 = vmatprep.mubr.bf16.mxu0 0
      %6676 = vmatmul.mubr.bf16.gmra.mxu0 %v6488
      %v6677 = vpop.f32.mrf.mxu0
      %v6678 = vadd.f32 0.0, %v6677
      %v6679 = vpop.f32.mrf.mxu0
      %v6680 = vpop.f32.mrf.mxu0
      %v6681 = vadd.f32 0.0, %v6680
      %v6682 = vpop.f32.mrf.mxu0
      %6683 = vmatprep.mubr.bf16.mxu0 0
      %6684 = vmatmul.mubr.bf16.gmra.mxu0 %v6489
      %v6685 = vpop.f32.mrf.mxu0
      %v6686 = vadd.f32 0.0, %v6685
      %v6687 = vpop.f32.mrf.mxu0
      %v6688 = vpop.f32.mrf.mxu0
      %v6689 = vpop.f32.mrf.mxu0
      %6690 = vdwg.mxu0
      %v6691 = vadd.f32 %v6427, %v6590
      %v6692 = vadd.f32 %v6428, %v6593
      %v6693 = vadd.f32 %v6429, %v6598
      %v6694 = vadd.f32 %v6430, %v6601
      %v6695 = vadd.f32 %v6431, %v6606
      %v6696 = vadd.f32 %v6432, %v6609
      %v6697 = vadd.f32 %v6433, %v6614
      %v6698 = vadd.f32 %v6434, %v6617
      %v6699 = vadd.f32 %v6435, %v6622
      %v6700 = vadd.f32 %v6436, %v6625
      %v6701 = vadd.f32 %v6437, %v6630
      %v6702 = vadd.f32 %v6438, %v6633
      %v6703 = vadd.f32 %v6439, %v6638
      %v6704 = vadd.f32 %v6440, %v6641
      %v6705 = vadd.f32 %v6441, %v6646
      %v6706 = vadd.f32 %v6442, %v6649
      %v6707 = vadd.f32 %v6443, %v6654
      %v6708 = vadd.f32 %v6444, %v6657
      %v6709 = vadd.f32 %v6445, %v6662
      %v6710 = vadd.f32 %v6446, %v6665
      %v6711 = vadd.f32 %v6447, %v6670
      %v6712 = vadd.f32 %v6448, %v6673
      %v6713 = vadd.f32 %v6449, %v6678
      %v6714 = vadd.f32 %v6450, %v6681
      %v6715 = vadd.f32 %v6451, %v6686
      %v6716 = vld [vmem:[#allocation2 + $0x38] sm:$0xff]
      %v6717 = vld [vmem:[#allocation2 + $0x40] sm:$0xff]
      %v6718 = vld [vmem:[#allocation2 + $0x48] sm:$0xff]
      %v6719 = vld [vmem:[#allocation2 + $0x50] sm:$0xff]
      %v6720 = vld [vmem:[#allocation2 + $0x58] sm:$0xff]
      %v6721 = vld [vmem:[#allocation2 + $0x60] sm:$0xff]
      %v6722 = vld [vmem:[#allocation2 + $0x68] sm:$0xff]
      %v6723 = vld [vmem:[#allocation2 + $0x70] sm:$0xff]
      %v6724 = vld [vmem:[#allocation2 + $0x78] sm:$0xff]
      %v6725 = vld [vmem:[#allocation2 + $0x80] sm:$0xff]
      %v6726 = vld [vmem:[#allocation2 + $0x88] sm:$0xff]
      %v6727 = vld [vmem:[#allocation2 + $0x90] sm:$0xff]
      %v6728 = vld [vmem:[#allocation2 + $0x98] sm:$0xff]
      %v6729 = vld [vmem:[#allocation2 + $0xa0] sm:$0xff]
      %v6730 = vld [vmem:[#allocation2 + $0xa8] sm:$0xff]
      %v6731 = vld [vmem:[#allocation2 + $0xb0] sm:$0xff]
      %v6732 = vld [vmem:[#allocation2 + $0xb8] sm:$0xff]
      %v6733 = vld [vmem:[#allocation2 + $0xc0] sm:$0xff]
      %v6734 = vld [vmem:[#allocation2 + $0xc8] sm:$0xff]
      %v6735 = vld [vmem:[#allocation2 + $0xd0] sm:$0xff]
      %v6736 = vld [vmem:[#allocation2 + $0xd8] sm:$0xff]
      %v6737 = vld [vmem:[#allocation2 + $0xe0] sm:$0xff]
      %v6738 = vld [vmem:[#allocation2 + $0xe8] sm:$0xff]
      %v6739 = vld [vmem:[#allocation2 + $0xf0] sm:$0xff]
      %v6740 = vld [vmem:[#allocation2 + $0xf8] sm:$0xf]
      %v6741 = vpack.c.bf16 %v6717, %v6716
      %v6742 = vpack.c.bf16 %v6719, %v6718
      %v6743 = vpack.c.bf16 %v6721, %v6720
      %v6744 = vpack.c.bf16 %v6723, %v6722
      %v6745 = vpack.c.bf16 %v6725, %v6724
      %v6746 = vpack.c.bf16 %v6727, %v6726
      %v6747 = vpack.c.bf16 %v6729, %v6728
      %v6748 = vpack.c.bf16 %v6731, %v6730
      %v6749 = vpack.c.bf16 %v6733, %v6732
      %v6750 = vpack.c.bf16 %v6735, %v6734
      %v6751 = vpack.c.bf16 %v6737, %v6736
      %v6752 = vpack.c.bf16 %v6739, %v6738
      %v6753 = vpack.c.bf16 %v6740, %v6740
      %s6754 = scalar_lea.vmem %s3, 1280
      %v6755 = vld [vmem:[%s6754] sm:$0xf]
      %v6756 = vld [vmem:[%s6754 + $0x4] sm:$0xf]
      %v6757 = vld [vmem:[%s6754 + $0x8] sm:$0xf]
      %v6758 = vld [vmem:[%s6754 + $0xc] sm:$0xf]
      %v6759 = vld [vmem:[%s6754 + $0x10] sm:$0xf]
      %v6760 = vld [vmem:[%s6754 + $0x14] sm:$0xf]
      %v6761 = vld [vmem:[%s6754 + $0x18] sm:$0xf]
      %v6762 = vld [vmem:[%s6754 + $0x1c] sm:$0xf]
      %v6763 = vld [vmem:[%s6754 + $0x20] sm:$0xf]
      %v6764 = vld [vmem:[%s6754 + $0x24] sm:$0xf]
      %v6765 = vld [vmem:[%s6754 + $0x28] sm:$0xf]
      %v6766 = vld [vmem:[%s6754 + $0x2c] sm:$0xf]
      %v6767 = vld [vmem:[%s6754 + $0x30] sm:$0xf]
      %v6768 = vld [vmem:[%s6754 + $0x34] sm:$0xf]
      %v6769 = vld [vmem:[%s6754 + $0x38] sm:$0xf]
      %v6770 = vld [vmem:[%s6754 + $0x3c] sm:$0xf]
      %v6787 = vunpack.c.l.b16 %v6755
      %v6788 = vunpack.c.l.b16 %v6756
      %v6789 = vunpack.c.l.b16 %v6757
      %v6790 = vunpack.c.l.b16 %v6758
      %v6791 = vunpack.c.l.b16 %v6759
      %v6792 = vunpack.c.l.b16 %v6760
      %v6793 = vunpack.c.l.b16 %v6761
      %v6794 = vunpack.c.l.b16 %v6762
      %v6795 = vunpack.c.l.b16 %v6763
      %v6796 = vunpack.c.l.b16 %v6764
      %v6797 = vunpack.c.l.b16 %v6765
      %v6798 = vunpack.c.l.b16 %v6766
      %v6799 = vunpack.c.l.b16 %v6767
      %v6800 = vunpack.c.l.b16 %v6768
      %v6801 = vunpack.c.l.b16 %v6769
      %v6802 = vunpack.c.l.b16 %v6770
      %v6803 = vpack.c.b16 %v6788, %v6787
      %v6804 = vpack.c.b16 %v6790, %v6789
      %v6805 = vpack.c.b16 %v6792, %v6791
      %v6806 = vpack.c.b16 %v6794, %v6793
      %v6807 = vpack.c.b16 %v6796, %v6795
      %v6808 = vpack.c.b16 %v6798, %v6797
      %v6809 = vpack.c.b16 %v6800, %v6799
      %v6810 = vpack.c.b16 %v6802, %v6801
      %6819 = vmatprep.subr.bf16.mxu0 0
      %6820 = vmatpush1.bf16.msra.mxu0 %v6810
      %6821 = vmatprep.subr.bf16.mxu0 0
      %6822 = vmatpush1.bf16.msra.mxu0 %v6809
      %6823 = vmatprep.subr.bf16.mxu0 0
      %6824 = vmatpush1.bf16.msra.mxu0 %v6808
      %6825 = vmatprep.subr.bf16.mxu0 0
      %6826 = vmatpush1.bf16.msra.mxu0 %v6807
      %6827 = vmatprep.subr.bf16.mxu0 0
      %6828 = vmatpush1.bf16.msra.mxu0 %v6806
      %6829 = vmatprep.subr.bf16.mxu0 0
      %6830 = vmatpush1.bf16.msra.mxu0 %v6805
      %6831 = vmatprep.subr.bf16.mxu0 0
      %6832 = vmatpush1.bf16.msra.mxu0 %v6804
      %6833 = vmatprep.subr.bf16.mxu0 0
      %6834 = vmatpush1.bf16.msra.mxu0 %v6803
      %6835 = vmatprep.subr.bf16.mxu0 0
      %6836 = vmatpush2.bf16.msra.mxu0 0
      %6837 = vmatprep.subr.bf16.mxu0 0
      %6838 = vmatpush2.bf16.msra.mxu0 0
      %6839 = vmatprep.subr.bf16.mxu0 0
      %6840 = vmatpush2.bf16.msra.mxu0 0
      %6841 = vmatprep.subr.bf16.mxu0 0
      %6842 = vmatpush2.bf16.msra.mxu0 0
      %6843 = vmatprep.subr.bf16.mxu0 0
      %6844 = vmatpush2.bf16.msra.mxu0 0
      %6845 = vmatprep.subr.bf16.mxu0 0
      %6846 = vmatpush2.bf16.msra.mxu0 0
      %6847 = vmatprep.subr.bf16.mxu0 0
      %6848 = vmatpush2.bf16.msra.mxu0 0
      %6849 = vmatprep.subr.bf16.mxu0 0
      %6850 = vmatpush2.bf16.msra.mxu0 0
      %6851 = vmatprep.mubr.bf16.mxu0 0
      %6852 = vmatmul.mubr.bf16.gmra.mxu0 %v6741
      %v6853 = vpop.f32.mrf.mxu0
      %v6854 = vadd.f32 0.0, %v6853
      %v6855 = vpop.f32.mrf.mxu0
      %v6856 = vpop.f32.mrf.mxu0
      %v6857 = vadd.f32 0.0, %v6856
      %v6858 = vpop.f32.mrf.mxu0
      %6859 = vmatprep.mubr.bf16.mxu0 0
      %6860 = vmatmul.mubr.bf16.gmra.mxu0 %v6742
      %v6861 = vpop.f32.mrf.mxu0
      %v6862 = vadd.f32 0.0, %v6861
      %v6863 = vpop.f32.mrf.mxu0
      %v6864 = vpop.f32.mrf.mxu0
      %v6865 = vadd.f32 0.0, %v6864
      %v6866 = vpop.f32.mrf.mxu0
      %6867 = vmatprep.mubr.bf16.mxu0 0
      %6868 = vmatmul.mubr.bf16.gmra.mxu0 %v6743
      %v6869 = vpop.f32.mrf.mxu0
      %v6870 = vadd.f32 0.0, %v6869
      %v6871 = vpop.f32.mrf.mxu0
      %v6872 = vpop.f32.mrf.mxu0
      %v6873 = vadd.f32 0.0, %v6872
      %v6874 = vpop.f32.mrf.mxu0
      %6875 = vmatprep.mubr.bf16.mxu0 0
      %6876 = vmatmul.mubr.bf16.gmra.mxu0 %v6744
      %v6877 = vpop.f32.mrf.mxu0
      %v6878 = vadd.f32 0.0, %v6877
      %v6879 = vpop.f32.mrf.mxu0
      %v6880 = vpop.f32.mrf.mxu0
      %v6881 = vadd.f32 0.0, %v6880
      %v6882 = vpop.f32.mrf.mxu0
      %6883 = vmatprep.mubr.bf16.mxu0 0
      %6884 = vmatmul.mubr.bf16.gmra.mxu0 %v6745
      %v6885 = vpop.f32.mrf.mxu0
      %v6886 = vadd.f32 0.0, %v6885
      %v6887 = vpop.f32.mrf.mxu0
      %v6888 = vpop.f32.mrf.mxu0
      %v6889 = vadd.f32 0.0, %v6888
      %v6890 = vpop.f32.mrf.mxu0
      %6891 = vmatprep.mubr.bf16.mxu0 0
      %6892 = vmatmul.mubr.bf16.gmra.mxu0 %v6746
      %v6893 = vpop.f32.mrf.mxu0
      %v6894 = vadd.f32 0.0, %v6893
      %v6895 = vpop.f32.mrf.mxu0
      %v6896 = vpop.f32.mrf.mxu0
      %v6897 = vadd.f32 0.0, %v6896
      %v6898 = vpop.f32.mrf.mxu0
      %6899 = vmatprep.mubr.bf16.mxu0 0
      %6900 = vmatmul.mubr.bf16.gmra.mxu0 %v6747
      %v6901 = vpop.f32.mrf.mxu0
      %v6902 = vadd.f32 0.0, %v6901
      %v6903 = vpop.f32.mrf.mxu0
      %v6904 = vpop.f32.mrf.mxu0
      %v6905 = vadd.f32 0.0, %v6904
      %v6906 = vpop.f32.mrf.mxu0
      %6907 = vmatprep.mubr.bf16.mxu0 0
      %6908 = vmatmul.mubr.bf16.gmra.mxu0 %v6748
      %v6909 = vpop.f32.mrf.mxu0
      %v6910 = vadd.f32 0.0, %v6909
      %v6911 = vpop.f32.mrf.mxu0
      %v6912 = vpop.f32.mrf.mxu0
      %v6913 = vadd.f32 0.0, %v6912
      %v6914 = vpop.f32.mrf.mxu0
      %6915 = vmatprep.mubr.bf16.mxu0 0
      %6916 = vmatmul.mubr.bf16.gmra.mxu0 %v6749
      %v6917 = vpop.f32.mrf.mxu0
      %v6918 = vadd.f32 0.0, %v6917
      %v6919 = vpop.f32.mrf.mxu0
      %v6920 = vpop.f32.mrf.mxu0
      %v6921 = vadd.f32 0.0, %v6920
      %v6922 = vpop.f32.mrf.mxu0
      %6923 = vmatprep.mubr.bf16.mxu0 0
      %6924 = vmatmul.mubr.bf16.gmra.mxu0 %v6750
      %v6925 = vpop.f32.mrf.mxu0
      %v6926 = vadd.f32 0.0, %v6925
      %v6927 = vpop.f32.mrf.mxu0
      %v6928 = vpop.f32.mrf.mxu0
      %v6929 = vadd.f32 0.0, %v6928
      %v6930 = vpop.f32.mrf.mxu0
      %6931 = vmatprep.mubr.bf16.mxu0 0
      %6932 = vmatmul.mubr.bf16.gmra.mxu0 %v6751
      %v6933 = vpop.f32.mrf.mxu0
      %v6934 = vadd.f32 0.0, %v6933
      %v6935 = vpop.f32.mrf.mxu0
      %v6936 = vpop.f32.mrf.mxu0
      %v6937 = vadd.f32 0.0, %v6936
      %v6938 = vpop.f32.mrf.mxu0
      %6939 = vmatprep.mubr.bf16.mxu0 0
      %6940 = vmatmul.mubr.bf16.gmra.mxu0 %v6752
      %v6941 = vpop.f32.mrf.mxu0
      %v6942 = vadd.f32 0.0, %v6941
      %v6943 = vpop.f32.mrf.mxu0
      %v6944 = vpop.f32.mrf.mxu0
      %v6945 = vadd.f32 0.0, %v6944
      %v6946 = vpop.f32.mrf.mxu0
      %6947 = vmatprep.mubr.bf16.mxu0 0
      %6948 = vmatmul.mubr.bf16.gmra.mxu0 %v6753
      %v6949 = vpop.f32.mrf.mxu0
      %v6950 = vadd.f32 0.0, %v6949
      %v6951 = vpop.f32.mrf.mxu0
      %v6952 = vpop.f32.mrf.mxu0
      %v6953 = vpop.f32.mrf.mxu0
      %6954 = vdwg.mxu0
      %v6955 = vadd.f32 %v6691, %v6854
      %v6956 = vadd.f32 %v6692, %v6857
      %v6957 = vadd.f32 %v6693, %v6862
      %v6958 = vadd.f32 %v6694, %v6865
      %v6959 = vadd.f32 %v6695, %v6870
      %v6960 = vadd.f32 %v6696, %v6873
      %v6961 = vadd.f32 %v6697, %v6878
      %v6962 = vadd.f32 %v6698, %v6881
      %v6963 = vadd.f32 %v6699, %v6886
      %v6964 = vadd.f32 %v6700, %v6889
      %v6965 = vadd.f32 %v6701, %v6894
      %v6966 = vadd.f32 %v6702, %v6897
      %v6967 = vadd.f32 %v6703, %v6902
      %v6968 = vadd.f32 %v6704, %v6905
      %v6969 = vadd.f32 %v6705, %v6910
      %v6970 = vadd.f32 %v6706, %v6913
      %v6971 = vadd.f32 %v6707, %v6918
      %v6972 = vadd.f32 %v6708, %v6921
      %v6973 = vadd.f32 %v6709, %v6926
      %v6974 = vadd.f32 %v6710, %v6929
      %v6975 = vadd.f32 %v6711, %v6934
      %v6976 = vadd.f32 %v6712, %v6937
      %v6977 = vadd.f32 %v6713, %v6942
      %v6978 = vadd.f32 %v6714, %v6945
      %v6979 = vadd.f32 %v6715, %v6950
      %v6980 = vld [vmem:[#allocation2 + $0x39] sm:$0xff]
      %v6981 = vld [vmem:[#allocation2 + $0x41] sm:$0xff]
      %v6982 = vld [vmem:[#allocation2 + $0x49] sm:$0xff]
      %v6983 = vld [vmem:[#allocation2 + $0x51] sm:$0xff]
      %v6984 = vld [vmem:[#allocation2 + $0x59] sm:$0xff]
      %v6985 = vld [vmem:[#allocation2 + $0x61] sm:$0xff]
      %v6986 = vld [vmem:[#allocation2 + $0x69] sm:$0xff]
      %v6987 = vld [vmem:[#allocation2 + $0x71] sm:$0xff]
      %v6988 = vld [vmem:[#allocation2 + $0x79] sm:$0xff]
      %v6989 = vld [vmem:[#allocation2 + $0x81] sm:$0xff]
      %v6990 = vld [vmem:[#allocation2 + $0x89] sm:$0xff]
      %v6991 = vld [vmem:[#allocation2 + $0x91] sm:$0xff]
      %v6992 = vld [vmem:[#allocation2 + $0x99] sm:$0xff]
      %v6993 = vld [vmem:[#allocation2 + $0xa1] sm:$0xff]
      %v6994 = vld [vmem:[#allocation2 + $0xa9] sm:$0xff]
      %v6995 = vld [vmem:[#allocation2 + $0xb1] sm:$0xff]
      %v6996 = vld [vmem:[#allocation2 + $0xb9] sm:$0xff]
      %v6997 = vld [vmem:[#allocation2 + $0xc1] sm:$0xff]
      %v6998 = vld [vmem:[#allocation2 + $0xc9] sm:$0xff]
      %v6999 = vld [vmem:[#allocation2 + $0xd1] sm:$0xff]
      %v7000 = vld [vmem:[#allocation2 + $0xd9] sm:$0xff]
      %v7001 = vld [vmem:[#allocation2 + $0xe1] sm:$0xff]
      %v7002 = vld [vmem:[#allocation2 + $0xe9] sm:$0xff]
      %v7003 = vld [vmem:[#allocation2 + $0xf1] sm:$0xff]
      %v7004 = vld [vmem:[#allocation2 + $0xf9] sm:$0xf]
      %v7005 = vpack.c.bf16 %v6981, %v6980
      %v7006 = vpack.c.bf16 %v6983, %v6982
      %v7007 = vpack.c.bf16 %v6985, %v6984
      %v7008 = vpack.c.bf16 %v6987, %v6986
      %v7009 = vpack.c.bf16 %v6989, %v6988
      %v7010 = vpack.c.bf16 %v6991, %v6990
      %v7011 = vpack.c.bf16 %v6993, %v6992
      %v7012 = vpack.c.bf16 %v6995, %v6994
      %v7013 = vpack.c.bf16 %v6997, %v6996
      %v7014 = vpack.c.bf16 %v6999, %v6998
      %v7015 = vpack.c.bf16 %v7001, %v7000
      %v7016 = vpack.c.bf16 %v7003, %v7002
      %v7017 = vpack.c.bf16 %v7004, %v7004
      %s7018 = scalar_lea.vmem %s3, 1344
      %v7019 = vld [vmem:[%s7018] sm:$0xf]
      %v7020 = vld [vmem:[%s7018 + $0x4] sm:$0xf]
      %v7021 = vld [vmem:[%s7018 + $0x8] sm:$0xf]
      %v7022 = vld [vmem:[%s7018 + $0xc] sm:$0xf]
      %v7023 = vld [vmem:[%s7018 + $0x10] sm:$0xf]
      %v7024 = vld [vmem:[%s7018 + $0x14] sm:$0xf]
      %v7025 = vld [vmem:[%s7018 + $0x18] sm:$0xf]
      %v7026 = vld [vmem:[%s7018 + $0x1c] sm:$0xf]
      %v7027 = vld [vmem:[%s7018 + $0x20] sm:$0xf]
      %v7028 = vld [vmem:[%s7018 + $0x24] sm:$0xf]
      %v7029 = vld [vmem:[%s7018 + $0x28] sm:$0xf]
      %v7030 = vld [vmem:[%s7018 + $0x2c] sm:$0xf]
      %v7031 = vld [vmem:[%s7018 + $0x30] sm:$0xf]
      %v7032 = vld [vmem:[%s7018 + $0x34] sm:$0xf]
      %v7033 = vld [vmem:[%s7018 + $0x38] sm:$0xf]
      %v7034 = vld [vmem:[%s7018 + $0x3c] sm:$0xf]
      %v7051 = vunpack.c.l.b16 %v7019
      %v7052 = vunpack.c.l.b16 %v7020
      %v7053 = vunpack.c.l.b16 %v7021
      %v7054 = vunpack.c.l.b16 %v7022
      %v7055 = vunpack.c.l.b16 %v7023
      %v7056 = vunpack.c.l.b16 %v7024
      %v7057 = vunpack.c.l.b16 %v7025
      %v7058 = vunpack.c.l.b16 %v7026
      %v7059 = vunpack.c.l.b16 %v7027
      %v7060 = vunpack.c.l.b16 %v7028
      %v7061 = vunpack.c.l.b16 %v7029
      %v7062 = vunpack.c.l.b16 %v7030
      %v7063 = vunpack.c.l.b16 %v7031
      %v7064 = vunpack.c.l.b16 %v7032
      %v7065 = vunpack.c.l.b16 %v7033
      %v7066 = vunpack.c.l.b16 %v7034
      %v7067 = vpack.c.b16 %v7052, %v7051
      %v7068 = vpack.c.b16 %v7054, %v7053
      %v7069 = vpack.c.b16 %v7056, %v7055
      %v7070 = vpack.c.b16 %v7058, %v7057
      %v7071 = vpack.c.b16 %v7060, %v7059
      %v7072 = vpack.c.b16 %v7062, %v7061
      %v7073 = vpack.c.b16 %v7064, %v7063
      %v7074 = vpack.c.b16 %v7066, %v7065
      %7083 = vmatprep.subr.bf16.mxu0 0
      %7084 = vmatpush1.bf16.msra.mxu0 %v7074
      %7085 = vmatprep.subr.bf16.mxu0 0
      %7086 = vmatpush1.bf16.msra.mxu0 %v7073
      %7087 = vmatprep.subr.bf16.mxu0 0
      %7088 = vmatpush1.bf16.msra.mxu0 %v7072
      %7089 = vmatprep.subr.bf16.mxu0 0
      %7090 = vmatpush1.bf16.msra.mxu0 %v7071
      %7091 = vmatprep.subr.bf16.mxu0 0
      %7092 = vmatpush1.bf16.msra.mxu0 %v7070
      %7093 = vmatprep.subr.bf16.mxu0 0
      %7094 = vmatpush1.bf16.msra.mxu0 %v7069
      %7095 = vmatprep.subr.bf16.mxu0 0
      %7096 = vmatpush1.bf16.msra.mxu0 %v7068
      %7097 = vmatprep.subr.bf16.mxu0 0
      %7098 = vmatpush1.bf16.msra.mxu0 %v7067
      %7099 = vmatprep.subr.bf16.mxu0 0
      %7100 = vmatpush2.bf16.msra.mxu0 0
      %7101 = vmatprep.subr.bf16.mxu0 0
      %7102 = vmatpush2.bf16.msra.mxu0 0
      %7103 = vmatprep.subr.bf16.mxu0 0
      %7104 = vmatpush2.bf16.msra.mxu0 0
      %7105 = vmatprep.subr.bf16.mxu0 0
      %7106 = vmatpush2.bf16.msra.mxu0 0
      %7107 = vmatprep.subr.bf16.mxu0 0
      %7108 = vmatpush2.bf16.msra.mxu0 0
      %7109 = vmatprep.subr.bf16.mxu0 0
      %7110 = vmatpush2.bf16.msra.mxu0 0
      %7111 = vmatprep.subr.bf16.mxu0 0
      %7112 = vmatpush2.bf16.msra.mxu0 0
      %7113 = vmatprep.subr.bf16.mxu0 0
      %7114 = vmatpush2.bf16.msra.mxu0 0
      %7115 = vmatprep.mubr.bf16.mxu0 0
      %7116 = vmatmul.mubr.bf16.gmra.mxu0 %v7005
      %v7117 = vpop.f32.mrf.mxu0
      %v7118 = vadd.f32 0.0, %v7117
      %v7119 = vpop.f32.mrf.mxu0
      %v7120 = vpop.f32.mrf.mxu0
      %v7121 = vadd.f32 0.0, %v7120
      %v7122 = vpop.f32.mrf.mxu0
      %7123 = vmatprep.mubr.bf16.mxu0 0
      %7124 = vmatmul.mubr.bf16.gmra.mxu0 %v7006
      %v7125 = vpop.f32.mrf.mxu0
      %v7126 = vadd.f32 0.0, %v7125
      %v7127 = vpop.f32.mrf.mxu0
      %v7128 = vpop.f32.mrf.mxu0
      %v7129 = vadd.f32 0.0, %v7128
      %v7130 = vpop.f32.mrf.mxu0
      %7131 = vmatprep.mubr.bf16.mxu0 0
      %7132 = vmatmul.mubr.bf16.gmra.mxu0 %v7007
      %v7133 = vpop.f32.mrf.mxu0
      %v7134 = vadd.f32 0.0, %v7133
      %v7135 = vpop.f32.mrf.mxu0
      %v7136 = vpop.f32.mrf.mxu0
      %v7137 = vadd.f32 0.0, %v7136
      %v7138 = vpop.f32.mrf.mxu0
      %7139 = vmatprep.mubr.bf16.mxu0 0
      %7140 = vmatmul.mubr.bf16.gmra.mxu0 %v7008
      %v7141 = vpop.f32.mrf.mxu0
      %v7142 = vadd.f32 0.0, %v7141
      %v7143 = vpop.f32.mrf.mxu0
      %v7144 = vpop.f32.mrf.mxu0
      %v7145 = vadd.f32 0.0, %v7144
      %v7146 = vpop.f32.mrf.mxu0
      %7147 = vmatprep.mubr.bf16.mxu0 0
      %7148 = vmatmul.mubr.bf16.gmra.mxu0 %v7009
      %v7149 = vpop.f32.mrf.mxu0
      %v7150 = vadd.f32 0.0, %v7149
      %v7151 = vpop.f32.mrf.mxu0
      %v7152 = vpop.f32.mrf.mxu0
      %v7153 = vadd.f32 0.0, %v7152
      %v7154 = vpop.f32.mrf.mxu0
      %7155 = vmatprep.mubr.bf16.mxu0 0
      %7156 = vmatmul.mubr.bf16.gmra.mxu0 %v7010
      %v7157 = vpop.f32.mrf.mxu0
      %v7158 = vadd.f32 0.0, %v7157
      %v7159 = vpop.f32.mrf.mxu0
      %v7160 = vpop.f32.mrf.mxu0
      %v7161 = vadd.f32 0.0, %v7160
      %v7162 = vpop.f32.mrf.mxu0
      %7163 = vmatprep.mubr.bf16.mxu0 0
      %7164 = vmatmul.mubr.bf16.gmra.mxu0 %v7011
      %v7165 = vpop.f32.mrf.mxu0
      %v7166 = vadd.f32 0.0, %v7165
      %v7167 = vpop.f32.mrf.mxu0
      %v7168 = vpop.f32.mrf.mxu0
      %v7169 = vadd.f32 0.0, %v7168
      %v7170 = vpop.f32.mrf.mxu0
      %7171 = vmatprep.mubr.bf16.mxu0 0
      %7172 = vmatmul.mubr.bf16.gmra.mxu0 %v7012
      %v7173 = vpop.f32.mrf.mxu0
      %v7174 = vadd.f32 0.0, %v7173
      %v7175 = vpop.f32.mrf.mxu0
      %v7176 = vpop.f32.mrf.mxu0
      %v7177 = vadd.f32 0.0, %v7176
      %v7178 = vpop.f32.mrf.mxu0
      %7179 = vmatprep.mubr.bf16.mxu0 0
      %7180 = vmatmul.mubr.bf16.gmra.mxu0 %v7013
      %v7181 = vpop.f32.mrf.mxu0
      %v7182 = vadd.f32 0.0, %v7181
      %v7183 = vpop.f32.mrf.mxu0
      %v7184 = vpop.f32.mrf.mxu0
      %v7185 = vadd.f32 0.0, %v7184
      %v7186 = vpop.f32.mrf.mxu0
      %7187 = vmatprep.mubr.bf16.mxu0 0
      %7188 = vmatmul.mubr.bf16.gmra.mxu0 %v7014
      %v7189 = vpop.f32.mrf.mxu0
      %v7190 = vadd.f32 0.0, %v7189
      %v7191 = vpop.f32.mrf.mxu0
      %v7192 = vpop.f32.mrf.mxu0
      %v7193 = vadd.f32 0.0, %v7192
      %v7194 = vpop.f32.mrf.mxu0
      %7195 = vmatprep.mubr.bf16.mxu0 0
      %7196 = vmatmul.mubr.bf16.gmra.mxu0 %v7015
      %v7197 = vpop.f32.mrf.mxu0
      %v7198 = vadd.f32 0.0, %v7197
      %v7199 = vpop.f32.mrf.mxu0
      %v7200 = vpop.f32.mrf.mxu0
      %v7201 = vadd.f32 0.0, %v7200
      %v7202 = vpop.f32.mrf.mxu0
      %7203 = vmatprep.mubr.bf16.mxu0 0
      %7204 = vmatmul.mubr.bf16.gmra.mxu0 %v7016
      %v7205 = vpop.f32.mrf.mxu0
      %v7206 = vadd.f32 0.0, %v7205
      %v7207 = vpop.f32.mrf.mxu0
      %v7208 = vpop.f32.mrf.mxu0
      %v7209 = vadd.f32 0.0, %v7208
      %v7210 = vpop.f32.mrf.mxu0
      %7211 = vmatprep.mubr.bf16.mxu0 0
      %7212 = vmatmul.mubr.bf16.gmra.mxu0 %v7017
      %v7213 = vpop.f32.mrf.mxu0
      %v7214 = vadd.f32 0.0, %v7213
      %v7215 = vpop.f32.mrf.mxu0
      %v7216 = vpop.f32.mrf.mxu0
      %v7217 = vpop.f32.mrf.mxu0
      %7218 = vdwg.mxu0
      %v7219 = vadd.f32 %v6955, %v7118
      %v7220 = vadd.f32 %v6956, %v7121
      %v7221 = vadd.f32 %v6957, %v7126
      %v7222 = vadd.f32 %v6958, %v7129
      %v7223 = vadd.f32 %v6959, %v7134
      %v7224 = vadd.f32 %v6960, %v7137
      %v7225 = vadd.f32 %v6961, %v7142
      %v7226 = vadd.f32 %v6962, %v7145
      %v7227 = vadd.f32 %v6963, %v7150
      %v7228 = vadd.f32 %v6964, %v7153
      %v7229 = vadd.f32 %v6965, %v7158
      %v7230 = vadd.f32 %v6966, %v7161
      %v7231 = vadd.f32 %v6967, %v7166
      %v7232 = vadd.f32 %v6968, %v7169
      %v7233 = vadd.f32 %v6969, %v7174
      %v7234 = vadd.f32 %v6970, %v7177
      %v7235 = vadd.f32 %v6971, %v7182
      %v7236 = vadd.f32 %v6972, %v7185
      %v7237 = vadd.f32 %v6973, %v7190
      %v7238 = vadd.f32 %v6974, %v7193
      %v7239 = vadd.f32 %v6975, %v7198
      %v7240 = vadd.f32 %v6976, %v7201
      %v7241 = vadd.f32 %v6977, %v7206
      %v7242 = vadd.f32 %v6978, %v7209
      %v7243 = vadd.f32 %v6979, %v7214
      %v7244 = vld [vmem:[#allocation2 + $0x3a] sm:$0xff]
      %v7245 = vld [vmem:[#allocation2 + $0x42] sm:$0xff]
      %v7246 = vld [vmem:[#allocation2 + $0x4a] sm:$0xff]
      %v7247 = vld [vmem:[#allocation2 + $0x52] sm:$0xff]
      %v7248 = vld [vmem:[#allocation2 + $0x5a] sm:$0xff]
      %v7249 = vld [vmem:[#allocation2 + $0x62] sm:$0xff]
      %v7250 = vld [vmem:[#allocation2 + $0x6a] sm:$0xff]
      %v7251 = vld [vmem:[#allocation2 + $0x72] sm:$0xff]
      %v7252 = vld [vmem:[#allocation2 + $0x7a] sm:$0xff]
      %v7253 = vld [vmem:[#allocation2 + $0x82] sm:$0xff]
      %v7254 = vld [vmem:[#allocation2 + $0x8a] sm:$0xff]
      %v7255 = vld [vmem:[#allocation2 + $0x92] sm:$0xff]
      %v7256 = vld [vmem:[#allocation2 + $0x9a] sm:$0xff]
      %v7257 = vld [vmem:[#allocation2 + $0xa2] sm:$0xff]
      %v7258 = vld [vmem:[#allocation2 + $0xaa] sm:$0xff]
      %v7259 = vld [vmem:[#allocation2 + $0xb2] sm:$0xff]
      %v7260 = vld [vmem:[#allocation2 + $0xba] sm:$0xff]
      %v7261 = vld [vmem:[#allocation2 + $0xc2] sm:$0xff]
      %v7262 = vld [vmem:[#allocation2 + $0xca] sm:$0xff]
      %v7263 = vld [vmem:[#allocation2 + $0xd2] sm:$0xff]
      %v7264 = vld [vmem:[#allocation2 + $0xda] sm:$0xff]
      %v7265 = vld [vmem:[#allocation2 + $0xe2] sm:$0xff]
      %v7266 = vld [vmem:[#allocation2 + $0xea] sm:$0xff]
      %v7267 = vld [vmem:[#allocation2 + $0xf2] sm:$0xff]
      %v7268 = vld [vmem:[#allocation2 + $0xfa] sm:$0xf]
      %v7269 = vpack.c.bf16 %v7245, %v7244
      %v7270 = vpack.c.bf16 %v7247, %v7246
      %v7271 = vpack.c.bf16 %v7249, %v7248
      %v7272 = vpack.c.bf16 %v7251, %v7250
      %v7273 = vpack.c.bf16 %v7253, %v7252
      %v7274 = vpack.c.bf16 %v7255, %v7254
      %v7275 = vpack.c.bf16 %v7257, %v7256
      %v7276 = vpack.c.bf16 %v7259, %v7258
      %v7277 = vpack.c.bf16 %v7261, %v7260
      %v7278 = vpack.c.bf16 %v7263, %v7262
      %v7279 = vpack.c.bf16 %v7265, %v7264
      %v7280 = vpack.c.bf16 %v7267, %v7266
      %v7281 = vpack.c.bf16 %v7268, %v7268
      %s7282 = scalar_lea.vmem %s3, 1408
      %v7283 = vld [vmem:[%s7282] sm:$0xf]
      %v7284 = vld [vmem:[%s7282 + $0x4] sm:$0xf]
      %v7285 = vld [vmem:[%s7282 + $0x8] sm:$0xf]
      %v7286 = vld [vmem:[%s7282 + $0xc] sm:$0xf]
      %v7287 = vld [vmem:[%s7282 + $0x10] sm:$0xf]
      %v7288 = vld [vmem:[%s7282 + $0x14] sm:$0xf]
      %v7289 = vld [vmem:[%s7282 + $0x18] sm:$0xf]
      %v7290 = vld [vmem:[%s7282 + $0x1c] sm:$0xf]
      %v7291 = vld [vmem:[%s7282 + $0x20] sm:$0xf]
      %v7292 = vld [vmem:[%s7282 + $0x24] sm:$0xf]
      %v7293 = vld [vmem:[%s7282 + $0x28] sm:$0xf]
      %v7294 = vld [vmem:[%s7282 + $0x2c] sm:$0xf]
      %v7295 = vld [vmem:[%s7282 + $0x30] sm:$0xf]
      %v7296 = vld [vmem:[%s7282 + $0x34] sm:$0xf]
      %v7297 = vld [vmem:[%s7282 + $0x38] sm:$0xf]
      %v7298 = vld [vmem:[%s7282 + $0x3c] sm:$0xf]
      %v7315 = vunpack.c.l.b16 %v7283
      %v7316 = vunpack.c.l.b16 %v7284
      %v7317 = vunpack.c.l.b16 %v7285
      %v7318 = vunpack.c.l.b16 %v7286
      %v7319 = vunpack.c.l.b16 %v7287
      %v7320 = vunpack.c.l.b16 %v7288
      %v7321 = vunpack.c.l.b16 %v7289
      %v7322 = vunpack.c.l.b16 %v7290
      %v7323 = vunpack.c.l.b16 %v7291
      %v7324 = vunpack.c.l.b16 %v7292
      %v7325 = vunpack.c.l.b16 %v7293
      %v7326 = vunpack.c.l.b16 %v7294
      %v7327 = vunpack.c.l.b16 %v7295
      %v7328 = vunpack.c.l.b16 %v7296
      %v7329 = vunpack.c.l.b16 %v7297
      %v7330 = vunpack.c.l.b16 %v7298
      %v7331 = vpack.c.b16 %v7316, %v7315
      %v7332 = vpack.c.b16 %v7318, %v7317
      %v7333 = vpack.c.b16 %v7320, %v7319
      %v7334 = vpack.c.b16 %v7322, %v7321
      %v7335 = vpack.c.b16 %v7324, %v7323
      %v7336 = vpack.c.b16 %v7326, %v7325
      %v7337 = vpack.c.b16 %v7328, %v7327
      %v7338 = vpack.c.b16 %v7330, %v7329
      %7347 = vmatprep.subr.bf16.mxu0 0
      %7348 = vmatpush1.bf16.msra.mxu0 %v7338
      %7349 = vmatprep.subr.bf16.mxu0 0
      %7350 = vmatpush1.bf16.msra.mxu0 %v7337
      %7351 = vmatprep.subr.bf16.mxu0 0
      %7352 = vmatpush1.bf16.msra.mxu0 %v7336
      %7353 = vmatprep.subr.bf16.mxu0 0
      %7354 = vmatpush1.bf16.msra.mxu0 %v7335
      %7355 = vmatprep.subr.bf16.mxu0 0
      %7356 = vmatpush1.bf16.msra.mxu0 %v7334
      %7357 = vmatprep.subr.bf16.mxu0 0
      %7358 = vmatpush1.bf16.msra.mxu0 %v7333
      %7359 = vmatprep.subr.bf16.mxu0 0
      %7360 = vmatpush1.bf16.msra.mxu0 %v7332
      %7361 = vmatprep.subr.bf16.mxu0 0
      %7362 = vmatpush1.bf16.msra.mxu0 %v7331
      %7363 = vmatprep.subr.bf16.mxu0 0
      %7364 = vmatpush2.bf16.msra.mxu0 0
      %7365 = vmatprep.subr.bf16.mxu0 0
      %7366 = vmatpush2.bf16.msra.mxu0 0
      %7367 = vmatprep.subr.bf16.mxu0 0
      %7368 = vmatpush2.bf16.msra.mxu0 0
      %7369 = vmatprep.subr.bf16.mxu0 0
      %7370 = vmatpush2.bf16.msra.mxu0 0
      %7371 = vmatprep.subr.bf16.mxu0 0
      %7372 = vmatpush2.bf16.msra.mxu0 0
      %7373 = vmatprep.subr.bf16.mxu0 0
      %7374 = vmatpush2.bf16.msra.mxu0 0
      %7375 = vmatprep.subr.bf16.mxu0 0
      %7376 = vmatpush2.bf16.msra.mxu0 0
      %7377 = vmatprep.subr.bf16.mxu0 0
      %7378 = vmatpush2.bf16.msra.mxu0 0
      %7379 = vmatprep.mubr.bf16.mxu0 0
      %7380 = vmatmul.mubr.bf16.gmra.mxu0 %v7269
      %v7381 = vpop.f32.mrf.mxu0
      %v7382 = vadd.f32 0.0, %v7381
      %v7383 = vpop.f32.mrf.mxu0
      %v7384 = vpop.f32.mrf.mxu0
      %v7385 = vadd.f32 0.0, %v7384
      %v7386 = vpop.f32.mrf.mxu0
      %7387 = vmatprep.mubr.bf16.mxu0 0
      %7388 = vmatmul.mubr.bf16.gmra.mxu0 %v7270
      %v7389 = vpop.f32.mrf.mxu0
      %v7390 = vadd.f32 0.0, %v7389
      %v7391 = vpop.f32.mrf.mxu0
      %v7392 = vpop.f32.mrf.mxu0
      %v7393 = vadd.f32 0.0, %v7392
      %v7394 = vpop.f32.mrf.mxu0
      %7395 = vmatprep.mubr.bf16.mxu0 0
      %7396 = vmatmul.mubr.bf16.gmra.mxu0 %v7271
      %v7397 = vpop.f32.mrf.mxu0
      %v7398 = vadd.f32 0.0, %v7397
      %v7399 = vpop.f32.mrf.mxu0
      %v7400 = vpop.f32.mrf.mxu0
      %v7401 = vadd.f32 0.0, %v7400
      %v7402 = vpop.f32.mrf.mxu0
      %7403 = vmatprep.mubr.bf16.mxu0 0
      %7404 = vmatmul.mubr.bf16.gmra.mxu0 %v7272
      %v7405 = vpop.f32.mrf.mxu0
      %v7406 = vadd.f32 0.0, %v7405
      %v7407 = vpop.f32.mrf.mxu0
      %v7408 = vpop.f32.mrf.mxu0
      %v7409 = vadd.f32 0.0, %v7408
      %v7410 = vpop.f32.mrf.mxu0
      %7411 = vmatprep.mubr.bf16.mxu0 0
      %7412 = vmatmul.mubr.bf16.gmra.mxu0 %v7273
      %v7413 = vpop.f32.mrf.mxu0
      %v7414 = vadd.f32 0.0, %v7413
      %v7415 = vpop.f32.mrf.mxu0
      %v7416 = vpop.f32.mrf.mxu0
      %v7417 = vadd.f32 0.0, %v7416
      %v7418 = vpop.f32.mrf.mxu0
      %7419 = vmatprep.mubr.bf16.mxu0 0
      %7420 = vmatmul.mubr.bf16.gmra.mxu0 %v7274
      %v7421 = vpop.f32.mrf.mxu0
      %v7422 = vadd.f32 0.0, %v7421
      %v7423 = vpop.f32.mrf.mxu0
      %v7424 = vpop.f32.mrf.mxu0
      %v7425 = vadd.f32 0.0, %v7424
      %v7426 = vpop.f32.mrf.mxu0
      %7427 = vmatprep.mubr.bf16.mxu0 0
      %7428 = vmatmul.mubr.bf16.gmra.mxu0 %v7275
      %v7429 = vpop.f32.mrf.mxu0
      %v7430 = vadd.f32 0.0, %v7429
      %v7431 = vpop.f32.mrf.mxu0
      %v7432 = vpop.f32.mrf.mxu0
      %v7433 = vadd.f32 0.0, %v7432
      %v7434 = vpop.f32.mrf.mxu0
      %7435 = vmatprep.mubr.bf16.mxu0 0
      %7436 = vmatmul.mubr.bf16.gmra.mxu0 %v7276
      %v7437 = vpop.f32.mrf.mxu0
      %v7438 = vadd.f32 0.0, %v7437
      %v7439 = vpop.f32.mrf.mxu0
      %v7440 = vpop.f32.mrf.mxu0
      %v7441 = vadd.f32 0.0, %v7440
      %v7442 = vpop.f32.mrf.mxu0
      %7443 = vmatprep.mubr.bf16.mxu0 0
      %7444 = vmatmul.mubr.bf16.gmra.mxu0 %v7277
      %v7445 = vpop.f32.mrf.mxu0
      %v7446 = vadd.f32 0.0, %v7445
      %v7447 = vpop.f32.mrf.mxu0
      %v7448 = vpop.f32.mrf.mxu0
      %v7449 = vadd.f32 0.0, %v7448
      %v7450 = vpop.f32.mrf.mxu0
      %7451 = vmatprep.mubr.bf16.mxu0 0
      %7452 = vmatmul.mubr.bf16.gmra.mxu0 %v7278
      %v7453 = vpop.f32.mrf.mxu0
      %v7454 = vadd.f32 0.0, %v7453
      %v7455 = vpop.f32.mrf.mxu0
      %v7456 = vpop.f32.mrf.mxu0
      %v7457 = vadd.f32 0.0, %v7456
      %v7458 = vpop.f32.mrf.mxu0
      %7459 = vmatprep.mubr.bf16.mxu0 0
      %7460 = vmatmul.mubr.bf16.gmra.mxu0 %v7279
      %v7461 = vpop.f32.mrf.mxu0
      %v7462 = vadd.f32 0.0, %v7461
      %v7463 = vpop.f32.mrf.mxu0
      %v7464 = vpop.f32.mrf.mxu0
      %v7465 = vadd.f32 0.0, %v7464
      %v7466 = vpop.f32.mrf.mxu0
      %7467 = vmatprep.mubr.bf16.mxu0 0
      %7468 = vmatmul.mubr.bf16.gmra.mxu0 %v7280
      %v7469 = vpop.f32.mrf.mxu0
      %v7470 = vadd.f32 0.0, %v7469
      %v7471 = vpop.f32.mrf.mxu0
      %v7472 = vpop.f32.mrf.mxu0
      %v7473 = vadd.f32 0.0, %v7472
      %v7474 = vpop.f32.mrf.mxu0
      %7475 = vmatprep.mubr.bf16.mxu0 0
      %7476 = vmatmul.mubr.bf16.gmra.mxu0 %v7281
      %v7477 = vpop.f32.mrf.mxu0
      %v7478 = vadd.f32 0.0, %v7477
      %v7479 = vpop.f32.mrf.mxu0
      %v7480 = vpop.f32.mrf.mxu0
      %v7481 = vpop.f32.mrf.mxu0
      %7482 = vdwg.mxu0
      %v7483 = vadd.f32 %v7219, %v7382
      %v7484 = vadd.f32 %v7220, %v7385
      %v7485 = vadd.f32 %v7221, %v7390
      %v7486 = vadd.f32 %v7222, %v7393
      %v7487 = vadd.f32 %v7223, %v7398
      %v7488 = vadd.f32 %v7224, %v7401
      %v7489 = vadd.f32 %v7225, %v7406
      %v7490 = vadd.f32 %v7226, %v7409
      %v7491 = vadd.f32 %v7227, %v7414
      %v7492 = vadd.f32 %v7228, %v7417
      %v7493 = vadd.f32 %v7229, %v7422
      %v7494 = vadd.f32 %v7230, %v7425
      %v7495 = vadd.f32 %v7231, %v7430
      %v7496 = vadd.f32 %v7232, %v7433
      %v7497 = vadd.f32 %v7233, %v7438
      %v7498 = vadd.f32 %v7234, %v7441
      %v7499 = vadd.f32 %v7235, %v7446
      %v7500 = vadd.f32 %v7236, %v7449
      %v7501 = vadd.f32 %v7237, %v7454
      %v7502 = vadd.f32 %v7238, %v7457
      %v7503 = vadd.f32 %v7239, %v7462
      %v7504 = vadd.f32 %v7240, %v7465
      %v7505 = vadd.f32 %v7241, %v7470
      %v7506 = vadd.f32 %v7242, %v7473
      %v7507 = vadd.f32 %v7243, %v7478
      %v7508 = vld [vmem:[#allocation2 + $0x3b] sm:$0xff]
      %v7509 = vld [vmem:[#allocation2 + $0x43] sm:$0xff]
      %v7510 = vld [vmem:[#allocation2 + $0x4b] sm:$0xff]
      %v7511 = vld [vmem:[#allocation2 + $0x53] sm:$0xff]
      %v7512 = vld [vmem:[#allocation2 + $0x5b] sm:$0xff]
      %v7513 = vld [vmem:[#allocation2 + $0x63] sm:$0xff]
      %v7514 = vld [vmem:[#allocation2 + $0x6b] sm:$0xff]
      %v7515 = vld [vmem:[#allocation2 + $0x73] sm:$0xff]
      %v7516 = vld [vmem:[#allocation2 + $0x7b] sm:$0xff]
      %v7517 = vld [vmem:[#allocation2 + $0x83] sm:$0xff]
      %v7518 = vld [vmem:[#allocation2 + $0x8b] sm:$0xff]
      %v7519 = vld [vmem:[#allocation2 + $0x93] sm:$0xff]
      %v7520 = vld [vmem:[#allocation2 + $0x9b] sm:$0xff]
      %v7521 = vld [vmem:[#allocation2 + $0xa3] sm:$0xff]
      %v7522 = vld [vmem:[#allocation2 + $0xab] sm:$0xff]
      %v7523 = vld [vmem:[#allocation2 + $0xb3] sm:$0xff]
      %v7524 = vld [vmem:[#allocation2 + $0xbb] sm:$0xff]
      %v7525 = vld [vmem:[#allocation2 + $0xc3] sm:$0xff]
      %v7526 = vld [vmem:[#allocation2 + $0xcb] sm:$0xff]
      %v7527 = vld [vmem:[#allocation2 + $0xd3] sm:$0xff]
      %v7528 = vld [vmem:[#allocation2 + $0xdb] sm:$0xff]
      %v7529 = vld [vmem:[#allocation2 + $0xe3] sm:$0xff]
      %v7530 = vld [vmem:[#allocation2 + $0xeb] sm:$0xff]
      %v7531 = vld [vmem:[#allocation2 + $0xf3] sm:$0xff]
      %v7532 = vld [vmem:[#allocation2 + $0xfb] sm:$0xf]
      %v7533 = vpack.c.bf16 %v7509, %v7508
      %v7534 = vpack.c.bf16 %v7511, %v7510
      %v7535 = vpack.c.bf16 %v7513, %v7512
      %v7536 = vpack.c.bf16 %v7515, %v7514
      %v7537 = vpack.c.bf16 %v7517, %v7516
      %v7538 = vpack.c.bf16 %v7519, %v7518
      %v7539 = vpack.c.bf16 %v7521, %v7520
      %v7540 = vpack.c.bf16 %v7523, %v7522
      %v7541 = vpack.c.bf16 %v7525, %v7524
      %v7542 = vpack.c.bf16 %v7527, %v7526
      %v7543 = vpack.c.bf16 %v7529, %v7528
      %v7544 = vpack.c.bf16 %v7531, %v7530
      %v7545 = vpack.c.bf16 %v7532, %v7532
      %s7546 = scalar_lea.vmem %s3, 1472
      %v7547 = vld [vmem:[%s7546] sm:$0xf]
      %v7548 = vld [vmem:[%s7546 + $0x4] sm:$0xf]
      %v7549 = vld [vmem:[%s7546 + $0x8] sm:$0xf]
      %v7550 = vld [vmem:[%s7546 + $0xc] sm:$0xf]
      %v7551 = vld [vmem:[%s7546 + $0x10] sm:$0xf]
      %v7552 = vld [vmem:[%s7546 + $0x14] sm:$0xf]
      %v7553 = vld [vmem:[%s7546 + $0x18] sm:$0xf]
      %v7554 = vld [vmem:[%s7546 + $0x1c] sm:$0xf]
      %v7555 = vld [vmem:[%s7546 + $0x20] sm:$0xf]
      %v7556 = vld [vmem:[%s7546 + $0x24] sm:$0xf]
      %v7557 = vld [vmem:[%s7546 + $0x28] sm:$0xf]
      %v7558 = vld [vmem:[%s7546 + $0x2c] sm:$0xf]
      %v7559 = vld [vmem:[%s7546 + $0x30] sm:$0xf]
      %v7560 = vld [vmem:[%s7546 + $0x34] sm:$0xf]
      %v7561 = vld [vmem:[%s7546 + $0x38] sm:$0xf]
      %v7562 = vld [vmem:[%s7546 + $0x3c] sm:$0xf]
      %v7579 = vunpack.c.l.b16 %v7547
      %v7580 = vunpack.c.l.b16 %v7548
      %v7581 = vunpack.c.l.b16 %v7549
      %v7582 = vunpack.c.l.b16 %v7550
      %v7583 = vunpack.c.l.b16 %v7551
      %v7584 = vunpack.c.l.b16 %v7552
      %v7585 = vunpack.c.l.b16 %v7553
      %v7586 = vunpack.c.l.b16 %v7554
      %v7587 = vunpack.c.l.b16 %v7555
      %v7588 = vunpack.c.l.b16 %v7556
      %v7589 = vunpack.c.l.b16 %v7557
      %v7590 = vunpack.c.l.b16 %v7558
      %v7591 = vunpack.c.l.b16 %v7559
      %v7592 = vunpack.c.l.b16 %v7560
      %v7593 = vunpack.c.l.b16 %v7561
      %v7594 = vunpack.c.l.b16 %v7562
      %v7595 = vpack.c.b16 %v7580, %v7579
      %v7596 = vpack.c.b16 %v7582, %v7581
      %v7597 = vpack.c.b16 %v7584, %v7583
      %v7598 = vpack.c.b16 %v7586, %v7585
      %v7599 = vpack.c.b16 %v7588, %v7587
      %v7600 = vpack.c.b16 %v7590, %v7589
      %v7601 = vpack.c.b16 %v7592, %v7591
      %v7602 = vpack.c.b16 %v7594, %v7593
      %7611 = vmatprep.subr.bf16.mxu0 0
      %7612 = vmatpush1.bf16.msra.mxu0 %v7602
      %7613 = vmatprep.subr.bf16.mxu0 0
      %7614 = vmatpush1.bf16.msra.mxu0 %v7601
      %7615 = vmatprep.subr.bf16.mxu0 0
      %7616 = vmatpush1.bf16.msra.mxu0 %v7600
      %7617 = vmatprep.subr.bf16.mxu0 0
      %7618 = vmatpush1.bf16.msra.mxu0 %v7599
      %7619 = vmatprep.subr.bf16.mxu0 0
      %7620 = vmatpush1.bf16.msra.mxu0 %v7598
      %7621 = vmatprep.subr.bf16.mxu0 0
      %7622 = vmatpush1.bf16.msra.mxu0 %v7597
      %7623 = vmatprep.subr.bf16.mxu0 0
      %7624 = vmatpush1.bf16.msra.mxu0 %v7596
      %7625 = vmatprep.subr.bf16.mxu0 0
      %7626 = vmatpush1.bf16.msra.mxu0 %v7595
      %7627 = vmatprep.subr.bf16.mxu0 0
      %7628 = vmatpush2.bf16.msra.mxu0 0
      %7629 = vmatprep.subr.bf16.mxu0 0
      %7630 = vmatpush2.bf16.msra.mxu0 0
      %7631 = vmatprep.subr.bf16.mxu0 0
      %7632 = vmatpush2.bf16.msra.mxu0 0
      %7633 = vmatprep.subr.bf16.mxu0 0
      %7634 = vmatpush2.bf16.msra.mxu0 0
      %7635 = vmatprep.subr.bf16.mxu0 0
      %7636 = vmatpush2.bf16.msra.mxu0 0
      %7637 = vmatprep.subr.bf16.mxu0 0
      %7638 = vmatpush2.bf16.msra.mxu0 0
      %7639 = vmatprep.subr.bf16.mxu0 0
      %7640 = vmatpush2.bf16.msra.mxu0 0
      %7641 = vmatprep.subr.bf16.mxu0 0
      %7642 = vmatpush2.bf16.msra.mxu0 0
      %7643 = vmatprep.mubr.bf16.mxu0 0
      %7644 = vmatmul.mubr.bf16.gmra.mxu0 %v7533
      %v7645 = vpop.f32.mrf.mxu0
      %v7646 = vadd.f32 0.0, %v7645
      %v7647 = vpop.f32.mrf.mxu0
      %v7648 = vpop.f32.mrf.mxu0
      %v7649 = vadd.f32 0.0, %v7648
      %v7650 = vpop.f32.mrf.mxu0
      %7651 = vmatprep.mubr.bf16.mxu0 0
      %7652 = vmatmul.mubr.bf16.gmra.mxu0 %v7534
      %v7653 = vpop.f32.mrf.mxu0
      %v7654 = vadd.f32 0.0, %v7653
      %v7655 = vpop.f32.mrf.mxu0
      %v7656 = vpop.f32.mrf.mxu0
      %v7657 = vadd.f32 0.0, %v7656
      %v7658 = vpop.f32.mrf.mxu0
      %7659 = vmatprep.mubr.bf16.mxu0 0
      %7660 = vmatmul.mubr.bf16.gmra.mxu0 %v7535
      %v7661 = vpop.f32.mrf.mxu0
      %v7662 = vadd.f32 0.0, %v7661
      %v7663 = vpop.f32.mrf.mxu0
      %v7664 = vpop.f32.mrf.mxu0
      %v7665 = vadd.f32 0.0, %v7664
      %v7666 = vpop.f32.mrf.mxu0
      %7667 = vmatprep.mubr.bf16.mxu0 0
      %7668 = vmatmul.mubr.bf16.gmra.mxu0 %v7536
      %v7669 = vpop.f32.mrf.mxu0
      %v7670 = vadd.f32 0.0, %v7669
      %v7671 = vpop.f32.mrf.mxu0
      %v7672 = vpop.f32.mrf.mxu0
      %v7673 = vadd.f32 0.0, %v7672
      %v7674 = vpop.f32.mrf.mxu0
      %7675 = vmatprep.mubr.bf16.mxu0 0
      %7676 = vmatmul.mubr.bf16.gmra.mxu0 %v7537
      %v7677 = vpop.f32.mrf.mxu0
      %v7678 = vadd.f32 0.0, %v7677
      %v7679 = vpop.f32.mrf.mxu0
      %v7680 = vpop.f32.mrf.mxu0
      %v7681 = vadd.f32 0.0, %v7680
      %v7682 = vpop.f32.mrf.mxu0
      %7683 = vmatprep.mubr.bf16.mxu0 0
      %7684 = vmatmul.mubr.bf16.gmra.mxu0 %v7538
      %v7685 = vpop.f32.mrf.mxu0
      %v7686 = vadd.f32 0.0, %v7685
      %v7687 = vpop.f32.mrf.mxu0
      %v7688 = vpop.f32.mrf.mxu0
      %v7689 = vadd.f32 0.0, %v7688
      %v7690 = vpop.f32.mrf.mxu0
      %7691 = vmatprep.mubr.bf16.mxu0 0
      %7692 = vmatmul.mubr.bf16.gmra.mxu0 %v7539
      %v7693 = vpop.f32.mrf.mxu0
      %v7694 = vadd.f32 0.0, %v7693
      %v7695 = vpop.f32.mrf.mxu0
      %v7696 = vpop.f32.mrf.mxu0
      %v7697 = vadd.f32 0.0, %v7696
      %v7698 = vpop.f32.mrf.mxu0
      %7699 = vmatprep.mubr.bf16.mxu0 0
      %7700 = vmatmul.mubr.bf16.gmra.mxu0 %v7540
      %v7701 = vpop.f32.mrf.mxu0
      %v7702 = vadd.f32 0.0, %v7701
      %v7703 = vpop.f32.mrf.mxu0
      %v7704 = vpop.f32.mrf.mxu0
      %v7705 = vadd.f32 0.0, %v7704
      %v7706 = vpop.f32.mrf.mxu0
      %7707 = vmatprep.mubr.bf16.mxu0 0
      %7708 = vmatmul.mubr.bf16.gmra.mxu0 %v7541
      %v7709 = vpop.f32.mrf.mxu0
      %v7710 = vadd.f32 0.0, %v7709
      %v7711 = vpop.f32.mrf.mxu0
      %v7712 = vpop.f32.mrf.mxu0
      %v7713 = vadd.f32 0.0, %v7712
      %v7714 = vpop.f32.mrf.mxu0
      %7715 = vmatprep.mubr.bf16.mxu0 0
      %7716 = vmatmul.mubr.bf16.gmra.mxu0 %v7542
      %v7717 = vpop.f32.mrf.mxu0
      %v7718 = vadd.f32 0.0, %v7717
      %v7719 = vpop.f32.mrf.mxu0
      %v7720 = vpop.f32.mrf.mxu0
      %v7721 = vadd.f32 0.0, %v7720
      %v7722 = vpop.f32.mrf.mxu0
      %7723 = vmatprep.mubr.bf16.mxu0 0
      %7724 = vmatmul.mubr.bf16.gmra.mxu0 %v7543
      %v7725 = vpop.f32.mrf.mxu0
      %v7726 = vadd.f32 0.0, %v7725
      %v7727 = vpop.f32.mrf.mxu0
      %v7728 = vpop.f32.mrf.mxu0
      %v7729 = vadd.f32 0.0, %v7728
      %v7730 = vpop.f32.mrf.mxu0
      %7731 = vmatprep.mubr.bf16.mxu0 0
      %7732 = vmatmul.mubr.bf16.gmra.mxu0 %v7544
      %v7733 = vpop.f32.mrf.mxu0
      %v7734 = vadd.f32 0.0, %v7733
      %v7735 = vpop.f32.mrf.mxu0
      %v7736 = vpop.f32.mrf.mxu0
      %v7737 = vadd.f32 0.0, %v7736
      %v7738 = vpop.f32.mrf.mxu0
      %7739 = vmatprep.mubr.bf16.mxu0 0
      %7740 = vmatmul.mubr.bf16.gmra.mxu0 %v7545
      %v7741 = vpop.f32.mrf.mxu0
      %v7742 = vadd.f32 0.0, %v7741
      %v7743 = vpop.f32.mrf.mxu0
      %v7744 = vpop.f32.mrf.mxu0
      %v7745 = vpop.f32.mrf.mxu0
      %7746 = vdwg.mxu0
      %v7747 = vadd.f32 %v7483, %v7646
      %v7748 = vadd.f32 %v7484, %v7649
      %v7749 = vadd.f32 %v7485, %v7654
      %v7750 = vadd.f32 %v7486, %v7657
      %v7751 = vadd.f32 %v7487, %v7662
      %v7752 = vadd.f32 %v7488, %v7665
      %v7753 = vadd.f32 %v7489, %v7670
      %v7754 = vadd.f32 %v7490, %v7673
      %v7755 = vadd.f32 %v7491, %v7678
      %v7756 = vadd.f32 %v7492, %v7681
      %v7757 = vadd.f32 %v7493, %v7686
      %v7758 = vadd.f32 %v7494, %v7689
      %v7759 = vadd.f32 %v7495, %v7694
      %v7760 = vadd.f32 %v7496, %v7697
      %v7761 = vadd.f32 %v7497, %v7702
      %v7762 = vadd.f32 %v7498, %v7705
      %v7763 = vadd.f32 %v7499, %v7710
      %v7764 = vadd.f32 %v7500, %v7713
      %v7765 = vadd.f32 %v7501, %v7718
      %v7766 = vadd.f32 %v7502, %v7721
      %v7767 = vadd.f32 %v7503, %v7726
      %v7768 = vadd.f32 %v7504, %v7729
      %v7769 = vadd.f32 %v7505, %v7734
      %v7770 = vadd.f32 %v7506, %v7737
      %v7771 = vadd.f32 %v7507, %v7742
      %v7772 = vld [vmem:[#allocation2 + $0x3c] sm:$0xff]
      %v7773 = vld [vmem:[#allocation2 + $0x44] sm:$0xff]
      %v7774 = vld [vmem:[#allocation2 + $0x4c] sm:$0xff]
      %v7775 = vld [vmem:[#allocation2 + $0x54] sm:$0xff]
      %v7776 = vld [vmem:[#allocation2 + $0x5c] sm:$0xff]
      %v7777 = vld [vmem:[#allocation2 + $0x64] sm:$0xff]
      %v7778 = vld [vmem:[#allocation2 + $0x6c] sm:$0xff]
      %v7779 = vld [vmem:[#allocation2 + $0x74] sm:$0xff]
      %v7780 = vld [vmem:[#allocation2 + $0x7c] sm:$0xff]
      %v7781 = vld [vmem:[#allocation2 + $0x84] sm:$0xff]
      %v7782 = vld [vmem:[#allocation2 + $0x8c] sm:$0xff]
      %v7783 = vld [vmem:[#allocation2 + $0x94] sm:$0xff]
      %v7784 = vld [vmem:[#allocation2 + $0x9c] sm:$0xff]
      %v7785 = vld [vmem:[#allocation2 + $0xa4] sm:$0xff]
      %v7786 = vld [vmem:[#allocation2 + $0xac] sm:$0xff]
      %v7787 = vld [vmem:[#allocation2 + $0xb4] sm:$0xff]
      %v7788 = vld [vmem:[#allocation2 + $0xbc] sm:$0xff]
      %v7789 = vld [vmem:[#allocation2 + $0xc4] sm:$0xff]
      %v7790 = vld [vmem:[#allocation2 + $0xcc] sm:$0xff]
      %v7791 = vld [vmem:[#allocation2 + $0xd4] sm:$0xff]
      %v7792 = vld [vmem:[#allocation2 + $0xdc] sm:$0xff]
      %v7793 = vld [vmem:[#allocation2 + $0xe4] sm:$0xff]
      %v7794 = vld [vmem:[#allocation2 + $0xec] sm:$0xff]
      %v7795 = vld [vmem:[#allocation2 + $0xf4] sm:$0xff]
      %v7796 = vld [vmem:[#allocation2 + $0xfc] sm:$0xf]
      %v7797 = vpack.c.bf16 %v7773, %v7772
      %v7798 = vpack.c.bf16 %v7775, %v7774
      %v7799 = vpack.c.bf16 %v7777, %v7776
      %v7800 = vpack.c.bf16 %v7779, %v7778
      %v7801 = vpack.c.bf16 %v7781, %v7780
      %v7802 = vpack.c.bf16 %v7783, %v7782
      %v7803 = vpack.c.bf16 %v7785, %v7784
      %v7804 = vpack.c.bf16 %v7787, %v7786
      %v7805 = vpack.c.bf16 %v7789, %v7788
      %v7806 = vpack.c.bf16 %v7791, %v7790
      %v7807 = vpack.c.bf16 %v7793, %v7792
      %v7808 = vpack.c.bf16 %v7795, %v7794
      %v7809 = vpack.c.bf16 %v7796, %v7796
      %s7810 = scalar_lea.vmem %s3, 1536
      %v7811 = vld [vmem:[%s7810] sm:$0xf]
      %v7812 = vld [vmem:[%s7810 + $0x4] sm:$0xf]
      %v7813 = vld [vmem:[%s7810 + $0x8] sm:$0xf]
      %v7814 = vld [vmem:[%s7810 + $0xc] sm:$0xf]
      %v7815 = vld [vmem:[%s7810 + $0x10] sm:$0xf]
      %v7816 = vld [vmem:[%s7810 + $0x14] sm:$0xf]
      %v7817 = vld [vmem:[%s7810 + $0x18] sm:$0xf]
      %v7818 = vld [vmem:[%s7810 + $0x1c] sm:$0xf]
      %v7819 = vld [vmem:[%s7810 + $0x20] sm:$0xf]
      %v7820 = vld [vmem:[%s7810 + $0x24] sm:$0xf]
      %v7821 = vld [vmem:[%s7810 + $0x28] sm:$0xf]
      %v7822 = vld [vmem:[%s7810 + $0x2c] sm:$0xf]
      %v7823 = vld [vmem:[%s7810 + $0x30] sm:$0xf]
      %v7824 = vld [vmem:[%s7810 + $0x34] sm:$0xf]
      %v7825 = vld [vmem:[%s7810 + $0x38] sm:$0xf]
      %v7826 = vld [vmem:[%s7810 + $0x3c] sm:$0xf]
      %v7843 = vunpack.c.l.b16 %v7811
      %v7844 = vunpack.c.l.b16 %v7812
      %v7845 = vunpack.c.l.b16 %v7813
      %v7846 = vunpack.c.l.b16 %v7814
      %v7847 = vunpack.c.l.b16 %v7815
      %v7848 = vunpack.c.l.b16 %v7816
      %v7849 = vunpack.c.l.b16 %v7817
      %v7850 = vunpack.c.l.b16 %v7818
      %v7851 = vunpack.c.l.b16 %v7819
      %v7852 = vunpack.c.l.b16 %v7820
      %v7853 = vunpack.c.l.b16 %v7821
      %v7854 = vunpack.c.l.b16 %v7822
      %v7855 = vunpack.c.l.b16 %v7823
      %v7856 = vunpack.c.l.b16 %v7824
      %v7857 = vunpack.c.l.b16 %v7825
      %v7858 = vunpack.c.l.b16 %v7826
      %v7859 = vpack.c.b16 %v7844, %v7843
      %v7860 = vpack.c.b16 %v7846, %v7845
      %v7861 = vpack.c.b16 %v7848, %v7847
      %v7862 = vpack.c.b16 %v7850, %v7849
      %v7863 = vpack.c.b16 %v7852, %v7851
      %v7864 = vpack.c.b16 %v7854, %v7853
      %v7865 = vpack.c.b16 %v7856, %v7855
      %v7866 = vpack.c.b16 %v7858, %v7857
      %7875 = vmatprep.subr.bf16.mxu0 0
      %7876 = vmatpush1.bf16.msra.mxu0 %v7866
      %7877 = vmatprep.subr.bf16.mxu0 0
      %7878 = vmatpush1.bf16.msra.mxu0 %v7865
      %7879 = vmatprep.subr.bf16.mxu0 0
      %7880 = vmatpush1.bf16.msra.mxu0 %v7864
      %7881 = vmatprep.subr.bf16.mxu0 0
      %7882 = vmatpush1.bf16.msra.mxu0 %v7863
      %7883 = vmatprep.subr.bf16.mxu0 0
      %7884 = vmatpush1.bf16.msra.mxu0 %v7862
      %7885 = vmatprep.subr.bf16.mxu0 0
      %7886 = vmatpush1.bf16.msra.mxu0 %v7861
      %7887 = vmatprep.subr.bf16.mxu0 0
      %7888 = vmatpush1.bf16.msra.mxu0 %v7860
      %7889 = vmatprep.subr.bf16.mxu0 0
      %7890 = vmatpush1.bf16.msra.mxu0 %v7859
      %7891 = vmatprep.subr.bf16.mxu0 0
      %7892 = vmatpush2.bf16.msra.mxu0 0
      %7893 = vmatprep.subr.bf16.mxu0 0
      %7894 = vmatpush2.bf16.msra.mxu0 0
      %7895 = vmatprep.subr.bf16.mxu0 0
      %7896 = vmatpush2.bf16.msra.mxu0 0
      %7897 = vmatprep.subr.bf16.mxu0 0
      %7898 = vmatpush2.bf16.msra.mxu0 0
      %7899 = vmatprep.subr.bf16.mxu0 0
      %7900 = vmatpush2.bf16.msra.mxu0 0
      %7901 = vmatprep.subr.bf16.mxu0 0
      %7902 = vmatpush2.bf16.msra.mxu0 0
      %7903 = vmatprep.subr.bf16.mxu0 0
      %7904 = vmatpush2.bf16.msra.mxu0 0
      %7905 = vmatprep.subr.bf16.mxu0 0
      %7906 = vmatpush2.bf16.msra.mxu0 0
      %7907 = vmatprep.mubr.bf16.mxu0 0
      %7908 = vmatmul.mubr.bf16.gmra.mxu0 %v7797
      %v7909 = vpop.f32.mrf.mxu0
      %v7910 = vadd.f32 0.0, %v7909
      %v7911 = vpop.f32.mrf.mxu0
      %v7912 = vpop.f32.mrf.mxu0
      %v7913 = vadd.f32 0.0, %v7912
      %v7914 = vpop.f32.mrf.mxu0
      %7915 = vmatprep.mubr.bf16.mxu0 0
      %7916 = vmatmul.mubr.bf16.gmra.mxu0 %v7798
      %v7917 = vpop.f32.mrf.mxu0
      %v7918 = vadd.f32 0.0, %v7917
      %v7919 = vpop.f32.mrf.mxu0
      %v7920 = vpop.f32.mrf.mxu0
      %v7921 = vadd.f32 0.0, %v7920
      %v7922 = vpop.f32.mrf.mxu0
      %7923 = vmatprep.mubr.bf16.mxu0 0
      %7924 = vmatmul.mubr.bf16.gmra.mxu0 %v7799
      %v7925 = vpop.f32.mrf.mxu0
      %v7926 = vadd.f32 0.0, %v7925
      %v7927 = vpop.f32.mrf.mxu0
      %v7928 = vpop.f32.mrf.mxu0
      %v7929 = vadd.f32 0.0, %v7928
      %v7930 = vpop.f32.mrf.mxu0
      %7931 = vmatprep.mubr.bf16.mxu0 0
      %7932 = vmatmul.mubr.bf16.gmra.mxu0 %v7800
      %v7933 = vpop.f32.mrf.mxu0
      %v7934 = vadd.f32 0.0, %v7933
      %v7935 = vpop.f32.mrf.mxu0
      %v7936 = vpop.f32.mrf.mxu0
      %v7937 = vadd.f32 0.0, %v7936
      %v7938 = vpop.f32.mrf.mxu0
      %7939 = vmatprep.mubr.bf16.mxu0 0
      %7940 = vmatmul.mubr.bf16.gmra.mxu0 %v7801
      %v7941 = vpop.f32.mrf.mxu0
      %v7942 = vadd.f32 0.0, %v7941
      %v7943 = vpop.f32.mrf.mxu0
      %v7944 = vpop.f32.mrf.mxu0
      %v7945 = vadd.f32 0.0, %v7944
      %v7946 = vpop.f32.mrf.mxu0
      %7947 = vmatprep.mubr.bf16.mxu0 0
      %7948 = vmatmul.mubr.bf16.gmra.mxu0 %v7802
      %v7949 = vpop.f32.mrf.mxu0
      %v7950 = vadd.f32 0.0, %v7949
      %v7951 = vpop.f32.mrf.mxu0
      %v7952 = vpop.f32.mrf.mxu0
      %v7953 = vadd.f32 0.0, %v7952
      %v7954 = vpop.f32.mrf.mxu0
      %7955 = vmatprep.mubr.bf16.mxu0 0
      %7956 = vmatmul.mubr.bf16.gmra.mxu0 %v7803
      %v7957 = vpop.f32.mrf.mxu0
      %v7958 = vadd.f32 0.0, %v7957
      %v7959 = vpop.f32.mrf.mxu0
      %v7960 = vpop.f32.mrf.mxu0
      %v7961 = vadd.f32 0.0, %v7960
      %v7962 = vpop.f32.mrf.mxu0
      %7963 = vmatprep.mubr.bf16.mxu0 0
      %7964 = vmatmul.mubr.bf16.gmra.mxu0 %v7804
      %v7965 = vpop.f32.mrf.mxu0
      %v7966 = vadd.f32 0.0, %v7965
      %v7967 = vpop.f32.mrf.mxu0
      %v7968 = vpop.f32.mrf.mxu0
      %v7969 = vadd.f32 0.0, %v7968
      %v7970 = vpop.f32.mrf.mxu0
      %7971 = vmatprep.mubr.bf16.mxu0 0
      %7972 = vmatmul.mubr.bf16.gmra.mxu0 %v7805
      %v7973 = vpop.f32.mrf.mxu0
      %v7974 = vadd.f32 0.0, %v7973
      %v7975 = vpop.f32.mrf.mxu0
      %v7976 = vpop.f32.mrf.mxu0
      %v7977 = vadd.f32 0.0, %v7976
      %v7978 = vpop.f32.mrf.mxu0
      %7979 = vmatprep.mubr.bf16.mxu0 0
      %7980 = vmatmul.mubr.bf16.gmra.mxu0 %v7806
      %v7981 = vpop.f32.mrf.mxu0
      %v7982 = vadd.f32 0.0, %v7981
      %v7983 = vpop.f32.mrf.mxu0
      %v7984 = vpop.f32.mrf.mxu0
      %v7985 = vadd.f32 0.0, %v7984
      %v7986 = vpop.f32.mrf.mxu0
      %7987 = vmatprep.mubr.bf16.mxu0 0
      %7988 = vmatmul.mubr.bf16.gmra.mxu0 %v7807
      %v7989 = vpop.f32.mrf.mxu0
      %v7990 = vadd.f32 0.0, %v7989
      %v7991 = vpop.f32.mrf.mxu0
      %v7992 = vpop.f32.mrf.mxu0
      %v7993 = vadd.f32 0.0, %v7992
      %v7994 = vpop.f32.mrf.mxu0
      %7995 = vmatprep.mubr.bf16.mxu0 0
      %7996 = vmatmul.mubr.bf16.gmra.mxu0 %v7808
      %v7997 = vpop.f32.mrf.mxu0
      %v7998 = vadd.f32 0.0, %v7997
      %v7999 = vpop.f32.mrf.mxu0
      %v8000 = vpop.f32.mrf.mxu0
      %v8001 = vadd.f32 0.0, %v8000
      %v8002 = vpop.f32.mrf.mxu0
      %8003 = vmatprep.mubr.bf16.mxu0 0
      %8004 = vmatmul.mubr.bf16.gmra.mxu0 %v7809
      %v8005 = vpop.f32.mrf.mxu0
      %v8006 = vadd.f32 0.0, %v8005
      %v8007 = vpop.f32.mrf.mxu0
      %v8008 = vpop.f32.mrf.mxu0
      %v8009 = vpop.f32.mrf.mxu0
      %8010 = vdwg.mxu0
      %v8011 = vadd.f32 %v7747, %v7910
      %v8012 = vadd.f32 %v7748, %v7913
      %v8013 = vadd.f32 %v7749, %v7918
      %v8014 = vadd.f32 %v7750, %v7921
      %v8015 = vadd.f32 %v7751, %v7926
      %v8016 = vadd.f32 %v7752, %v7929
      %v8017 = vadd.f32 %v7753, %v7934
      %v8018 = vadd.f32 %v7754, %v7937
      %v8019 = vadd.f32 %v7755, %v7942
      %v8020 = vadd.f32 %v7756, %v7945
      %v8021 = vadd.f32 %v7757, %v7950
      %v8022 = vadd.f32 %v7758, %v7953
      %v8023 = vadd.f32 %v7759, %v7958
      %v8024 = vadd.f32 %v7760, %v7961
      %v8025 = vadd.f32 %v7761, %v7966
      %v8026 = vadd.f32 %v7762, %v7969
      %v8027 = vadd.f32 %v7763, %v7974
      %v8028 = vadd.f32 %v7764, %v7977
      %v8029 = vadd.f32 %v7765, %v7982
      %v8030 = vadd.f32 %v7766, %v7985
      %v8031 = vadd.f32 %v7767, %v7990
      %v8032 = vadd.f32 %v7768, %v7993
      %v8033 = vadd.f32 %v7769, %v7998
      %v8034 = vadd.f32 %v7770, %v8001
      %v8035 = vadd.f32 %v7771, %v8006
      %v8036 = vld [vmem:[%s4] sm:$0x1]
      %v8038 = vlaneseq
      %v8039 = vshrl.u32 %v8038, 7
      %v8040 = vsub.s32 0, %v8039
      %v8041 = vrot.slane %v8036, %v8040
      %v8043 = vadd.f32 %v8011, %v8041
      %v8044 = vadd.f32 %v8012, %v8041
      %v8045 = vadd.f32 %v8013, %v8041
      %v8046 = vadd.f32 %v8014, %v8041
      %v8047 = vadd.f32 %v8015, %v8041
      %v8048 = vadd.f32 %v8016, %v8041
      %v8049 = vadd.f32 %v8017, %v8041
      %v8050 = vadd.f32 %v8018, %v8041
      %v8051 = vadd.f32 %v8019, %v8041
      %v8052 = vadd.f32 %v8020, %v8041
      %v8053 = vadd.f32 %v8021, %v8041
      %v8054 = vadd.f32 %v8022, %v8041
      %v8055 = vadd.f32 %v8023, %v8041
      %v8056 = vadd.f32 %v8024, %v8041
      %v8057 = vadd.f32 %v8025, %v8041
      %v8058 = vadd.f32 %v8026, %v8041
      %v8059 = vadd.f32 %v8027, %v8041
      %v8060 = vadd.f32 %v8028, %v8041
      %v8061 = vadd.f32 %v8029, %v8041
      %v8062 = vadd.f32 %v8030, %v8041
      %v8063 = vadd.f32 %v8031, %v8041
      %v8064 = vadd.f32 %v8032, %v8041
      %v8065 = vadd.f32 %v8033, %v8041
      %v8066 = vadd.f32 %v8034, %v8041
      %v8067 = vadd.f32 %v8035, %v8041
      %v8068 = vmax.f32 %v8043, 0.0
      %v8069 = vmax.f32 %v8044, 0.0
      %v8070 = vmax.f32 %v8045, 0.0
      %v8071 = vmax.f32 %v8046, 0.0
      %v8072 = vmax.f32 %v8047, 0.0
      %v8073 = vmax.f32 %v8048, 0.0
      %v8074 = vmax.f32 %v8049, 0.0
      %v8075 = vmax.f32 %v8050, 0.0
      %v8076 = vmax.f32 %v8051, 0.0
      %v8077 = vmax.f32 %v8052, 0.0
      %v8078 = vmax.f32 %v8053, 0.0
      %v8079 = vmax.f32 %v8054, 0.0
      %v8080 = vmax.f32 %v8055, 0.0
      %v8081 = vmax.f32 %v8056, 0.0
      %v8082 = vmax.f32 %v8057, 0.0
      %v8083 = vmax.f32 %v8058, 0.0
      %v8084 = vmax.f32 %v8059, 0.0
      %v8085 = vmax.f32 %v8060, 0.0
      %v8086 = vmax.f32 %v8061, 0.0
      %v8087 = vmax.f32 %v8062, 0.0
      %v8088 = vmax.f32 %v8063, 0.0
      %v8089 = vmax.f32 %v8064, 0.0
      %v8090 = vmax.f32 %v8065, 0.0
      %v8091 = vmax.f32 %v8066, 0.0
      %v8092 = vmax.f32 %v8067, 0.0
      %8093 = vst [vmem:[#allocation3] sm:$0xff] %v8068
      %8094 = vst [vmem:[#allocation3 + $0x8] sm:$0xff] %v8069
      %8095 = vst [vmem:[#allocation3 + $0x10] sm:$0xff] %v8070
      %8096 = vst [vmem:[#allocation3 + $0x18] sm:$0xff] %v8071
      %8097 = vst [vmem:[#allocation3 + $0x20] sm:$0xff] %v8072
      %8098 = vst [vmem:[#allocation3 + $0x28] sm:$0xff] %v8073
      %8099 = vst [vmem:[#allocation3 + $0x30] sm:$0xff] %v8074
      %8100 = vst [vmem:[#allocation3 + $0x38] sm:$0xff] %v8075
      %8101 = vst [vmem:[#allocation3 + $0x40] sm:$0xff] %v8076
      %8102 = vst [vmem:[#allocation3 + $0x48] sm:$0xff] %v8077
      %8103 = vst [vmem:[#allocation3 + $0x50] sm:$0xff] %v8078
      %8104 = vst [vmem:[#allocation3 + $0x58] sm:$0xff] %v8079
      %8105 = vst [vmem:[#allocation3 + $0x60] sm:$0xff] %v8080
      %8106 = vst [vmem:[#allocation3 + $0x68] sm:$0xff] %v8081
      %8107 = vst [vmem:[#allocation3 + $0x70] sm:$0xff] %v8082
      %8108 = vst [vmem:[#allocation3 + $0x78] sm:$0xff] %v8083
      %8109 = vst [vmem:[#allocation3 + $0x80] sm:$0xff] %v8084
      %8110 = vst [vmem:[#allocation3 + $0x88] sm:$0xff] %v8085
      %8111 = vst [vmem:[#allocation3 + $0x90] sm:$0xff] %v8086
      %8112 = vst [vmem:[#allocation3 + $0x98] sm:$0xff] %v8087
      %8113 = vst [vmem:[#allocation3 + $0xa0] sm:$0xff] %v8088
      %8114 = vst [vmem:[#allocation3 + $0xa8] sm:$0xff] %v8089
      %8115 = vst [vmem:[#allocation3 + $0xb0] sm:$0xff] %v8090
      %8116 = vst [vmem:[#allocation3 + $0xb8] sm:$0xff] %v8091
      %8117 = vst [vmem:[#allocation3 + $0xc0] sm:$0xf] %v8092
      %8118 = vst [vmem:[%s224] sm:$0xf] 0
      %8119 = vst [vmem:[%s224 + $0x4] sm:$0xf] 0
      %8120 = vst [vmem:[%s224 + $0x8] sm:$0xf] 0
      %8121 = vst [vmem:[%s224 + $0xc] sm:$0xf] 0
      %v8122 = vld [vmem:[#allocation3] sm:$0x3]
      %v8123 = vld [vmem:[#allocation3 + $0xe] sm:$0x3]
      %v8124 = vmax.f32 %v8122, %v8123
      %vm8125 = vcmask 1041408
      %v8126 = vsel %vm8125, %v8124, -inf
      %v8127 = vrot.slane %v8126, 4
      %v8128 = vmax.f32 %v8126, %v8127
      %v8129 = vrot.slane %v8128, 2
      %v8130 = vmax.f32 %v8128, %v8129
      %v8131 = vrot.slane %v8130, 1
      %v8132 = vmax.f32 %v8130, %v8131
      %v8133 = vpack.c.bf16 %v8132, %v8132
      %vm8134 = vcmask 1040384
      %vm8135 = vsmask.f32 256
      %vm8136 = vmand %vm8134, %vm8135
      %v8137 = vld [vmem:[%s224] sm:$0x1]
      %v8138 = vsel %vm8136, %v8133, %v8137
      %8139 = vst [vmem:[%s224] sm:$0x1] %v8138
      %v8140 = vld [vmem:[#allocation3 + $0x2] sm:$0x3]
      %v8141 = vld [vmem:[#allocation3 + $0x10] sm:$0x3]
      %v8142 = vmax.f32 %v8140, %v8141
      %v8143 = vsel %vm8125, %v8142, -inf
      %v8144 = vrot.slane %v8143, 4
      %v8145 = vmax.f32 %v8143, %v8144
      %v8146 = vrot.slane %v8145, 2
      %v8147 = vmax.f32 %v8145, %v8146
      %v8148 = vrot.slane %v8147, 1
      %v8149 = vmax.f32 %v8147, %v8148
      %v8150 = vpack.c.bf16 %v8149, %v8149
      %vm8151 = vsmask.f32 7938
      %vm8152 = vmand %vm8134, %vm8151
      %v8153 = vld [vmem:[%s224] sm:$0x1]
      %v8154 = vsel %vm8152, %v8150, %v8153
      %8155 = vst [vmem:[%s224] sm:$0x1] %v8154
      %v8156 = vld [vmem:[#allocation3 + $0x4] sm:$0x3]
      %v8157 = vld [vmem:[#allocation3 + $0x12] sm:$0x3]
      %v8158 = vmax.f32 %v8156, %v8157
      %v8159 = vsel %vm8125, %v8158, -inf
      %v8160 = vrot.slane %v8159, 4
      %v8161 = vmax.f32 %v8159, %v8160
      %v8162 = vrot.slane %v8161, 2
      %v8163 = vmax.f32 %v8161, %v8162
      %v8164 = vrot.slane %v8163, 1
      %v8165 = vmax.f32 %v8163, %v8164
      %v8166 = vpack.c.bf16 %v8165, %v8165
      %vm8167 = vcmask 1041409
      %vm8168 = vsmask.f32 1280
      %vm8169 = vmand %vm8167, %vm8168
      %v8170 = vld [vmem:[%s224] sm:$0x2]
      %v8171 = vsel %vm8169, %v8166, %v8170
      %8172 = vst [vmem:[%s224] sm:$0x2] %v8171
      %v8173 = vld [vmem:[#allocation3 + $0x6] sm:$0x3]
      %v8174 = vld [vmem:[#allocation3 + $0x14] sm:$0x3]
      %v8175 = vmax.f32 %v8173, %v8174
      %v8176 = vsel %vm8125, %v8175, -inf
      %v8177 = vrot.slane %v8176, 4
      %v8178 = vmax.f32 %v8176, %v8177
      %v8179 = vrot.slane %v8178, 2
      %v8180 = vmax.f32 %v8178, %v8179
      %v8181 = vrot.slane %v8180, 1
      %v8182 = vmax.f32 %v8180, %v8181
      %v8183 = vpack.c.bf16 %v8182, %v8182
      %vm8184 = vsmask.f32 7942
      %vm8185 = vmand %vm8167, %vm8184
      %v8186 = vld [vmem:[%s224] sm:$0x2]
      %v8187 = vsel %vm8185, %v8183, %v8186
      %8188 = vst [vmem:[%s224] sm:$0x2] %v8187
      %v8189 = vld [vmem:[#allocation3 + $0x8] sm:$0x3]
      %v8190 = vld [vmem:[#allocation3 + $0x16] sm:$0x3]
      %v8191 = vmax.f32 %v8189, %v8190
      %v8192 = vsel %vm8125, %v8191, -inf
      %v8193 = vrot.slane %v8192, 4
      %v8194 = vmax.f32 %v8192, %v8193
      %v8195 = vrot.slane %v8194, 2
      %v8196 = vmax.f32 %v8194, %v8195
      %v8197 = vrot.slane %v8196, 1
      %v8198 = vmax.f32 %v8196, %v8197
      %v8199 = vpack.c.bf16 %v8198, %v8198
      %vm8200 = vcmask 1042434
      %vm8201 = vsmask.f32 2304
      %vm8202 = vmand %vm8200, %vm8201
      %v8203 = vld [vmem:[%s224] sm:$0x4]
      %v8204 = vsel %vm8202, %v8199, %v8203
      %8205 = vst [vmem:[%s224] sm:$0x4] %v8204
      %v8206 = vld [vmem:[#allocation3 + $0x1c] sm:$0x3]
      %v8207 = vld [vmem:[#allocation3 + $0x2a] sm:$0x3]
      %v8208 = vmax.f32 %v8206, %v8207
      %v8209 = vsel %vm8125, %v8208, -inf
      %v8210 = vrot.slane %v8209, 4
      %v8211 = vmax.f32 %v8209, %v8210
      %v8212 = vrot.slane %v8211, 2
      %v8213 = vmax.f32 %v8211, %v8212
      %v8214 = vrot.slane %v8213, 1
      %v8215 = vmax.f32 %v8213, %v8214
      %v8216 = vpack.c.bf16 %v8215, %v8215
      %vm8217 = vsmask.f32 7946
      %vm8218 = vmand %vm8200, %vm8217
      %v8219 = vld [vmem:[%s224] sm:$0x4]
      %v8220 = vsel %vm8218, %v8216, %v8219
      %8221 = vst [vmem:[%s224] sm:$0x4] %v8220
      %v8222 = vld [vmem:[#allocation3 + $0x1e] sm:$0x3]
      %v8223 = vld [vmem:[#allocation3 + $0x2c] sm:$0x3]
      %v8224 = vmax.f32 %v8222, %v8223
      %v8225 = vsel %vm8125, %v8224, -inf
      %v8226 = vrot.slane %v8225, 4
      %v8227 = vmax.f32 %v8225, %v8226
      %v8228 = vrot.slane %v8227, 2
      %v8229 = vmax.f32 %v8227, %v8228
      %v8230 = vrot.slane %v8229, 1
      %v8231 = vmax.f32 %v8229, %v8230
      %v8232 = vpack.c.bf16 %v8231, %v8231
      %vm8233 = vcmask 1043459
      %vm8234 = vsmask.f32 3328
      %vm8235 = vmand %vm8233, %vm8234
      %v8236 = vld [vmem:[%s224] sm:$0x8]
      %v8237 = vsel %vm8235, %v8232, %v8236
      %8238 = vst [vmem:[%s224] sm:$0x8] %v8237
      %v8239 = vld [vmem:[#allocation3 + $0x20] sm:$0x3]
      %v8240 = vld [vmem:[#allocation3 + $0x2e] sm:$0x3]
      %v8241 = vmax.f32 %v8239, %v8240
      %v8242 = vsel %vm8125, %v8241, -inf
      %v8243 = vrot.slane %v8242, 4
      %v8244 = vmax.f32 %v8242, %v8243
      %v8245 = vrot.slane %v8244, 2
      %v8246 = vmax.f32 %v8244, %v8245
      %v8247 = vrot.slane %v8246, 1
      %v8248 = vmax.f32 %v8246, %v8247
      %v8249 = vpack.c.bf16 %v8248, %v8248
      %vm8250 = vsmask.f32 7950
      %vm8251 = vmand %vm8233, %vm8250
      %v8252 = vld [vmem:[%s224] sm:$0x8]
      %v8253 = vsel %vm8251, %v8249, %v8252
      %8254 = vst [vmem:[%s224] sm:$0x8] %v8253
      %v8255 = vld [vmem:[#allocation3 + $0x22] sm:$0x3]
      %v8256 = vld [vmem:[#allocation3 + $0x30] sm:$0x3]
      %v8257 = vmax.f32 %v8255, %v8256
      %v8258 = vsel %vm8125, %v8257, -inf
      %v8259 = vrot.slane %v8258, 4
      %v8260 = vmax.f32 %v8258, %v8259
      %v8261 = vrot.slane %v8260, 2
      %v8262 = vmax.f32 %v8260, %v8261
      %v8263 = vrot.slane %v8262, 1
      %v8264 = vmax.f32 %v8262, %v8263
      %v8265 = vpack.c.bf16 %v8264, %v8264
      %v8266 = vld [vmem:[%s224 + $0x4] sm:$0x1]
      %v8267 = vsel %vm8136, %v8265, %v8266
      %8268 = vst [vmem:[%s224 + $0x4] sm:$0x1] %v8267
      %v8269 = vld [vmem:[#allocation3 + $0x24] sm:$0x3]
      %v8270 = vld [vmem:[#allocation3 + $0x32] sm:$0x3]
      %v8271 = vmax.f32 %v8269, %v8270
      %v8272 = vsel %vm8125, %v8271, -inf
      %v8273 = vrot.slane %v8272, 4
      %v8274 = vmax.f32 %v8272, %v8273
      %v8275 = vrot.slane %v8274, 2
      %v8276 = vmax.f32 %v8274, %v8275
      %v8277 = vrot.slane %v8276, 1
      %v8278 = vmax.f32 %v8276, %v8277
      %v8279 = vpack.c.bf16 %v8278, %v8278
      %v8280 = vld [vmem:[%s224 + $0x4] sm:$0x1]
      %v8281 = vsel %vm8152, %v8279, %v8280
      %8282 = vst [vmem:[%s224 + $0x4] sm:$0x1] %v8281
      %v8283 = vld [vmem:[#allocation3 + $0x38] sm:$0x3]
      %v8284 = vld [vmem:[#allocation3 + $0x46] sm:$0x3]
      %v8285 = vmax.f32 %v8283, %v8284
      %v8286 = vsel %vm8125, %v8285, -inf
      %v8287 = vrot.slane %v8286, 4
      %v8288 = vmax.f32 %v8286, %v8287
      %v8289 = vrot.slane %v8288, 2
      %v8290 = vmax.f32 %v8288, %v8289
      %v8291 = vrot.slane %v8290, 1
      %v8292 = vmax.f32 %v8290, %v8291
      %v8293 = vpack.c.bf16 %v8292, %v8292
      %v8294 = vld [vmem:[%s224 + $0x4] sm:$0x2]
      %v8295 = vsel %vm8169, %v8293, %v8294
      %8296 = vst [vmem:[%s224 + $0x4] sm:$0x2] %v8295
      %v8297 = vld [vmem:[#allocation3 + $0x3a] sm:$0x3]
      %v8298 = vld [vmem:[#allocation3 + $0x48] sm:$0x3]
      %v8299 = vmax.f32 %v8297, %v8298
      %v8300 = vsel %vm8125, %v8299, -inf
      %v8301 = vrot.slane %v8300, 4
      %v8302 = vmax.f32 %v8300, %v8301
      %v8303 = vrot.slane %v8302, 2
      %v8304 = vmax.f32 %v8302, %v8303
      %v8305 = vrot.slane %v8304, 1
      %v8306 = vmax.f32 %v8304, %v8305
      %v8307 = vpack.c.bf16 %v8306, %v8306
      %v8308 = vld [vmem:[%s224 + $0x4] sm:$0x2]
      %v8309 = vsel %vm8185, %v8307, %v8308
      %8310 = vst [vmem:[%s224 + $0x4] sm:$0x2] %v8309
      %v8311 = vld [vmem:[#allocation3 + $0x3c] sm:$0x3]
      %v8312 = vld [vmem:[#allocation3 + $0x4a] sm:$0x3]
      %v8313 = vmax.f32 %v8311, %v8312
      %v8314 = vsel %vm8125, %v8313, -inf
      %v8315 = vrot.slane %v8314, 4
      %v8316 = vmax.f32 %v8314, %v8315
      %v8317 = vrot.slane %v8316, 2
      %v8318 = vmax.f32 %v8316, %v8317
      %v8319 = vrot.slane %v8318, 1
      %v8320 = vmax.f32 %v8318, %v8319
      %v8321 = vpack.c.bf16 %v8320, %v8320
      %v8322 = vld [vmem:[%s224 + $0x4] sm:$0x4]
      %v8323 = vsel %vm8202, %v8321, %v8322
      %8324 = vst [vmem:[%s224 + $0x4] sm:$0x4] %v8323
      %v8325 = vld [vmem:[#allocation3 + $0x3e] sm:$0x3]
      %v8326 = vld [vmem:[#allocation3 + $0x4c] sm:$0x3]
      %v8327 = vmax.f32 %v8325, %v8326
      %v8328 = vsel %vm8125, %v8327, -inf
      %v8329 = vrot.slane %v8328, 4
      %v8330 = vmax.f32 %v8328, %v8329
      %v8331 = vrot.slane %v8330, 2
      %v8332 = vmax.f32 %v8330, %v8331
      %v8333 = vrot.slane %v8332, 1
      %v8334 = vmax.f32 %v8332, %v8333
      %v8335 = vpack.c.bf16 %v8334, %v8334
      %v8336 = vld [vmem:[%s224 + $0x4] sm:$0x4]
      %v8337 = vsel %vm8218, %v8335, %v8336
      %8338 = vst [vmem:[%s224 + $0x4] sm:$0x4] %v8337
      %v8339 = vld [vmem:[#allocation3 + $0x40] sm:$0x3]
      %v8340 = vld [vmem:[#allocation3 + $0x4e] sm:$0x3]
      %v8341 = vmax.f32 %v8339, %v8340
      %v8342 = vsel %vm8125, %v8341, -inf
      %v8343 = vrot.slane %v8342, 4
      %v8344 = vmax.f32 %v8342, %v8343
      %v8345 = vrot.slane %v8344, 2
      %v8346 = vmax.f32 %v8344, %v8345
      %v8347 = vrot.slane %v8346, 1
      %v8348 = vmax.f32 %v8346, %v8347
      %v8349 = vpack.c.bf16 %v8348, %v8348
      %v8350 = vld [vmem:[%s224 + $0x4] sm:$0x8]
      %v8351 = vsel %vm8235, %v8349, %v8350
      %8352 = vst [vmem:[%s224 + $0x4] sm:$0x8] %v8351
      %v8353 = vld [vmem:[#allocation3 + $0x54] sm:$0x3]
      %v8354 = vld [vmem:[#allocation3 + $0x62] sm:$0x3]
      %v8355 = vmax.f32 %v8353, %v8354
      %v8356 = vsel %vm8125, %v8355, -inf
      %v8357 = vrot.slane %v8356, 4
      %v8358 = vmax.f32 %v8356, %v8357
      %v8359 = vrot.slane %v8358, 2
      %v8360 = vmax.f32 %v8358, %v8359
      %v8361 = vrot.slane %v8360, 1
      %v8362 = vmax.f32 %v8360, %v8361
      %v8363 = vpack.c.bf16 %v8362, %v8362
      %v8364 = vld [vmem:[%s224 + $0x4] sm:$0x8]
      %v8365 = vsel %vm8251, %v8363, %v8364
      %8366 = vst [vmem:[%s224 + $0x4] sm:$0x8] %v8365
      %v8367 = vld [vmem:[#allocation3 + $0x56] sm:$0x3]
      %v8368 = vld [vmem:[#allocation3 + $0x64] sm:$0x3]
      %v8369 = vmax.f32 %v8367, %v8368
      %v8370 = vsel %vm8125, %v8369, -inf
      %v8371 = vrot.slane %v8370, 4
      %v8372 = vmax.f32 %v8370, %v8371
      %v8373 = vrot.slane %v8372, 2
      %v8374 = vmax.f32 %v8372, %v8373
      %v8375 = vrot.slane %v8374, 1
      %v8376 = vmax.f32 %v8374, %v8375
      %v8377 = vpack.c.bf16 %v8376, %v8376
      %v8378 = vld [vmem:[%s224 + $0x8] sm:$0x1]
      %v8379 = vsel %vm8136, %v8377, %v8378
      %8380 = vst [vmem:[%s224 + $0x8] sm:$0x1] %v8379
      %v8381 = vld [vmem:[#allocation3 + $0x58] sm:$0x3]
      %v8382 = vld [vmem:[#allocation3 + $0x66] sm:$0x3]
      %v8383 = vmax.f32 %v8381, %v8382
      %v8384 = vsel %vm8125, %v8383, -inf
      %v8385 = vrot.slane %v8384, 4
      %v8386 = vmax.f32 %v8384, %v8385
      %v8387 = vrot.slane %v8386, 2
      %v8388 = vmax.f32 %v8386, %v8387
      %v8389 = vrot.slane %v8388, 1
      %v8390 = vmax.f32 %v8388, %v8389
      %v8391 = vpack.c.bf16 %v8390, %v8390
      %v8392 = vld [vmem:[%s224 + $0x8] sm:$0x1]
      %v8393 = vsel %vm8152, %v8391, %v8392
      %8394 = vst [vmem:[%s224 + $0x8] sm:$0x1] %v8393
      %v8395 = vld [vmem:[#allocation3 + $0x5a] sm:$0x3]
      %v8396 = vld [vmem:[#allocation3 + $0x68] sm:$0x3]
      %v8397 = vmax.f32 %v8395, %v8396
      %v8398 = vsel %vm8125, %v8397, -inf
      %v8399 = vrot.slane %v8398, 4
      %v8400 = vmax.f32 %v8398, %v8399
      %v8401 = vrot.slane %v8400, 2
      %v8402 = vmax.f32 %v8400, %v8401
      %v8403 = vrot.slane %v8402, 1
      %v8404 = vmax.f32 %v8402, %v8403
      %v8405 = vpack.c.bf16 %v8404, %v8404
      %v8406 = vld [vmem:[%s224 + $0x8] sm:$0x2]
      %v8407 = vsel %vm8169, %v8405, %v8406
      %8408 = vst [vmem:[%s224 + $0x8] sm:$0x2] %v8407
      %v8409 = vld [vmem:[#allocation3 + $0x5c] sm:$0x3]
      %v8410 = vld [vmem:[#allocation3 + $0x6a] sm:$0x3]
      %v8411 = vmax.f32 %v8409, %v8410
      %v8412 = vsel %vm8125, %v8411, -inf
      %v8413 = vrot.slane %v8412, 4
      %v8414 = vmax.f32 %v8412, %v8413
      %v8415 = vrot.slane %v8414, 2
      %v8416 = vmax.f32 %v8414, %v8415
      %v8417 = vrot.slane %v8416, 1
      %v8418 = vmax.f32 %v8416, %v8417
      %v8419 = vpack.c.bf16 %v8418, %v8418
      %v8420 = vld [vmem:[%s224 + $0x8] sm:$0x2]
      %v8421 = vsel %vm8185, %v8419, %v8420
      %8422 = vst [vmem:[%s224 + $0x8] sm:$0x2] %v8421
      %v8423 = vld [vmem:[#allocation3 + $0x70] sm:$0x3]
      %v8424 = vld [vmem:[#allocation3 + $0x7e] sm:$0x3]
      %v8425 = vmax.f32 %v8423, %v8424
      %v8426 = vsel %vm8125, %v8425, -inf
      %v8427 = vrot.slane %v8426, 4
      %v8428 = vmax.f32 %v8426, %v8427
      %v8429 = vrot.slane %v8428, 2
      %v8430 = vmax.f32 %v8428, %v8429
      %v8431 = vrot.slane %v8430, 1
      %v8432 = vmax.f32 %v8430, %v8431
      %v8433 = vpack.c.bf16 %v8432, %v8432
      %v8434 = vld [vmem:[%s224 + $0x8] sm:$0x4]
      %v8435 = vsel %vm8202, %v8433, %v8434
      %8436 = vst [vmem:[%s224 + $0x8] sm:$0x4] %v8435
      %v8437 = vld [vmem:[#allocation3 + $0x72] sm:$0x3]
      %v8438 = vld [vmem:[#allocation3 + $0x80] sm:$0x3]
      %v8439 = vmax.f32 %v8437, %v8438
      %v8440 = vsel %vm8125, %v8439, -inf
      %v8441 = vrot.slane %v8440, 4
      %v8442 = vmax.f32 %v8440, %v8441
      %v8443 = vrot.slane %v8442, 2
      %v8444 = vmax.f32 %v8442, %v8443
      %v8445 = vrot.slane %v8444, 1
      %v8446 = vmax.f32 %v8444, %v8445
      %v8447 = vpack.c.bf16 %v8446, %v8446
      %v8448 = vld [vmem:[%s224 + $0x8] sm:$0x4]
      %v8449 = vsel %vm8218, %v8447, %v8448
      %8450 = vst [vmem:[%s224 + $0x8] sm:$0x4] %v8449
      %v8451 = vld [vmem:[#allocation3 + $0x74] sm:$0x3]
      %v8452 = vld [vmem:[#allocation3 + $0x82] sm:$0x3]
      %v8453 = vmax.f32 %v8451, %v8452
      %v8454 = vsel %vm8125, %v8453, -inf
      %v8455 = vrot.slane %v8454, 4
      %v8456 = vmax.f32 %v8454, %v8455
      %v8457 = vrot.slane %v8456, 2
      %v8458 = vmax.f32 %v8456, %v8457
      %v8459 = vrot.slane %v8458, 1
      %v8460 = vmax.f32 %v8458, %v8459
      %v8461 = vpack.c.bf16 %v8460, %v8460
      %v8462 = vld [vmem:[%s224 + $0x8] sm:$0x8]
      %v8463 = vsel %vm8235, %v8461, %v8462
      %8464 = vst [vmem:[%s224 + $0x8] sm:$0x8] %v8463
      %v8465 = vld [vmem:[#allocation3 + $0x76] sm:$0x3]
      %v8466 = vld [vmem:[#allocation3 + $0x84] sm:$0x3]
      %v8467 = vmax.f32 %v8465, %v8466
      %v8468 = vsel %vm8125, %v8467, -inf
      %v8469 = vrot.slane %v8468, 4
      %v8470 = vmax.f32 %v8468, %v8469
      %v8471 = vrot.slane %v8470, 2
      %v8472 = vmax.f32 %v8470, %v8471
      %v8473 = vrot.slane %v8472, 1
      %v8474 = vmax.f32 %v8472, %v8473
      %v8475 = vpack.c.bf16 %v8474, %v8474
      %v8476 = vld [vmem:[%s224 + $0x8] sm:$0x8]
      %v8477 = vsel %vm8251, %v8475, %v8476
      %8478 = vst [vmem:[%s224 + $0x8] sm:$0x8] %v8477
      %v8479 = vld [vmem:[#allocation3 + $0x78] sm:$0x3]
      %v8480 = vld [vmem:[#allocation3 + $0x86] sm:$0x3]
      %v8481 = vmax.f32 %v8479, %v8480
      %v8482 = vsel %vm8125, %v8481, -inf
      %v8483 = vrot.slane %v8482, 4
      %v8484 = vmax.f32 %v8482, %v8483
      %v8485 = vrot.slane %v8484, 2
      %v8486 = vmax.f32 %v8484, %v8485
      %v8487 = vrot.slane %v8486, 1
      %v8488 = vmax.f32 %v8486, %v8487
      %v8489 = vpack.c.bf16 %v8488, %v8488
      %v8490 = vld [vmem:[%s224 + $0xc] sm:$0x1]
      %v8491 = vsel %vm8136, %v8489, %v8490
      %8492 = vst [vmem:[%s224 + $0xc] sm:$0x1] %v8491
      %p8493 = scmp.lt.s32.totalorder %s16, 1
      %s8494 = scalar_select %p8493, %s16, 1
      %s8495 = smul.addr %s8494, 4
      %s8496 = smul.addr %s8495, 4
      %s8497 = scalar_lea.vmem %s5, %s8496
      // Predicated region
      $region41: #{net_forward_pallas.2} parent=39 // pred_check
        %p8498 = pneg %p144
      $region42: #{net_forward_pallas.2} parent=39 // pred_check_branch
        %8500 = sbr.rel (%p8498) target = $region44
      $region43: #{net_forward_pallas.2} parent=39 // pred_region
        _
      $region44: #{net_forward_pallas.2} parent=39 // pred_fallthru
        _
    $region40: #{net_forward_pallas.2} parent=5 // pred_fallthru
      _
    %p8501 = scmp.le.s32.totalorder 2, %s11
    // Predicated region
    $region45: #{net_forward_pallas.2} parent=5 // pred_check
      %p8502 = pneg %p8501
    $region46: #{net_forward_pallas.2} parent=5 // pred_check_branch
      %8504 = sbr.rel (%p8502) target = $region48
    $region47: #{net_forward_pallas.2} parent=5 // pred_region
      %s8505 = ssub.s32 %s11, 2
      // Predicated region
      $region49: #{net_forward_pallas.2} parent=47 // pred_check
        %p8506 = pneg %p150
      $region50: #{net_forward_pallas.2} parent=47 // pred_check_branch
        %8508 = sbr.rel (%p8506) target = $region52
      $region51: #{net_forward_pallas.2} parent=47 // pred_region
        %p8509 = scmp.lt.s32.totalorder %s17, 1
        %s8510 = scalar_select %p8509, %s17, 1
        %s8511 = smul.addr %s8510, 4
        %s8512 = smul.addr %s8511, 4
        %s8513 = scalar_lea.vmem %s5, %s8512
      $region52: #{net_forward_pallas.2} parent=47 // pred_fallthru
        _
    $region48: #{net_forward_pallas.2} parent=5 // pred_fallthru
      _
  $region6: #{net_forward_pallas.2} parent=0 // loop_footer
    %s15 = sadd.s32 1, %s11
  $region7: #{net_forward_pallas.2} parent=0 // loop_footer_branch
    %10 = sbr.rel target = $region3
  $region8: #{net_forward_pallas.2} parent=0 // loop_exit
    _

</llo_original>
